<compile_context>
chip_gen: v6e
topology: v6e:2x2x1
jax: 0.10.0
libtpu: 0.0.40
codegen_flags: <defaults>
</compile_context>

<pallas_src>
import functools
import math

import jax
import jax.numpy as jnp
from jax.experimental import pallas as pl
from jax.experimental.pallas import tpu as pltpu

EPS = 1e-5  # PyTorch BatchNorm3d default eps


def _round_up(n, m):
    return ((n + m - 1) // m) * m


# ---------------------------------------------------------------------------
# Kernel 1: fused (patches @ W) * bn_scale + bn_shift, optional activation,
#           optional residual add (+ relu).  Covers every conv in the net.
# ---------------------------------------------------------------------------
def _mm_affine_act_kernel(x_ref, w_ref, s_ref, b_ref, o_ref, *, act):
    y = jnp.dot(x_ref[...], w_ref[...], preferred_element_type=jnp.float32)
    y = y * s_ref[...] + b_ref[...]
    if act == "relu":
        y = jnp.maximum(y, 0.0)
    elif act == "tanh":
        y = jnp.tanh(y)
    o_ref[...] = y


def _mm_affine_res_relu_kernel(x_ref, w_ref, s_ref, b_ref, r_ref, o_ref):
    y = jnp.dot(x_ref[...], w_ref[...], preferred_element_type=jnp.float32)
    y = y * s_ref[...] + b_ref[...] + r_ref[...]
    o_ref[...] = jnp.maximum(y, 0.0)


def fused_matmul_bn_act(x, w, scale, shift, act=None, residual=None, tm=256):
    """x: (N, K) patches, w: (K, Cout).  Returns (N, Cout) float32."""
    N, K = x.shape
    Cout = w.shape[1]
    tm = min(tm, _round_up(N, 8))          # row tile, multiple of 8 sublanes
    Np = _round_up(N, tm)
    if Np != N:
        x = jnp.pad(x, ((0, Np - N), (0, 0)))
        if residual is not None:
            residual = jnp.pad(residual, ((0, Np - N), (0, 0)))

    row_x = pl.BlockSpec((tm, K), lambda i: (i, 0))
    row_o = pl.BlockSpec((tm, Cout), lambda i: (i, 0))
    resident = lambda shape: pl.BlockSpec(shape, lambda i: (0, 0))

    scale2 = scale.reshape(1, Cout).astype(jnp.float32)
    shift2 = shift.reshape(1, Cout).astype(jnp.float32)

    if residual is None:
        kernel = functools.partial(_mm_affine_act_kernel, act=act)
        in_specs = [row_x, resident((K, Cout)), resident((1, Cout)),
                    resident((1, Cout))]
        args = (x, w, scale2, shift2)
    else:
        kernel = _mm_affine_res_relu_kernel
        in_specs = [row_x, resident((K, Cout)), resident((1, Cout)),
                    resident((1, Cout)), row_o]
        args = (x, w, scale2, shift2, residual)

    out = pl.pallas_call(
        kernel,
        grid=(Np // tm,),
        in_specs=in_specs,
        out_specs=row_o,
        out_shape=jax.ShapeDtypeStruct((Np, Cout), jnp.float32),
        compiler_params=pltpu.CompilerParams(
            dimension_semantics=("parallel",)),
    )(*args)
    return out[:N]


# ---------------------------------------------------------------------------
# Kernel 2: MaxPool2d(kernel=3, stride=2, padding=1) as a max over 9 taps.
# ---------------------------------------------------------------------------
def _max_taps_kernel(x_ref, o_ref):
    o_ref[...] = jnp.max(x_ref[...], axis=0)


def maxpool2d_3x3_s2_p1(x):
    """x: (B, D, H, W, C) -> (B, D, OH, OW, C)."""
    B, D, H, W, C = x.shape
    OH = (H + 2 - 3) // 2 + 1
    OW = (W + 2 - 3) // 2 + 1
    neg = jnp.finfo(jnp.float32).min
    xp = jnp.pad(x, ((0, 0), (0, 0), (1, 1), (1, 1), (0, 0)),
                 constant_values=neg)
    taps = [xp[:, :, ky:ky + 2 * OH:2, kx:kx + 2 * OW:2, :]
            for ky in range(3) for kx in range(3)]
    t = jnp.stack(taps, axis=0).reshape(9, B * D * OH * OW, C)

    N = B * D * OH * OW
    tm = min(256, _round_up(N, 8))
    Np = _round_up(N, tm)
    if Np != N:
        t = jnp.pad(t, ((0, 0), (0, Np - N), (0, 0)), constant_values=neg)

    out = pl.pallas_call(
        _max_taps_kernel,
        grid=(Np // tm,),
        in_specs=[pl.BlockSpec((9, tm, C), lambda i: (0, i, 0))],
        out_specs=pl.BlockSpec((tm, C), lambda i: (i, 0)),
        out_shape=jax.ShapeDtypeStruct((Np, C), jnp.float32),
        compiler_params=pltpu.CompilerParams(
            dimension_semantics=("parallel",)),
    )(t)
    return out[:N].reshape(B, D, OH, OW, C)


# ---------------------------------------------------------------------------
# Kernel 3: tail = conv5(1x1x1)+bias+bn5+relu, adaptive avg pool, relu.
#           Global average pool expressed as (B, B*P) @ (B*P, Cout) matmul.
# ---------------------------------------------------------------------------
def _tail_kernel(x_ref, w_ref, s_ref, b_ref, avg_ref, o_ref):
    y = jnp.dot(x_ref[...], w_ref[...], preferred_element_type=jnp.float32)
    y = jnp.maximum(y * s_ref[...] + b_ref[...], 0.0)        # conv5+bn5+relu
    pooled = jnp.dot(avg_ref[...], y, preferred_element_type=jnp.float32)
    o_ref[...] = jnp.maximum(pooled, 0.0)                    # avgpool + relu


def tail(x, cp):
    B, D, H, W, C = x.shape
    P = D * H * W
    x2 = x.reshape(B * P, C)
    Cout = cp["w"].shape[0]
    wm = cp["w"].reshape(Cout, C).T                           # (C, Cout)
    scale = cp["gamma"] / jnp.sqrt(cp["var"] + EPS)
    bias = cp.get("b", jnp.zeros((Cout,), jnp.float32))
    shift = cp["beta"] + (bias - cp["mean"]) * scale
    avg = jnp.kron(jnp.eye(B, dtype=jnp.float32),
                   jnp.full((1, P), 1.0 / P, jnp.float32))    # (B, B*P)
    vmem = pl.BlockSpec(memory_space=pltpu.MemorySpace.VMEM)
    return pl.pallas_call(
        _tail_kernel,
        in_specs=[vmem] * 5,
        out_specs=vmem,
        out_shape=jax.ShapeDtypeStruct((B, Cout), jnp.float32),
    )(x2, wm, scale.reshape(1, Cout), shift.reshape(1, Cout), avg)


# ---------------------------------------------------------------------------
# Conv wrappers (im2col is thin wrapper-side layout glue; all FLOPs in Pallas)
# ---------------------------------------------------------------------------
def _im2col(x, kd, kh, kw, stride_hw=1, pad_d=0, pad_hw=0):
    """x: (B, D, H, W, C) -> (B*OD*OH*OW, kd*kh*kw*C) patches."""
    B, D, H, W, C = x.shape
    xp = jnp.pad(x, ((0, 0), (pad_d, pad_d), (pad_hw, pad_hw),
                     (pad_hw, pad_hw), (0, 0)))
    Dp, Hp, Wp = D + 2 * pad_d, H + 2 * pad_hw, W + 2 * pad_hw
    OD = Dp - kd + 1                      # depth is never strided in FRBNet
    OH = (Hp - kh) // stride_hw + 1
    OW = (Wp - kw) // stride_hw + 1
    s = stride_hw
    taps = [xp[:, kz:kz + OD, ky:ky + s * OH:s, kx:kx + s * OW:s, :]
            for kz in range(kd) for ky in range(kh) for kx in range(kw)]
    patches = jnp.concatenate(taps, axis=-1)
    return patches.reshape(B * OD * OH * OW, kd * kh * kw * C), (B, OD, OH, OW)


def conv_bn_act(x, cp, *, stride_hw=1, pad_hw=0, pad_d=0, act=None,
                residual=None):
    """Conv3d(+bias) + BatchNorm3d(eval) + act (+ residual add & relu)."""
    w = cp["w"]                                   # (Cout, Cin, kD, kH, kW)
    Cout, Cin, kD, kH, kW = w.shape
    patches, (B, OD, OH, OW) = _im2col(x, kD, kH, kW, stride_hw, pad_d, pad_hw)
    wm = jnp.transpose(w, (2, 3, 4, 1, 0)).reshape(kD * kH * kW * Cin, Cout)
    scale = cp["gamma"] / jnp.sqrt(cp["var"] + EPS)
    bias = cp.get("b", jnp.zeros((Cout,), jnp.float32))
    shift = cp["beta"] + (bias - cp["mean"]) * scale
    res2d = None
    if residual is not None:
        res2d = residual.reshape(B * OD * OH * OW, Cout)
    y = fused_matmul_bn_act(patches, wm, scale, shift, act=act, residual=res2d)
    return y.reshape(B, OD, OH, OW, Cout)


def resblock(x, bp, *, stride):
    identity = conv_bn_act(x, bp["down"], stride_hw=stride)            # 1x1
    h = conv_bn_act(x, bp["c1"], act="relu")                           # 1x1
    h = conv_bn_act(h, bp["c2"], stride_hw=stride, pad_hw=1, act="relu")
    # conv3 + BN + residual add + relu fused into a single kernel
    out = conv_bn_act(h, bp["c3"], residual=identity)
    # TODO(synk): F.dropout(p=0.3) is identity in eval mode; training-mode
    # dropout is not implemented.
    return out


def frbnet_forward(x_ncdhw, params):
    # NCDHW -> channels-last NDHWC
    x = jnp.transpose(x_ncdhw, (0, 2, 3, 4, 1)).astype(jnp.float32)
    x = conv_bn_act(x, params["conv1"], stride_hw=2, pad_hw=3, act="tanh")
    x = maxpool2d_3x3_s2_p1(x)
    x = resblock(x, params["layer1"], stride=1)
    x = conv_bn_act(x, params["conv2"], pad_hw=1, pad_d=1, act="relu")
    x = resblock(x, params["layer2"], stride=2)
    x = conv_bn_act(x, params["conv3"], pad_hw=1, pad_d=1, act="relu")
    x = resblock(x, params["layer3"], stride=2)
    return tail(x, params["conv5"])                                    # (B, 4)


# ---------------------------------------------------------------------------
# Pure-JAX reference (mirrors PyTorch forward in eval mode)
# ---------------------------------------------------------------------------
def _conv3d_ref(x, w, b=None, stride=(1, 1, 1), padding=(0, 0, 0)):
    dn = jax.lax.conv_dimension_numbers(x.shape, w.shape,
                                        ("NCDHW", "OIDHW", "NCDHW"))
    y = jax.lax.conv_general_dilated(
        x, w, window_strides=stride, padding=[(p, p) for p in padding],
        dimension_numbers=dn, precision=jax.lax.Precision.HIGHEST)
    if b is not None:
        y = y + b.reshape(1, -1, 1, 1, 1)
    return y


def _bn_ref(x, p):
    scale = p["gamma"] / jnp.sqrt(p["var"] + EPS)
    shift = p["beta"] - p["mean"] * scale
    return x * scale.reshape(1, -1, 1, 1, 1) + shift.reshape(1, -1, 1, 1, 1)


def _convlayer_ref(x, cp, stride=1, padding=0):
    return _bn_ref(_conv3d_ref(x, cp["w"], None, (1, stride, stride),
                               (0, padding, padding)), cp)


def _resblock_ref(x, bp, stride):
    identity = _convlayer_ref(x, bp["down"], stride=stride)
    h = jnp.maximum(_convlayer_ref(x, bp["c1"]), 0.0)
    h = jnp.maximum(_convlayer_ref(h, bp["c2"], stride=stride, padding=1), 0.0)
    h = _convlayer_ref(h, bp["c3"])
    return jnp.maximum(h + identity, 0.0)


def frbnet_reference(x, p):
    h = jnp.tanh(_convlayer_ref(x, p["conv1"], stride=2, padding=3))
    B = h.shape[0]
    h4 = h.reshape(B, -1, h.shape[3], h.shape[4])
    h4 = jax.lax.reduce_window(h4, -jnp.inf, jax.lax.max,
                               (1, 1, 3, 3), (1, 1, 2, 2),
                               [(0, 0), (0, 0), (1, 1), (1, 1)])
    h = h4.reshape(B, 32, -1, h4.shape[2], h4.shape[3])
    h = _resblock_ref(h, p["layer1"], 1)
    h = jnp.maximum(_bn_ref(_conv3d_ref(h, p["conv2"]["w"], p["conv2"]["b"],
                                        (1, 1, 1), (1, 1, 1)), p["conv2"]), 0.0)
    h = _resblock_ref(h, p["layer2"], 2)
    h = jnp.maximum(_bn_ref(_conv3d_ref(h, p["conv3"]["w"], p["conv3"]["b"],
                                        (1, 1, 1), (1, 1, 1)), p["conv3"]), 0.0)
    h = _resblock_ref(h, p["layer3"], 2)
    h = jnp.maximum(_bn_ref(_conv3d_ref(h, p["conv5"]["w"], p["conv5"]["b"]),
                            p["conv5"]), 0.0)
    return jnp.maximum(jnp.mean(h, axis=(2, 3, 4)), 0.0)     # (B, 4)


# ---------------------------------------------------------------------------
# Parameter construction
# ---------------------------------------------------------------------------
def make_conv_bn(key, cout, cin, kd, kh, kw, bias=False):
    ks = jax.random.split(key, 6)
    fan_in = float(cin * kd * kh * kw)
    p = {
        "w": jax.random.normal(ks[0], (cout, cin, kd, kh, kw),
                               jnp.float32) / math.sqrt(fan_in),
        "gamma": 1.0 + 0.1 * jax.random.normal(ks[1], (cout,), jnp.float32),
        "beta": 0.1 * jax.random.normal(ks[2], (cout,), jnp.float32),
        "mean": 0.1 * jax.random.normal(ks[3], (cout,), jnp.float32),
        "var": 0.5 + jax.random.uniform(ks[4], (cout,), jnp.float32),
    }
    if bias:
        p["b"] = 0.1 * jax.random.normal(ks[5], (cout,), jnp.float32)
    return p


def make_resblock_params(key, cin, cmid, cout):
    k = jax.random.split(key, 4)
    return {
        "c1": make_conv_bn(k[0], cmid, cin, 1, 1, 1),
        "c2": make_conv_bn(k[1], cmid, cmid, 1, 3, 3),
        "c3": make_conv_bn(k[2], cout, cmid, 1, 1, 1),
        "down": make_conv_bn(k[3], cout, cin, 1, 1, 1),
    }


# ---------------------------------------------------------------------------
if __name__ == "__main__":
    key = jax.random.PRNGKey(0)
    ks = jax.random.split(key, 8)
    params = {
        "conv1": make_conv_bn(ks[0], 32, 1, 1, 7, 7),
        "layer1": make_resblock_params(ks[1], 32, 32, 64),
        "conv2": make_conv_bn(ks[2], 64, 64, 3, 3, 3, bias=True),
        "layer2": make_resblock_params(ks[3], 64, 64, 128),
        "conv3": make_conv_bn(ks[4], 128, 128, 3, 3, 3, bias=True),
        "layer3": make_resblock_params(ks[5], 128, 128, 256),
        "conv5": make_conv_bn(ks[6], 4, 256, 1, 1, 1, bias=True),
    }

    # (B, C=1, D, H, W)
    x = jax.random.normal(ks[7], (2, 1, 4, 16, 16), jnp.float32)

    out = jax.jit(frbnet_forward)(x, params)
    out = jax.block_until_ready(out)

    ref = frbnet_reference(x, params)
    assert out.shape == (2, 4), f"bad output shape {out.shape}"
    err = float(jnp.max(jnp.abs(out - ref)))
    scale_ref = float(jnp.max(jnp.abs(ref))) + 1e-6
    assert err <= 1e-3 * scale_ref + 1e-4, (
        f"mismatch: max abs diff {err}, ref scale {scale_ref}")

    print("KERNEL_OK")
</pallas_src>

<mosaic_0001>
module attributes {stable_mosaic.version = 11 : i64} {
  func.func @_mm_affine_act_kernel(%arg0: i32, %arg1: memref<256x49xf32, #tpu.memory_space<vmem>>, %arg2: memref<49x32xf32, #tpu.memory_space<vmem>>, %arg3: memref<1x32xf32, #tpu.memory_space<vmem>>, %arg4: memref<1x32xf32, #tpu.memory_space<vmem>>, %arg5: memref<256x32xf32, #tpu.memory_space<vmem>>) attributes {dimension_semantics = [#tpu.dimension_semantics<parallel>], iteration_bounds = array<i64: 2>, scalar_prefetch = 0 : i64, scratch_operands = 0 : i64, tpu.core_type = #tpu.core_type<tc>, window_params = [{transform_indices = @transform_0, window_bounds = array<i64: 256, 49>}, {pipeline_mode = #tpu.pipeline_mode<synchronous>, transform_indices = @transform_1, window_bounds = array<i64: 49, 32>}, {pipeline_mode = #tpu.pipeline_mode<synchronous>, transform_indices = @transform_2, window_bounds = array<i64: 1, 32>}, {pipeline_mode = #tpu.pipeline_mode<synchronous>, transform_indices = @transform_3, window_bounds = array<i64: 1, 32>}, {transform_indices = @transform_4, window_bounds = array<i64: 256, 32>}]} {
    %c0 = arith.constant 0 : index
    %c0_0 = arith.constant 0 : index
    %0 = vector.load %arg1[%c0, %c0_0] : memref<256x49xf32, #tpu.memory_space<vmem>>, vector<256x49xf32>
    %c0_1 = arith.constant 0 : index
    %c0_2 = arith.constant 0 : index
    %1 = vector.load %arg2[%c0_1, %c0_2] : memref<49x32xf32, #tpu.memory_space<vmem>>, vector<49x32xf32>
    %cst = arith.constant dense<0.000000e+00> : vector<256x32xf32>
    %2 = tpu.matmul %0, %1, %cst {dimension_numbers = #tpu.dot_dimension_numbers<[1], [0], [0], [1], [0, 0, 1, 1], [], []>} : vector<256x49xf32>, vector<49x32xf32>, vector<256x32xf32> -> vector<256x32xf32>
    %c0_3 = arith.constant 0 : index
    %c0_4 = arith.constant 0 : index
    %3 = vector.load %arg3[%c0_3, %c0_4] : memref<1x32xf32, #tpu.memory_space<vmem>>, vector<1x32xf32>
    %4 = vector.broadcast %3 : vector<1x32xf32> to vector<256x32xf32>
    %5 = arith.mulf %2, %4 : vector<256x32xf32>
    %c0_5 = arith.constant 0 : index
    %c0_6 = arith.constant 0 : index
    %6 = vector.load %arg4[%c0_5, %c0_6] : memref<1x32xf32, #tpu.memory_space<vmem>>, vector<1x32xf32>
    %7 = vector.broadcast %6 : vector<1x32xf32> to vector<256x32xf32>
    %8 = arith.addf %5, %7 : vector<256x32xf32>
    %9 = math.tanh %8 : vector<256x32xf32>
    %c0_7 = arith.constant 0 : index
    %c0_8 = arith.constant 0 : index
    %10 = vector.load %arg5[%c0_7, %c0_8] : memref<256x32xf32, #tpu.memory_space<vmem>>, vector<256x32xf32>
    tpu.vector_store %arg5[%c0_7, %c0_8], %9 {strides = array<i32>} : memref<256x32xf32, #tpu.memory_space<vmem>>, vector<256x32xf32>,
    return
  }
  func.func @transform_0(%arg0: i32) -> (i32, i32) {
    %c0_i32 = arith.constant 0 : i32
    %c0_i32_0 = arith.constant 0 : i32
    return %arg0, %c0_i32 : i32, i32
  }
  func.func @transform_1(%arg0: i32) -> (i32, i32) {
    %c0_i32 = arith.constant 0 : i32
    %c0_i32_0 = arith.constant 0 : i32
    %c0_i32_1 = arith.constant 0 : i32
    return %c0_i32, %c0_i32_0 : i32, i32
  }
  func.func @transform_2(%arg0: i32) -> (i32, i32) {
    %c0_i32 = arith.constant 0 : i32
    %c0_i32_0 = arith.constant 0 : i32
    %c0_i32_1 = arith.constant 0 : i32
    return %c0_i32, %c0_i32_0 : i32, i32
  }
  func.func @transform_3(%arg0: i32) -> (i32, i32) {
    %c0_i32 = arith.constant 0 : i32
    %c0_i32_0 = arith.constant 0 : i32
    %c0_i32_1 = arith.constant 0 : i32
    return %c0_i32, %c0_i32_0 : i32, i32
  }
  func.func @transform_4(%arg0: i32) -> (i32, i32) {
    %c0_i32 = arith.constant 0 : i32
    %c0_i32_0 = arith.constant 0 : i32
    return %arg0, %c0_i32 : i32, i32
  }
}

module attributes {stable_mosaic.version = 11 : i64} {
  func.func @_max_taps_kernel(%arg0: i32, %arg1: memref<9x128x32xf32, #tpu.memory_space<vmem>>, %arg2: memref<128x32xf32, #tpu.memory_space<vmem>>) attributes {dimension_semantics = [#tpu.dimension_semantics<parallel>], iteration_bounds = array<i64: 1>, scalar_prefetch = 0 : i64, scratch_operands = 0 : i64, tpu.core_type = #tpu.core_type<tc>, window_params = [{transform_indices = @transform_0, window_bounds = array<i64: 9, 128, 32>}, {transform_indices = @transform_1, window_bounds = array<i64: 128, 32>}]} {
    %c0 = arith.constant 0 : index
    %c0_0 = arith.constant 0 : index
    %c0_1 = arith.constant 0 : index
    %0 = vector.load %arg1[%c0, %c0_0, %c0_1] : memref<9x128x32xf32, #tpu.memory_space<vmem>>, vector<9x128x32xf32>
    %cst = arith.constant dense<0xFF800000> : vector<128x32xf32>
    %1 = vector.multi_reduction <maximumf>, %0, %cst [0] : vector<9x128x32xf32> to vector<128x32xf32>
    %c0_2 = arith.constant 0 : index
    %c0_3 = arith.constant 0 : index
    %2 = vector.load %arg2[%c0_2, %c0_3] : memref<128x32xf32, #tpu.memory_space<vmem>>, vector<128x32xf32>
    tpu.vector_store %arg2[%c0_2, %c0_3], %1 {strides = array<i32>} : memref<128x32xf32, #tpu.memory_space<vmem>>, vector<128x32xf32>,
    return
  }
  func.func @transform_0(%arg0: i32) -> (i32, i32, i32) {
    %c0_i32 = arith.constant 0 : i32
    %c0_i32_0 = arith.constant 0 : i32
    %c0_i32_1 = arith.constant 0 : i32
    return %c0_i32, %arg0, %c0_i32_0 : i32, i32, i32
  }
  func.func @transform_1(%arg0: i32) -> (i32, i32) {
    %c0_i32 = arith.constant 0 : i32
    %c0_i32_0 = arith.constant 0 : i32
    return %arg0, %c0_i32 : i32, i32
  }
}

module attributes {stable_mosaic.version = 11 : i64} {
  func.func @_mm_affine_act_kernel(%arg0: i32, %arg1: memref<128x32xf32, #tpu.memory_space<vmem>>, %arg2: memref<32x32xf32, #tpu.memory_space<vmem>>, %arg3: memref<1x32xf32, #tpu.memory_space<vmem>>, %arg4: memref<1x32xf32, #tpu.memory_space<vmem>>, %arg5: memref<128x32xf32, #tpu.memory_space<vmem>>) attributes {dimension_semantics = [#tpu.dimension_semantics<parallel>], iteration_bounds = array<i64: 1>, scalar_prefetch = 0 : i64, scratch_operands = 0 : i64, tpu.core_type = #tpu.core_type<tc>, window_params = [{transform_indices = @transform_0, window_bounds = array<i64: 128, 32>}, {pipeline_mode = #tpu.pipeline_mode<synchronous>, transform_indices = @transform_1, window_bounds = array<i64: 32, 32>}, {pipeline_mode = #tpu.pipeline_mode<synchronous>, transform_indices = @transform_2, window_bounds = array<i64: 1, 32>}, {pipeline_mode = #tpu.pipeline_mode<synchronous>, transform_indices = @transform_3, window_bounds = array<i64: 1, 32>}, {transform_indices = @transform_4, window_bounds = array<i64: 128, 32>}]} {
    %c0 = arith.constant 0 : index
    %c0_0 = arith.constant 0 : index
    %0 = vector.load %arg1[%c0, %c0_0] : memref<128x32xf32, #tpu.memory_space<vmem>>, vector<128x32xf32>
    %c0_1 = arith.constant 0 : index
    %c0_2 = arith.constant 0 : index
    %1 = vector.load %arg2[%c0_1, %c0_2] : memref<32x32xf32, #tpu.memory_space<vmem>>, vector<32x32xf32>
    %cst = arith.constant dense<0.000000e+00> : vector<128x32xf32>
    %2 = tpu.matmul %0, %1, %cst {dimension_numbers = #tpu.dot_dimension_numbers<[1], [0], [0], [1], [0, 0, 1, 1], [], []>} : vector<128x32xf32>, vector<32x32xf32>, vector<128x32xf32> -> vector<128x32xf32>
    %c0_3 = arith.constant 0 : index
    %c0_4 = arith.constant 0 : index
    %3 = vector.load %arg3[%c0_3, %c0_4] : memref<1x32xf32, #tpu.memory_space<vmem>>, vector<1x32xf32>
    %4 = vector.broadcast %3 : vector<1x32xf32> to vector<128x32xf32>
    %5 = arith.mulf %2, %4 : vector<128x32xf32>
    %c0_5 = arith.constant 0 : index
    %c0_6 = arith.constant 0 : index
    %6 = vector.load %arg4[%c0_5, %c0_6] : memref<1x32xf32, #tpu.memory_space<vmem>>, vector<1x32xf32>
    %7 = vector.broadcast %6 : vector<1x32xf32> to vector<128x32xf32>
    %8 = arith.addf %5, %7 : vector<128x32xf32>
    %cst_7 = arith.constant 0.000000e+00 : f32
    %9 = vector.broadcast %cst_7 : f32 to vector<128x32xf32>
    %10 = arith.maximumf %8, %9 : vector<128x32xf32>
    %c0_8 = arith.constant 0 : index
    %c0_9 = arith.constant 0 : index
    %11 = vector.load %arg5[%c0_8, %c0_9] : memref<128x32xf32, #tpu.memory_space<vmem>>, vector<128x32xf32>
    tpu.vector_store %arg5[%c0_8, %c0_9], %10 {strides = array<i32>} : memref<128x32xf32, #tpu.memory_space<vmem>>, vector<128x32xf32>,
    return
  }
  func.func @transform_0(%arg0: i32) -> (i32, i32) {
    %c0_i32 = arith.constant 0 : i32
    %c0_i32_0 = arith.constant 0 : i32
    return %arg0, %c0_i32 : i32, i32
  }
  func.func @transform_1(%arg0: i32) -> (i32, i32) {
    %c0_i32 = arith.constant 0 : i32
    %c0_i32_0 = arith.constant 0 : i32
    %c0_i32_1 = arith.constant 0 : i32
    return %c0_i32, %c0_i32_0 : i32, i32
  }
  func.func @transform_2(%arg0: i32) -> (i32, i32) {
    %c0_i32 = arith.constant 0 : i32
    %c0_i32_0 = arith.constant 0 : i32
    %c0_i32_1 = arith.constant 0 : i32
    return %c0_i32, %c0_i32_0 : i32, i32
  }
  func.func @transform_3(%arg0: i32) -> (i32, i32) {
    %c0_i32 = arith.constant 0 : i32
    %c0_i32_0 = arith.constant 0 : i32
    %c0_i32_1 = arith.constant 0 : i32
    return %c0_i32, %c0_i32_0 : i32, i32
  }
  func.func @transform_4(%arg0: i32) -> (i32, i32) {
    %c0_i32 = arith.constant 0 : i32
    %c0_i32_0 = arith.constant 0 : i32
    return %arg0, %c0_i32 : i32, i32
  }
}

module attributes {stable_mosaic.version = 11 : i64} {
  func.func @_mm_affine_res_relu_kernel(%arg0: i32, %arg1: memref<128x32xf32, #tpu.memory_space<vmem>>, %arg2: memref<32x64xf32, #tpu.memory_space<vmem>>, %arg3: memref<1x64xf32, #tpu.memory_space<vmem>>, %arg4: memref<1x64xf32, #tpu.memory_space<vmem>>, %arg5: memref<128x64xf32, #tpu.memory_space<vmem>>, %arg6: memref<128x64xf32, #tpu.memory_space<vmem>>) attributes {dimension_semantics = [#tpu.dimension_semantics<parallel>], iteration_bounds = array<i64: 1>, scalar_prefetch = 0 : i64, scratch_operands = 0 : i64, tpu.core_type = #tpu.core_type<tc>, window_params = [{transform_indices = @transform_0, window_bounds = array<i64: 128, 32>}, {pipeline_mode = #tpu.pipeline_mode<synchronous>, transform_indices = @transform_1, window_bounds = array<i64: 32, 64>}, {pipeline_mode = #tpu.pipeline_mode<synchronous>, transform_indices = @transform_2, window_bounds = array<i64: 1, 64>}, {pipeline_mode = #tpu.pipeline_mode<synchronous>, transform_indices = @transform_3, window_bounds = array<i64: 1, 64>}, {transform_indices = @transform_4, window_bounds = array<i64: 128, 64>}, {transform_indices = @transform_5, window_bounds = array<i64: 128, 64>}]} {
    %c0 = arith.constant 0 : index
    %c0_0 = arith.constant 0 : index
    %0 = vector.load %arg1[%c0, %c0_0] : memref<128x32xf32, #tpu.memory_space<vmem>>, vector<128x32xf32>
    %c0_1 = arith.constant 0 : index
    %c0_2 = arith.constant 0 : index
    %1 = vector.load %arg2[%c0_1, %c0_2] : memref<32x64xf32, #tpu.memory_space<vmem>>, vector<32x64xf32>
    %cst = arith.constant dense<0.000000e+00> : vector<128x64xf32>
    %2 = tpu.matmul %0, %1, %cst {dimension_numbers = #tpu.dot_dimension_numbers<[1], [0], [0], [1], [0, 0, 1, 1], [], []>} : vector<128x32xf32>, vector<32x64xf32>, vector<128x64xf32> -> vector<128x64xf32>
    %c0_3 = arith.constant 0 : index
    %c0_4 = arith.constant 0 : index
    %3 = vector.load %arg3[%c0_3, %c0_4] : memref<1x64xf32, #tpu.memory_space<vmem>>, vector<1x64xf32>
    %4 = vector.broadcast %3 : vector<1x64xf32> to vector<128x64xf32>
    %5 = arith.mulf %2, %4 : vector<128x64xf32>
    %c0_5 = arith.constant 0 : index
    %c0_6 = arith.constant 0 : index
    %6 = vector.load %arg4[%c0_5, %c0_6] : memref<1x64xf32, #tpu.memory_space<vmem>>, vector<1x64xf32>
    %7 = vector.broadcast %6 : vector<1x64xf32> to vector<128x64xf32>
    %8 = arith.addf %5, %7 : vector<128x64xf32>
    %c0_7 = arith.constant 0 : index
    %c0_8 = arith.constant 0 : index
    %9 = vector.load %arg5[%c0_7, %c0_8] : memref<128x64xf32, #tpu.memory_space<vmem>>, vector<128x64xf32>
    %10 = arith.addf %8, %9 : vector<128x64xf32>
    %cst_9 = arith.constant 0.000000e+00 : f32
    %11 = vector.broadcast %cst_9 : f32 to vector<128x64xf32>
    %12 = arith.maximumf %10, %11 : vector<128x64xf32>
    %c0_10 = arith.constant 0 : index
    %c0_11 = arith.constant 0 : index
    %13 = vector.load %arg6[%c0_10, %c0_11] : memref<128x64xf32, #tpu.memory_space<vmem>>, vector<128x64xf32>
    tpu.vector_store %arg6[%c0_10, %c0_11], %12 {strides = array<i32>} : memref<128x64xf32, #tpu.memory_space<vmem>>, vector<128x64xf32>,
    return
  }
  func.func @transform_0(%arg0: i32) -> (i32, i32) {
    %c0_i32 = arith.constant 0 : i32
    %c0_i32_0 = arith.constant 0 : i32
    return %arg0, %c0_i32 : i32, i32
  }
  func.func @transform_1(%arg0: i32) -> (i32, i32) {
    %c0_i32 = arith.constant 0 : i32
    %c0_i32_0 = arith.constant 0 : i32
    %c0_i32_1 = arith.constant 0 : i32
    return %c0_i32, %c0_i32_0 : i32, i32
  }
  func.func @transform_2(%arg0: i32) -> (i32, i32) {
    %c0_i32 = arith.constant 0 : i32
    %c0_i32_0 = arith.constant 0 : i32
    %c0_i32_1 = arith.constant 0 : i32
    return %c0_i32, %c0_i32_0 : i32, i32
  }
  func.func @transform_3(%arg0: i32) -> (i32, i32) {
    %c0_i32 = arith.constant 0 : i32
    %c0_i32_0 = arith.constant 0 : i32
    %c0_i32_1 = arith.constant 0 : i32
    return %c0_i32, %c0_i32_0 : i32, i32
  }
  func.func @transform_4(%arg0: i32) -> (i32, i32) {
    %c0_i32 = arith.constant 0 : i32
    %c0_i32_0 = arith.constant 0 : i32
    return %arg0, %c0_i32 : i32, i32
  }
  func.func @transform_5(%arg0: i32) -> (i32, i32) {
    %c0_i32 = arith.constant 0 : i32
    %c0_i32_0 = arith.constant 0 : i32
    return %arg0, %c0_i32 : i32, i32
  }
}

module attributes {stable_mosaic.version = 11 : i64} {
  func.func @_mm_affine_act_kernel(%arg0: i32, %arg1: memref<128x288xf32, #tpu.memory_space<vmem>>, %arg2: memref<288x32xf32, #tpu.memory_space<vmem>>, %arg3: memref<1x32xf32, #tpu.memory_space<vmem>>, %arg4: memref<1x32xf32, #tpu.memory_space<vmem>>, %arg5: memref<128x32xf32, #tpu.memory_space<vmem>>) attributes {dimension_semantics = [#tpu.dimension_semantics<parallel>], iteration_bounds = array<i64: 1>, scalar_prefetch = 0 : i64, scratch_operands = 0 : i64, tpu.core_type = #tpu.core_type<tc>, window_params = [{transform_indices = @transform_0, window_bounds = array<i64: 128, 288>}, {pipeline_mode = #tpu.pipeline_mode<synchronous>, transform_indices = @transform_1, window_bounds = array<i64: 288, 32>}, {pipeline_mode = #tpu.pipeline_mode<synchronous>, transform_indices = @transform_2, window_bounds = array<i64: 1, 32>}, {pipeline_mode = #tpu.pipeline_mode<synchronous>, transform_indices = @transform_3, window_bounds = array<i64: 1, 32>}, {transform_indices = @transform_4, window_bounds = array<i64: 128, 32>}]} {
    %c0 = arith.constant 0 : index
    %c0_0 = arith.constant 0 : index
    %0 = vector.load %arg1[%c0, %c0_0] : memref<128x288xf32, #tpu.memory_space<vmem>>, vector<128x288xf32>
    %c0_1 = arith.constant 0 : index
    %c0_2 = arith.constant 0 : index
    %1 = vector.load %arg2[%c0_1, %c0_2] : memref<288x32xf32, #tpu.memory_space<vmem>>, vector<288x32xf32>
    %cst = arith.constant dense<0.000000e+00> : vector<128x32xf32>
    %2 = tpu.matmul %0, %1, %cst {dimension_numbers = #tpu.dot_dimension_numbers<[1], [0], [0], [1], [0, 0, 1, 1], [], []>} : vector<128x288xf32>, vector<288x32xf32>, vector<128x32xf32> -> vector<128x32xf32>
    %c0_3 = arith.constant 0 : index
    %c0_4 = arith.constant 0 : index
    %3 = vector.load %arg3[%c0_3, %c0_4] : memref<1x32xf32, #tpu.memory_space<vmem>>, vector<1x32xf32>
    %4 = vector.broadcast %3 : vector<1x32xf32> to vector<128x32xf32>
    %5 = arith.mulf %2, %4 : vector<128x32xf32>
    %c0_5 = arith.constant 0 : index
    %c0_6 = arith.constant 0 : index
    %6 = vector.load %arg4[%c0_5, %c0_6] : memref<1x32xf32, #tpu.memory_space<vmem>>, vector<1x32xf32>
    %7 = vector.broadcast %6 : vector<1x32xf32> to vector<128x32xf32>
    %8 = arith.addf %5, %7 : vector<128x32xf32>
    %cst_7 = arith.constant 0.000000e+00 : f32
    %9 = vector.broadcast %cst_7 : f32 to vector<128x32xf32>
    %10 = arith.maximumf %8, %9 : vector<128x32xf32>
    %c0_8 = arith.constant 0 : index
    %c0_9 = arith.constant 0 : index
    %11 = vector.load %arg5[%c0_8, %c0_9] : memref<128x32xf32, #tpu.memory_space<vmem>>, vector<128x32xf32>
    tpu.vector_store %arg5[%c0_8, %c0_9], %10 {strides = array<i32>} : memref<128x32xf32, #tpu.memory_space<vmem>>, vector<128x32xf32>,
    return
  }
  func.func @transform_0(%arg0: i32) -> (i32, i32) {
    %c0_i32 = arith.constant 0 : i32
    %c0_i32_0 = arith.constant 0 : i32
    return %arg0, %c0_i32 : i32, i32
  }
  func.func @transform_1(%arg0: i32) -> (i32, i32) {
    %c0_i32 = arith.constant 0 : i32
    %c0_i32_0 = arith.constant 0 : i32
    %c0_i32_1 = arith.constant 0 : i32
    return %c0_i32, %c0_i32_0 : i32, i32
  }
  func.func @transform_2(%arg0: i32) -> (i32, i32) {
    %c0_i32 = arith.constant 0 : i32
    %c0_i32_0 = arith.constant 0 : i32
    %c0_i32_1 = arith.constant 0 : i32
    return %c0_i32, %c0_i32_0 : i32, i32
  }
  func.func @transform_3(%arg0: i32) -> (i32, i32) {
    %c0_i32 = arith.constant 0 : i32
    %c0_i32_0 = arith.constant 0 : i32
    %c0_i32_1 = arith.constant 0 : i32
    return %c0_i32, %c0_i32_0 : i32, i32
  }
  func.func @transform_4(%arg0: i32) -> (i32, i32) {
    %c0_i32 = arith.constant 0 : i32
    %c0_i32_0 = arith.constant 0 : i32
    return %arg0, %c0_i32 : i32, i32
  }
}

module attributes {stable_mosaic.version = 11 : i64} {
  func.func @_mm_affine_act_kernel(%arg0: i32, %arg1: memref<128x32xf32, #tpu.memory_space<vmem>>, %arg2: memref<32x64xf32, #tpu.memory_space<vmem>>, %arg3: memref<1x64xf32, #tpu.memory_space<vmem>>, %arg4: memref<1x64xf32, #tpu.memory_space<vmem>>, %arg5: memref<128x64xf32, #tpu.memory_space<vmem>>) attributes {dimension_semantics = [#tpu.dimension_semantics<parallel>], iteration_bounds = array<i64: 1>, scalar_prefetch = 0 : i64, scratch_operands = 0 : i64, tpu.core_type = #tpu.core_type<tc>, window_params = [{transform_indices = @transform_0, window_bounds = array<i64: 128, 32>}, {pipeline_mode = #tpu.pipeline_mode<synchronous>, transform_indices = @transform_1, window_bounds = array<i64: 32, 64>}, {pipeline_mode = #tpu.pipeline_mode<synchronous>, transform_indices = @transform_2, window_bounds = array<i64: 1, 64>}, {pipeline_mode = #tpu.pipeline_mode<synchronous>, transform_indices = @transform_3, window_bounds = array<i64: 1, 64>}, {transform_indices = @transform_4, window_bounds = array<i64: 128, 64>}]} {
    %c0 = arith.constant 0 : index
    %c0_0 = arith.constant 0 : index
    %0 = vector.load %arg1[%c0, %c0_0] : memref<128x32xf32, #tpu.memory_space<vmem>>, vector<128x32xf32>
    %c0_1 = arith.constant 0 : index
    %c0_2 = arith.constant 0 : index
    %1 = vector.load %arg2[%c0_1, %c0_2] : memref<32x64xf32, #tpu.memory_space<vmem>>, vector<32x64xf32>
    %cst = arith.constant dense<0.000000e+00> : vector<128x64xf32>
    %2 = tpu.matmul %0, %1, %cst {dimension_numbers = #tpu.dot_dimension_numbers<[1], [0], [0], [1], [0, 0, 1, 1], [], []>} : vector<128x32xf32>, vector<32x64xf32>, vector<128x64xf32> -> vector<128x64xf32>
    %c0_3 = arith.constant 0 : index
    %c0_4 = arith.constant 0 : index
    %3 = vector.load %arg3[%c0_3, %c0_4] : memref<1x64xf32, #tpu.memory_space<vmem>>, vector<1x64xf32>
    %4 = vector.broadcast %3 : vector<1x64xf32> to vector<128x64xf32>
    %5 = arith.mulf %2, %4 : vector<128x64xf32>
    %c0_5 = arith.constant 0 : index
    %c0_6 = arith.constant 0 : index
    %6 = vector.load %arg4[%c0_5, %c0_6] : memref<1x64xf32, #tpu.memory_space<vmem>>, vector<1x64xf32>
    %7 = vector.broadcast %6 : vector<1x64xf32> to vector<128x64xf32>
    %8 = arith.addf %5, %7 : vector<128x64xf32>
    %c0_7 = arith.constant 0 : index
    %c0_8 = arith.constant 0 : index
    %9 = vector.load %arg5[%c0_7, %c0_8] : memref<128x64xf32, #tpu.memory_space<vmem>>, vector<128x64xf32>
    tpu.vector_store %arg5[%c0_7, %c0_8], %8 {strides = array<i32>} : memref<128x64xf32, #tpu.memory_space<vmem>>, vector<128x64xf32>,
    return
  }
  func.func @transform_0(%arg0: i32) -> (i32, i32) {
    %c0_i32 = arith.constant 0 : i32
    %c0_i32_0 = arith.constant 0 : i32
    return %arg0, %c0_i32 : i32, i32
  }
  func.func @transform_1(%arg0: i32) -> (i32, i32) {
    %c0_i32 = arith.constant 0 : i32
    %c0_i32_0 = arith.constant 0 : i32
    %c0_i32_1 = arith.constant 0 : i32
    return %c0_i32, %c0_i32_0 : i32, i32
  }
  func.func @transform_2(%arg0: i32) -> (i32, i32) {
    %c0_i32 = arith.constant 0 : i32
    %c0_i32_0 = arith.constant 0 : i32
    %c0_i32_1 = arith.constant 0 : i32
    return %c0_i32, %c0_i32_0 : i32, i32
  }
  func.func @transform_3(%arg0: i32) -> (i32, i32) {
    %c0_i32 = arith.constant 0 : i32
    %c0_i32_0 = arith.constant 0 : i32
    %c0_i32_1 = arith.constant 0 : i32
    return %c0_i32, %c0_i32_0 : i32, i32
  }
  func.func @transform_4(%arg0: i32) -> (i32, i32) {
    %c0_i32 = arith.constant 0 : i32
    %c0_i32_0 = arith.constant 0 : i32
    return %arg0, %c0_i32 : i32, i32
  }
}

module attributes {stable_mosaic.version = 11 : i64} {
  func.func @_mm_affine_act_kernel(%arg0: i32, %arg1: memref<128x1728xf32, #tpu.memory_space<vmem>>, %arg2: memref<1728x64xf32, #tpu.memory_space<vmem>>, %arg3: memref<1x64xf32, #tpu.memory_space<vmem>>, %arg4: memref<1x64xf32, #tpu.memory_space<vmem>>, %arg5: memref<128x64xf32, #tpu.memory_space<vmem>>) attributes {dimension_semantics = [#tpu.dimension_semantics<parallel>], iteration_bounds = array<i64: 1>, scalar_prefetch = 0 : i64, scratch_operands = 0 : i64, tpu.core_type = #tpu.core_type<tc>, window_params = [{transform_indices = @transform_0, window_bounds = array<i64: 128, 1728>}, {pipeline_mode = #tpu.pipeline_mode<synchronous>, transform_indices = @transform_1, window_bounds = array<i64: 1728, 64>}, {pipeline_mode = #tpu.pipeline_mode<synchronous>, transform_indices = @transform_2, window_bounds = array<i64: 1, 64>}, {pipeline_mode = #tpu.pipeline_mode<synchronous>, transform_indices = @transform_3, window_bounds = array<i64: 1, 64>}, {transform_indices = @transform_4, window_bounds = array<i64: 128, 64>}]} {
    %c0 = arith.constant 0 : index
    %c0_0 = arith.constant 0 : index
    %0 = vector.load %arg1[%c0, %c0_0] : memref<128x1728xf32, #tpu.memory_space<vmem>>, vector<128x1728xf32>
    %c0_1 = arith.constant 0 : index
    %c0_2 = arith.constant 0 : index
    %1 = vector.load %arg2[%c0_1, %c0_2] : memref<1728x64xf32, #tpu.memory_space<vmem>>, vector<1728x64xf32>
    %cst = arith.constant dense<0.000000e+00> : vector<128x64xf32>
    %2 = tpu.matmul %0, %1, %cst {dimension_numbers = #tpu.dot_dimension_numbers<[1], [0], [0], [1], [0, 0, 1, 1], [], []>} : vector<128x1728xf32>, vector<1728x64xf32>, vector<128x64xf32> -> vector<128x64xf32>
    %c0_3 = arith.constant 0 : index
    %c0_4 = arith.constant 0 : index
    %3 = vector.load %arg3[%c0_3, %c0_4] : memref<1x64xf32, #tpu.memory_space<vmem>>, vector<1x64xf32>
    %4 = vector.broadcast %3 : vector<1x64xf32> to vector<128x64xf32>
    %5 = arith.mulf %2, %4 : vector<128x64xf32>
    %c0_5 = arith.constant 0 : index
    %c0_6 = arith.constant 0 : index
    %6 = vector.load %arg4[%c0_5, %c0_6] : memref<1x64xf32, #tpu.memory_space<vmem>>, vector<1x64xf32>
    %7 = vector.broadcast %6 : vector<1x64xf32> to vector<128x64xf32>
    %8 = arith.addf %5, %7 : vector<128x64xf32>
    %cst_7 = arith.constant 0.000000e+00 : f32
    %9 = vector.broadcast %cst_7 : f32 to vector<128x64xf32>
    %10 = arith.maximumf %8, %9 : vector<128x64xf32>
    %c0_8 = arith.constant 0 : index
    %c0_9 = arith.constant 0 : index
    %11 = vector.load %arg5[%c0_8, %c0_9] : memref<128x64xf32, #tpu.memory_space<vmem>>, vector<128x64xf32>
    tpu.vector_store %arg5[%c0_8, %c0_9], %10 {strides = array<i32>} : memref<128x64xf32, #tpu.memory_space<vmem>>, vector<128x64xf32>,
    return
  }
  func.func @transform_0(%arg0: i32) -> (i32, i32) {
    %c0_i32 = arith.constant 0 : i32
    %c0_i32_0 = arith.constant 0 : i32
    return %arg0, %c0_i32 : i32, i32
  }
  func.func @transform_1(%arg0: i32) -> (i32, i32) {
    %c0_i32 = arith.constant 0 : i32
    %c0_i32_0 = arith.constant 0 : i32
    %c0_i32_1 = arith.constant 0 : i32
    return %c0_i32, %c0_i32_0 : i32, i32
  }
  func.func @transform_2(%arg0: i32) -> (i32, i32) {
    %c0_i32 = arith.constant 0 : i32
    %c0_i32_0 = arith.constant 0 : i32
    %c0_i32_1 = arith.constant 0 : i32
    return %c0_i32, %c0_i32_0 : i32, i32
  }
  func.func @transform_3(%arg0: i32) -> (i32, i32) {
    %c0_i32 = arith.constant 0 : i32
    %c0_i32_0 = arith.constant 0 : i32
    %c0_i32_1 = arith.constant 0 : i32
    return %c0_i32, %c0_i32_0 : i32, i32
  }
  func.func @transform_4(%arg0: i32) -> (i32, i32) {
    %c0_i32 = arith.constant 0 : i32
    %c0_i32_0 = arith.constant 0 : i32
    return %arg0, %c0_i32 : i32, i32
  }
}

module attributes {stable_mosaic.version = 11 : i64} {
  func.func @_mm_affine_act_kernel(%arg0: i32, %arg1: memref<128x64xf32, #tpu.memory_space<vmem>>, %arg2: memref<64x64xf32, #tpu.memory_space<vmem>>, %arg3: memref<1x64xf32, #tpu.memory_space<vmem>>, %arg4: memref<1x64xf32, #tpu.memory_space<vmem>>, %arg5: memref<128x64xf32, #tpu.memory_space<vmem>>) attributes {dimension_semantics = [#tpu.dimension_semantics<parallel>], iteration_bounds = array<i64: 1>, scalar_prefetch = 0 : i64, scratch_operands = 0 : i64, tpu.core_type = #tpu.core_type<tc>, window_params = [{transform_indices = @transform_0, window_bounds = array<i64: 128, 64>}, {pipeline_mode = #tpu.pipeline_mode<synchronous>, transform_indices = @transform_1, window_bounds = array<i64: 64, 64>}, {pipeline_mode = #tpu.pipeline_mode<synchronous>, transform_indices = @transform_2, window_bounds = array<i64: 1, 64>}, {pipeline_mode = #tpu.pipeline_mode<synchronous>, transform_indices = @transform_3, window_bounds = array<i64: 1, 64>}, {transform_indices = @transform_4, window_bounds = array<i64: 128, 64>}]} {
    %c0 = arith.constant 0 : index
    %c0_0 = arith.constant 0 : index
    %0 = vector.load %arg1[%c0, %c0_0] : memref<128x64xf32, #tpu.memory_space<vmem>>, vector<128x64xf32>
    %c0_1 = arith.constant 0 : index
    %c0_2 = arith.constant 0 : index
    %1 = vector.load %arg2[%c0_1, %c0_2] : memref<64x64xf32, #tpu.memory_space<vmem>>, vector<64x64xf32>
    %cst = arith.constant dense<0.000000e+00> : vector<128x64xf32>
    %2 = tpu.matmul %0, %1, %cst {dimension_numbers = #tpu.dot_dimension_numbers<[1], [0], [0], [1], [0, 0, 1, 1], [], []>} : vector<128x64xf32>, vector<64x64xf32>, vector<128x64xf32> -> vector<128x64xf32>
    %c0_3 = arith.constant 0 : index
    %c0_4 = arith.constant 0 : index
    %3 = vector.load %arg3[%c0_3, %c0_4] : memref<1x64xf32, #tpu.memory_space<vmem>>, vector<1x64xf32>
    %4 = vector.broadcast %3 : vector<1x64xf32> to vector<128x64xf32>
    %5 = arith.mulf %2, %4 : vector<128x64xf32>
    %c0_5 = arith.constant 0 : index
    %c0_6 = arith.constant 0 : index
    %6 = vector.load %arg4[%c0_5, %c0_6] : memref<1x64xf32, #tpu.memory_space<vmem>>, vector<1x64xf32>
    %7 = vector.broadcast %6 : vector<1x64xf32> to vector<128x64xf32>
    %8 = arith.addf %5, %7 : vector<128x64xf32>
    %cst_7 = arith.constant 0.000000e+00 : f32
    %9 = vector.broadcast %cst_7 : f32 to vector<128x64xf32>
    %10 = arith.maximumf %8, %9 : vector<128x64xf32>
    %c0_8 = arith.constant 0 : index
    %c0_9 = arith.constant 0 : index
    %11 = vector.load %arg5[%c0_8, %c0_9] : memref<128x64xf32, #tpu.memory_space<vmem>>, vector<128x64xf32>
    tpu.vector_store %arg5[%c0_8, %c0_9], %10 {strides = array<i32>} : memref<128x64xf32, #tpu.memory_space<vmem>>, vector<128x64xf32>,
    return
  }
  func.func @transform_0(%arg0: i32) -> (i32, i32) {
    %c0_i32 = arith.constant 0 : i32
    %c0_i32_0 = arith.constant 0 : i32
    return %arg0, %c0_i32 : i32, i32
  }
  func.func @transform_1(%arg0: i32) -> (i32, i32) {
    %c0_i32 = arith.constant 0 : i32
    %c0_i32_0 = arith.constant 0 : i32
    %c0_i32_1 = arith.constant 0 : i32
    return %c0_i32, %c0_i32_0 : i32, i32
  }
  func.func @transform_2(%arg0: i32) -> (i32, i32) {
    %c0_i32 = arith.constant 0 : i32
    %c0_i32_0 = arith.constant 0 : i32
    %c0_i32_1 = arith.constant 0 : i32
    return %c0_i32, %c0_i32_0 : i32, i32
  }
  func.func @transform_3(%arg0: i32) -> (i32, i32) {
    %c0_i32 = arith.constant 0 : i32
    %c0_i32_0 = arith.constant 0 : i32
    %c0_i32_1 = arith.constant 0 : i32
    return %c0_i32, %c0_i32_0 : i32, i32
  }
  func.func @transform_4(%arg0: i32) -> (i32, i32) {
    %c0_i32 = arith.constant 0 : i32
    %c0_i32_0 = arith.constant 0 : i32
    return %arg0, %c0_i32 : i32, i32
  }
}

module attributes {stable_mosaic.version = 11 : i64} {
  func.func @_mm_affine_act_kernel(%arg0: i32, %arg1: memref<32x576xf32, #tpu.memory_space<vmem>>, %arg2: memref<576x64xf32, #tpu.memory_space<vmem>>, %arg3: memref<1x64xf32, #tpu.memory_space<vmem>>, %arg4: memref<1x64xf32, #tpu.memory_space<vmem>>, %arg5: memref<32x64xf32, #tpu.memory_space<vmem>>) attributes {dimension_semantics = [#tpu.dimension_semantics<parallel>], iteration_bounds = array<i64: 1>, scalar_prefetch = 0 : i64, scratch_operands = 0 : i64, tpu.core_type = #tpu.core_type<tc>, window_params = [{transform_indices = @transform_0, window_bounds = array<i64: 32, 576>}, {pipeline_mode = #tpu.pipeline_mode<synchronous>, transform_indices = @transform_1, window_bounds = array<i64: 576, 64>}, {pipeline_mode = #tpu.pipeline_mode<synchronous>, transform_indices = @transform_2, window_bounds = array<i64: 1, 64>}, {pipeline_mode = #tpu.pipeline_mode<synchronous>, transform_indices = @transform_3, window_bounds = array<i64: 1, 64>}, {transform_indices = @transform_4, window_bounds = array<i64: 32, 64>}]} {
    %c0 = arith.constant 0 : index
    %c0_0 = arith.constant 0 : index
    %0 = vector.load %arg1[%c0, %c0_0] : memref<32x576xf32, #tpu.memory_space<vmem>>, vector<32x576xf32>
    %c0_1 = arith.constant 0 : index
    %c0_2 = arith.constant 0 : index
    %1 = vector.load %arg2[%c0_1, %c0_2] : memref<576x64xf32, #tpu.memory_space<vmem>>, vector<576x64xf32>
    %cst = arith.constant dense<0.000000e+00> : vector<32x64xf32>
    %2 = tpu.matmul %0, %1, %cst {dimension_numbers = #tpu.dot_dimension_numbers<[1], [0], [0], [1], [0, 0, 1, 1], [], []>} : vector<32x576xf32>, vector<576x64xf32>, vector<32x64xf32> -> vector<32x64xf32>
    %c0_3 = arith.constant 0 : index
    %c0_4 = arith.constant 0 : index
    %3 = vector.load %arg3[%c0_3, %c0_4] : memref<1x64xf32, #tpu.memory_space<vmem>>, vector<1x64xf32>
    %4 = vector.broadcast %3 : vector<1x64xf32> to vector<32x64xf32>
    %5 = arith.mulf %2, %4 : vector<32x64xf32>
    %c0_5 = arith.constant 0 : index
    %c0_6 = arith.constant 0 : index
    %6 = vector.load %arg4[%c0_5, %c0_6] : memref<1x64xf32, #tpu.memory_space<vmem>>, vector<1x64xf32>
    %7 = vector.broadcast %6 : vector<1x64xf32> to vector<32x64xf32>
    %8 = arith.addf %5, %7 : vector<32x64xf32>
    %cst_7 = arith.constant 0.000000e+00 : f32
    %9 = vector.broadcast %cst_7 : f32 to vector<32x64xf32>
    %10 = arith.maximumf %8, %9 : vector<32x64xf32>
    %c0_8 = arith.constant 0 : index
    %c0_9 = arith.constant 0 : index
    %11 = vector.load %arg5[%c0_8, %c0_9] : memref<32x64xf32, #tpu.memory_space<vmem>>, vector<32x64xf32>
    tpu.vector_store %arg5[%c0_8, %c0_9], %10 {strides = array<i32>} : memref<32x64xf32, #tpu.memory_space<vmem>>, vector<32x64xf32>,
    return
  }
  func.func @transform_0(%arg0: i32) -> (i32, i32) {
    %c0_i32 = arith.constant 0 : i32
    %c0_i32_0 = arith.constant 0 : i32
    return %arg0, %c0_i32 : i32, i32
  }
  func.func @transform_1(%arg0: i32) -> (i32, i32) {
    %c0_i32 = arith.constant 0 : i32
    %c0_i32_0 = arith.constant 0 : i32
    %c0_i32_1 = arith.constant 0 : i32
    return %c0_i32, %c0_i32_0 : i32, i32
  }
  func.func @transform_2(%arg0: i32) -> (i32, i32) {
    %c0_i32 = arith.constant 0 : i32
    %c0_i32_0 = arith.constant 0 : i32
    %c0_i32_1 = arith.constant 0 : i32
    return %c0_i32, %c0_i32_0 : i32, i32
  }
  func.func @transform_3(%arg0: i32) -> (i32, i32) {
    %c0_i32 = arith.constant 0 : i32
    %c0_i32_0 = arith.constant 0 : i32
    %c0_i32_1 = arith.constant 0 : i32
    return %c0_i32, %c0_i32_0 : i32, i32
  }
  func.func @transform_4(%arg0: i32) -> (i32, i32) {
    %c0_i32 = arith.constant 0 : i32
    %c0_i32_0 = arith.constant 0 : i32
    return %arg0, %c0_i32 : i32, i32
  }
}

module attributes {stable_mosaic.version = 11 : i64} {
  func.func @_mm_affine_res_relu_kernel(%arg0: i32, %arg1: memref<32x64xf32, #tpu.memory_space<vmem>>, %arg2: memref<64x128xf32, #tpu.memory_space<vmem>>, %arg3: memref<1x128xf32, #tpu.memory_space<vmem>>, %arg4: memref<1x128xf32, #tpu.memory_space<vmem>>, %arg5: memref<32x128xf32, #tpu.memory_space<vmem>>, %arg6: memref<32x128xf32, #tpu.memory_space<vmem>>) attributes {dimension_semantics = [#tpu.dimension_semantics<parallel>], iteration_bounds = array<i64: 1>, scalar_prefetch = 0 : i64, scratch_operands = 0 : i64, tpu.core_type = #tpu.core_type<tc>, window_params = [{transform_indices = @transform_0, window_bounds = array<i64: 32, 64>}, {pipeline_mode = #tpu.pipeline_mode<synchronous>, transform_indices = @transform_1, window_bounds = array<i64: 64, 128>}, {pipeline_mode = #tpu.pipeline_mode<synchronous>, transform_indices = @transform_2, window_bounds = array<i64: 1, 128>}, {pipeline_mode = #tpu.pipeline_mode<synchronous>, transform_indices = @transform_3, window_bounds = array<i64: 1, 128>}, {transform_indices = @transform_4, window_bounds = array<i64: 32, 128>}, {transform_indices = @transform_5, window_bounds = array<i64: 32, 128>}]} {
    %c0 = arith.constant 0 : index
    %c0_0 = arith.constant 0 : index
    %0 = vector.load %arg1[%c0, %c0_0] : memref<32x64xf32, #tpu.memory_space<vmem>>, vector<32x64xf32>
    %c0_1 = arith.constant 0 : index
    %c0_2 = arith.constant 0 : index
    %1 = vector.load %arg2[%c0_1, %c0_2] : memref<64x128xf32, #tpu.memory_space<vmem>>, vector<64x128xf32>
    %cst = arith.constant dense<0.000000e+00> : vector<32x128xf32>
    %2 = tpu.matmul %0, %1, %cst {dimension_numbers = #tpu.dot_dimension_numbers<[1], [0], [0], [1], [0, 0, 1, 1], [], []>} : vector<32x64xf32>, vector<64x128xf32>, vector<32x128xf32> -> vector<32x128xf32>
    %c0_3 = arith.constant 0 : index
    %c0_4 = arith.constant 0 : index
    %3 = vector.load %arg3[%c0_3, %c0_4] : memref<1x128xf32, #tpu.memory_space<vmem>>, vector<1x128xf32>
    %4 = vector.broadcast %3 : vector<1x128xf32> to vector<32x128xf32>
    %5 = arith.mulf %2, %4 : vector<32x128xf32>
    %c0_5 = arith.constant 0 : index
    %c0_6 = arith.constant 0 : index
    %6 = vector.load %arg4[%c0_5, %c0_6] : memref<1x128xf32, #tpu.memory_space<vmem>>, vector<1x128xf32>
    %7 = vector.broadcast %6 : vector<1x128xf32> to vector<32x128xf32>
    %8 = arith.addf %5, %7 : vector<32x128xf32>
    %c0_7 = arith.constant 0 : index
    %c0_8 = arith.constant 0 : index
    %9 = vector.load %arg5[%c0_7, %c0_8] : memref<32x128xf32, #tpu.memory_space<vmem>>, vector<32x128xf32>
    %10 = arith.addf %8, %9 : vector<32x128xf32>
    %cst_9 = arith.constant 0.000000e+00 : f32
    %11 = vector.broadcast %cst_9 : f32 to vector<32x128xf32>
    %12 = arith.maximumf %10, %11 : vector<32x128xf32>
    %c0_10 = arith.constant 0 : index
    %c0_11 = arith.constant 0 : index
    %13 = vector.load %arg6[%c0_10, %c0_11] : memref<32x128xf32, #tpu.memory_space<vmem>>, vector<32x128xf32>
    tpu.vector_store %arg6[%c0_10, %c0_11], %12 {strides = array<i32>} : memref<32x128xf32, #tpu.memory_space<vmem>>, vector<32x128xf32>,
    return
  }
  func.func @transform_0(%arg0: i32) -> (i32, i32) {
    %c0_i32 = arith.constant 0 : i32
    %c0_i32_0 = arith.constant 0 : i32
    return %arg0, %c0_i32 : i32, i32
  }
  func.func @transform_1(%arg0: i32) -> (i32, i32) {
    %c0_i32 = arith.constant 0 : i32
    %c0_i32_0 = arith.constant 0 : i32
    %c0_i32_1 = arith.constant 0 : i32
    return %c0_i32, %c0_i32_0 : i32, i32
  }
  func.func @transform_2(%arg0: i32) -> (i32, i32) {
    %c0_i32 = arith.constant 0 : i32
    %c0_i32_0 = arith.constant 0 : i32
    %c0_i32_1 = arith.constant 0 : i32
    return %c0_i32, %c0_i32_0 : i32, i32
  }
  func.func @transform_3(%arg0: i32) -> (i32, i32) {
    %c0_i32 = arith.constant 0 : i32
    %c0_i32_0 = arith.constant 0 : i32
    %c0_i32_1 = arith.constant 0 : i32
    return %c0_i32, %c0_i32_0 : i32, i32
  }
  func.func @transform_4(%arg0: i32) -> (i32, i32) {
    %c0_i32 = arith.constant 0 : i32
    %c0_i32_0 = arith.constant 0 : i32
    return %arg0, %c0_i32 : i32, i32
  }
  func.func @transform_5(%arg0: i32) -> (i32, i32) {
    %c0_i32 = arith.constant 0 : i32
    %c0_i32_0 = arith.constant 0 : i32
    return %arg0, %c0_i32 : i32, i32
  }
}

module attributes {stable_mosaic.version = 11 : i64} {
  func.func @_mm_affine_act_kernel(%arg0: i32, %arg1: memref<32x64xf32, #tpu.memory_space<vmem>>, %arg2: memref<64x128xf32, #tpu.memory_space<vmem>>, %arg3: memref<1x128xf32, #tpu.memory_space<vmem>>, %arg4: memref<1x128xf32, #tpu.memory_space<vmem>>, %arg5: memref<32x128xf32, #tpu.memory_space<vmem>>) attributes {dimension_semantics = [#tpu.dimension_semantics<parallel>], iteration_bounds = array<i64: 1>, scalar_prefetch = 0 : i64, scratch_operands = 0 : i64, tpu.core_type = #tpu.core_type<tc>, window_params = [{transform_indices = @transform_0, window_bounds = array<i64: 32, 64>}, {pipeline_mode = #tpu.pipeline_mode<synchronous>, transform_indices = @transform_1, window_bounds = array<i64: 64, 128>}, {pipeline_mode = #tpu.pipeline_mode<synchronous>, transform_indices = @transform_2, window_bounds = array<i64: 1, 128>}, {pipeline_mode = #tpu.pipeline_mode<synchronous>, transform_indices = @transform_3, window_bounds = array<i64: 1, 128>}, {transform_indices = @transform_4, window_bounds = array<i64: 32, 128>}]} {
    %c0 = arith.constant 0 : index
    %c0_0 = arith.constant 0 : index
    %0 = vector.load %arg1[%c0, %c0_0] : memref<32x64xf32, #tpu.memory_space<vmem>>, vector<32x64xf32>
    %c0_1 = arith.constant 0 : index
    %c0_2 = arith.constant 0 : index
    %1 = vector.load %arg2[%c0_1, %c0_2] : memref<64x128xf32, #tpu.memory_space<vmem>>, vector<64x128xf32>
    %cst = arith.constant dense<0.000000e+00> : vector<32x128xf32>
    %2 = tpu.matmul %0, %1, %cst {dimension_numbers = #tpu.dot_dimension_numbers<[1], [0], [0], [1], [0, 0, 1, 1], [], []>} : vector<32x64xf32>, vector<64x128xf32>, vector<32x128xf32> -> vector<32x128xf32>
    %c0_3 = arith.constant 0 : index
    %c0_4 = arith.constant 0 : index
    %3 = vector.load %arg3[%c0_3, %c0_4] : memref<1x128xf32, #tpu.memory_space<vmem>>, vector<1x128xf32>
    %4 = vector.broadcast %3 : vector<1x128xf32> to vector<32x128xf32>
    %5 = arith.mulf %2, %4 : vector<32x128xf32>
    %c0_5 = arith.constant 0 : index
    %c0_6 = arith.constant 0 : index
    %6 = vector.load %arg4[%c0_5, %c0_6] : memref<1x128xf32, #tpu.memory_space<vmem>>, vector<1x128xf32>
    %7 = vector.broadcast %6 : vector<1x128xf32> to vector<32x128xf32>
    %8 = arith.addf %5, %7 : vector<32x128xf32>
    %c0_7 = arith.constant 0 : index
    %c0_8 = arith.constant 0 : index
    %9 = vector.load %arg5[%c0_7, %c0_8] : memref<32x128xf32, #tpu.memory_space<vmem>>, vector<32x128xf32>
    tpu.vector_store %arg5[%c0_7, %c0_8], %8 {strides = array<i32>} : memref<32x128xf32, #tpu.memory_space<vmem>>, vector<32x128xf32>,
    return
  }
  func.func @transform_0(%arg0: i32) -> (i32, i32) {
    %c0_i32 = arith.constant 0 : i32
    %c0_i32_0 = arith.constant 0 : i32
    return %arg0, %c0_i32 : i32, i32
  }
  func.func @transform_1(%arg0: i32) -> (i32, i32) {
    %c0_i32 = arith.constant 0 : i32
    %c0_i32_0 = arith.constant 0 : i32
    %c0_i32_1 = arith.constant 0 : i32
    return %c0_i32, %c0_i32_0 : i32, i32
  }
  func.func @transform_2(%arg0: i32) -> (i32, i32) {
    %c0_i32 = arith.constant 0 : i32
    %c0_i32_0 = arith.constant 0 : i32
    %c0_i32_1 = arith.constant 0 : i32
    return %c0_i32, %c0_i32_0 : i32, i32
  }
  func.func @transform_3(%arg0: i32) -> (i32, i32) {
    %c0_i32 = arith.constant 0 : i32
    %c0_i32_0 = arith.constant 0 : i32
    %c0_i32_1 = arith.constant 0 : i32
    return %c0_i32, %c0_i32_0 : i32, i32
  }
  func.func @transform_4(%arg0: i32) -> (i32, i32) {
    %c0_i32 = arith.constant 0 : i32
    %c0_i32_0 = arith.constant 0 : i32
    return %arg0, %c0_i32 : i32, i32
  }
}

module attributes {stable_mosaic.version = 11 : i64} {
  func.func @_mm_affine_act_kernel(%arg0: i32, %arg1: memref<32x128xf32, #tpu.memory_space<vmem>>, %arg2: memref<128x128xf32, #tpu.memory_space<vmem>>, %arg3: memref<1x128xf32, #tpu.memory_space<vmem>>, %arg4: memref<1x128xf32, #tpu.memory_space<vmem>>, %arg5: memref<32x128xf32, #tpu.memory_space<vmem>>) attributes {dimension_semantics = [#tpu.dimension_semantics<parallel>], iteration_bounds = array<i64: 1>, scalar_prefetch = 0 : i64, scratch_operands = 0 : i64, tpu.core_type = #tpu.core_type<tc>, window_params = [{transform_indices = @transform_0, window_bounds = array<i64: 32, 128>}, {pipeline_mode = #tpu.pipeline_mode<synchronous>, transform_indices = @transform_1, window_bounds = array<i64: 128, 128>}, {pipeline_mode = #tpu.pipeline_mode<synchronous>, transform_indices = @transform_2, window_bounds = array<i64: 1, 128>}, {pipeline_mode = #tpu.pipeline_mode<synchronous>, transform_indices = @transform_3, window_bounds = array<i64: 1, 128>}, {transform_indices = @transform_4, window_bounds = array<i64: 32, 128>}]} {
    %c0 = arith.constant 0 : index
    %c0_0 = arith.constant 0 : index
    %0 = vector.load %arg1[%c0, %c0_0] : memref<32x128xf32, #tpu.memory_space<vmem>>, vector<32x128xf32>
    %c0_1 = arith.constant 0 : index
    %c0_2 = arith.constant 0 : index
    %1 = vector.load %arg2[%c0_1, %c0_2] : memref<128x128xf32, #tpu.memory_space<vmem>>, vector<128x128xf32>
    %cst = arith.constant dense<0.000000e+00> : vector<32x128xf32>
    %2 = tpu.matmul %0, %1, %cst {dimension_numbers = #tpu.dot_dimension_numbers<[1], [0], [0], [1], [0, 0, 1, 1], [], []>} : vector<32x128xf32>, vector<128x128xf32>, vector<32x128xf32> -> vector<32x128xf32>
    %c0_3 = arith.constant 0 : index
    %c0_4 = arith.constant 0 : index
    %3 = vector.load %arg3[%c0_3, %c0_4] : memref<1x128xf32, #tpu.memory_space<vmem>>, vector<1x128xf32>
    %4 = vector.broadcast %3 : vector<1x128xf32> to vector<32x128xf32>
    %5 = arith.mulf %2, %4 : vector<32x128xf32>
    %c0_5 = arith.constant 0 : index
    %c0_6 = arith.constant 0 : index
    %6 = vector.load %arg4[%c0_5, %c0_6] : memref<1x128xf32, #tpu.memory_space<vmem>>, vector<1x128xf32>
    %7 = vector.broadcast %6 : vector<1x128xf32> to vector<32x128xf32>
    %8 = arith.addf %5, %7 : vector<32x128xf32>
    %cst_7 = arith.constant 0.000000e+00 : f32
    %9 = vector.broadcast %cst_7 : f32 to vector<32x128xf32>
    %10 = arith.maximumf %8, %9 : vector<32x128xf32>
    %c0_8 = arith.constant 0 : index
    %c0_9 = arith.constant 0 : index
    %11 = vector.load %arg5[%c0_8, %c0_9] : memref<32x128xf32, #tpu.memory_space<vmem>>, vector<32x128xf32>
    tpu.vector_store %arg5[%c0_8, %c0_9], %10 {strides = array<i32>} : memref<32x128xf32, #tpu.memory_space<vmem>>, vector<32x128xf32>,
    return
  }
  func.func @transform_0(%arg0: i32) -> (i32, i32) {
    %c0_i32 = arith.constant 0 : i32
    %c0_i32_0 = arith.constant 0 : i32
    return %arg0, %c0_i32 : i32, i32
  }
  func.func @transform_1(%arg0: i32) -> (i32, i32) {
    %c0_i32 = arith.constant 0 : i32
    %c0_i32_0 = arith.constant 0 : i32
    %c0_i32_1 = arith.constant 0 : i32
    return %c0_i32, %c0_i32_0 : i32, i32
  }
  func.func @transform_2(%arg0: i32) -> (i32, i32) {
    %c0_i32 = arith.constant 0 : i32
    %c0_i32_0 = arith.constant 0 : i32
    %c0_i32_1 = arith.constant 0 : i32
    return %c0_i32, %c0_i32_0 : i32, i32
  }
  func.func @transform_3(%arg0: i32) -> (i32, i32) {
    %c0_i32 = arith.constant 0 : i32
    %c0_i32_0 = arith.constant 0 : i32
    %c0_i32_1 = arith.constant 0 : i32
    return %c0_i32, %c0_i32_0 : i32, i32
  }
  func.func @transform_4(%arg0: i32) -> (i32, i32) {
    %c0_i32 = arith.constant 0 : i32
    %c0_i32_0 = arith.constant 0 : i32
    return %arg0, %c0_i32 : i32, i32
  }
}

module attributes {stable_mosaic.version = 11 : i64} {
  func.func @_mm_affine_act_kernel(%arg0: i32, %arg1: memref<32x3456xf32, #tpu.memory_space<vmem>>, %arg2: memref<3456x128xf32, #tpu.memory_space<vmem>>, %arg3: memref<1x128xf32, #tpu.memory_space<vmem>>, %arg4: memref<1x128xf32, #tpu.memory_space<vmem>>, %arg5: memref<32x128xf32, #tpu.memory_space<vmem>>) attributes {dimension_semantics = [#tpu.dimension_semantics<parallel>], iteration_bounds = array<i64: 1>, scalar_prefetch = 0 : i64, scratch_operands = 0 : i64, tpu.core_type = #tpu.core_type<tc>, window_params = [{transform_indices = @transform_0, window_bounds = array<i64: 32, 3456>}, {pipeline_mode = #tpu.pipeline_mode<synchronous>, transform_indices = @transform_1, window_bounds = array<i64: 3456, 128>}, {pipeline_mode = #tpu.pipeline_mode<synchronous>, transform_indices = @transform_2, window_bounds = array<i64: 1, 128>}, {pipeline_mode = #tpu.pipeline_mode<synchronous>, transform_indices = @transform_3, window_bounds = array<i64: 1, 128>}, {transform_indices = @transform_4, window_bounds = array<i64: 32, 128>}]} {
    %c0 = arith.constant 0 : index
    %c0_0 = arith.constant 0 : index
    %0 = vector.load %arg1[%c0, %c0_0] : memref<32x3456xf32, #tpu.memory_space<vmem>>, vector<32x3456xf32>
    %c0_1 = arith.constant 0 : index
    %c0_2 = arith.constant 0 : index
    %1 = vector.load %arg2[%c0_1, %c0_2] : memref<3456x128xf32, #tpu.memory_space<vmem>>, vector<3456x128xf32>
    %cst = arith.constant dense<0.000000e+00> : vector<32x128xf32>
    %2 = tpu.matmul %0, %1, %cst {dimension_numbers = #tpu.dot_dimension_numbers<[1], [0], [0], [1], [0, 0, 1, 1], [], []>} : vector<32x3456xf32>, vector<3456x128xf32>, vector<32x128xf32> -> vector<32x128xf32>
    %c0_3 = arith.constant 0 : index
    %c0_4 = arith.constant 0 : index
    %3 = vector.load %arg3[%c0_3, %c0_4] : memref<1x128xf32, #tpu.memory_space<vmem>>, vector<1x128xf32>
    %4 = vector.broadcast %3 : vector<1x128xf32> to vector<32x128xf32>
    %5 = arith.mulf %2, %4 : vector<32x128xf32>
    %c0_5 = arith.constant 0 : index
    %c0_6 = arith.constant 0 : index
    %6 = vector.load %arg4[%c0_5, %c0_6] : memref<1x128xf32, #tpu.memory_space<vmem>>, vector<1x128xf32>
    %7 = vector.broadcast %6 : vector<1x128xf32> to vector<32x128xf32>
    %8 = arith.addf %5, %7 : vector<32x128xf32>
    %cst_7 = arith.constant 0.000000e+00 : f32
    %9 = vector.broadcast %cst_7 : f32 to vector<32x128xf32>
    %10 = arith.maximumf %8, %9 : vector<32x128xf32>
    %c0_8 = arith.constant 0 : index
    %c0_9 = arith.constant 0 : index
    %11 = vector.load %arg5[%c0_8, %c0_9] : memref<32x128xf32, #tpu.memory_space<vmem>>, vector<32x128xf32>
    tpu.vector_store %arg5[%c0_8, %c0_9], %10 {strides = array<i32>} : memref<32x128xf32, #tpu.memory_space<vmem>>, vector<32x128xf32>,
    return
  }
  func.func @transform_0(%arg0: i32) -> (i32, i32) {
    %c0_i32 = arith.constant 0 : i32
    %c0_i32_0 = arith.constant 0 : i32
    return %arg0, %c0_i32 : i32, i32
  }
  func.func @transform_1(%arg0: i32) -> (i32, i32) {
    %c0_i32 = arith.constant 0 : i32
    %c0_i32_0 = arith.constant 0 : i32
    %c0_i32_1 = arith.constant 0 : i32
    return %c0_i32, %c0_i32_0 : i32, i32
  }
  func.func @transform_2(%arg0: i32) -> (i32, i32) {
    %c0_i32 = arith.constant 0 : i32
    %c0_i32_0 = arith.constant 0 : i32
    %c0_i32_1 = arith.constant 0 : i32
    return %c0_i32, %c0_i32_0 : i32, i32
  }
  func.func @transform_3(%arg0: i32) -> (i32, i32) {
    %c0_i32 = arith.constant 0 : i32
    %c0_i32_0 = arith.constant 0 : i32
    %c0_i32_1 = arith.constant 0 : i32
    return %c0_i32, %c0_i32_0 : i32, i32
  }
  func.func @transform_4(%arg0: i32) -> (i32, i32) {
    %c0_i32 = arith.constant 0 : i32
    %c0_i32_0 = arith.constant 0 : i32
    return %arg0, %c0_i32 : i32, i32
  }
}

module attributes {stable_mosaic.version = 11 : i64} {
  func.func @_mm_affine_act_kernel(%arg0: i32, %arg1: memref<8x1152xf32, #tpu.memory_space<vmem>>, %arg2: memref<1152x128xf32, #tpu.memory_space<vmem>>, %arg3: memref<1x128xf32, #tpu.memory_space<vmem>>, %arg4: memref<1x128xf32, #tpu.memory_space<vmem>>, %arg5: memref<8x128xf32, #tpu.memory_space<vmem>>) attributes {dimension_semantics = [#tpu.dimension_semantics<parallel>], iteration_bounds = array<i64: 1>, scalar_prefetch = 0 : i64, scratch_operands = 0 : i64, tpu.core_type = #tpu.core_type<tc>, window_params = [{transform_indices = @transform_0, window_bounds = array<i64: 8, 1152>}, {pipeline_mode = #tpu.pipeline_mode<synchronous>, transform_indices = @transform_1, window_bounds = array<i64: 1152, 128>}, {pipeline_mode = #tpu.pipeline_mode<synchronous>, transform_indices = @transform_2, window_bounds = array<i64: 1, 128>}, {pipeline_mode = #tpu.pipeline_mode<synchronous>, transform_indices = @transform_3, window_bounds = array<i64: 1, 128>}, {transform_indices = @transform_4, window_bounds = array<i64: 8, 128>}]} {
    %c0 = arith.constant 0 : index
    %c0_0 = arith.constant 0 : index
    %0 = vector.load %arg1[%c0, %c0_0] : memref<8x1152xf32, #tpu.memory_space<vmem>>, vector<8x1152xf32>
    %c0_1 = arith.constant 0 : index
    %c0_2 = arith.constant 0 : index
    %1 = vector.load %arg2[%c0_1, %c0_2] : memref<1152x128xf32, #tpu.memory_space<vmem>>, vector<1152x128xf32>
    %cst = arith.constant dense<0.000000e+00> : vector<8x128xf32>
    %2 = tpu.matmul %0, %1, %cst {dimension_numbers = #tpu.dot_dimension_numbers<[1], [0], [0], [1], [0, 0, 1, 1], [], []>} : vector<8x1152xf32>, vector<1152x128xf32>, vector<8x128xf32> -> vector<8x128xf32>
    %c0_3 = arith.constant 0 : index
    %c0_4 = arith.constant 0 : index
    %3 = vector.load %arg3[%c0_3, %c0_4] : memref<1x128xf32, #tpu.memory_space<vmem>>, vector<1x128xf32>
    %4 = vector.broadcast %3 : vector<1x128xf32> to vector<8x128xf32>
    %5 = arith.mulf %2, %4 : vector<8x128xf32>
    %c0_5 = arith.constant 0 : index
    %c0_6 = arith.constant 0 : index
    %6 = vector.load %arg4[%c0_5, %c0_6] : memref<1x128xf32, #tpu.memory_space<vmem>>, vector<1x128xf32>
    %7 = vector.broadcast %6 : vector<1x128xf32> to vector<8x128xf32>
    %8 = arith.addf %5, %7 : vector<8x128xf32>
    %cst_7 = arith.constant 0.000000e+00 : f32
    %9 = vector.broadcast %cst_7 : f32 to vector<8x128xf32>
    %10 = arith.maximumf %8, %9 : vector<8x128xf32>
    %c0_8 = arith.constant 0 : index
    %c0_9 = arith.constant 0 : index
    %11 = vector.load %arg5[%c0_8, %c0_9] : memref<8x128xf32, #tpu.memory_space<vmem>>, vector<8x128xf32>
    tpu.vector_store %arg5[%c0_8, %c0_9], %10 {strides = array<i32>} : memref<8x128xf32, #tpu.memory_space<vmem>>, vector<8x128xf32>,
    return
  }
  func.func @transform_0(%arg0: i32) -> (i32, i32) {
    %c0_i32 = arith.constant 0 : i32
    %c0_i32_0 = arith.constant 0 : i32
    return %arg0, %c0_i32 : i32, i32
  }
  func.func @transform_1(%arg0: i32) -> (i32, i32) {
    %c0_i32 = arith.constant 0 : i32
    %c0_i32_0 = arith.constant 0 : i32
    %c0_i32_1 = arith.constant 0 : i32
    return %c0_i32, %c0_i32_0 : i32, i32
  }
  func.func @transform_2(%arg0: i32) -> (i32, i32) {
    %c0_i32 = arith.constant 0 : i32
    %c0_i32_0 = arith.constant 0 : i32
    %c0_i32_1 = arith.constant 0 : i32
    return %c0_i32, %c0_i32_0 : i32, i32
  }
  func.func @transform_3(%arg0: i32) -> (i32, i32) {
    %c0_i32 = arith.constant 0 : i32
    %c0_i32_0 = arith.constant 0 : i32
    %c0_i32_1 = arith.constant 0 : i32
    return %c0_i32, %c0_i32_0 : i32, i32
  }
  func.func @transform_4(%arg0: i32) -> (i32, i32) {
    %c0_i32 = arith.constant 0 : i32
    %c0_i32_0 = arith.constant 0 : i32
    return %arg0, %c0_i32 : i32, i32
  }
}

module attributes {stable_mosaic.version = 11 : i64} {
  func.func @_mm_affine_act_kernel(%arg0: i32, %arg1: memref<8x128xf32, #tpu.memory_space<vmem>>, %arg2: memref<128x256xf32, #tpu.memory_space<vmem>>, %arg3: memref<1x256xf32, #tpu.memory_space<vmem>>, %arg4: memref<1x256xf32, #tpu.memory_space<vmem>>, %arg5: memref<8x256xf32, #tpu.memory_space<vmem>>) attributes {dimension_semantics = [#tpu.dimension_semantics<parallel>], iteration_bounds = array<i64: 1>, scalar_prefetch = 0 : i64, scratch_operands = 0 : i64, tpu.core_type = #tpu.core_type<tc>, window_params = [{transform_indices = @transform_0, window_bounds = array<i64: 8, 128>}, {pipeline_mode = #tpu.pipeline_mode<synchronous>, transform_indices = @transform_1, window_bounds = array<i64: 128, 256>}, {pipeline_mode = #tpu.pipeline_mode<synchronous>, transform_indices = @transform_2, window_bounds = array<i64: 1, 256>}, {pipeline_mode = #tpu.pipeline_mode<synchronous>, transform_indices = @transform_3, window_bounds = array<i64: 1, 256>}, {transform_indices = @transform_4, window_bounds = array<i64: 8, 256>}]} {
    %c0 = arith.constant 0 : index
    %c0_0 = arith.constant 0 : index
    %0 = vector.load %arg1[%c0, %c0_0] : memref<8x128xf32, #tpu.memory_space<vmem>>, vector<8x128xf32>
    %c0_1 = arith.constant 0 : index
    %c0_2 = arith.constant 0 : index
    %1 = vector.load %arg2[%c0_1, %c0_2] : memref<128x256xf32, #tpu.memory_space<vmem>>, vector<128x256xf32>
    %cst = arith.constant dense<0.000000e+00> : vector<8x256xf32>
    %2 = tpu.matmul %0, %1, %cst {dimension_numbers = #tpu.dot_dimension_numbers<[1], [0], [0], [1], [0, 0, 1, 1], [], []>} : vector<8x128xf32>, vector<128x256xf32>, vector<8x256xf32> -> vector<8x256xf32>
    %c0_3 = arith.constant 0 : index
    %c0_4 = arith.constant 0 : index
    %3 = vector.load %arg3[%c0_3, %c0_4] : memref<1x256xf32, #tpu.memory_space<vmem>>, vector<1x256xf32>
    %4 = vector.broadcast %3 : vector<1x256xf32> to vector<8x256xf32>
    %5 = arith.mulf %2, %4 : vector<8x256xf32>
    %c0_5 = arith.constant 0 : index
    %c0_6 = arith.constant 0 : index
    %6 = vector.load %arg4[%c0_5, %c0_6] : memref<1x256xf32, #tpu.memory_space<vmem>>, vector<1x256xf32>
    %7 = vector.broadcast %6 : vector<1x256xf32> to vector<8x256xf32>
    %8 = arith.addf %5, %7 : vector<8x256xf32>
    %c0_7 = arith.constant 0 : index
    %c0_8 = arith.constant 0 : index
    %9 = vector.load %arg5[%c0_7, %c0_8] : memref<8x256xf32, #tpu.memory_space<vmem>>, vector<8x256xf32>
    tpu.vector_store %arg5[%c0_7, %c0_8], %8 {strides = array<i32>} : memref<8x256xf32, #tpu.memory_space<vmem>>, vector<8x256xf32>,
    return
  }
  func.func @transform_0(%arg0: i32) -> (i32, i32) {
    %c0_i32 = arith.constant 0 : i32
    %c0_i32_0 = arith.constant 0 : i32
    return %arg0, %c0_i32 : i32, i32
  }
  func.func @transform_1(%arg0: i32) -> (i32, i32) {
    %c0_i32 = arith.constant 0 : i32
    %c0_i32_0 = arith.constant 0 : i32
    %c0_i32_1 = arith.constant 0 : i32
    return %c0_i32, %c0_i32_0 : i32, i32
  }
  func.func @transform_2(%arg0: i32) -> (i32, i32) {
    %c0_i32 = arith.constant 0 : i32
    %c0_i32_0 = arith.constant 0 : i32
    %c0_i32_1 = arith.constant 0 : i32
    return %c0_i32, %c0_i32_0 : i32, i32
  }
  func.func @transform_3(%arg0: i32) -> (i32, i32) {
    %c0_i32 = arith.constant 0 : i32
    %c0_i32_0 = arith.constant 0 : i32
    %c0_i32_1 = arith.constant 0 : i32
    return %c0_i32, %c0_i32_0 : i32, i32
  }
  func.func @transform_4(%arg0: i32) -> (i32, i32) {
    %c0_i32 = arith.constant 0 : i32
    %c0_i32_0 = arith.constant 0 : i32
    return %arg0, %c0_i32 : i32, i32
  }
}

module attributes {stable_mosaic.version = 11 : i64} {
  func.func @_mm_affine_res_relu_kernel(%arg0: i32, %arg1: memref<8x128xf32, #tpu.memory_space<vmem>>, %arg2: memref<128x256xf32, #tpu.memory_space<vmem>>, %arg3: memref<1x256xf32, #tpu.memory_space<vmem>>, %arg4: memref<1x256xf32, #tpu.memory_space<vmem>>, %arg5: memref<8x256xf32, #tpu.memory_space<vmem>>, %arg6: memref<8x256xf32, #tpu.memory_space<vmem>>) attributes {dimension_semantics = [#tpu.dimension_semantics<parallel>], iteration_bounds = array<i64: 1>, scalar_prefetch = 0 : i64, scratch_operands = 0 : i64, tpu.core_type = #tpu.core_type<tc>, window_params = [{transform_indices = @transform_0, window_bounds = array<i64: 8, 128>}, {pipeline_mode = #tpu.pipeline_mode<synchronous>, transform_indices = @transform_1, window_bounds = array<i64: 128, 256>}, {pipeline_mode = #tpu.pipeline_mode<synchronous>, transform_indices = @transform_2, window_bounds = array<i64: 1, 256>}, {pipeline_mode = #tpu.pipeline_mode<synchronous>, transform_indices = @transform_3, window_bounds = array<i64: 1, 256>}, {transform_indices = @transform_4, window_bounds = array<i64: 8, 256>}, {transform_indices = @transform_5, window_bounds = array<i64: 8, 256>}]} {
    %c0 = arith.constant 0 : index
    %c0_0 = arith.constant 0 : index
    %0 = vector.load %arg1[%c0, %c0_0] : memref<8x128xf32, #tpu.memory_space<vmem>>, vector<8x128xf32>
    %c0_1 = arith.constant 0 : index
    %c0_2 = arith.constant 0 : index
    %1 = vector.load %arg2[%c0_1, %c0_2] : memref<128x256xf32, #tpu.memory_space<vmem>>, vector<128x256xf32>
    %cst = arith.constant dense<0.000000e+00> : vector<8x256xf32>
    %2 = tpu.matmul %0, %1, %cst {dimension_numbers = #tpu.dot_dimension_numbers<[1], [0], [0], [1], [0, 0, 1, 1], [], []>} : vector<8x128xf32>, vector<128x256xf32>, vector<8x256xf32> -> vector<8x256xf32>
    %c0_3 = arith.constant 0 : index
    %c0_4 = arith.constant 0 : index
    %3 = vector.load %arg3[%c0_3, %c0_4] : memref<1x256xf32, #tpu.memory_space<vmem>>, vector<1x256xf32>
    %4 = vector.broadcast %3 : vector<1x256xf32> to vector<8x256xf32>
    %5 = arith.mulf %2, %4 : vector<8x256xf32>
    %c0_5 = arith.constant 0 : index
    %c0_6 = arith.constant 0 : index
    %6 = vector.load %arg4[%c0_5, %c0_6] : memref<1x256xf32, #tpu.memory_space<vmem>>, vector<1x256xf32>
    %7 = vector.broadcast %6 : vector<1x256xf32> to vector<8x256xf32>
    %8 = arith.addf %5, %7 : vector<8x256xf32>
    %c0_7 = arith.constant 0 : index
    %c0_8 = arith.constant 0 : index
    %9 = vector.load %arg5[%c0_7, %c0_8] : memref<8x256xf32, #tpu.memory_space<vmem>>, vector<8x256xf32>
    %10 = arith.addf %8, %9 : vector<8x256xf32>
    %cst_9 = arith.constant 0.000000e+00 : f32
    %11 = vector.broadcast %cst_9 : f32 to vector<8x256xf32>
    %12 = arith.maximumf %10, %11 : vector<8x256xf32>
    %c0_10 = arith.constant 0 : index
    %c0_11 = arith.constant 0 : index
    %13 = vector.load %arg6[%c0_10, %c0_11] : memref<8x256xf32, #tpu.memory_space<vmem>>, vector<8x256xf32>
    tpu.vector_store %arg6[%c0_10, %c0_11], %12 {strides = array<i32>} : memref<8x256xf32, #tpu.memory_space<vmem>>, vector<8x256xf32>,
    return
  }
  func.func @transform_0(%arg0: i32) -> (i32, i32) {
    %c0_i32 = arith.constant 0 : i32
    %c0_i32_0 = arith.constant 0 : i32
    return %arg0, %c0_i32 : i32, i32
  }
  func.func @transform_1(%arg0: i32) -> (i32, i32) {
    %c0_i32 = arith.constant 0 : i32
    %c0_i32_0 = arith.constant 0 : i32
    %c0_i32_1 = arith.constant 0 : i32
    return %c0_i32, %c0_i32_0 : i32, i32
  }
  func.func @transform_2(%arg0: i32) -> (i32, i32) {
    %c0_i32 = arith.constant 0 : i32
    %c0_i32_0 = arith.constant 0 : i32
    %c0_i32_1 = arith.constant 0 : i32
    return %c0_i32, %c0_i32_0 : i32, i32
  }
  func.func @transform_3(%arg0: i32) -> (i32, i32) {
    %c0_i32 = arith.constant 0 : i32
    %c0_i32_0 = arith.constant 0 : i32
    %c0_i32_1 = arith.constant 0 : i32
    return %c0_i32, %c0_i32_0 : i32, i32
  }
  func.func @transform_4(%arg0: i32) -> (i32, i32) {
    %c0_i32 = arith.constant 0 : i32
    %c0_i32_0 = arith.constant 0 : i32
    return %arg0, %c0_i32 : i32, i32
  }
  func.func @transform_5(%arg0: i32) -> (i32, i32) {
    %c0_i32 = arith.constant 0 : i32
    %c0_i32_0 = arith.constant 0 : i32
    return %arg0, %c0_i32 : i32, i32
  }
}

module attributes {stable_mosaic.version = 11 : i64} {
  func.func @_tail_kernel(%arg0: memref<8x256xf32, #tpu.memory_space<vmem>>, %arg1: memref<256x4xf32, #tpu.memory_space<vmem>>, %arg2: memref<1x4xf32, #tpu.memory_space<vmem>>, %arg3: memref<1x4xf32, #tpu.memory_space<vmem>>, %arg4: memref<2x8xf32, #tpu.memory_space<vmem>>, %arg5: memref<2x4xf32, #tpu.memory_space<vmem>>) attributes {dimension_semantics = [], scalar_prefetch = 0 : i64, scratch_operands = 0 : i64, tpu.core_type = #tpu.core_type<tc>} {
    %c0 = arith.constant 0 : index
    %c0_0 = arith.constant 0 : index
    %0 = vector.load %arg0[%c0, %c0_0] : memref<8x256xf32, #tpu.memory_space<vmem>>, vector<8x256xf32>
    %c0_1 = arith.constant 0 : index
    %c0_2 = arith.constant 0 : index
    %1 = vector.load %arg1[%c0_1, %c0_2] : memref<256x4xf32, #tpu.memory_space<vmem>>, vector<256x4xf32>
    %cst = arith.constant dense<0.000000e+00> : vector<8x4xf32>
    %2 = tpu.matmul %0, %1, %cst {dimension_numbers = #tpu.dot_dimension_numbers<[1], [0], [0], [1], [0, 0, 1, 1], [], []>} : vector<8x256xf32>, vector<256x4xf32>, vector<8x4xf32> -> vector<8x4xf32>
    %c0_3 = arith.constant 0 : index
    %c0_4 = arith.constant 0 : index
    %3 = vector.load %arg2[%c0_3, %c0_4] : memref<1x4xf32, #tpu.memory_space<vmem>>, vector<1x4xf32>
    %4 = vector.broadcast %3 : vector<1x4xf32> to vector<8x4xf32>
    %5 = arith.mulf %2, %4 : vector<8x4xf32>
    %c0_5 = arith.constant 0 : index
    %c0_6 = arith.constant 0 : index
    %6 = vector.load %arg3[%c0_5, %c0_6] : memref<1x4xf32, #tpu.memory_space<vmem>>, vector<1x4xf32>
    %7 = vector.broadcast %6 : vector<1x4xf32> to vector<8x4xf32>
    %8 = arith.addf %5, %7 : vector<8x4xf32>
    %cst_7 = arith.constant 0.000000e+00 : f32
    %9 = vector.broadcast %cst_7 : f32 to vector<8x4xf32>
    %10 = arith.maximumf %8, %9 : vector<8x4xf32>
    %c0_8 = arith.constant 0 : index
    %c0_9 = arith.constant 0 : index
    %11 = vector.load %arg4[%c0_8, %c0_9] : memref<2x8xf32, #tpu.memory_space<vmem>>, vector<2x8xf32>
    %cst_10 = arith.constant dense<0.000000e+00> : vector<2x4xf32>
    %12 = tpu.matmul %11, %10, %cst_10 {dimension_numbers = #tpu.dot_dimension_numbers<[1], [0], [0], [1], [0, 0, 1, 1], [], []>} : vector<2x8xf32>, vector<8x4xf32>, vector<2x4xf32> -> vector<2x4xf32>
    %cst_11 = arith.constant 0.000000e+00 : f32
    %13 = vector.broadcast %cst_11 : f32 to vector<2x4xf32>
    %14 = arith.maximumf %12, %13 : vector<2x4xf32>
    %c0_12 = arith.constant 0 : index
    %c0_13 = arith.constant 0 : index
    %15 = vector.load %arg5[%c0_12, %c0_13] : memref<2x4xf32, #tpu.memory_space<vmem>>, vector<2x4xf32>
    tpu.vector_store %arg5[%c0_12, %c0_13], %14 {strides = array<i32>} : memref<2x4xf32, #tpu.memory_space<vmem>>, vector<2x4xf32>,
    return
  }
}

</mosaic_0001>

<llo_original>
// kernel: frbnet_forward.17
$region0: #{frbnet_forward.17}
  #allocation0 [shape = 'u32[]', space=smem, size = 0x4, offset = 0x4, fixed_abs, tag = 'smem constant byte address 0x4 - core index']
  #allocation1 [shape = 'u32[144,128]{1,0:T(1,128)}', space=vmem, size = 0x12000, scoped, tag = 'internal scratch']
  %s0 = inlined_call_operand.vmem [shape: f32[512,49], index: 0, kind: input, shape index: {}]
  %s1 = inlined_call_operand.vmem [shape: f32[49,32], index: 1, kind: input, shape index: {}]
  %s2 = inlined_call_operand.vmem [shape: f32[1,32], index: 2, kind: input, shape index: {}]
  %s3 = inlined_call_operand.vmem [shape: f32[1,32], index: 3, kind: input, shape index: {}]
  %s4 = inlined_call_operand.vmem [shape: f32[512,32], index: 4, kind: output, shape index: {}]
  %s5 = sld [smem:[#allocation0]]
  $region49: #{frbnet_forward.17} parent=0
    _
  %s7 = ssub.s32 1, %s5
  %s8 = scalar_select 0, %s7, %s5
  loop: start=0, step=1, limit=4
  $region2: #{frbnet_forward.17} parent=0 // loop_pre_header
    _
  $region3: #{frbnet_forward.17} parent=0 // loop_header
    %s10 = sphi 0, %s14
    %p11 = scmp.ge.s32.totalorder %s10, 4
    %s20 = sphi 0, %s22
    %s23 = sphi 0, %s20
    %s24 = sphi 0, %s23
    %s40 = sphi 0, %s24
    %s44 = sphi 0, %s44
    %s46 = sphi 0, %s44
    %s47 = sphi 0, %s46
    %s61 = sphi 0, %s47
    %s65 = sphi 0, %s65
    %s67 = sphi 0, %s65
    %s68 = sphi 0, %s67
    %s82 = sphi 0, %s68
    %s86 = sphi 0, %s86
    %s88 = sphi 0, %s86
    %s89 = sphi 0, %s88
    %s103 = sphi 0, %s89
    %s109 = sphi 0, %s111
    %s112 = sphi 0, %s109
    %s113 = sphi 0, %s112
    %s129 = sphi 0, %s113
  $region4: #{frbnet_forward.17} parent=0 // loop_header_branch
    %13 = sbr.rel (%p11) target = $region8
  $region5: #{frbnet_forward.17} parent=0 // loop_body
    %s15 = ssub.s32 %s10, 1
    %s16 = ssub.s32 %s10, 2
    %s17 = sadd.s32 %s10, 1
    %s18 = ssub.s32 %s10, %s17
    %p19 = scmp.eq.s32.totalorder %s18, 0
    %s21 = sadd.s32 %s20, 1
    %s22 = scalar_select %p19, %s20, %s21
    %p25 = pneg %p19
    %p26 = scmp.eq.s32.totalorder %s10, 1
    %p27 = por %p25, %p26
    %p28 = scmp.ne.s32.totalorder %s20, %s23
    %p29 = scmp.eq.s32.totalorder %s10, 0
    %p30 = por %p28, %p29
    %p31 = scmp.ne.s32.totalorder %s20, %s23
    %p32 = scmp.eq.s32.totalorder %s15, 1
    %p33 = por %p31, %p32
    %p34 = scmp.ne.s32.totalorder %s23, %s24
    %p35 = scmp.eq.s32.totalorder %s15, 0
    %p36 = por %p34, %p35
    %p37 = scmp.ne.s32.totalorder %s23, %s24
    %p38 = scmp.eq.s32.totalorder %s16, 1
    %p39 = por %p37, %p38
    %p41 = scmp.ne.s32.totalorder %s24, %s40
    %p42 = scmp.eq.s32.totalorder %s16, 0
    %p43 = por %p41, %p42
    %s45 = sadd.s32 %s44, 1
    %p48 = scmp.eq.s32.totalorder %s10, 1
    %p49 = scmp.ne.s32.totalorder %s44, %s46
    %p50 = scmp.eq.s32.totalorder %s10, 0
    %p51 = por %p49, %p50
    %p52 = scmp.ne.s32.totalorder %s44, %s46
    %p53 = scmp.eq.s32.totalorder %s15, 1
    %p54 = por %p52, %p53
    %p55 = scmp.ne.s32.totalorder %s46, %s47
    %p56 = scmp.eq.s32.totalorder %s15, 0
    %p57 = por %p55, %p56
    %p58 = scmp.ne.s32.totalorder %s46, %s47
    %p59 = scmp.eq.s32.totalorder %s16, 1
    %p60 = por %p58, %p59
    %p62 = scmp.ne.s32.totalorder %s47, %s61
    %p63 = scmp.eq.s32.totalorder %s16, 0
    %p64 = por %p62, %p63
    %s66 = sadd.s32 %s65, 1
    %p69 = scmp.eq.s32.totalorder %s10, 1
    %p70 = scmp.ne.s32.totalorder %s65, %s67
    %p71 = scmp.eq.s32.totalorder %s10, 0
    %p72 = por %p70, %p71
    %p73 = scmp.ne.s32.totalorder %s65, %s67
    %p74 = scmp.eq.s32.totalorder %s15, 1
    %p75 = por %p73, %p74
    %p76 = scmp.ne.s32.totalorder %s67, %s68
    %p77 = scmp.eq.s32.totalorder %s15, 0
    %p78 = por %p76, %p77
    %p79 = scmp.ne.s32.totalorder %s67, %s68
    %p80 = scmp.eq.s32.totalorder %s16, 1
    %p81 = por %p79, %p80
    %p83 = scmp.ne.s32.totalorder %s68, %s82
    %p84 = scmp.eq.s32.totalorder %s16, 0
    %p85 = por %p83, %p84
    %s87 = sadd.s32 %s86, 1
    %p90 = scmp.eq.s32.totalorder %s10, 1
    %p91 = scmp.ne.s32.totalorder %s86, %s88
    %p92 = scmp.eq.s32.totalorder %s10, 0
    %p93 = por %p91, %p92
    %p94 = scmp.ne.s32.totalorder %s86, %s88
    %p95 = scmp.eq.s32.totalorder %s15, 1
    %p96 = por %p94, %p95
    %p97 = scmp.ne.s32.totalorder %s88, %s89
    %p98 = scmp.eq.s32.totalorder %s15, 0
    %p99 = por %p97, %p98
    %p100 = scmp.ne.s32.totalorder %s88, %s89
    %p101 = scmp.eq.s32.totalorder %s16, 1
    %p102 = por %p100, %p101
    %p104 = scmp.ne.s32.totalorder %s89, %s103
    %p105 = scmp.eq.s32.totalorder %s16, 0
    %p106 = por %p104, %p105
    %s107 = ssub.s32 %s10, %s17
    %p108 = scmp.eq.s32.totalorder %s107, 0
    %s110 = sadd.s32 %s109, 1
    %s111 = scalar_select %p108, %s109, %s110
    %p114 = pneg %p108
    %p115 = scmp.eq.s32.totalorder %s10, 1
    %p116 = por %p114, %p115
    %p117 = scmp.ne.s32.totalorder %s109, %s112
    %p118 = scmp.eq.s32.totalorder %s10, 0
    %p119 = por %p117, %p118
    %p120 = scmp.ne.s32.totalorder %s109, %s112
    %p121 = scmp.eq.s32.totalorder %s15, 1
    %p122 = por %p120, %p121
    %p123 = scmp.ne.s32.totalorder %s112, %s113
    %p124 = scmp.eq.s32.totalorder %s15, 0
    %p125 = por %p123, %p124
    %p126 = scmp.ne.s32.totalorder %s112, %s113
    %p127 = scmp.eq.s32.totalorder %s16, 1
    %p128 = por %p126, %p127
    %p130 = scmp.ne.s32.totalorder %s113, %s129
    %p131 = scmp.eq.s32.totalorder %s16, 0
    %p132 = por %p130, %p131
    %p133 = scmp.le.s32.totalorder 1, %s10
    %p134 = scmp.lt.s32.totalorder %s10, 3
    %p135 = pnand %p133, %p134
    %p136 = pneg %p135
    // Predicated region
    $region9: #{frbnet_forward.17} parent=5 // pred_check
      _
    $region10: #{frbnet_forward.17} parent=5 // pred_check_branch
      %138 = sbr.rel (%p135) target = $region12
    $region11: #{frbnet_forward.17} parent=5 // pred_region
      %s139 = ssub.s32 %s10, 1
      // Predicated region
      $region13: #{frbnet_forward.17} parent=11 // pred_check
        %p140 = pneg %p57
      $region14: #{frbnet_forward.17} parent=11 // pred_check_branch
        %142 = sbr.rel (%p140) target = $region16
      $region15: #{frbnet_forward.17} parent=11 // pred_region
        _
      $region16: #{frbnet_forward.17} parent=11 // pred_fallthru
        _
      // Predicated region
      $region17: #{frbnet_forward.17} parent=11 // pred_check
        %p143 = pneg %p78
      $region18: #{frbnet_forward.17} parent=11 // pred_check_branch
        %145 = sbr.rel (%p143) target = $region20
      $region19: #{frbnet_forward.17} parent=11 // pred_region
        _
      $region20: #{frbnet_forward.17} parent=11 // pred_fallthru
        _
      // Predicated region
      $region21: #{frbnet_forward.17} parent=11 // pred_check
        %p146 = pneg %p99
      $region22: #{frbnet_forward.17} parent=11 // pred_check_branch
        %148 = sbr.rel (%p146) target = $region24
      $region23: #{frbnet_forward.17} parent=11 // pred_region
        _
      $region24: #{frbnet_forward.17} parent=11 // pred_fallthru
        _
    $region12: #{frbnet_forward.17} parent=5 // pred_fallthru
      _
    %p149 = scmp.lt.s32.totalorder %s10, 2
    // Predicated region
    $region25: #{frbnet_forward.17} parent=5 // pred_check
      %p150 = pneg %p149
    $region26: #{frbnet_forward.17} parent=5 // pred_check_branch
      %152 = sbr.rel (%p150) target = $region28
    $region27: #{frbnet_forward.17} parent=5 // pred_region
      // Predicated region
      $region29: #{frbnet_forward.17} parent=27 // pred_check
        %p153 = pneg %p30
      $region30: #{frbnet_forward.17} parent=27 // pred_check_branch
        %155 = sbr.rel (%p153) target = $region32
      $region31: #{frbnet_forward.17} parent=27 // pred_region
        %s156 = smul.u32 32, %s10
        %p157 = scmp.lt.s32.totalorder %s156, 63
        %s158 = scalar_select %p157, %s156, 63
        %s159 = smul.addr %s158, 8
        %s160 = scalar_lea.vmem %s0, %s159
        %s161 = smul.u32 32, %s10
      $region32: #{frbnet_forward.17} parent=27 // pred_fallthru
        _
    $region28: #{frbnet_forward.17} parent=5 // pred_fallthru
      _
    %p162 = scmp.le.s32.totalorder 1, %s10
    %p163 = scmp.lt.s32.totalorder %s10, 3
    %p164 = pnand %p162, %p163
    %p165 = pneg %p164
    // Predicated region
    $region33: #{frbnet_forward.17} parent=5 // pred_check
      _
    $region34: #{frbnet_forward.17} parent=5 // pred_check_branch
      %167 = sbr.rel (%p164) target = $region36
    $region35: #{frbnet_forward.17} parent=5 // pred_region
      %s168 = ssub.s32 %s10, 1
      %s169 = smul.u32 32, %s15
      %p170 = scmp.lt.s32.totalorder %s169, 63
      %s171 = scalar_select %p170, %s169, 63
      %s172 = smul.addr %s171, 8
      %s173 = scalar_lea.vmem %s0, %s172
      %p174 = pneg %p36
      %p175 = pneg %p33
      %p176 = pneg %p57
      %p177 = pneg %p54
      %p178 = pneg %p78
      %p179 = pneg %p75
      %p180 = pneg %p99
      %p181 = pneg %p96
      %p182 = pneg %p125
      %p183 = pneg %p122
      %s184 = smul.u32 32, %s15
      %p185 = scmp.lt.s32.totalorder %s184, 63
      %s186 = scalar_select %p185, %s184, 63
      %s187 = smul.addr %s186, 8
      %s188 = scalar_lea.vmem %s4, %s187
      %s189 = smul.u32 32, %s15
      %p190 = scmp.lt.s32.totalorder %s189, 63
      %s191 = scalar_select %p190, %s189, 63
      %s192 = smul.addr %s191, 8
      %s193 = scalar_lea.vmem %s0, %s192
      %s194 = smul.u32 32, %s15
      %s195 = smul.u32 32, %s15
      %p196 = scmp.lt.s32.totalorder %s195, 63
      %s197 = scalar_select %p196, %s195, 63
      %s198 = smul.addr %s197, 8
      %s199 = scalar_lea.vmem %s4, %s198
      %s200 = smul.u32 32, %s15
      %v201 = vld [vmem:[%s193] sm:$0xff]
      %v202 = vld [vmem:[%s193 + $0x8] sm:$0xff]
      %v203 = vld [vmem:[%s193 + $0x10] sm:$0xff]
      %v204 = vld [vmem:[%s193 + $0x18] sm:$0xff]
      %v205 = vld [vmem:[%s193 + $0x20] sm:$0xff]
      %v206 = vld [vmem:[%s193 + $0x28] sm:$0xff]
      %v207 = vld [vmem:[%s193 + $0x30] sm:$0xff]
      %v208 = vld [vmem:[%s193 + $0x38] sm:$0xff]
      %v209 = vld [vmem:[%s193 + $0x40] sm:$0xff]
      %v210 = vld [vmem:[%s193 + $0x48] sm:$0xff]
      %v211 = vld [vmem:[%s193 + $0x50] sm:$0xff]
      %v212 = vld [vmem:[%s193 + $0x58] sm:$0xff]
      %v213 = vld [vmem:[%s193 + $0x60] sm:$0xff]
      %v214 = vld [vmem:[%s193 + $0x68] sm:$0xff]
      %v215 = vld [vmem:[%s193 + $0x70] sm:$0xff]
      %v216 = vld [vmem:[%s193 + $0x78] sm:$0xff]
      %v217 = vld [vmem:[%s193 + $0x80] sm:$0xff]
      %v218 = vld [vmem:[%s193 + $0x88] sm:$0xff]
      %v219 = vld [vmem:[%s193 + $0x90] sm:$0xff]
      %v220 = vld [vmem:[%s193 + $0x98] sm:$0xff]
      %v221 = vld [vmem:[%s193 + $0xa0] sm:$0xff]
      %v222 = vld [vmem:[%s193 + $0xa8] sm:$0xff]
      %v223 = vld [vmem:[%s193 + $0xb0] sm:$0xff]
      %v224 = vld [vmem:[%s193 + $0xb8] sm:$0xff]
      %v225 = vld [vmem:[%s193 + $0xc0] sm:$0xff]
      %v226 = vld [vmem:[%s193 + $0xc8] sm:$0xff]
      %v227 = vld [vmem:[%s193 + $0xd0] sm:$0xff]
      %v228 = vld [vmem:[%s193 + $0xd8] sm:$0xff]
      %v229 = vld [vmem:[%s193 + $0xe0] sm:$0xff]
      %v230 = vld [vmem:[%s193 + $0xe8] sm:$0xff]
      %v231 = vld [vmem:[%s193 + $0xf0] sm:$0xff]
      %v232 = vld [vmem:[%s193 + $0xf8] sm:$0xff]
      %v233 = vld [vmem:[%s1] sm:$0xff]
      %v234 = vld [vmem:[%s1 + $0x8] sm:$0xff]
      %v235 = vld [vmem:[%s1 + $0x10] sm:$0xff]
      %v236 = vld [vmem:[%s1 + $0x18] sm:$0xff]
      %v237 = vld [vmem:[%s1 + $0x20] sm:$0xff]
      %v238 = vld [vmem:[%s1 + $0x28] sm:$0xff]
      %v239 = vld [vmem:[%s1 + $0x30] sm:$0x1]
      %vm240 = vcmask 400384
      %v242 = vsel %vm240, %v201, 0
      %v245 = vsel %vm240, %v202, 0
      %v248 = vsel %vm240, %v203, 0
      %v251 = vsel %vm240, %v204, 0
      %v254 = vsel %vm240, %v205, 0
      %v257 = vsel %vm240, %v206, 0
      %v260 = vsel %vm240, %v207, 0
      %v263 = vsel %vm240, %v208, 0
      %v266 = vsel %vm240, %v209, 0
      %v269 = vsel %vm240, %v210, 0
      %v272 = vsel %vm240, %v211, 0
      %v275 = vsel %vm240, %v212, 0
      %v278 = vsel %vm240, %v213, 0
      %v281 = vsel %vm240, %v214, 0
      %v284 = vsel %vm240, %v215, 0
      %v287 = vsel %vm240, %v216, 0
      %v290 = vsel %vm240, %v217, 0
      %v293 = vsel %vm240, %v218, 0
      %v296 = vsel %vm240, %v219, 0
      %v299 = vsel %vm240, %v220, 0
      %v302 = vsel %vm240, %v221, 0
      %v305 = vsel %vm240, %v222, 0
      %v308 = vsel %vm240, %v223, 0
      %v311 = vsel %vm240, %v224, 0
      %v314 = vsel %vm240, %v225, 0
      %v317 = vsel %vm240, %v226, 0
      %v320 = vsel %vm240, %v227, 0
      %v323 = vsel %vm240, %v228, 0
      %v326 = vsel %vm240, %v229, 0
      %v329 = vsel %vm240, %v230, 0
      %v332 = vsel %vm240, %v231, 0
      %v335 = vsel %vm240, %v232, 0
      %vm337 = vcmask 1040384
      %v339 = vsel %vm337, %v239, 0
      %341 = vmatprep.subr.mxu0 0.0
      %342 = vmatpush1.msra.mxu0 0.0
      %343 = vmatprep.subr.mxu0 0.0
      %344 = vmatpush1.msra.mxu0 0.0
      %345 = vmatprep.subr.mxu0 0.0
      %346 = vmatpush1.msra.mxu0 0.0
      %347 = vmatprep.subr.mxu0 0.0
      %348 = vmatpush1.msra.mxu0 0.0
      %349 = vmatprep.subr.mxu0 0.0
      %350 = vmatpush1.msra.mxu0 0.0
      %351 = vmatprep.subr.mxu0 0.0
      %352 = vmatpush1.msra.mxu0 0.0
      %353 = vmatprep.subr.mxu0 0.0
      %354 = vmatpush1.msra.mxu0 0.0
      %355 = vmatprep.subr.mxu0 0.0
      %356 = vmatpush1.msra.mxu0 0.0
      %357 = vmatprep.subr.mxu0 0.0
      %358 = vmatpush1.msra.mxu0 0.0
      %359 = vmatprep.subr.mxu0 0.0
      %360 = vmatpush1.msra.mxu0 %v339
      %361 = vmatprep.subr.mxu0 0.0
      %362 = vmatpush1.msra.mxu0 %v238
      %363 = vmatprep.subr.mxu0 0.0
      %364 = vmatpush1.msra.mxu0 %v237
      %365 = vmatprep.subr.mxu0 0.0
      %366 = vmatpush1.msra.mxu0 %v236
      %367 = vmatprep.subr.mxu0 0.0
      %368 = vmatpush1.msra.mxu0 %v235
      %369 = vmatprep.subr.mxu0 0.0
      %370 = vmatpush1.msra.mxu0 %v234
      %371 = vmatprep.subr.mxu0 0.0
      %372 = vmatpush1.msra.mxu0 %v233
      %373 = vmatprep.subr.mxu0 0.0
      %374 = vmatpush2.msra.mxu0 0.0
      %375 = vmatprep.subr.mxu0 0.0
      %376 = vmatpush2.msra.mxu0 0.0
      %377 = vmatprep.subr.mxu0 0.0
      %378 = vmatpush2.msra.mxu0 0.0
      %379 = vmatprep.subr.mxu0 0.0
      %380 = vmatpush2.msra.mxu0 0.0
      %381 = vmatprep.subr.mxu0 0.0
      %382 = vmatpush2.msra.mxu0 0.0
      %383 = vmatprep.subr.mxu0 0.0
      %384 = vmatpush2.msra.mxu0 0.0
      %385 = vmatprep.subr.mxu0 0.0
      %386 = vmatpush2.msra.mxu0 0.0
      %387 = vmatprep.subr.mxu0 0.0
      %388 = vmatpush2.msra.mxu0 0.0
      %389 = vmatprep.subr.mxu0 0.0
      %390 = vmatpush2.msra.mxu0 0.0
      %391 = vmatprep.subr.mxu0 0.0
      %392 = vmatpush2.msra.mxu0 0.0
      %393 = vmatprep.subr.mxu0 0.0
      %394 = vmatpush2.msra.mxu0 0.0
      %395 = vmatprep.subr.mxu0 0.0
      %396 = vmatpush2.msra.mxu0 0.0
      %397 = vmatprep.subr.mxu0 0.0
      %398 = vmatpush2.msra.mxu0 0.0
      %399 = vmatprep.subr.mxu0 0.0
      %400 = vmatpush2.msra.mxu0 0.0
      %401 = vmatprep.subr.mxu0 0.0
      %402 = vmatpush2.msra.mxu0 0.0
      %403 = vmatprep.subr.mxu0 0.0
      %404 = vmatpush2.msra.mxu0 0.0
      %405 = vmatprep.mubr.f32.mxu0 0.0
      %406 = vmatmul.mubr.f32.gmra.mxu0 %v242
      %v407 = vpop.f32.mrf.mxu0
      %v408 = vadd.f32 0.0, %v407
      %v409 = vpop.f32.mrf.mxu0
      %410 = vmatprep.mubr.f32.mxu0 0.0
      %411 = vmatmul.mubr.f32.gmra.mxu0 %v245
      %v412 = vpop.f32.mrf.mxu0
      %v413 = vadd.f32 0.0, %v412
      %v414 = vpop.f32.mrf.mxu0
      %415 = vmatprep.mubr.f32.mxu0 0.0
      %416 = vmatmul.mubr.f32.gmra.mxu0 %v248
      %v417 = vpop.f32.mrf.mxu0
      %v418 = vadd.f32 0.0, %v417
      %v419 = vpop.f32.mrf.mxu0
      %420 = vmatprep.mubr.f32.mxu0 0.0
      %421 = vmatmul.mubr.f32.gmra.mxu0 %v251
      %v422 = vpop.f32.mrf.mxu0
      %v423 = vadd.f32 0.0, %v422
      %v424 = vpop.f32.mrf.mxu0
      %425 = vmatprep.mubr.f32.mxu0 0.0
      %426 = vmatmul.mubr.f32.gmra.mxu0 %v254
      %v427 = vpop.f32.mrf.mxu0
      %v428 = vadd.f32 0.0, %v427
      %v429 = vpop.f32.mrf.mxu0
      %430 = vmatprep.mubr.f32.mxu0 0.0
      %431 = vmatmul.mubr.f32.gmra.mxu0 %v257
      %v432 = vpop.f32.mrf.mxu0
      %v433 = vadd.f32 0.0, %v432
      %v434 = vpop.f32.mrf.mxu0
      %435 = vmatprep.mubr.f32.mxu0 0.0
      %436 = vmatmul.mubr.f32.gmra.mxu0 %v260
      %v437 = vpop.f32.mrf.mxu0
      %v438 = vadd.f32 0.0, %v437
      %v439 = vpop.f32.mrf.mxu0
      %440 = vmatprep.mubr.f32.mxu0 0.0
      %441 = vmatmul.mubr.f32.gmra.mxu0 %v263
      %v442 = vpop.f32.mrf.mxu0
      %v443 = vadd.f32 0.0, %v442
      %v444 = vpop.f32.mrf.mxu0
      %445 = vmatprep.mubr.f32.mxu0 0.0
      %446 = vmatmul.mubr.f32.gmra.mxu0 %v266
      %v447 = vpop.f32.mrf.mxu0
      %v448 = vadd.f32 0.0, %v447
      %v449 = vpop.f32.mrf.mxu0
      %450 = vmatprep.mubr.f32.mxu0 0.0
      %451 = vmatmul.mubr.f32.gmra.mxu0 %v269
      %v452 = vpop.f32.mrf.mxu0
      %v453 = vadd.f32 0.0, %v452
      %v454 = vpop.f32.mrf.mxu0
      %455 = vmatprep.mubr.f32.mxu0 0.0
      %456 = vmatmul.mubr.f32.gmra.mxu0 %v272
      %v457 = vpop.f32.mrf.mxu0
      %v458 = vadd.f32 0.0, %v457
      %v459 = vpop.f32.mrf.mxu0
      %460 = vmatprep.mubr.f32.mxu0 0.0
      %461 = vmatmul.mubr.f32.gmra.mxu0 %v275
      %v462 = vpop.f32.mrf.mxu0
      %v463 = vadd.f32 0.0, %v462
      %v464 = vpop.f32.mrf.mxu0
      %465 = vmatprep.mubr.f32.mxu0 0.0
      %466 = vmatmul.mubr.f32.gmra.mxu0 %v278
      %v467 = vpop.f32.mrf.mxu0
      %v468 = vadd.f32 0.0, %v467
      %v469 = vpop.f32.mrf.mxu0
      %470 = vmatprep.mubr.f32.mxu0 0.0
      %471 = vmatmul.mubr.f32.gmra.mxu0 %v281
      %v472 = vpop.f32.mrf.mxu0
      %v473 = vadd.f32 0.0, %v472
      %v474 = vpop.f32.mrf.mxu0
      %475 = vmatprep.mubr.f32.mxu0 0.0
      %476 = vmatmul.mubr.f32.gmra.mxu0 %v284
      %v477 = vpop.f32.mrf.mxu0
      %v478 = vadd.f32 0.0, %v477
      %v479 = vpop.f32.mrf.mxu0
      %480 = vmatprep.mubr.f32.mxu0 0.0
      %481 = vmatmul.mubr.f32.gmra.mxu0 %v287
      %v482 = vpop.f32.mrf.mxu0
      %v483 = vadd.f32 0.0, %v482
      %v484 = vpop.f32.mrf.mxu0
      %485 = vmatprep.mubr.f32.mxu0 0.0
      %486 = vmatmul.mubr.f32.gmra.mxu0 %v290
      %v487 = vpop.f32.mrf.mxu0
      %v488 = vadd.f32 0.0, %v487
      %v489 = vpop.f32.mrf.mxu0
      %490 = vmatprep.mubr.f32.mxu0 0.0
      %491 = vmatmul.mubr.f32.gmra.mxu0 %v293
      %v492 = vpop.f32.mrf.mxu0
      %v493 = vadd.f32 0.0, %v492
      %v494 = vpop.f32.mrf.mxu0
      %495 = vmatprep.mubr.f32.mxu0 0.0
      %496 = vmatmul.mubr.f32.gmra.mxu0 %v296
      %v497 = vpop.f32.mrf.mxu0
      %v498 = vadd.f32 0.0, %v497
      %v499 = vpop.f32.mrf.mxu0
      %500 = vmatprep.mubr.f32.mxu0 0.0
      %501 = vmatmul.mubr.f32.gmra.mxu0 %v299
      %v502 = vpop.f32.mrf.mxu0
      %v503 = vadd.f32 0.0, %v502
      %v504 = vpop.f32.mrf.mxu0
      %505 = vmatprep.mubr.f32.mxu0 0.0
      %506 = vmatmul.mubr.f32.gmra.mxu0 %v302
      %v507 = vpop.f32.mrf.mxu0
      %v508 = vadd.f32 0.0, %v507
      %v509 = vpop.f32.mrf.mxu0
      %510 = vmatprep.mubr.f32.mxu0 0.0
      %511 = vmatmul.mubr.f32.gmra.mxu0 %v305
      %v512 = vpop.f32.mrf.mxu0
      %v513 = vadd.f32 0.0, %v512
      %v514 = vpop.f32.mrf.mxu0
      %515 = vmatprep.mubr.f32.mxu0 0.0
      %516 = vmatmul.mubr.f32.gmra.mxu0 %v308
      %v517 = vpop.f32.mrf.mxu0
      %v518 = vadd.f32 0.0, %v517
      %v519 = vpop.f32.mrf.mxu0
      %520 = vmatprep.mubr.f32.mxu0 0.0
      %521 = vmatmul.mubr.f32.gmra.mxu0 %v311
      %v522 = vpop.f32.mrf.mxu0
      %v523 = vadd.f32 0.0, %v522
      %v524 = vpop.f32.mrf.mxu0
      %525 = vmatprep.mubr.f32.mxu0 0.0
      %526 = vmatmul.mubr.f32.gmra.mxu0 %v314
      %v527 = vpop.f32.mrf.mxu0
      %v528 = vadd.f32 0.0, %v527
      %v529 = vpop.f32.mrf.mxu0
      %530 = vmatprep.mubr.f32.mxu0 0.0
      %531 = vmatmul.mubr.f32.gmra.mxu0 %v317
      %v532 = vpop.f32.mrf.mxu0
      %v533 = vadd.f32 0.0, %v532
      %v534 = vpop.f32.mrf.mxu0
      %535 = vmatprep.mubr.f32.mxu0 0.0
      %536 = vmatmul.mubr.f32.gmra.mxu0 %v320
      %v537 = vpop.f32.mrf.mxu0
      %v538 = vadd.f32 0.0, %v537
      %v539 = vpop.f32.mrf.mxu0
      %540 = vmatprep.mubr.f32.mxu0 0.0
      %541 = vmatmul.mubr.f32.gmra.mxu0 %v323
      %v542 = vpop.f32.mrf.mxu0
      %v543 = vadd.f32 0.0, %v542
      %v544 = vpop.f32.mrf.mxu0
      %545 = vmatprep.mubr.f32.mxu0 0.0
      %546 = vmatmul.mubr.f32.gmra.mxu0 %v326
      %v547 = vpop.f32.mrf.mxu0
      %v548 = vadd.f32 0.0, %v547
      %v549 = vpop.f32.mrf.mxu0
      %550 = vmatprep.mubr.f32.mxu0 0.0
      %551 = vmatmul.mubr.f32.gmra.mxu0 %v329
      %v552 = vpop.f32.mrf.mxu0
      %v553 = vadd.f32 0.0, %v552
      %v554 = vpop.f32.mrf.mxu0
      %555 = vmatprep.mubr.f32.mxu0 0.0
      %556 = vmatmul.mubr.f32.gmra.mxu0 %v332
      %v557 = vpop.f32.mrf.mxu0
      %v558 = vadd.f32 0.0, %v557
      %v559 = vpop.f32.mrf.mxu0
      %560 = vmatprep.mubr.f32.mxu0 0.0
      %561 = vmatmul.mubr.f32.gmra.mxu0 %v335
      %v562 = vpop.f32.mrf.mxu0
      %v563 = vadd.f32 0.0, %v562
      %v564 = vpop.f32.mrf.mxu0
      %565 = vdwg.mxu0
      %v566 = vld [vmem:[%s2] sm:$0x1]
      %v568 = vlaneseq
      %v569 = vshrl.u32 %v568, 7
      %v570 = vsub.s32 0, %v569
      %v571 = vrot.slane %v566, %v570
      %v573 = vmul.f32 %v408, %v571
      %v574 = vmul.f32 %v413, %v571
      %v575 = vmul.f32 %v418, %v571
      %v576 = vmul.f32 %v423, %v571
      %v577 = vmul.f32 %v428, %v571
      %v578 = vmul.f32 %v433, %v571
      %v579 = vmul.f32 %v438, %v571
      %v580 = vmul.f32 %v443, %v571
      %v581 = vmul.f32 %v448, %v571
      %v582 = vmul.f32 %v453, %v571
      %v583 = vmul.f32 %v458, %v571
      %v584 = vmul.f32 %v463, %v571
      %v585 = vmul.f32 %v468, %v571
      %v586 = vmul.f32 %v473, %v571
      %v587 = vmul.f32 %v478, %v571
      %v588 = vmul.f32 %v483, %v571
      %v589 = vmul.f32 %v488, %v571
      %v590 = vmul.f32 %v493, %v571
      %v591 = vmul.f32 %v498, %v571
      %v592 = vmul.f32 %v503, %v571
      %v593 = vmul.f32 %v508, %v571
      %v594 = vmul.f32 %v513, %v571
      %v595 = vmul.f32 %v518, %v571
      %v596 = vmul.f32 %v523, %v571
      %v597 = vmul.f32 %v528, %v571
      %v598 = vmul.f32 %v533, %v571
      %v599 = vmul.f32 %v538, %v571
      %v600 = vmul.f32 %v543, %v571
      %v601 = vmul.f32 %v548, %v571
      %v602 = vmul.f32 %v553, %v571
      %v603 = vmul.f32 %v558, %v571
      %v604 = vmul.f32 %v563, %v571
      %v605 = vld [vmem:[%s3] sm:$0x1]
      %v607 = vlaneseq
      %v608 = vshrl.u32 %v607, 7
      %v609 = vsub.s32 0, %v608
      %v610 = vrot.slane %v605, %v609
      %v612 = vadd.f32 %v573, %v610
      %v613 = vadd.f32 %v574, %v610
      %v614 = vadd.f32 %v575, %v610
      %v615 = vadd.f32 %v576, %v610
      %v616 = vadd.f32 %v577, %v610
      %v617 = vadd.f32 %v578, %v610
      %v618 = vadd.f32 %v579, %v610
      %v619 = vadd.f32 %v580, %v610
      %v620 = vadd.f32 %v581, %v610
      %v621 = vadd.f32 %v582, %v610
      %v622 = vadd.f32 %v583, %v610
      %v623 = vadd.f32 %v584, %v610
      %v624 = vadd.f32 %v585, %v610
      %v625 = vadd.f32 %v586, %v610
      %v626 = vadd.f32 %v587, %v610
      %v627 = vadd.f32 %v588, %v610
      %v628 = vadd.f32 %v589, %v610
      %v629 = vadd.f32 %v590, %v610
      %v630 = vadd.f32 %v591, %v610
      %v631 = vadd.f32 %v592, %v610
      %v632 = vadd.f32 %v593, %v610
      %v633 = vadd.f32 %v594, %v610
      %v634 = vadd.f32 %v595, %v610
      %v635 = vadd.f32 %v596, %v610
      %v636 = vadd.f32 %v597, %v610
      %v637 = vadd.f32 %v598, %v610
      %v638 = vadd.f32 %v599, %v610
      %v639 = vadd.f32 %v600, %v610
      %v640 = vadd.f32 %v601, %v610
      %v641 = vadd.f32 %v602, %v610
      %v642 = vadd.f32 %v603, %v610
      %v643 = vadd.f32 %v604, %v610
      %v644 = vtanh.pop %v612
      %v645 = vtanh.pop %v613
      %v646 = vtanh.pop %v614
      %v647 = vtanh.pop %v615
      %v648 = vtanh.pop %v616
      %v649 = vtanh.pop %v617
      %v650 = vtanh.pop %v618
      %v651 = vtanh.pop %v619
      %v652 = vtanh.pop %v620
      %v653 = vtanh.pop %v621
      %v654 = vtanh.pop %v622
      %v655 = vtanh.pop %v623
      %v656 = vtanh.pop %v624
      %v657 = vtanh.pop %v625
      %v658 = vtanh.pop %v626
      %v659 = vtanh.pop %v627
      %v660 = vtanh.pop %v628
      %v661 = vtanh.pop %v629
      %v662 = vtanh.pop %v630
      %v663 = vtanh.pop %v631
      %v664 = vtanh.pop %v632
      %v665 = vtanh.pop %v633
      %v666 = vtanh.pop %v634
      %v667 = vtanh.pop %v635
      %v668 = vtanh.pop %v636
      %v669 = vtanh.pop %v637
      %v670 = vtanh.pop %v638
      %v671 = vtanh.pop %v639
      %v672 = vtanh.pop %v640
      %v673 = vtanh.pop %v641
      %v674 = vtanh.pop %v642
      %v675 = vtanh.pop %v643
      %vm676 = vcmask 261120
      %677 = vst.msk [vmem:[%s199] sm:$0xff] %vm676, %v644
      %678 = vst.msk [vmem:[%s199 + $0x8] sm:$0xff] %vm676, %v645
      %679 = vst.msk [vmem:[%s199 + $0x10] sm:$0xff] %vm676, %v646
      %680 = vst.msk [vmem:[%s199 + $0x18] sm:$0xff] %vm676, %v647
      %681 = vst.msk [vmem:[%s199 + $0x20] sm:$0xff] %vm676, %v648
      %682 = vst.msk [vmem:[%s199 + $0x28] sm:$0xff] %vm676, %v649
      %683 = vst.msk [vmem:[%s199 + $0x30] sm:$0xff] %vm676, %v650
      %684 = vst.msk [vmem:[%s199 + $0x38] sm:$0xff] %vm676, %v651
      %685 = vst.msk [vmem:[%s199 + $0x40] sm:$0xff] %vm676, %v652
      %686 = vst.msk [vmem:[%s199 + $0x48] sm:$0xff] %vm676, %v653
      %687 = vst.msk [vmem:[%s199 + $0x50] sm:$0xff] %vm676, %v654
      %688 = vst.msk [vmem:[%s199 + $0x58] sm:$0xff] %vm676, %v655
      %689 = vst.msk [vmem:[%s199 + $0x60] sm:$0xff] %vm676, %v656
      %690 = vst.msk [vmem:[%s199 + $0x68] sm:$0xff] %vm676, %v657
      %691 = vst.msk [vmem:[%s199 + $0x70] sm:$0xff] %vm676, %v658
      %692 = vst.msk [vmem:[%s199 + $0x78] sm:$0xff] %vm676, %v659
      %693 = vst.msk [vmem:[%s199 + $0x80] sm:$0xff] %vm676, %v660
      %694 = vst.msk [vmem:[%s199 + $0x88] sm:$0xff] %vm676, %v661
      %695 = vst.msk [vmem:[%s199 + $0x90] sm:$0xff] %vm676, %v662
      %696 = vst.msk [vmem:[%s199 + $0x98] sm:$0xff] %vm676, %v663
      %697 = vst.msk [vmem:[%s199 + $0xa0] sm:$0xff] %vm676, %v664
      %698 = vst.msk [vmem:[%s199 + $0xa8] sm:$0xff] %vm676, %v665
      %699 = vst.msk [vmem:[%s199 + $0xb0] sm:$0xff] %vm676, %v666
      %700 = vst.msk [vmem:[%s199 + $0xb8] sm:$0xff] %vm676, %v667
      %701 = vst.msk [vmem:[%s199 + $0xc0] sm:$0xff] %vm676, %v668
      %702 = vst.msk [vmem:[%s199 + $0xc8] sm:$0xff] %vm676, %v669
      %703 = vst.msk [vmem:[%s199 + $0xd0] sm:$0xff] %vm676, %v670
      %704 = vst.msk [vmem:[%s199 + $0xd8] sm:$0xff] %vm676, %v671
      %705 = vst.msk [vmem:[%s199 + $0xe0] sm:$0xff] %vm676, %v672
      %706 = vst.msk [vmem:[%s199 + $0xe8] sm:$0xff] %vm676, %v673
      %707 = vst.msk [vmem:[%s199 + $0xf0] sm:$0xff] %vm676, %v674
      %708 = vst.msk [vmem:[%s199 + $0xf8] sm:$0xff] %vm676, %v675
      %s709 = smul.u32 32, %s15
      %p710 = scmp.lt.s32.totalorder %s709, 63
      %s711 = scalar_select %p710, %s709, 63
      %s712 = smul.addr %s711, 8
      %s713 = scalar_lea.vmem %s4, %s712
      // Predicated region
      $region37: #{frbnet_forward.17} parent=35 // pred_check
        %p714 = pneg %p122
      $region38: #{frbnet_forward.17} parent=35 // pred_check_branch
        %716 = sbr.rel (%p714) target = $region40
      $region39: #{frbnet_forward.17} parent=35 // pred_region
        %s717 = smul.u32 32, %s15
      $region40: #{frbnet_forward.17} parent=35 // pred_fallthru
        _
    $region36: #{frbnet_forward.17} parent=5 // pred_fallthru
      _
    %p718 = scmp.le.s32.totalorder 2, %s10
    // Predicated region
    $region41: #{frbnet_forward.17} parent=5 // pred_check
      %p719 = pneg %p718
    $region42: #{frbnet_forward.17} parent=5 // pred_check_branch
      %721 = sbr.rel (%p719) target = $region44
    $region43: #{frbnet_forward.17} parent=5 // pred_region
      %s722 = ssub.s32 %s10, 2
      // Predicated region
      $region45: #{frbnet_forward.17} parent=43 // pred_check
        %p723 = pneg %p128
      $region46: #{frbnet_forward.17} parent=43 // pred_check_branch
        %725 = sbr.rel (%p723) target = $region48
      $region47: #{frbnet_forward.17} parent=43 // pred_region
        %s726 = smul.u32 32, %s16
        %p727 = scmp.lt.s32.totalorder %s726, 63
        %s728 = scalar_select %p727, %s726, 63
        %s729 = smul.addr %s728, 8
        %s730 = scalar_lea.vmem %s4, %s729
      $region48: #{frbnet_forward.17} parent=43 // pred_fallthru
        _
    $region44: #{frbnet_forward.17} parent=5 // pred_fallthru
      _
  $region6: #{frbnet_forward.17} parent=0 // loop_footer
    %s14 = sadd.s32 1, %s10
  $region7: #{frbnet_forward.17} parent=0 // loop_footer_branch
    %9 = sbr.rel target = $region3
  $region8: #{frbnet_forward.17} parent=0 // loop_exit
    _

// kernel: frbnet_forward.20
$region0: #{frbnet_forward.20}
  #allocation0 [shape = 'u32[]', space=smem, size = 0x4, offset = 0x4, fixed_abs, tag = 'smem constant byte address 0x4 - core index']
  #allocation1 [shape = 'u32[144,128]{1,0:T(1,128)}', space=vmem, size = 0x12000, scoped, tag = 'internal scratch']
  %s0 = inlined_call_operand.vmem [shape: f32[128,32], index: 0, kind: input, shape index: {}]
  %s1 = inlined_call_operand.vmem [shape: f32[32,32], index: 1, kind: input, shape index: {}]
  %s2 = inlined_call_operand.vmem [shape: f32[1,32], index: 2, kind: input, shape index: {}]
  %s3 = inlined_call_operand.vmem [shape: f32[1,32], index: 3, kind: input, shape index: {}]
  %s4 = inlined_call_operand.vmem [shape: f32[128,32], index: 4, kind: output, shape index: {}]
  %s5 = sld [smem:[#allocation0]]
  $region26: #{frbnet_forward.20} parent=0
    _
  %s7 = ssub.s32 1, %s5
  %s8 = scalar_select 0, %s7, %s5
  // Predicated region
  $region2: #{frbnet_forward.20} parent=0 // pred_check
    _
  $region3: #{frbnet_forward.20} parent=0 // pred_check_branch
    %10 = sbr.rel (0) target = $region5
  $region4: #{frbnet_forward.20} parent=0 // pred_region
    _
  $region5: #{frbnet_forward.20} parent=0 // pred_fallthru
    _
  // Predicated region
  $region6: #{frbnet_forward.20} parent=0 // pred_check
    _
  $region7: #{frbnet_forward.20} parent=0 // pred_check_branch
    %12 = sbr.rel (0) target = $region9
  $region8: #{frbnet_forward.20} parent=0 // pred_region
    _
  $region9: #{frbnet_forward.20} parent=0 // pred_fallthru
    _
  // Predicated region
  $region10: #{frbnet_forward.20} parent=0 // pred_check
    _
  $region11: #{frbnet_forward.20} parent=0 // pred_check_branch
    %14 = sbr.rel (0) target = $region13
  $region12: #{frbnet_forward.20} parent=0 // pred_region
    _
  $region13: #{frbnet_forward.20} parent=0 // pred_fallthru
    _
  // Predicated region
  $region14: #{frbnet_forward.20} parent=0 // pred_check
    _
  $region15: #{frbnet_forward.20} parent=0 // pred_check_branch
    %16 = sbr.rel (0) target = $region17
  $region16: #{frbnet_forward.20} parent=0 // pred_region
    _
  $region17: #{frbnet_forward.20} parent=0 // pred_fallthru
    _
  %v17 = vld [vmem:[%s0] sm:$0xff]
  %v18 = vld [vmem:[%s0 + $0x8] sm:$0xff]
  %v19 = vld [vmem:[%s0 + $0x10] sm:$0xff]
  %v20 = vld [vmem:[%s0 + $0x18] sm:$0xff]
  %v21 = vld [vmem:[%s0 + $0x20] sm:$0xff]
  %v22 = vld [vmem:[%s0 + $0x28] sm:$0xff]
  %v23 = vld [vmem:[%s0 + $0x30] sm:$0xff]
  %v24 = vld [vmem:[%s0 + $0x38] sm:$0xff]
  %v25 = vld [vmem:[%s0 + $0x40] sm:$0xff]
  %v26 = vld [vmem:[%s0 + $0x48] sm:$0xff]
  %v27 = vld [vmem:[%s0 + $0x50] sm:$0xff]
  %v28 = vld [vmem:[%s0 + $0x58] sm:$0xff]
  %v29 = vld [vmem:[%s0 + $0x60] sm:$0xff]
  %v30 = vld [vmem:[%s0 + $0x68] sm:$0xff]
  %v31 = vld [vmem:[%s0 + $0x70] sm:$0xff]
  %v32 = vld [vmem:[%s0 + $0x78] sm:$0xff]
  %v33 = vld [vmem:[%s1] sm:$0xff]
  %v34 = vld [vmem:[%s1 + $0x8] sm:$0xff]
  %v35 = vld [vmem:[%s1 + $0x10] sm:$0xff]
  %v36 = vld [vmem:[%s1 + $0x18] sm:$0xff]
  %vm37 = vcmask 261120
  %v39 = vsel %vm37, %v17, 0
  %v42 = vsel %vm37, %v18, 0
  %v45 = vsel %vm37, %v19, 0
  %v48 = vsel %vm37, %v20, 0
  %v51 = vsel %vm37, %v21, 0
  %v54 = vsel %vm37, %v22, 0
  %v57 = vsel %vm37, %v23, 0
  %v60 = vsel %vm37, %v24, 0
  %v63 = vsel %vm37, %v25, 0
  %v66 = vsel %vm37, %v26, 0
  %v69 = vsel %vm37, %v27, 0
  %v72 = vsel %vm37, %v28, 0
  %v75 = vsel %vm37, %v29, 0
  %v78 = vsel %vm37, %v30, 0
  %v81 = vsel %vm37, %v31, 0
  %v84 = vsel %vm37, %v32, 0
  %86 = vmatprep.subr.mxu0 0.0
  %87 = vmatpush1.msra.mxu0 0.0
  %88 = vmatprep.subr.mxu0 0.0
  %89 = vmatpush1.msra.mxu0 0.0
  %90 = vmatprep.subr.mxu0 0.0
  %91 = vmatpush1.msra.mxu0 0.0
  %92 = vmatprep.subr.mxu0 0.0
  %93 = vmatpush1.msra.mxu0 0.0
  %94 = vmatprep.subr.mxu0 0.0
  %95 = vmatpush1.msra.mxu0 0.0
  %96 = vmatprep.subr.mxu0 0.0
  %97 = vmatpush1.msra.mxu0 0.0
  %98 = vmatprep.subr.mxu0 0.0
  %99 = vmatpush1.msra.mxu0 0.0
  %100 = vmatprep.subr.mxu0 0.0
  %101 = vmatpush1.msra.mxu0 0.0
  %102 = vmatprep.subr.mxu0 0.0
  %103 = vmatpush1.msra.mxu0 0.0
  %104 = vmatprep.subr.mxu0 0.0
  %105 = vmatpush1.msra.mxu0 0.0
  %106 = vmatprep.subr.mxu0 0.0
  %107 = vmatpush1.msra.mxu0 0.0
  %108 = vmatprep.subr.mxu0 0.0
  %109 = vmatpush1.msra.mxu0 0.0
  %110 = vmatprep.subr.mxu0 0.0
  %111 = vmatpush1.msra.mxu0 %v36
  %112 = vmatprep.subr.mxu0 0.0
  %113 = vmatpush1.msra.mxu0 %v35
  %114 = vmatprep.subr.mxu0 0.0
  %115 = vmatpush1.msra.mxu0 %v34
  %116 = vmatprep.subr.mxu0 0.0
  %117 = vmatpush1.msra.mxu0 %v33
  %118 = vmatprep.subr.mxu0 0.0
  %119 = vmatpush2.msra.mxu0 0.0
  %120 = vmatprep.subr.mxu0 0.0
  %121 = vmatpush2.msra.mxu0 0.0
  %122 = vmatprep.subr.mxu0 0.0
  %123 = vmatpush2.msra.mxu0 0.0
  %124 = vmatprep.subr.mxu0 0.0
  %125 = vmatpush2.msra.mxu0 0.0
  %126 = vmatprep.subr.mxu0 0.0
  %127 = vmatpush2.msra.mxu0 0.0
  %128 = vmatprep.subr.mxu0 0.0
  %129 = vmatpush2.msra.mxu0 0.0
  %130 = vmatprep.subr.mxu0 0.0
  %131 = vmatpush2.msra.mxu0 0.0
  %132 = vmatprep.subr.mxu0 0.0
  %133 = vmatpush2.msra.mxu0 0.0
  %134 = vmatprep.subr.mxu0 0.0
  %135 = vmatpush2.msra.mxu0 0.0
  %136 = vmatprep.subr.mxu0 0.0
  %137 = vmatpush2.msra.mxu0 0.0
  %138 = vmatprep.subr.mxu0 0.0
  %139 = vmatpush2.msra.mxu0 0.0
  %140 = vmatprep.subr.mxu0 0.0
  %141 = vmatpush2.msra.mxu0 0.0
  %142 = vmatprep.subr.mxu0 0.0
  %143 = vmatpush2.msra.mxu0 0.0
  %144 = vmatprep.subr.mxu0 0.0
  %145 = vmatpush2.msra.mxu0 0.0
  %146 = vmatprep.subr.mxu0 0.0
  %147 = vmatpush2.msra.mxu0 0.0
  %148 = vmatprep.subr.mxu0 0.0
  %149 = vmatpush2.msra.mxu0 0.0
  %150 = vmatprep.mubr.f32.mxu0 0.0
  %151 = vmatmul.mubr.f32.gmra.mxu0 %v39
  %v152 = vpop.f32.mrf.mxu0
  %v153 = vadd.f32 0.0, %v152
  %v154 = vpop.f32.mrf.mxu0
  %155 = vmatprep.mubr.f32.mxu0 0.0
  %156 = vmatmul.mubr.f32.gmra.mxu0 %v42
  %v157 = vpop.f32.mrf.mxu0
  %v158 = vadd.f32 0.0, %v157
  %v159 = vpop.f32.mrf.mxu0
  %160 = vmatprep.mubr.f32.mxu0 0.0
  %161 = vmatmul.mubr.f32.gmra.mxu0 %v45
  %v162 = vpop.f32.mrf.mxu0
  %v163 = vadd.f32 0.0, %v162
  %v164 = vpop.f32.mrf.mxu0
  %165 = vmatprep.mubr.f32.mxu0 0.0
  %166 = vmatmul.mubr.f32.gmra.mxu0 %v48
  %v167 = vpop.f32.mrf.mxu0
  %v168 = vadd.f32 0.0, %v167
  %v169 = vpop.f32.mrf.mxu0
  %170 = vmatprep.mubr.f32.mxu0 0.0
  %171 = vmatmul.mubr.f32.gmra.mxu0 %v51
  %v172 = vpop.f32.mrf.mxu0
  %v173 = vadd.f32 0.0, %v172
  %v174 = vpop.f32.mrf.mxu0
  %175 = vmatprep.mubr.f32.mxu0 0.0
  %176 = vmatmul.mubr.f32.gmra.mxu0 %v54
  %v177 = vpop.f32.mrf.mxu0
  %v178 = vadd.f32 0.0, %v177
  %v179 = vpop.f32.mrf.mxu0
  %180 = vmatprep.mubr.f32.mxu0 0.0
  %181 = vmatmul.mubr.f32.gmra.mxu0 %v57
  %v182 = vpop.f32.mrf.mxu0
  %v183 = vadd.f32 0.0, %v182
  %v184 = vpop.f32.mrf.mxu0
  %185 = vmatprep.mubr.f32.mxu0 0.0
  %186 = vmatmul.mubr.f32.gmra.mxu0 %v60
  %v187 = vpop.f32.mrf.mxu0
  %v188 = vadd.f32 0.0, %v187
  %v189 = vpop.f32.mrf.mxu0
  %190 = vmatprep.mubr.f32.mxu0 0.0
  %191 = vmatmul.mubr.f32.gmra.mxu0 %v63
  %v192 = vpop.f32.mrf.mxu0
  %v193 = vadd.f32 0.0, %v192
  %v194 = vpop.f32.mrf.mxu0
  %195 = vmatprep.mubr.f32.mxu0 0.0
  %196 = vmatmul.mubr.f32.gmra.mxu0 %v66
  %v197 = vpop.f32.mrf.mxu0
  %v198 = vadd.f32 0.0, %v197
  %v199 = vpop.f32.mrf.mxu0
  %200 = vmatprep.mubr.f32.mxu0 0.0
  %201 = vmatmul.mubr.f32.gmra.mxu0 %v69
  %v202 = vpop.f32.mrf.mxu0
  %v203 = vadd.f32 0.0, %v202
  %v204 = vpop.f32.mrf.mxu0
  %205 = vmatprep.mubr.f32.mxu0 0.0
  %206 = vmatmul.mubr.f32.gmra.mxu0 %v72
  %v207 = vpop.f32.mrf.mxu0
  %v208 = vadd.f32 0.0, %v207
  %v209 = vpop.f32.mrf.mxu0
  %210 = vmatprep.mubr.f32.mxu0 0.0
  %211 = vmatmul.mubr.f32.gmra.mxu0 %v75
  %v212 = vpop.f32.mrf.mxu0
  %v213 = vadd.f32 0.0, %v212
  %v214 = vpop.f32.mrf.mxu0
  %215 = vmatprep.mubr.f32.mxu0 0.0
  %216 = vmatmul.mubr.f32.gmra.mxu0 %v78
  %v217 = vpop.f32.mrf.mxu0
  %v218 = vadd.f32 0.0, %v217
  %v219 = vpop.f32.mrf.mxu0
  %220 = vmatprep.mubr.f32.mxu0 0.0
  %221 = vmatmul.mubr.f32.gmra.mxu0 %v81
  %v222 = vpop.f32.mrf.mxu0
  %v223 = vadd.f32 0.0, %v222
  %v224 = vpop.f32.mrf.mxu0
  %225 = vmatprep.mubr.f32.mxu0 0.0
  %226 = vmatmul.mubr.f32.gmra.mxu0 %v84
  %v227 = vpop.f32.mrf.mxu0
  %v228 = vadd.f32 0.0, %v227
  %v229 = vpop.f32.mrf.mxu0
  %230 = vdwg.mxu0
  %v231 = vld [vmem:[%s2] sm:$0x1]
  %v233 = vlaneseq
  %v234 = vshrl.u32 %v233, 7
  %v235 = vsub.s32 0, %v234
  %v236 = vrot.slane %v231, %v235
  %v238 = vmul.f32 %v153, %v236
  %v239 = vmul.f32 %v158, %v236
  %v240 = vmul.f32 %v163, %v236
  %v241 = vmul.f32 %v168, %v236
  %v242 = vmul.f32 %v173, %v236
  %v243 = vmul.f32 %v178, %v236
  %v244 = vmul.f32 %v183, %v236
  %v245 = vmul.f32 %v188, %v236
  %v246 = vmul.f32 %v193, %v236
  %v247 = vmul.f32 %v198, %v236
  %v248 = vmul.f32 %v203, %v236
  %v249 = vmul.f32 %v208, %v236
  %v250 = vmul.f32 %v213, %v236
  %v251 = vmul.f32 %v218, %v236
  %v252 = vmul.f32 %v223, %v236
  %v253 = vmul.f32 %v228, %v236
  %v254 = vld [vmem:[%s3] sm:$0x1]
  %v256 = vlaneseq
  %v257 = vshrl.u32 %v256, 7
  %v258 = vsub.s32 0, %v257
  %v259 = vrot.slane %v254, %v258
  %v261 = vadd.f32 %v238, %v259
  %v262 = vadd.f32 %v239, %v259
  %v263 = vadd.f32 %v240, %v259
  %v264 = vadd.f32 %v241, %v259
  %v265 = vadd.f32 %v242, %v259
  %v266 = vadd.f32 %v243, %v259
  %v267 = vadd.f32 %v244, %v259
  %v268 = vadd.f32 %v245, %v259
  %v269 = vadd.f32 %v246, %v259
  %v270 = vadd.f32 %v247, %v259
  %v271 = vadd.f32 %v248, %v259
  %v272 = vadd.f32 %v249, %v259
  %v273 = vadd.f32 %v250, %v259
  %v274 = vadd.f32 %v251, %v259
  %v275 = vadd.f32 %v252, %v259
  %v276 = vadd.f32 %v253, %v259
  %v277 = vmax.f32 %v261, 0.0
  %v278 = vmax.f32 %v262, 0.0
  %v279 = vmax.f32 %v263, 0.0
  %v280 = vmax.f32 %v264, 0.0
  %v281 = vmax.f32 %v265, 0.0
  %v282 = vmax.f32 %v266, 0.0
  %v283 = vmax.f32 %v267, 0.0
  %v284 = vmax.f32 %v268, 0.0
  %v285 = vmax.f32 %v269, 0.0
  %v286 = vmax.f32 %v270, 0.0
  %v287 = vmax.f32 %v271, 0.0
  %v288 = vmax.f32 %v272, 0.0
  %v289 = vmax.f32 %v273, 0.0
  %v290 = vmax.f32 %v274, 0.0
  %v291 = vmax.f32 %v275, 0.0
  %v292 = vmax.f32 %v276, 0.0
  %293 = vst.msk [vmem:[%s4] sm:$0xff] %vm37, %v277
  %294 = vst.msk [vmem:[%s4 + $0x8] sm:$0xff] %vm37, %v278
  %295 = vst.msk [vmem:[%s4 + $0x10] sm:$0xff] %vm37, %v279
  %296 = vst.msk [vmem:[%s4 + $0x18] sm:$0xff] %vm37, %v280
  %297 = vst.msk [vmem:[%s4 + $0x20] sm:$0xff] %vm37, %v281
  %298 = vst.msk [vmem:[%s4 + $0x28] sm:$0xff] %vm37, %v282
  %299 = vst.msk [vmem:[%s4 + $0x30] sm:$0xff] %vm37, %v283
  %300 = vst.msk [vmem:[%s4 + $0x38] sm:$0xff] %vm37, %v284
  %301 = vst.msk [vmem:[%s4 + $0x40] sm:$0xff] %vm37, %v285
  %302 = vst.msk [vmem:[%s4 + $0x48] sm:$0xff] %vm37, %v286
  %303 = vst.msk [vmem:[%s4 + $0x50] sm:$0xff] %vm37, %v287
  %304 = vst.msk [vmem:[%s4 + $0x58] sm:$0xff] %vm37, %v288
  %305 = vst.msk [vmem:[%s4 + $0x60] sm:$0xff] %vm37, %v289
  %306 = vst.msk [vmem:[%s4 + $0x68] sm:$0xff] %vm37, %v290
  %307 = vst.msk [vmem:[%s4 + $0x70] sm:$0xff] %vm37, %v291
  %308 = vst.msk [vmem:[%s4 + $0x78] sm:$0xff] %vm37, %v292
  // Predicated region
  $region18: #{frbnet_forward.20} parent=0 // pred_check
    _
  $region19: #{frbnet_forward.20} parent=0 // pred_check_branch
    %310 = sbr.rel (0) target = $region21
  $region20: #{frbnet_forward.20} parent=0 // pred_region
    _
  $region21: #{frbnet_forward.20} parent=0 // pred_fallthru
    _
  // Predicated region
  $region22: #{frbnet_forward.20} parent=0 // pred_check
    _
  $region23: #{frbnet_forward.20} parent=0 // pred_check_branch
    %312 = sbr.rel (0) target = $region25
  $region24: #{frbnet_forward.20} parent=0 // pred_region
    _
  $region25: #{frbnet_forward.20} parent=0 // pred_fallthru
    _

// kernel: frbnet_forward.18
$region0: #{frbnet_forward.18}
  #allocation0 [shape = 'u32[]', space=smem, size = 0x4, offset = 0x4, fixed_abs, tag = 'smem constant byte address 0x4 - core index']
  #allocation1 [shape = 'u32[144,128]{1,0:T(1,128)}', space=vmem, size = 0x12000, scoped, tag = 'internal scratch']
  %s0 = inlined_call_operand.vmem [shape: f32[9,128,32], index: 0, kind: input, shape index: {}]
  %s1 = inlined_call_operand.vmem [shape: f32[128,32], index: 1, kind: output, shape index: {}]
  %s2 = sld [smem:[#allocation0]]
  $region14: #{frbnet_forward.18} parent=0
    _
  %s4 = ssub.s32 1, %s2
  %s5 = scalar_select 0, %s4, %s2
  // Predicated region
  $region2: #{frbnet_forward.18} parent=0 // pred_check
    _
  $region3: #{frbnet_forward.18} parent=0 // pred_check_branch
    %7 = sbr.rel (0) target = $region5
  $region4: #{frbnet_forward.18} parent=0 // pred_region
    _
  $region5: #{frbnet_forward.18} parent=0 // pred_fallthru
    _
  %v8 = vld [vmem:[%s0] sm:$0xff]
  %v9 = vld [vmem:[%s0 + $0x8] sm:$0xff]
  %v10 = vld [vmem:[%s0 + $0x10] sm:$0xff]
  %v11 = vld [vmem:[%s0 + $0x18] sm:$0xff]
  %v12 = vld [vmem:[%s0 + $0x20] sm:$0xff]
  %v13 = vld [vmem:[%s0 + $0x28] sm:$0xff]
  %v14 = vld [vmem:[%s0 + $0x30] sm:$0xff]
  %v15 = vld [vmem:[%s0 + $0x38] sm:$0xff]
  %v16 = vld [vmem:[%s0 + $0x40] sm:$0xff]
  %v17 = vld [vmem:[%s0 + $0x48] sm:$0xff]
  %v18 = vld [vmem:[%s0 + $0x50] sm:$0xff]
  %v19 = vld [vmem:[%s0 + $0x58] sm:$0xff]
  %v20 = vld [vmem:[%s0 + $0x60] sm:$0xff]
  %v21 = vld [vmem:[%s0 + $0x68] sm:$0xff]
  %v22 = vld [vmem:[%s0 + $0x70] sm:$0xff]
  %v23 = vld [vmem:[%s0 + $0x78] sm:$0xff]
  %v24 = vld [vmem:[%s0 + $0x80] sm:$0xff]
  %v25 = vld [vmem:[%s0 + $0x88] sm:$0xff]
  %v26 = vld [vmem:[%s0 + $0x90] sm:$0xff]
  %v27 = vld [vmem:[%s0 + $0x98] sm:$0xff]
  %v28 = vld [vmem:[%s0 + $0xa0] sm:$0xff]
  %v29 = vld [vmem:[%s0 + $0xa8] sm:$0xff]
  %v30 = vld [vmem:[%s0 + $0xb0] sm:$0xff]
  %v31 = vld [vmem:[%s0 + $0xb8] sm:$0xff]
  %v32 = vld [vmem:[%s0 + $0xc0] sm:$0xff]
  %v33 = vld [vmem:[%s0 + $0xc8] sm:$0xff]
  %v34 = vld [vmem:[%s0 + $0xd0] sm:$0xff]
  %v35 = vld [vmem:[%s0 + $0xd8] sm:$0xff]
  %v36 = vld [vmem:[%s0 + $0xe0] sm:$0xff]
  %v37 = vld [vmem:[%s0 + $0xe8] sm:$0xff]
  %v38 = vld [vmem:[%s0 + $0xf0] sm:$0xff]
  %v39 = vld [vmem:[%s0 + $0xf8] sm:$0xff]
  %v40 = vld [vmem:[%s0 + $0x100] sm:$0xff]
  %v41 = vld [vmem:[%s0 + $0x108] sm:$0xff]
  %v42 = vld [vmem:[%s0 + $0x110] sm:$0xff]
  %v43 = vld [vmem:[%s0 + $0x118] sm:$0xff]
  %v44 = vld [vmem:[%s0 + $0x120] sm:$0xff]
  %v45 = vld [vmem:[%s0 + $0x128] sm:$0xff]
  %v46 = vld [vmem:[%s0 + $0x130] sm:$0xff]
  %v47 = vld [vmem:[%s0 + $0x138] sm:$0xff]
  %v48 = vld [vmem:[%s0 + $0x140] sm:$0xff]
  %v49 = vld [vmem:[%s0 + $0x148] sm:$0xff]
  %v50 = vld [vmem:[%s0 + $0x150] sm:$0xff]
  %v51 = vld [vmem:[%s0 + $0x158] sm:$0xff]
  %v52 = vld [vmem:[%s0 + $0x160] sm:$0xff]
  %v53 = vld [vmem:[%s0 + $0x168] sm:$0xff]
  %v54 = vld [vmem:[%s0 + $0x170] sm:$0xff]
  %v55 = vld [vmem:[%s0 + $0x178] sm:$0xff]
  %v56 = vld [vmem:[%s0 + $0x180] sm:$0xff]
  %v57 = vld [vmem:[%s0 + $0x188] sm:$0xff]
  %v58 = vld [vmem:[%s0 + $0x190] sm:$0xff]
  %v59 = vld [vmem:[%s0 + $0x198] sm:$0xff]
  %v60 = vld [vmem:[%s0 + $0x1a0] sm:$0xff]
  %v61 = vld [vmem:[%s0 + $0x1a8] sm:$0xff]
  %v62 = vld [vmem:[%s0 + $0x1b0] sm:$0xff]
  %v63 = vld [vmem:[%s0 + $0x1b8] sm:$0xff]
  %v64 = vld [vmem:[%s0 + $0x1c0] sm:$0xff]
  %v65 = vld [vmem:[%s0 + $0x1c8] sm:$0xff]
  %v66 = vld [vmem:[%s0 + $0x1d0] sm:$0xff]
  %v67 = vld [vmem:[%s0 + $0x1d8] sm:$0xff]
  %v68 = vld [vmem:[%s0 + $0x1e0] sm:$0xff]
  %v69 = vld [vmem:[%s0 + $0x1e8] sm:$0xff]
  %v70 = vld [vmem:[%s0 + $0x1f0] sm:$0xff]
  %v71 = vld [vmem:[%s0 + $0x1f8] sm:$0xff]
  %v72 = vld [vmem:[%s0 + $0x200] sm:$0xff]
  %v73 = vld [vmem:[%s0 + $0x208] sm:$0xff]
  %v74 = vld [vmem:[%s0 + $0x210] sm:$0xff]
  %v75 = vld [vmem:[%s0 + $0x218] sm:$0xff]
  %v76 = vld [vmem:[%s0 + $0x220] sm:$0xff]
  %v77 = vld [vmem:[%s0 + $0x228] sm:$0xff]
  %v78 = vld [vmem:[%s0 + $0x230] sm:$0xff]
  %v79 = vld [vmem:[%s0 + $0x238] sm:$0xff]
  %v80 = vld [vmem:[%s0 + $0x240] sm:$0xff]
  %v81 = vld [vmem:[%s0 + $0x248] sm:$0xff]
  %v82 = vld [vmem:[%s0 + $0x250] sm:$0xff]
  %v83 = vld [vmem:[%s0 + $0x258] sm:$0xff]
  %v84 = vld [vmem:[%s0 + $0x260] sm:$0xff]
  %v85 = vld [vmem:[%s0 + $0x268] sm:$0xff]
  %v86 = vld [vmem:[%s0 + $0x270] sm:$0xff]
  %v87 = vld [vmem:[%s0 + $0x278] sm:$0xff]
  %v88 = vld [vmem:[%s0 + $0x280] sm:$0xff]
  %v89 = vld [vmem:[%s0 + $0x288] sm:$0xff]
  %v90 = vld [vmem:[%s0 + $0x290] sm:$0xff]
  %v91 = vld [vmem:[%s0 + $0x298] sm:$0xff]
  %v92 = vld [vmem:[%s0 + $0x2a0] sm:$0xff]
  %v93 = vld [vmem:[%s0 + $0x2a8] sm:$0xff]
  %v94 = vld [vmem:[%s0 + $0x2b0] sm:$0xff]
  %v95 = vld [vmem:[%s0 + $0x2b8] sm:$0xff]
  %v96 = vld [vmem:[%s0 + $0x2c0] sm:$0xff]
  %v97 = vld [vmem:[%s0 + $0x2c8] sm:$0xff]
  %v98 = vld [vmem:[%s0 + $0x2d0] sm:$0xff]
  %v99 = vld [vmem:[%s0 + $0x2d8] sm:$0xff]
  %v100 = vld [vmem:[%s0 + $0x2e0] sm:$0xff]
  %v101 = vld [vmem:[%s0 + $0x2e8] sm:$0xff]
  %v102 = vld [vmem:[%s0 + $0x2f0] sm:$0xff]
  %v103 = vld [vmem:[%s0 + $0x2f8] sm:$0xff]
  %v104 = vld [vmem:[%s0 + $0x300] sm:$0xff]
  %v105 = vld [vmem:[%s0 + $0x308] sm:$0xff]
  %v106 = vld [vmem:[%s0 + $0x310] sm:$0xff]
  %v107 = vld [vmem:[%s0 + $0x318] sm:$0xff]
  %v108 = vld [vmem:[%s0 + $0x320] sm:$0xff]
  %v109 = vld [vmem:[%s0 + $0x328] sm:$0xff]
  %v110 = vld [vmem:[%s0 + $0x330] sm:$0xff]
  %v111 = vld [vmem:[%s0 + $0x338] sm:$0xff]
  %v112 = vld [vmem:[%s0 + $0x340] sm:$0xff]
  %v113 = vld [vmem:[%s0 + $0x348] sm:$0xff]
  %v114 = vld [vmem:[%s0 + $0x350] sm:$0xff]
  %v115 = vld [vmem:[%s0 + $0x358] sm:$0xff]
  %v116 = vld [vmem:[%s0 + $0x360] sm:$0xff]
  %v117 = vld [vmem:[%s0 + $0x368] sm:$0xff]
  %v118 = vld [vmem:[%s0 + $0x370] sm:$0xff]
  %v119 = vld [vmem:[%s0 + $0x378] sm:$0xff]
  %v120 = vld [vmem:[%s0 + $0x380] sm:$0xff]
  %v121 = vld [vmem:[%s0 + $0x388] sm:$0xff]
  %v122 = vld [vmem:[%s0 + $0x390] sm:$0xff]
  %v123 = vld [vmem:[%s0 + $0x398] sm:$0xff]
  %v124 = vld [vmem:[%s0 + $0x3a0] sm:$0xff]
  %v125 = vld [vmem:[%s0 + $0x3a8] sm:$0xff]
  %v126 = vld [vmem:[%s0 + $0x3b0] sm:$0xff]
  %v127 = vld [vmem:[%s0 + $0x3b8] sm:$0xff]
  %v128 = vld [vmem:[%s0 + $0x3c0] sm:$0xff]
  %v129 = vld [vmem:[%s0 + $0x3c8] sm:$0xff]
  %v130 = vld [vmem:[%s0 + $0x3d0] sm:$0xff]
  %v131 = vld [vmem:[%s0 + $0x3d8] sm:$0xff]
  %v132 = vld [vmem:[%s0 + $0x3e0] sm:$0xff]
  %v133 = vld [vmem:[%s0 + $0x3e8] sm:$0xff]
  %v134 = vld [vmem:[%s0 + $0x3f0] sm:$0xff]
  %v135 = vld [vmem:[%s0 + $0x3f8] sm:$0xff]
  %v136 = vld [vmem:[%s0 + $0x400] sm:$0xff]
  %v137 = vld [vmem:[%s0 + $0x408] sm:$0xff]
  %v138 = vld [vmem:[%s0 + $0x410] sm:$0xff]
  %v139 = vld [vmem:[%s0 + $0x418] sm:$0xff]
  %v140 = vld [vmem:[%s0 + $0x420] sm:$0xff]
  %v141 = vld [vmem:[%s0 + $0x428] sm:$0xff]
  %v142 = vld [vmem:[%s0 + $0x430] sm:$0xff]
  %v143 = vld [vmem:[%s0 + $0x438] sm:$0xff]
  %v144 = vld [vmem:[%s0 + $0x440] sm:$0xff]
  %v145 = vld [vmem:[%s0 + $0x448] sm:$0xff]
  %v146 = vld [vmem:[%s0 + $0x450] sm:$0xff]
  %v147 = vld [vmem:[%s0 + $0x458] sm:$0xff]
  %v148 = vld [vmem:[%s0 + $0x460] sm:$0xff]
  %v149 = vld [vmem:[%s0 + $0x468] sm:$0xff]
  %v150 = vld [vmem:[%s0 + $0x470] sm:$0xff]
  %v151 = vld [vmem:[%s0 + $0x478] sm:$0xff]
  %vm152 = vcmask 261120
  %v153 = vsel %vm152, %v8, -inf
  %v154 = vsel %vm152, %v24, -inf
  %v155 = vmax.f32 %v153, %v154
  %v156 = vsel %vm152, %v40, -inf
  %v157 = vmax.f32 %v155, %v156
  %v158 = vsel %vm152, %v56, -inf
  %v159 = vmax.f32 %v157, %v158
  %v160 = vsel %vm152, %v72, -inf
  %v161 = vmax.f32 %v159, %v160
  %v162 = vsel %vm152, %v88, -inf
  %v163 = vmax.f32 %v161, %v162
  %v164 = vsel %vm152, %v104, -inf
  %v165 = vmax.f32 %v163, %v164
  %v166 = vsel %vm152, %v120, -inf
  %v167 = vmax.f32 %v165, %v166
  %v168 = vsel %vm152, %v136, -inf
  %v169 = vmax.f32 %v167, %v168
  %v170 = vsel %vm152, %v9, -inf
  %v171 = vsel %vm152, %v25, -inf
  %v172 = vmax.f32 %v170, %v171
  %v173 = vsel %vm152, %v41, -inf
  %v174 = vmax.f32 %v172, %v173
  %v175 = vsel %vm152, %v57, -inf
  %v176 = vmax.f32 %v174, %v175
  %v177 = vsel %vm152, %v73, -inf
  %v178 = vmax.f32 %v176, %v177
  %v179 = vsel %vm152, %v89, -inf
  %v180 = vmax.f32 %v178, %v179
  %v181 = vsel %vm152, %v105, -inf
  %v182 = vmax.f32 %v180, %v181
  %v183 = vsel %vm152, %v121, -inf
  %v184 = vmax.f32 %v182, %v183
  %v185 = vsel %vm152, %v137, -inf
  %v186 = vmax.f32 %v184, %v185
  %v187 = vsel %vm152, %v10, -inf
  %v188 = vsel %vm152, %v26, -inf
  %v189 = vmax.f32 %v187, %v188
  %v190 = vsel %vm152, %v42, -inf
  %v191 = vmax.f32 %v189, %v190
  %v192 = vsel %vm152, %v58, -inf
  %v193 = vmax.f32 %v191, %v192
  %v194 = vsel %vm152, %v74, -inf
  %v195 = vmax.f32 %v193, %v194
  %v196 = vsel %vm152, %v90, -inf
  %v197 = vmax.f32 %v195, %v196
  %v198 = vsel %vm152, %v106, -inf
  %v199 = vmax.f32 %v197, %v198
  %v200 = vsel %vm152, %v122, -inf
  %v201 = vmax.f32 %v199, %v200
  %v202 = vsel %vm152, %v138, -inf
  %v203 = vmax.f32 %v201, %v202
  %v204 = vsel %vm152, %v11, -inf
  %v205 = vsel %vm152, %v27, -inf
  %v206 = vmax.f32 %v204, %v205
  %v207 = vsel %vm152, %v43, -inf
  %v208 = vmax.f32 %v206, %v207
  %v209 = vsel %vm152, %v59, -inf
  %v210 = vmax.f32 %v208, %v209
  %v211 = vsel %vm152, %v75, -inf
  %v212 = vmax.f32 %v210, %v211
  %v213 = vsel %vm152, %v91, -inf
  %v214 = vmax.f32 %v212, %v213
  %v215 = vsel %vm152, %v107, -inf
  %v216 = vmax.f32 %v214, %v215
  %v217 = vsel %vm152, %v123, -inf
  %v218 = vmax.f32 %v216, %v217
  %v219 = vsel %vm152, %v139, -inf
  %v220 = vmax.f32 %v218, %v219
  %v221 = vsel %vm152, %v12, -inf
  %v222 = vsel %vm152, %v28, -inf
  %v223 = vmax.f32 %v221, %v222
  %v224 = vsel %vm152, %v44, -inf
  %v225 = vmax.f32 %v223, %v224
  %v226 = vsel %vm152, %v60, -inf
  %v227 = vmax.f32 %v225, %v226
  %v228 = vsel %vm152, %v76, -inf
  %v229 = vmax.f32 %v227, %v228
  %v230 = vsel %vm152, %v92, -inf
  %v231 = vmax.f32 %v229, %v230
  %v232 = vsel %vm152, %v108, -inf
  %v233 = vmax.f32 %v231, %v232
  %v234 = vsel %vm152, %v124, -inf
  %v235 = vmax.f32 %v233, %v234
  %v236 = vsel %vm152, %v140, -inf
  %v237 = vmax.f32 %v235, %v236
  %v238 = vsel %vm152, %v13, -inf
  %v239 = vsel %vm152, %v29, -inf
  %v240 = vmax.f32 %v238, %v239
  %v241 = vsel %vm152, %v45, -inf
  %v242 = vmax.f32 %v240, %v241
  %v243 = vsel %vm152, %v61, -inf
  %v244 = vmax.f32 %v242, %v243
  %v245 = vsel %vm152, %v77, -inf
  %v246 = vmax.f32 %v244, %v245
  %v247 = vsel %vm152, %v93, -inf
  %v248 = vmax.f32 %v246, %v247
  %v249 = vsel %vm152, %v109, -inf
  %v250 = vmax.f32 %v248, %v249
  %v251 = vsel %vm152, %v125, -inf
  %v252 = vmax.f32 %v250, %v251
  %v253 = vsel %vm152, %v141, -inf
  %v254 = vmax.f32 %v252, %v253
  %v255 = vsel %vm152, %v14, -inf
  %v256 = vsel %vm152, %v30, -inf
  %v257 = vmax.f32 %v255, %v256
  %v258 = vsel %vm152, %v46, -inf
  %v259 = vmax.f32 %v257, %v258
  %v260 = vsel %vm152, %v62, -inf
  %v261 = vmax.f32 %v259, %v260
  %v262 = vsel %vm152, %v78, -inf
  %v263 = vmax.f32 %v261, %v262
  %v264 = vsel %vm152, %v94, -inf
  %v265 = vmax.f32 %v263, %v264
  %v266 = vsel %vm152, %v110, -inf
  %v267 = vmax.f32 %v265, %v266
  %v268 = vsel %vm152, %v126, -inf
  %v269 = vmax.f32 %v267, %v268
  %v270 = vsel %vm152, %v142, -inf
  %v271 = vmax.f32 %v269, %v270
  %v272 = vsel %vm152, %v15, -inf
  %v273 = vsel %vm152, %v31, -inf
  %v274 = vmax.f32 %v272, %v273
  %v275 = vsel %vm152, %v47, -inf
  %v276 = vmax.f32 %v274, %v275
  %v277 = vsel %vm152, %v63, -inf
  %v278 = vmax.f32 %v276, %v277
  %v279 = vsel %vm152, %v79, -inf
  %v280 = vmax.f32 %v278, %v279
  %v281 = vsel %vm152, %v95, -inf
  %v282 = vmax.f32 %v280, %v281
  %v283 = vsel %vm152, %v111, -inf
  %v284 = vmax.f32 %v282, %v283
  %v285 = vsel %vm152, %v127, -inf
  %v286 = vmax.f32 %v284, %v285
  %v287 = vsel %vm152, %v143, -inf
  %v288 = vmax.f32 %v286, %v287
  %v289 = vsel %vm152, %v16, -inf
  %v290 = vsel %vm152, %v32, -inf
  %v291 = vmax.f32 %v289, %v290
  %v292 = vsel %vm152, %v48, -inf
  %v293 = vmax.f32 %v291, %v292
  %v294 = vsel %vm152, %v64, -inf
  %v295 = vmax.f32 %v293, %v294
  %v296 = vsel %vm152, %v80, -inf
  %v297 = vmax.f32 %v295, %v296
  %v298 = vsel %vm152, %v96, -inf
  %v299 = vmax.f32 %v297, %v298
  %v300 = vsel %vm152, %v112, -inf
  %v301 = vmax.f32 %v299, %v300
  %v302 = vsel %vm152, %v128, -inf
  %v303 = vmax.f32 %v301, %v302
  %v304 = vsel %vm152, %v144, -inf
  %v305 = vmax.f32 %v303, %v304
  %v306 = vsel %vm152, %v17, -inf
  %v307 = vsel %vm152, %v33, -inf
  %v308 = vmax.f32 %v306, %v307
  %v309 = vsel %vm152, %v49, -inf
  %v310 = vmax.f32 %v308, %v309
  %v311 = vsel %vm152, %v65, -inf
  %v312 = vmax.f32 %v310, %v311
  %v313 = vsel %vm152, %v81, -inf
  %v314 = vmax.f32 %v312, %v313
  %v315 = vsel %vm152, %v97, -inf
  %v316 = vmax.f32 %v314, %v315
  %v317 = vsel %vm152, %v113, -inf
  %v318 = vmax.f32 %v316, %v317
  %v319 = vsel %vm152, %v129, -inf
  %v320 = vmax.f32 %v318, %v319
  %v321 = vsel %vm152, %v145, -inf
  %v322 = vmax.f32 %v320, %v321
  %v323 = vsel %vm152, %v18, -inf
  %v324 = vsel %vm152, %v34, -inf
  %v325 = vmax.f32 %v323, %v324
  %v326 = vsel %vm152, %v50, -inf
  %v327 = vmax.f32 %v325, %v326
  %v328 = vsel %vm152, %v66, -inf
  %v329 = vmax.f32 %v327, %v328
  %v330 = vsel %vm152, %v82, -inf
  %v331 = vmax.f32 %v329, %v330
  %v332 = vsel %vm152, %v98, -inf
  %v333 = vmax.f32 %v331, %v332
  %v334 = vsel %vm152, %v114, -inf
  %v335 = vmax.f32 %v333, %v334
  %v336 = vsel %vm152, %v130, -inf
  %v337 = vmax.f32 %v335, %v336
  %v338 = vsel %vm152, %v146, -inf
  %v339 = vmax.f32 %v337, %v338
  %v340 = vsel %vm152, %v19, -inf
  %v341 = vsel %vm152, %v35, -inf
  %v342 = vmax.f32 %v340, %v341
  %v343 = vsel %vm152, %v51, -inf
  %v344 = vmax.f32 %v342, %v343
  %v345 = vsel %vm152, %v67, -inf
  %v346 = vmax.f32 %v344, %v345
  %v347 = vsel %vm152, %v83, -inf
  %v348 = vmax.f32 %v346, %v347
  %v349 = vsel %vm152, %v99, -inf
  %v350 = vmax.f32 %v348, %v349
  %v351 = vsel %vm152, %v115, -inf
  %v352 = vmax.f32 %v350, %v351
  %v353 = vsel %vm152, %v131, -inf
  %v354 = vmax.f32 %v352, %v353
  %v355 = vsel %vm152, %v147, -inf
  %v356 = vmax.f32 %v354, %v355
  %v357 = vsel %vm152, %v20, -inf
  %v358 = vsel %vm152, %v36, -inf
  %v359 = vmax.f32 %v357, %v358
  %v360 = vsel %vm152, %v52, -inf
  %v361 = vmax.f32 %v359, %v360
  %v362 = vsel %vm152, %v68, -inf
  %v363 = vmax.f32 %v361, %v362
  %v364 = vsel %vm152, %v84, -inf
  %v365 = vmax.f32 %v363, %v364
  %v366 = vsel %vm152, %v100, -inf
  %v367 = vmax.f32 %v365, %v366
  %v368 = vsel %vm152, %v116, -inf
  %v369 = vmax.f32 %v367, %v368
  %v370 = vsel %vm152, %v132, -inf
  %v371 = vmax.f32 %v369, %v370
  %v372 = vsel %vm152, %v148, -inf
  %v373 = vmax.f32 %v371, %v372
  %v374 = vsel %vm152, %v21, -inf
  %v375 = vsel %vm152, %v37, -inf
  %v376 = vmax.f32 %v374, %v375
  %v377 = vsel %vm152, %v53, -inf
  %v378 = vmax.f32 %v376, %v377
  %v379 = vsel %vm152, %v69, -inf
  %v380 = vmax.f32 %v378, %v379
  %v381 = vsel %vm152, %v85, -inf
  %v382 = vmax.f32 %v380, %v381
  %v383 = vsel %vm152, %v101, -inf
  %v384 = vmax.f32 %v382, %v383
  %v385 = vsel %vm152, %v117, -inf
  %v386 = vmax.f32 %v384, %v385
  %v387 = vsel %vm152, %v133, -inf
  %v388 = vmax.f32 %v386, %v387
  %v389 = vsel %vm152, %v149, -inf
  %v390 = vmax.f32 %v388, %v389
  %v391 = vsel %vm152, %v22, -inf
  %v392 = vsel %vm152, %v38, -inf
  %v393 = vmax.f32 %v391, %v392
  %v394 = vsel %vm152, %v54, -inf
  %v395 = vmax.f32 %v393, %v394
  %v396 = vsel %vm152, %v70, -inf
  %v397 = vmax.f32 %v395, %v396
  %v398 = vsel %vm152, %v86, -inf
  %v399 = vmax.f32 %v397, %v398
  %v400 = vsel %vm152, %v102, -inf
  %v401 = vmax.f32 %v399, %v400
  %v402 = vsel %vm152, %v118, -inf
  %v403 = vmax.f32 %v401, %v402
  %v404 = vsel %vm152, %v134, -inf
  %v405 = vmax.f32 %v403, %v404
  %v406 = vsel %vm152, %v150, -inf
  %v407 = vmax.f32 %v405, %v406
  %v408 = vsel %vm152, %v23, -inf
  %v409 = vsel %vm152, %v39, -inf
  %v410 = vmax.f32 %v408, %v409
  %v411 = vsel %vm152, %v55, -inf
  %v412 = vmax.f32 %v410, %v411
  %v413 = vsel %vm152, %v71, -inf
  %v414 = vmax.f32 %v412, %v413
  %v415 = vsel %vm152, %v87, -inf
  %v416 = vmax.f32 %v414, %v415
  %v417 = vsel %vm152, %v103, -inf
  %v418 = vmax.f32 %v416, %v417
  %v419 = vsel %vm152, %v119, -inf
  %v420 = vmax.f32 %v418, %v419
  %v421 = vsel %vm152, %v135, -inf
  %v422 = vmax.f32 %v420, %v421
  %v423 = vsel %vm152, %v151, -inf
  %v424 = vmax.f32 %v422, %v423
  %425 = vst.msk [vmem:[%s1] sm:$0xff] %vm152, %v169
  %426 = vst.msk [vmem:[%s1 + $0x8] sm:$0xff] %vm152, %v186
  %427 = vst.msk [vmem:[%s1 + $0x10] sm:$0xff] %vm152, %v203
  %428 = vst.msk [vmem:[%s1 + $0x18] sm:$0xff] %vm152, %v220
  %429 = vst.msk [vmem:[%s1 + $0x20] sm:$0xff] %vm152, %v237
  %430 = vst.msk [vmem:[%s1 + $0x28] sm:$0xff] %vm152, %v254
  %431 = vst.msk [vmem:[%s1 + $0x30] sm:$0xff] %vm152, %v271
  %432 = vst.msk [vmem:[%s1 + $0x38] sm:$0xff] %vm152, %v288
  %433 = vst.msk [vmem:[%s1 + $0x40] sm:$0xff] %vm152, %v305
  %434 = vst.msk [vmem:[%s1 + $0x48] sm:$0xff] %vm152, %v322
  %435 = vst.msk [vmem:[%s1 + $0x50] sm:$0xff] %vm152, %v339
  %436 = vst.msk [vmem:[%s1 + $0x58] sm:$0xff] %vm152, %v356
  %437 = vst.msk [vmem:[%s1 + $0x60] sm:$0xff] %vm152, %v373
  %438 = vst.msk [vmem:[%s1 + $0x68] sm:$0xff] %vm152, %v390
  %439 = vst.msk [vmem:[%s1 + $0x70] sm:$0xff] %vm152, %v407
  %440 = vst.msk [vmem:[%s1 + $0x78] sm:$0xff] %vm152, %v424
  // Predicated region
  $region6: #{frbnet_forward.18} parent=0 // pred_check
    _
  $region7: #{frbnet_forward.18} parent=0 // pred_check_branch
    %442 = sbr.rel (0) target = $region9
  $region8: #{frbnet_forward.18} parent=0 // pred_region
    _
  $region9: #{frbnet_forward.18} parent=0 // pred_fallthru
    _
  // Predicated region
  $region10: #{frbnet_forward.18} parent=0 // pred_check
    _
  $region11: #{frbnet_forward.18} parent=0 // pred_check_branch
    %444 = sbr.rel (0) target = $region13
  $region12: #{frbnet_forward.18} parent=0 // pred_region
    _
  $region13: #{frbnet_forward.18} parent=0 // pred_fallthru
    _

// kernel: frbnet_forward.22
$region0: #{frbnet_forward.22}
  #allocation0 [shape = 'u32[]', space=smem, size = 0x4, offset = 0x4, fixed_abs, tag = 'smem constant byte address 0x4 - core index']
  #allocation1 [shape = 'u32[144,128]{1,0:T(1,128)}', space=vmem, size = 0x12000, scoped, tag = 'internal scratch']
  %s0 = inlined_call_operand.vmem [shape: f32[128,32], index: 0, kind: input, shape index: {}]
  %s1 = inlined_call_operand.vmem [shape: f32[32,64], index: 1, kind: input, shape index: {}]
  %s2 = inlined_call_operand.vmem [shape: f32[1,64], index: 2, kind: input, shape index: {}]
  %s3 = inlined_call_operand.vmem [shape: f32[1,64], index: 3, kind: input, shape index: {}]
  %s4 = inlined_call_operand.vmem [shape: f32[128,64], index: 4, kind: input, shape index: {}]
  %s5 = inlined_call_operand.vmem [shape: f32[128,64], index: 5, kind: output, shape index: {}]
  %s6 = sld [smem:[#allocation0]]
  $region30: #{frbnet_forward.22} parent=0
    _
  %s8 = ssub.s32 1, %s6
  %s9 = scalar_select 0, %s8, %s6
  // Predicated region
  $region2: #{frbnet_forward.22} parent=0 // pred_check
    _
  $region3: #{frbnet_forward.22} parent=0 // pred_check_branch
    %11 = sbr.rel (0) target = $region5
  $region4: #{frbnet_forward.22} parent=0 // pred_region
    _
  $region5: #{frbnet_forward.22} parent=0 // pred_fallthru
    _
  // Predicated region
  $region6: #{frbnet_forward.22} parent=0 // pred_check
    _
  $region7: #{frbnet_forward.22} parent=0 // pred_check_branch
    %13 = sbr.rel (0) target = $region9
  $region8: #{frbnet_forward.22} parent=0 // pred_region
    _
  $region9: #{frbnet_forward.22} parent=0 // pred_fallthru
    _
  // Predicated region
  $region10: #{frbnet_forward.22} parent=0 // pred_check
    _
  $region11: #{frbnet_forward.22} parent=0 // pred_check_branch
    %15 = sbr.rel (0) target = $region13
  $region12: #{frbnet_forward.22} parent=0 // pred_region
    _
  $region13: #{frbnet_forward.22} parent=0 // pred_fallthru
    _
  // Predicated region
  $region14: #{frbnet_forward.22} parent=0 // pred_check
    _
  $region15: #{frbnet_forward.22} parent=0 // pred_check_branch
    %17 = sbr.rel (0) target = $region17
  $region16: #{frbnet_forward.22} parent=0 // pred_region
    _
  $region17: #{frbnet_forward.22} parent=0 // pred_fallthru
    _
  // Predicated region
  $region18: #{frbnet_forward.22} parent=0 // pred_check
    _
  $region19: #{frbnet_forward.22} parent=0 // pred_check_branch
    %19 = sbr.rel (0) target = $region21
  $region20: #{frbnet_forward.22} parent=0 // pred_region
    _
  $region21: #{frbnet_forward.22} parent=0 // pred_fallthru
    _
  %v20 = vld [vmem:[%s0] sm:$0xff]
  %v21 = vld [vmem:[%s0 + $0x8] sm:$0xff]
  %v22 = vld [vmem:[%s0 + $0x10] sm:$0xff]
  %v23 = vld [vmem:[%s0 + $0x18] sm:$0xff]
  %v24 = vld [vmem:[%s0 + $0x20] sm:$0xff]
  %v25 = vld [vmem:[%s0 + $0x28] sm:$0xff]
  %v26 = vld [vmem:[%s0 + $0x30] sm:$0xff]
  %v27 = vld [vmem:[%s0 + $0x38] sm:$0xff]
  %v28 = vld [vmem:[%s0 + $0x40] sm:$0xff]
  %v29 = vld [vmem:[%s0 + $0x48] sm:$0xff]
  %v30 = vld [vmem:[%s0 + $0x50] sm:$0xff]
  %v31 = vld [vmem:[%s0 + $0x58] sm:$0xff]
  %v32 = vld [vmem:[%s0 + $0x60] sm:$0xff]
  %v33 = vld [vmem:[%s0 + $0x68] sm:$0xff]
  %v34 = vld [vmem:[%s0 + $0x70] sm:$0xff]
  %v35 = vld [vmem:[%s0 + $0x78] sm:$0xff]
  %v36 = vld [vmem:[%s1] sm:$0xff]
  %v37 = vld [vmem:[%s1 + $0x8] sm:$0xff]
  %v38 = vld [vmem:[%s1 + $0x10] sm:$0xff]
  %v39 = vld [vmem:[%s1 + $0x18] sm:$0xff]
  %vm40 = vcmask 261120
  %v42 = vsel %vm40, %v20, 0
  %v45 = vsel %vm40, %v21, 0
  %v48 = vsel %vm40, %v22, 0
  %v51 = vsel %vm40, %v23, 0
  %v54 = vsel %vm40, %v24, 0
  %v57 = vsel %vm40, %v25, 0
  %v60 = vsel %vm40, %v26, 0
  %v63 = vsel %vm40, %v27, 0
  %v66 = vsel %vm40, %v28, 0
  %v69 = vsel %vm40, %v29, 0
  %v72 = vsel %vm40, %v30, 0
  %v75 = vsel %vm40, %v31, 0
  %v78 = vsel %vm40, %v32, 0
  %v81 = vsel %vm40, %v33, 0
  %v84 = vsel %vm40, %v34, 0
  %v87 = vsel %vm40, %v35, 0
  %89 = vmatprep.subr.mxu0 0.0
  %90 = vmatpush1.msra.mxu0 0.0
  %91 = vmatprep.subr.mxu0 0.0
  %92 = vmatpush1.msra.mxu0 0.0
  %93 = vmatprep.subr.mxu0 0.0
  %94 = vmatpush1.msra.mxu0 0.0
  %95 = vmatprep.subr.mxu0 0.0
  %96 = vmatpush1.msra.mxu0 0.0
  %97 = vmatprep.subr.mxu0 0.0
  %98 = vmatpush1.msra.mxu0 0.0
  %99 = vmatprep.subr.mxu0 0.0
  %100 = vmatpush1.msra.mxu0 0.0
  %101 = vmatprep.subr.mxu0 0.0
  %102 = vmatpush1.msra.mxu0 0.0
  %103 = vmatprep.subr.mxu0 0.0
  %104 = vmatpush1.msra.mxu0 0.0
  %105 = vmatprep.subr.mxu0 0.0
  %106 = vmatpush1.msra.mxu0 0.0
  %107 = vmatprep.subr.mxu0 0.0
  %108 = vmatpush1.msra.mxu0 0.0
  %109 = vmatprep.subr.mxu0 0.0
  %110 = vmatpush1.msra.mxu0 0.0
  %111 = vmatprep.subr.mxu0 0.0
  %112 = vmatpush1.msra.mxu0 0.0
  %113 = vmatprep.subr.mxu0 0.0
  %114 = vmatpush1.msra.mxu0 %v39
  %115 = vmatprep.subr.mxu0 0.0
  %116 = vmatpush1.msra.mxu0 %v38
  %117 = vmatprep.subr.mxu0 0.0
  %118 = vmatpush1.msra.mxu0 %v37
  %119 = vmatprep.subr.mxu0 0.0
  %120 = vmatpush1.msra.mxu0 %v36
  %121 = vmatprep.subr.mxu0 0.0
  %122 = vmatpush2.msra.mxu0 0.0
  %123 = vmatprep.subr.mxu0 0.0
  %124 = vmatpush2.msra.mxu0 0.0
  %125 = vmatprep.subr.mxu0 0.0
  %126 = vmatpush2.msra.mxu0 0.0
  %127 = vmatprep.subr.mxu0 0.0
  %128 = vmatpush2.msra.mxu0 0.0
  %129 = vmatprep.subr.mxu0 0.0
  %130 = vmatpush2.msra.mxu0 0.0
  %131 = vmatprep.subr.mxu0 0.0
  %132 = vmatpush2.msra.mxu0 0.0
  %133 = vmatprep.subr.mxu0 0.0
  %134 = vmatpush2.msra.mxu0 0.0
  %135 = vmatprep.subr.mxu0 0.0
  %136 = vmatpush2.msra.mxu0 0.0
  %137 = vmatprep.subr.mxu0 0.0
  %138 = vmatpush2.msra.mxu0 0.0
  %139 = vmatprep.subr.mxu0 0.0
  %140 = vmatpush2.msra.mxu0 0.0
  %141 = vmatprep.subr.mxu0 0.0
  %142 = vmatpush2.msra.mxu0 0.0
  %143 = vmatprep.subr.mxu0 0.0
  %144 = vmatpush2.msra.mxu0 0.0
  %145 = vmatprep.subr.mxu0 0.0
  %146 = vmatpush2.msra.mxu0 0.0
  %147 = vmatprep.subr.mxu0 0.0
  %148 = vmatpush2.msra.mxu0 0.0
  %149 = vmatprep.subr.mxu0 0.0
  %150 = vmatpush2.msra.mxu0 0.0
  %151 = vmatprep.subr.mxu0 0.0
  %152 = vmatpush2.msra.mxu0 0.0
  %153 = vmatprep.mubr.f32.mxu0 0.0
  %154 = vmatmul.mubr.f32.gmra.mxu0 %v42
  %v155 = vpop.f32.mrf.mxu0
  %v156 = vadd.f32 0.0, %v155
  %v157 = vpop.f32.mrf.mxu0
  %158 = vmatprep.mubr.f32.mxu0 0.0
  %159 = vmatmul.mubr.f32.gmra.mxu0 %v45
  %v160 = vpop.f32.mrf.mxu0
  %v161 = vadd.f32 0.0, %v160
  %v162 = vpop.f32.mrf.mxu0
  %163 = vmatprep.mubr.f32.mxu0 0.0
  %164 = vmatmul.mubr.f32.gmra.mxu0 %v48
  %v165 = vpop.f32.mrf.mxu0
  %v166 = vadd.f32 0.0, %v165
  %v167 = vpop.f32.mrf.mxu0
  %168 = vmatprep.mubr.f32.mxu0 0.0
  %169 = vmatmul.mubr.f32.gmra.mxu0 %v51
  %v170 = vpop.f32.mrf.mxu0
  %v171 = vadd.f32 0.0, %v170
  %v172 = vpop.f32.mrf.mxu0
  %173 = vmatprep.mubr.f32.mxu0 0.0
  %174 = vmatmul.mubr.f32.gmra.mxu0 %v54
  %v175 = vpop.f32.mrf.mxu0
  %v176 = vadd.f32 0.0, %v175
  %v177 = vpop.f32.mrf.mxu0
  %178 = vmatprep.mubr.f32.mxu0 0.0
  %179 = vmatmul.mubr.f32.gmra.mxu0 %v57
  %v180 = vpop.f32.mrf.mxu0
  %v181 = vadd.f32 0.0, %v180
  %v182 = vpop.f32.mrf.mxu0
  %183 = vmatprep.mubr.f32.mxu0 0.0
  %184 = vmatmul.mubr.f32.gmra.mxu0 %v60
  %v185 = vpop.f32.mrf.mxu0
  %v186 = vadd.f32 0.0, %v185
  %v187 = vpop.f32.mrf.mxu0
  %188 = vmatprep.mubr.f32.mxu0 0.0
  %189 = vmatmul.mubr.f32.gmra.mxu0 %v63
  %v190 = vpop.f32.mrf.mxu0
  %v191 = vadd.f32 0.0, %v190
  %v192 = vpop.f32.mrf.mxu0
  %193 = vmatprep.mubr.f32.mxu0 0.0
  %194 = vmatmul.mubr.f32.gmra.mxu0 %v66
  %v195 = vpop.f32.mrf.mxu0
  %v196 = vadd.f32 0.0, %v195
  %v197 = vpop.f32.mrf.mxu0
  %198 = vmatprep.mubr.f32.mxu0 0.0
  %199 = vmatmul.mubr.f32.gmra.mxu0 %v69
  %v200 = vpop.f32.mrf.mxu0
  %v201 = vadd.f32 0.0, %v200
  %v202 = vpop.f32.mrf.mxu0
  %203 = vmatprep.mubr.f32.mxu0 0.0
  %204 = vmatmul.mubr.f32.gmra.mxu0 %v72
  %v205 = vpop.f32.mrf.mxu0
  %v206 = vadd.f32 0.0, %v205
  %v207 = vpop.f32.mrf.mxu0
  %208 = vmatprep.mubr.f32.mxu0 0.0
  %209 = vmatmul.mubr.f32.gmra.mxu0 %v75
  %v210 = vpop.f32.mrf.mxu0
  %v211 = vadd.f32 0.0, %v210
  %v212 = vpop.f32.mrf.mxu0
  %213 = vmatprep.mubr.f32.mxu0 0.0
  %214 = vmatmul.mubr.f32.gmra.mxu0 %v78
  %v215 = vpop.f32.mrf.mxu0
  %v216 = vadd.f32 0.0, %v215
  %v217 = vpop.f32.mrf.mxu0
  %218 = vmatprep.mubr.f32.mxu0 0.0
  %219 = vmatmul.mubr.f32.gmra.mxu0 %v81
  %v220 = vpop.f32.mrf.mxu0
  %v221 = vadd.f32 0.0, %v220
  %v222 = vpop.f32.mrf.mxu0
  %223 = vmatprep.mubr.f32.mxu0 0.0
  %224 = vmatmul.mubr.f32.gmra.mxu0 %v84
  %v225 = vpop.f32.mrf.mxu0
  %v226 = vadd.f32 0.0, %v225
  %v227 = vpop.f32.mrf.mxu0
  %228 = vmatprep.mubr.f32.mxu0 0.0
  %229 = vmatmul.mubr.f32.gmra.mxu0 %v87
  %v230 = vpop.f32.mrf.mxu0
  %v231 = vadd.f32 0.0, %v230
  %v232 = vpop.f32.mrf.mxu0
  %233 = vdwg.mxu0
  %v234 = vld [vmem:[%s2] sm:$0x1]
  %v236 = vlaneseq
  %v237 = vshrl.u32 %v236, 7
  %v238 = vsub.s32 0, %v237
  %v239 = vrot.slane %v234, %v238
  %v241 = vmul.f32 %v156, %v239
  %v242 = vmul.f32 %v161, %v239
  %v243 = vmul.f32 %v166, %v239
  %v244 = vmul.f32 %v171, %v239
  %v245 = vmul.f32 %v176, %v239
  %v246 = vmul.f32 %v181, %v239
  %v247 = vmul.f32 %v186, %v239
  %v248 = vmul.f32 %v191, %v239
  %v249 = vmul.f32 %v196, %v239
  %v250 = vmul.f32 %v201, %v239
  %v251 = vmul.f32 %v206, %v239
  %v252 = vmul.f32 %v211, %v239
  %v253 = vmul.f32 %v216, %v239
  %v254 = vmul.f32 %v221, %v239
  %v255 = vmul.f32 %v226, %v239
  %v256 = vmul.f32 %v231, %v239
  %v257 = vld [vmem:[%s3] sm:$0x1]
  %v259 = vlaneseq
  %v260 = vshrl.u32 %v259, 7
  %v261 = vsub.s32 0, %v260
  %v262 = vrot.slane %v257, %v261
  %v264 = vadd.f32 %v241, %v262
  %v265 = vadd.f32 %v242, %v262
  %v266 = vadd.f32 %v243, %v262
  %v267 = vadd.f32 %v244, %v262
  %v268 = vadd.f32 %v245, %v262
  %v269 = vadd.f32 %v246, %v262
  %v270 = vadd.f32 %v247, %v262
  %v271 = vadd.f32 %v248, %v262
  %v272 = vadd.f32 %v249, %v262
  %v273 = vadd.f32 %v250, %v262
  %v274 = vadd.f32 %v251, %v262
  %v275 = vadd.f32 %v252, %v262
  %v276 = vadd.f32 %v253, %v262
  %v277 = vadd.f32 %v254, %v262
  %v278 = vadd.f32 %v255, %v262
  %v279 = vadd.f32 %v256, %v262
  %v280 = vld [vmem:[%s4] sm:$0xff]
  %v281 = vld [vmem:[%s4 + $0x8] sm:$0xff]
  %v282 = vld [vmem:[%s4 + $0x10] sm:$0xff]
  %v283 = vld [vmem:[%s4 + $0x18] sm:$0xff]
  %v284 = vld [vmem:[%s4 + $0x20] sm:$0xff]
  %v285 = vld [vmem:[%s4 + $0x28] sm:$0xff]
  %v286 = vld [vmem:[%s4 + $0x30] sm:$0xff]
  %v287 = vld [vmem:[%s4 + $0x38] sm:$0xff]
  %v288 = vld [vmem:[%s4 + $0x40] sm:$0xff]
  %v289 = vld [vmem:[%s4 + $0x48] sm:$0xff]
  %v290 = vld [vmem:[%s4 + $0x50] sm:$0xff]
  %v291 = vld [vmem:[%s4 + $0x58] sm:$0xff]
  %v292 = vld [vmem:[%s4 + $0x60] sm:$0xff]
  %v293 = vld [vmem:[%s4 + $0x68] sm:$0xff]
  %v294 = vld [vmem:[%s4 + $0x70] sm:$0xff]
  %v295 = vld [vmem:[%s4 + $0x78] sm:$0xff]
  %v296 = vadd.f32 %v264, %v280
  %v297 = vadd.f32 %v265, %v281
  %v298 = vadd.f32 %v266, %v282
  %v299 = vadd.f32 %v267, %v283
  %v300 = vadd.f32 %v268, %v284
  %v301 = vadd.f32 %v269, %v285
  %v302 = vadd.f32 %v270, %v286
  %v303 = vadd.f32 %v271, %v287
  %v304 = vadd.f32 %v272, %v288
  %v305 = vadd.f32 %v273, %v289
  %v306 = vadd.f32 %v274, %v290
  %v307 = vadd.f32 %v275, %v291
  %v308 = vadd.f32 %v276, %v292
  %v309 = vadd.f32 %v277, %v293
  %v310 = vadd.f32 %v278, %v294
  %v311 = vadd.f32 %v279, %v295
  %v312 = vmax.f32 %v296, 0.0
  %v313 = vmax.f32 %v297, 0.0
  %v314 = vmax.f32 %v298, 0.0
  %v315 = vmax.f32 %v299, 0.0
  %v316 = vmax.f32 %v300, 0.0
  %v317 = vmax.f32 %v301, 0.0
  %v318 = vmax.f32 %v302, 0.0
  %v319 = vmax.f32 %v303, 0.0
  %v320 = vmax.f32 %v304, 0.0
  %v321 = vmax.f32 %v305, 0.0
  %v322 = vmax.f32 %v306, 0.0
  %v323 = vmax.f32 %v307, 0.0
  %v324 = vmax.f32 %v308, 0.0
  %v325 = vmax.f32 %v309, 0.0
  %v326 = vmax.f32 %v310, 0.0
  %v327 = vmax.f32 %v311, 0.0
  %vm328 = vcmask 523264
  %329 = vst.msk [vmem:[%s5] sm:$0xff] %vm328, %v312
  %330 = vst.msk [vmem:[%s5 + $0x8] sm:$0xff] %vm328, %v313
  %331 = vst.msk [vmem:[%s5 + $0x10] sm:$0xff] %vm328, %v314
  %332 = vst.msk [vmem:[%s5 + $0x18] sm:$0xff] %vm328, %v315
  %333 = vst.msk [vmem:[%s5 + $0x20] sm:$0xff] %vm328, %v316
  %334 = vst.msk [vmem:[%s5 + $0x28] sm:$0xff] %vm328, %v317
  %335 = vst.msk [vmem:[%s5 + $0x30] sm:$0xff] %vm328, %v318
  %336 = vst.msk [vmem:[%s5 + $0x38] sm:$0xff] %vm328, %v319
  %337 = vst.msk [vmem:[%s5 + $0x40] sm:$0xff] %vm328, %v320
  %338 = vst.msk [vmem:[%s5 + $0x48] sm:$0xff] %vm328, %v321
  %339 = vst.msk [vmem:[%s5 + $0x50] sm:$0xff] %vm328, %v322
  %340 = vst.msk [vmem:[%s5 + $0x58] sm:$0xff] %vm328, %v323
  %341 = vst.msk [vmem:[%s5 + $0x60] sm:$0xff] %vm328, %v324
  %342 = vst.msk [vmem:[%s5 + $0x68] sm:$0xff] %vm328, %v325
  %343 = vst.msk [vmem:[%s5 + $0x70] sm:$0xff] %vm328, %v326
  %344 = vst.msk [vmem:[%s5 + $0x78] sm:$0xff] %vm328, %v327
  // Predicated region
  $region22: #{frbnet_forward.22} parent=0 // pred_check
    _
  $region23: #{frbnet_forward.22} parent=0 // pred_check_branch
    %346 = sbr.rel (0) target = $region25
  $region24: #{frbnet_forward.22} parent=0 // pred_region
    _
  $region25: #{frbnet_forward.22} parent=0 // pred_fallthru
    _
  // Predicated region
  $region26: #{frbnet_forward.22} parent=0 // pred_check
    _
  $region27: #{frbnet_forward.22} parent=0 // pred_check_branch
    %348 = sbr.rel (0) target = $region29
  $region28: #{frbnet_forward.22} parent=0 // pred_region
    _
  $region29: #{frbnet_forward.22} parent=0 // pred_fallthru
    _

// kernel: frbnet_forward.19
$region0: #{frbnet_forward.19}
  #allocation0 [shape = 'u32[]', space=smem, size = 0x4, offset = 0x4, fixed_abs, tag = 'smem constant byte address 0x4 - core index']
  #allocation1 [shape = 'u32[144,128]{1,0:T(1,128)}', space=vmem, size = 0x12000, scoped, tag = 'internal scratch']
  %s0 = inlined_call_operand.vmem [shape: f32[128,32], index: 0, kind: input, shape index: {}]
  %s1 = inlined_call_operand.vmem [shape: f32[32,64], index: 1, kind: input, shape index: {}]
  %s2 = inlined_call_operand.vmem [shape: f32[1,64], index: 2, kind: input, shape index: {}]
  %s3 = inlined_call_operand.vmem [shape: f32[1,64], index: 3, kind: input, shape index: {}]
  %s4 = inlined_call_operand.vmem [shape: f32[128,64], index: 4, kind: output, shape index: {}]
  %s5 = sld [smem:[#allocation0]]
  $region26: #{frbnet_forward.19} parent=0
    _
  %s7 = ssub.s32 1, %s5
  %s8 = scalar_select 0, %s7, %s5
  // Predicated region
  $region2: #{frbnet_forward.19} parent=0 // pred_check
    _
  $region3: #{frbnet_forward.19} parent=0 // pred_check_branch
    %10 = sbr.rel (0) target = $region5
  $region4: #{frbnet_forward.19} parent=0 // pred_region
    _
  $region5: #{frbnet_forward.19} parent=0 // pred_fallthru
    _
  // Predicated region
  $region6: #{frbnet_forward.19} parent=0 // pred_check
    _
  $region7: #{frbnet_forward.19} parent=0 // pred_check_branch
    %12 = sbr.rel (0) target = $region9
  $region8: #{frbnet_forward.19} parent=0 // pred_region
    _
  $region9: #{frbnet_forward.19} parent=0 // pred_fallthru
    _
  // Predicated region
  $region10: #{frbnet_forward.19} parent=0 // pred_check
    _
  $region11: #{frbnet_forward.19} parent=0 // pred_check_branch
    %14 = sbr.rel (0) target = $region13
  $region12: #{frbnet_forward.19} parent=0 // pred_region
    _
  $region13: #{frbnet_forward.19} parent=0 // pred_fallthru
    _
  // Predicated region
  $region14: #{frbnet_forward.19} parent=0 // pred_check
    _
  $region15: #{frbnet_forward.19} parent=0 // pred_check_branch
    %16 = sbr.rel (0) target = $region17
  $region16: #{frbnet_forward.19} parent=0 // pred_region
    _
  $region17: #{frbnet_forward.19} parent=0 // pred_fallthru
    _
  %v17 = vld [vmem:[%s0] sm:$0xff]
  %v18 = vld [vmem:[%s0 + $0x8] sm:$0xff]
  %v19 = vld [vmem:[%s0 + $0x10] sm:$0xff]
  %v20 = vld [vmem:[%s0 + $0x18] sm:$0xff]
  %v21 = vld [vmem:[%s0 + $0x20] sm:$0xff]
  %v22 = vld [vmem:[%s0 + $0x28] sm:$0xff]
  %v23 = vld [vmem:[%s0 + $0x30] sm:$0xff]
  %v24 = vld [vmem:[%s0 + $0x38] sm:$0xff]
  %v25 = vld [vmem:[%s0 + $0x40] sm:$0xff]
  %v26 = vld [vmem:[%s0 + $0x48] sm:$0xff]
  %v27 = vld [vmem:[%s0 + $0x50] sm:$0xff]
  %v28 = vld [vmem:[%s0 + $0x58] sm:$0xff]
  %v29 = vld [vmem:[%s0 + $0x60] sm:$0xff]
  %v30 = vld [vmem:[%s0 + $0x68] sm:$0xff]
  %v31 = vld [vmem:[%s0 + $0x70] sm:$0xff]
  %v32 = vld [vmem:[%s0 + $0x78] sm:$0xff]
  %v33 = vld [vmem:[%s1] sm:$0xff]
  %v34 = vld [vmem:[%s1 + $0x8] sm:$0xff]
  %v35 = vld [vmem:[%s1 + $0x10] sm:$0xff]
  %v36 = vld [vmem:[%s1 + $0x18] sm:$0xff]
  %vm37 = vcmask 261120
  %v39 = vsel %vm37, %v17, 0
  %v42 = vsel %vm37, %v18, 0
  %v45 = vsel %vm37, %v19, 0
  %v48 = vsel %vm37, %v20, 0
  %v51 = vsel %vm37, %v21, 0
  %v54 = vsel %vm37, %v22, 0
  %v57 = vsel %vm37, %v23, 0
  %v60 = vsel %vm37, %v24, 0
  %v63 = vsel %vm37, %v25, 0
  %v66 = vsel %vm37, %v26, 0
  %v69 = vsel %vm37, %v27, 0
  %v72 = vsel %vm37, %v28, 0
  %v75 = vsel %vm37, %v29, 0
  %v78 = vsel %vm37, %v30, 0
  %v81 = vsel %vm37, %v31, 0
  %v84 = vsel %vm37, %v32, 0
  %86 = vmatprep.subr.mxu0 0.0
  %87 = vmatpush1.msra.mxu0 0.0
  %88 = vmatprep.subr.mxu0 0.0
  %89 = vmatpush1.msra.mxu0 0.0
  %90 = vmatprep.subr.mxu0 0.0
  %91 = vmatpush1.msra.mxu0 0.0
  %92 = vmatprep.subr.mxu0 0.0
  %93 = vmatpush1.msra.mxu0 0.0
  %94 = vmatprep.subr.mxu0 0.0
  %95 = vmatpush1.msra.mxu0 0.0
  %96 = vmatprep.subr.mxu0 0.0
  %97 = vmatpush1.msra.mxu0 0.0
  %98 = vmatprep.subr.mxu0 0.0
  %99 = vmatpush1.msra.mxu0 0.0
  %100 = vmatprep.subr.mxu0 0.0
  %101 = vmatpush1.msra.mxu0 0.0
  %102 = vmatprep.subr.mxu0 0.0
  %103 = vmatpush1.msra.mxu0 0.0
  %104 = vmatprep.subr.mxu0 0.0
  %105 = vmatpush1.msra.mxu0 0.0
  %106 = vmatprep.subr.mxu0 0.0
  %107 = vmatpush1.msra.mxu0 0.0
  %108 = vmatprep.subr.mxu0 0.0
  %109 = vmatpush1.msra.mxu0 0.0
  %110 = vmatprep.subr.mxu0 0.0
  %111 = vmatpush1.msra.mxu0 %v36
  %112 = vmatprep.subr.mxu0 0.0
  %113 = vmatpush1.msra.mxu0 %v35
  %114 = vmatprep.subr.mxu0 0.0
  %115 = vmatpush1.msra.mxu0 %v34
  %116 = vmatprep.subr.mxu0 0.0
  %117 = vmatpush1.msra.mxu0 %v33
  %118 = vmatprep.subr.mxu0 0.0
  %119 = vmatpush2.msra.mxu0 0.0
  %120 = vmatprep.subr.mxu0 0.0
  %121 = vmatpush2.msra.mxu0 0.0
  %122 = vmatprep.subr.mxu0 0.0
  %123 = vmatpush2.msra.mxu0 0.0
  %124 = vmatprep.subr.mxu0 0.0
  %125 = vmatpush2.msra.mxu0 0.0
  %126 = vmatprep.subr.mxu0 0.0
  %127 = vmatpush2.msra.mxu0 0.0
  %128 = vmatprep.subr.mxu0 0.0
  %129 = vmatpush2.msra.mxu0 0.0
  %130 = vmatprep.subr.mxu0 0.0
  %131 = vmatpush2.msra.mxu0 0.0
  %132 = vmatprep.subr.mxu0 0.0
  %133 = vmatpush2.msra.mxu0 0.0
  %134 = vmatprep.subr.mxu0 0.0
  %135 = vmatpush2.msra.mxu0 0.0
  %136 = vmatprep.subr.mxu0 0.0
  %137 = vmatpush2.msra.mxu0 0.0
  %138 = vmatprep.subr.mxu0 0.0
  %139 = vmatpush2.msra.mxu0 0.0
  %140 = vmatprep.subr.mxu0 0.0
  %141 = vmatpush2.msra.mxu0 0.0
  %142 = vmatprep.subr.mxu0 0.0
  %143 = vmatpush2.msra.mxu0 0.0
  %144 = vmatprep.subr.mxu0 0.0
  %145 = vmatpush2.msra.mxu0 0.0
  %146 = vmatprep.subr.mxu0 0.0
  %147 = vmatpush2.msra.mxu0 0.0
  %148 = vmatprep.subr.mxu0 0.0
  %149 = vmatpush2.msra.mxu0 0.0
  %150 = vmatprep.mubr.f32.mxu0 0.0
  %151 = vmatmul.mubr.f32.gmra.mxu0 %v39
  %v152 = vpop.f32.mrf.mxu0
  %v153 = vadd.f32 0.0, %v152
  %v154 = vpop.f32.mrf.mxu0
  %155 = vmatprep.mubr.f32.mxu0 0.0
  %156 = vmatmul.mubr.f32.gmra.mxu0 %v42
  %v157 = vpop.f32.mrf.mxu0
  %v158 = vadd.f32 0.0, %v157
  %v159 = vpop.f32.mrf.mxu0
  %160 = vmatprep.mubr.f32.mxu0 0.0
  %161 = vmatmul.mubr.f32.gmra.mxu0 %v45
  %v162 = vpop.f32.mrf.mxu0
  %v163 = vadd.f32 0.0, %v162
  %v164 = vpop.f32.mrf.mxu0
  %165 = vmatprep.mubr.f32.mxu0 0.0
  %166 = vmatmul.mubr.f32.gmra.mxu0 %v48
  %v167 = vpop.f32.mrf.mxu0
  %v168 = vadd.f32 0.0, %v167
  %v169 = vpop.f32.mrf.mxu0
  %170 = vmatprep.mubr.f32.mxu0 0.0
  %171 = vmatmul.mubr.f32.gmra.mxu0 %v51
  %v172 = vpop.f32.mrf.mxu0
  %v173 = vadd.f32 0.0, %v172
  %v174 = vpop.f32.mrf.mxu0
  %175 = vmatprep.mubr.f32.mxu0 0.0
  %176 = vmatmul.mubr.f32.gmra.mxu0 %v54
  %v177 = vpop.f32.mrf.mxu0
  %v178 = vadd.f32 0.0, %v177
  %v179 = vpop.f32.mrf.mxu0
  %180 = vmatprep.mubr.f32.mxu0 0.0
  %181 = vmatmul.mubr.f32.gmra.mxu0 %v57
  %v182 = vpop.f32.mrf.mxu0
  %v183 = vadd.f32 0.0, %v182
  %v184 = vpop.f32.mrf.mxu0
  %185 = vmatprep.mubr.f32.mxu0 0.0
  %186 = vmatmul.mubr.f32.gmra.mxu0 %v60
  %v187 = vpop.f32.mrf.mxu0
  %v188 = vadd.f32 0.0, %v187
  %v189 = vpop.f32.mrf.mxu0
  %190 = vmatprep.mubr.f32.mxu0 0.0
  %191 = vmatmul.mubr.f32.gmra.mxu0 %v63
  %v192 = vpop.f32.mrf.mxu0
  %v193 = vadd.f32 0.0, %v192
  %v194 = vpop.f32.mrf.mxu0
  %195 = vmatprep.mubr.f32.mxu0 0.0
  %196 = vmatmul.mubr.f32.gmra.mxu0 %v66
  %v197 = vpop.f32.mrf.mxu0
  %v198 = vadd.f32 0.0, %v197
  %v199 = vpop.f32.mrf.mxu0
  %200 = vmatprep.mubr.f32.mxu0 0.0
  %201 = vmatmul.mubr.f32.gmra.mxu0 %v69
  %v202 = vpop.f32.mrf.mxu0
  %v203 = vadd.f32 0.0, %v202
  %v204 = vpop.f32.mrf.mxu0
  %205 = vmatprep.mubr.f32.mxu0 0.0
  %206 = vmatmul.mubr.f32.gmra.mxu0 %v72
  %v207 = vpop.f32.mrf.mxu0
  %v208 = vadd.f32 0.0, %v207
  %v209 = vpop.f32.mrf.mxu0
  %210 = vmatprep.mubr.f32.mxu0 0.0
  %211 = vmatmul.mubr.f32.gmra.mxu0 %v75
  %v212 = vpop.f32.mrf.mxu0
  %v213 = vadd.f32 0.0, %v212
  %v214 = vpop.f32.mrf.mxu0
  %215 = vmatprep.mubr.f32.mxu0 0.0
  %216 = vmatmul.mubr.f32.gmra.mxu0 %v78
  %v217 = vpop.f32.mrf.mxu0
  %v218 = vadd.f32 0.0, %v217
  %v219 = vpop.f32.mrf.mxu0
  %220 = vmatprep.mubr.f32.mxu0 0.0
  %221 = vmatmul.mubr.f32.gmra.mxu0 %v81
  %v222 = vpop.f32.mrf.mxu0
  %v223 = vadd.f32 0.0, %v222
  %v224 = vpop.f32.mrf.mxu0
  %225 = vmatprep.mubr.f32.mxu0 0.0
  %226 = vmatmul.mubr.f32.gmra.mxu0 %v84
  %v227 = vpop.f32.mrf.mxu0
  %v228 = vadd.f32 0.0, %v227
  %v229 = vpop.f32.mrf.mxu0
  %230 = vdwg.mxu0
  %v231 = vld [vmem:[%s2] sm:$0x1]
  %v233 = vlaneseq
  %v234 = vshrl.u32 %v233, 7
  %v235 = vsub.s32 0, %v234
  %v236 = vrot.slane %v231, %v235
  %v238 = vmul.f32 %v153, %v236
  %v239 = vmul.f32 %v158, %v236
  %v240 = vmul.f32 %v163, %v236
  %v241 = vmul.f32 %v168, %v236
  %v242 = vmul.f32 %v173, %v236
  %v243 = vmul.f32 %v178, %v236
  %v244 = vmul.f32 %v183, %v236
  %v245 = vmul.f32 %v188, %v236
  %v246 = vmul.f32 %v193, %v236
  %v247 = vmul.f32 %v198, %v236
  %v248 = vmul.f32 %v203, %v236
  %v249 = vmul.f32 %v208, %v236
  %v250 = vmul.f32 %v213, %v236
  %v251 = vmul.f32 %v218, %v236
  %v252 = vmul.f32 %v223, %v236
  %v253 = vmul.f32 %v228, %v236
  %v254 = vld [vmem:[%s3] sm:$0x1]
  %v256 = vlaneseq
  %v257 = vshrl.u32 %v256, 7
  %v258 = vsub.s32 0, %v257
  %v259 = vrot.slane %v254, %v258
  %v261 = vadd.f32 %v238, %v259
  %v262 = vadd.f32 %v239, %v259
  %v263 = vadd.f32 %v240, %v259
  %v264 = vadd.f32 %v241, %v259
  %v265 = vadd.f32 %v242, %v259
  %v266 = vadd.f32 %v243, %v259
  %v267 = vadd.f32 %v244, %v259
  %v268 = vadd.f32 %v245, %v259
  %v269 = vadd.f32 %v246, %v259
  %v270 = vadd.f32 %v247, %v259
  %v271 = vadd.f32 %v248, %v259
  %v272 = vadd.f32 %v249, %v259
  %v273 = vadd.f32 %v250, %v259
  %v274 = vadd.f32 %v251, %v259
  %v275 = vadd.f32 %v252, %v259
  %v276 = vadd.f32 %v253, %v259
  %vm277 = vcmask 523264
  %278 = vst.msk [vmem:[%s4] sm:$0xff] %vm277, %v261
  %279 = vst.msk [vmem:[%s4 + $0x8] sm:$0xff] %vm277, %v262
  %280 = vst.msk [vmem:[%s4 + $0x10] sm:$0xff] %vm277, %v263
  %281 = vst.msk [vmem:[%s4 + $0x18] sm:$0xff] %vm277, %v264
  %282 = vst.msk [vmem:[%s4 + $0x20] sm:$0xff] %vm277, %v265
  %283 = vst.msk [vmem:[%s4 + $0x28] sm:$0xff] %vm277, %v266
  %284 = vst.msk [vmem:[%s4 + $0x30] sm:$0xff] %vm277, %v267
  %285 = vst.msk [vmem:[%s4 + $0x38] sm:$0xff] %vm277, %v268
  %286 = vst.msk [vmem:[%s4 + $0x40] sm:$0xff] %vm277, %v269
  %287 = vst.msk [vmem:[%s4 + $0x48] sm:$0xff] %vm277, %v270
  %288 = vst.msk [vmem:[%s4 + $0x50] sm:$0xff] %vm277, %v271
  %289 = vst.msk [vmem:[%s4 + $0x58] sm:$0xff] %vm277, %v272
  %290 = vst.msk [vmem:[%s4 + $0x60] sm:$0xff] %vm277, %v273
  %291 = vst.msk [vmem:[%s4 + $0x68] sm:$0xff] %vm277, %v274
  %292 = vst.msk [vmem:[%s4 + $0x70] sm:$0xff] %vm277, %v275
  %293 = vst.msk [vmem:[%s4 + $0x78] sm:$0xff] %vm277, %v276
  // Predicated region
  $region18: #{frbnet_forward.19} parent=0 // pred_check
    _
  $region19: #{frbnet_forward.19} parent=0 // pred_check_branch
    %295 = sbr.rel (0) target = $region21
  $region20: #{frbnet_forward.19} parent=0 // pred_region
    _
  $region21: #{frbnet_forward.19} parent=0 // pred_fallthru
    _
  // Predicated region
  $region22: #{frbnet_forward.19} parent=0 // pred_check
    _
  $region23: #{frbnet_forward.19} parent=0 // pred_check_branch
    %297 = sbr.rel (0) target = $region25
  $region24: #{frbnet_forward.19} parent=0 // pred_region
    _
  $region25: #{frbnet_forward.19} parent=0 // pred_fallthru
    _

// kernel: frbnet_forward.21
$region0: #{frbnet_forward.21}
  #allocation0 [shape = 'u32[]', space=smem, size = 0x4, offset = 0x4, fixed_abs, tag = 'smem constant byte address 0x4 - core index']
  #allocation1 [shape = 'u32[144,128]{1,0:T(1,128)}', space=vmem, size = 0x12000, scoped, tag = 'internal scratch']
  %s0 = inlined_call_operand.vmem [shape: f32[128,288], index: 0, kind: input, shape index: {}]
  %s1 = inlined_call_operand.vmem [shape: f32[288,32], index: 1, kind: input, shape index: {}]
  %s2 = inlined_call_operand.vmem [shape: f32[1,32], index: 2, kind: input, shape index: {}]
  %s3 = inlined_call_operand.vmem [shape: f32[1,32], index: 3, kind: input, shape index: {}]
  %s4 = inlined_call_operand.vmem [shape: f32[128,32], index: 4, kind: output, shape index: {}]
  %s5 = sld [smem:[#allocation0]]
  $region26: #{frbnet_forward.21} parent=0
    _
  %s7 = ssub.s32 1, %s5
  %s8 = scalar_select 0, %s7, %s5
  // Predicated region
  $region2: #{frbnet_forward.21} parent=0 // pred_check
    _
  $region3: #{frbnet_forward.21} parent=0 // pred_check_branch
    %10 = sbr.rel (0) target = $region5
  $region4: #{frbnet_forward.21} parent=0 // pred_region
    _
  $region5: #{frbnet_forward.21} parent=0 // pred_fallthru
    _
  // Predicated region
  $region6: #{frbnet_forward.21} parent=0 // pred_check
    _
  $region7: #{frbnet_forward.21} parent=0 // pred_check_branch
    %12 = sbr.rel (0) target = $region9
  $region8: #{frbnet_forward.21} parent=0 // pred_region
    _
  $region9: #{frbnet_forward.21} parent=0 // pred_fallthru
    _
  // Predicated region
  $region10: #{frbnet_forward.21} parent=0 // pred_check
    _
  $region11: #{frbnet_forward.21} parent=0 // pred_check_branch
    %14 = sbr.rel (0) target = $region13
  $region12: #{frbnet_forward.21} parent=0 // pred_region
    _
  $region13: #{frbnet_forward.21} parent=0 // pred_fallthru
    _
  // Predicated region
  $region14: #{frbnet_forward.21} parent=0 // pred_check
    _
  $region15: #{frbnet_forward.21} parent=0 // pred_check_branch
    %16 = sbr.rel (0) target = $region17
  $region16: #{frbnet_forward.21} parent=0 // pred_region
    _
  $region17: #{frbnet_forward.21} parent=0 // pred_fallthru
    _
  %v17 = vld [vmem:[%s0] sm:$0xff]
  %v18 = vld [vmem:[%s0 + $0x8] sm:$0xff]
  %v19 = vld [vmem:[%s0 + $0x10] sm:$0xff]
  %v20 = vld [vmem:[%s0 + $0x18] sm:$0xff]
  %v21 = vld [vmem:[%s0 + $0x20] sm:$0xff]
  %v22 = vld [vmem:[%s0 + $0x28] sm:$0xff]
  %v23 = vld [vmem:[%s0 + $0x30] sm:$0xff]
  %v24 = vld [vmem:[%s0 + $0x38] sm:$0xff]
  %v25 = vld [vmem:[%s0 + $0x40] sm:$0xff]
  %v26 = vld [vmem:[%s0 + $0x48] sm:$0xff]
  %v27 = vld [vmem:[%s0 + $0x50] sm:$0xff]
  %v28 = vld [vmem:[%s0 + $0x58] sm:$0xff]
  %v29 = vld [vmem:[%s0 + $0x60] sm:$0xff]
  %v30 = vld [vmem:[%s0 + $0x68] sm:$0xff]
  %v31 = vld [vmem:[%s0 + $0x70] sm:$0xff]
  %v32 = vld [vmem:[%s0 + $0x78] sm:$0xff]
  %v33 = vld [vmem:[%s0 + $0x80] sm:$0xff]
  %v34 = vld [vmem:[%s0 + $0x88] sm:$0xff]
  %v35 = vld [vmem:[%s0 + $0x90] sm:$0xff]
  %v36 = vld [vmem:[%s0 + $0x98] sm:$0xff]
  %v37 = vld [vmem:[%s0 + $0xa0] sm:$0xff]
  %v38 = vld [vmem:[%s0 + $0xa8] sm:$0xff]
  %v39 = vld [vmem:[%s0 + $0xb0] sm:$0xff]
  %v40 = vld [vmem:[%s0 + $0xb8] sm:$0xff]
  %v41 = vld [vmem:[%s0 + $0xc0] sm:$0xff]
  %v42 = vld [vmem:[%s0 + $0xc8] sm:$0xff]
  %v43 = vld [vmem:[%s0 + $0xd0] sm:$0xff]
  %v44 = vld [vmem:[%s0 + $0xd8] sm:$0xff]
  %v45 = vld [vmem:[%s0 + $0xe0] sm:$0xff]
  %v46 = vld [vmem:[%s0 + $0xe8] sm:$0xff]
  %v47 = vld [vmem:[%s0 + $0xf0] sm:$0xff]
  %v48 = vld [vmem:[%s0 + $0xf8] sm:$0xff]
  %v49 = vld [vmem:[%s0 + $0x100] sm:$0xff]
  %v50 = vld [vmem:[%s0 + $0x108] sm:$0xff]
  %v51 = vld [vmem:[%s0 + $0x110] sm:$0xff]
  %v52 = vld [vmem:[%s0 + $0x118] sm:$0xff]
  %v53 = vld [vmem:[%s0 + $0x120] sm:$0xff]
  %v54 = vld [vmem:[%s0 + $0x128] sm:$0xff]
  %v55 = vld [vmem:[%s0 + $0x130] sm:$0xff]
  %v56 = vld [vmem:[%s0 + $0x138] sm:$0xff]
  %v57 = vld [vmem:[%s0 + $0x140] sm:$0xff]
  %v58 = vld [vmem:[%s0 + $0x148] sm:$0xff]
  %v59 = vld [vmem:[%s0 + $0x150] sm:$0xff]
  %v60 = vld [vmem:[%s0 + $0x158] sm:$0xff]
  %v61 = vld [vmem:[%s0 + $0x160] sm:$0xff]
  %v62 = vld [vmem:[%s0 + $0x168] sm:$0xff]
  %v63 = vld [vmem:[%s0 + $0x170] sm:$0xff]
  %v64 = vld [vmem:[%s0 + $0x178] sm:$0xff]
  %v65 = vld [vmem:[%s1] sm:$0xff]
  %v66 = vld [vmem:[%s1 + $0x8] sm:$0xff]
  %v67 = vld [vmem:[%s1 + $0x10] sm:$0xff]
  %v68 = vld [vmem:[%s1 + $0x18] sm:$0xff]
  %v69 = vld [vmem:[%s1 + $0x20] sm:$0xff]
  %v70 = vld [vmem:[%s1 + $0x28] sm:$0xff]
  %v71 = vld [vmem:[%s1 + $0x30] sm:$0xff]
  %v72 = vld [vmem:[%s1 + $0x38] sm:$0xff]
  %v73 = vld [vmem:[%s1 + $0x40] sm:$0xff]
  %v74 = vld [vmem:[%s1 + $0x48] sm:$0xff]
  %v75 = vld [vmem:[%s1 + $0x50] sm:$0xff]
  %v76 = vld [vmem:[%s1 + $0x58] sm:$0xff]
  %v77 = vld [vmem:[%s1 + $0x60] sm:$0xff]
  %v78 = vld [vmem:[%s1 + $0x68] sm:$0xff]
  %v79 = vld [vmem:[%s1 + $0x70] sm:$0xff]
  %v80 = vld [vmem:[%s1 + $0x78] sm:$0xff]
  %v81 = vld [vmem:[%s1 + $0x80] sm:$0xff]
  %v82 = vld [vmem:[%s1 + $0x88] sm:$0xff]
  %v83 = vld [vmem:[%s1 + $0x90] sm:$0xff]
  %v84 = vld [vmem:[%s1 + $0x98] sm:$0xff]
  %v85 = vld [vmem:[%s1 + $0xa0] sm:$0xff]
  %v86 = vld [vmem:[%s1 + $0xa8] sm:$0xff]
  %v87 = vld [vmem:[%s1 + $0xb0] sm:$0xff]
  %v88 = vld [vmem:[%s1 + $0xb8] sm:$0xff]
  %v89 = vld [vmem:[%s1 + $0xc0] sm:$0xff]
  %v90 = vld [vmem:[%s1 + $0xc8] sm:$0xff]
  %v91 = vld [vmem:[%s1 + $0xd0] sm:$0xff]
  %v92 = vld [vmem:[%s1 + $0xd8] sm:$0xff]
  %v93 = vld [vmem:[%s1 + $0xe0] sm:$0xff]
  %v94 = vld [vmem:[%s1 + $0xe8] sm:$0xff]
  %v95 = vld [vmem:[%s1 + $0xf0] sm:$0xff]
  %v96 = vld [vmem:[%s1 + $0xf8] sm:$0xff]
  %v97 = vld [vmem:[%s1 + $0x100] sm:$0xff]
  %v98 = vld [vmem:[%s1 + $0x108] sm:$0xff]
  %v99 = vld [vmem:[%s1 + $0x110] sm:$0xff]
  %v100 = vld [vmem:[%s1 + $0x118] sm:$0xff]
  %vm101 = vcmask 261120
  %v103 = vsel %vm101, %v19, 0
  %v106 = vsel %vm101, %v22, 0
  %v109 = vsel %vm101, %v25, 0
  %v112 = vsel %vm101, %v28, 0
  %v115 = vsel %vm101, %v31, 0
  %v118 = vsel %vm101, %v34, 0
  %v121 = vsel %vm101, %v37, 0
  %v124 = vsel %vm101, %v40, 0
  %v127 = vsel %vm101, %v43, 0
  %v130 = vsel %vm101, %v46, 0
  %v133 = vsel %vm101, %v49, 0
  %v136 = vsel %vm101, %v52, 0
  %v139 = vsel %vm101, %v55, 0
  %v142 = vsel %vm101, %v58, 0
  %v145 = vsel %vm101, %v61, 0
  %v148 = vsel %vm101, %v64, 0
  %150 = vmatprep.subr.mxu0 0.0
  %151 = vmatpush1.msra.mxu0 %v80
  %152 = vmatprep.subr.mxu0 0.0
  %153 = vmatpush1.msra.mxu0 %v79
  %154 = vmatprep.subr.mxu0 0.0
  %155 = vmatpush1.msra.mxu0 %v78
  %156 = vmatprep.subr.mxu0 0.0
  %157 = vmatpush1.msra.mxu0 %v77
  %158 = vmatprep.subr.mxu0 0.0
  %159 = vmatpush1.msra.mxu0 %v76
  %160 = vmatprep.subr.mxu0 0.0
  %161 = vmatpush1.msra.mxu0 %v75
  %162 = vmatprep.subr.mxu0 0.0
  %163 = vmatpush1.msra.mxu0 %v74
  %164 = vmatprep.subr.mxu0 0.0
  %165 = vmatpush1.msra.mxu0 %v73
  %166 = vmatprep.subr.mxu0 0.0
  %167 = vmatpush1.msra.mxu0 %v72
  %168 = vmatprep.subr.mxu0 0.0
  %169 = vmatpush1.msra.mxu0 %v71
  %170 = vmatprep.subr.mxu0 0.0
  %171 = vmatpush1.msra.mxu0 %v70
  %172 = vmatprep.subr.mxu0 0.0
  %173 = vmatpush1.msra.mxu0 %v69
  %174 = vmatprep.subr.mxu0 0.0
  %175 = vmatpush1.msra.mxu0 %v68
  %176 = vmatprep.subr.mxu0 0.0
  %177 = vmatpush1.msra.mxu0 %v67
  %178 = vmatprep.subr.mxu0 0.0
  %179 = vmatpush1.msra.mxu0 %v66
  %180 = vmatprep.subr.mxu0 0.0
  %181 = vmatpush1.msra.mxu0 %v65
  %182 = vmatprep.subr.mxu0 0.0
  %183 = vmatpush2.msra.mxu0 %v96
  %184 = vmatprep.subr.mxu0 0.0
  %185 = vmatpush2.msra.mxu0 %v95
  %186 = vmatprep.subr.mxu0 0.0
  %187 = vmatpush2.msra.mxu0 %v94
  %188 = vmatprep.subr.mxu0 0.0
  %189 = vmatpush2.msra.mxu0 %v93
  %190 = vmatprep.subr.mxu0 0.0
  %191 = vmatpush2.msra.mxu0 %v92
  %192 = vmatprep.subr.mxu0 0.0
  %193 = vmatpush2.msra.mxu0 %v91
  %194 = vmatprep.subr.mxu0 0.0
  %195 = vmatpush2.msra.mxu0 %v90
  %196 = vmatprep.subr.mxu0 0.0
  %197 = vmatpush2.msra.mxu0 %v89
  %198 = vmatprep.subr.mxu0 0.0
  %199 = vmatpush2.msra.mxu0 %v88
  %200 = vmatprep.subr.mxu0 0.0
  %201 = vmatpush2.msra.mxu0 %v87
  %202 = vmatprep.subr.mxu0 0.0
  %203 = vmatpush2.msra.mxu0 %v86
  %204 = vmatprep.subr.mxu0 0.0
  %205 = vmatpush2.msra.mxu0 %v85
  %206 = vmatprep.subr.mxu0 0.0
  %207 = vmatpush2.msra.mxu0 %v84
  %208 = vmatprep.subr.mxu0 0.0
  %209 = vmatpush2.msra.mxu0 %v83
  %210 = vmatprep.subr.mxu0 0.0
  %211 = vmatpush2.msra.mxu0 %v82
  %212 = vmatprep.subr.mxu0 0.0
  %213 = vmatpush2.msra.mxu0 %v81
  %214 = vmatprep.mubr.f32.mxu0 %v18
  %215 = vmatmul.mubr.f32.gmra.mxu0 %v17
  %v216 = vpop.f32.mrf.mxu0
  %v217 = vadd.f32 0.0, %v216
  %v218 = vpop.f32.mrf.mxu0
  %219 = vmatprep.mubr.f32.mxu0 %v21
  %220 = vmatmul.mubr.f32.gmra.mxu0 %v20
  %v221 = vpop.f32.mrf.mxu0
  %v222 = vadd.f32 0.0, %v221
  %v223 = vpop.f32.mrf.mxu0
  %224 = vmatprep.mubr.f32.mxu0 %v24
  %225 = vmatmul.mubr.f32.gmra.mxu0 %v23
  %v226 = vpop.f32.mrf.mxu0
  %v227 = vadd.f32 0.0, %v226
  %v228 = vpop.f32.mrf.mxu0
  %229 = vmatprep.mubr.f32.mxu0 %v27
  %230 = vmatmul.mubr.f32.gmra.mxu0 %v26
  %v231 = vpop.f32.mrf.mxu0
  %v232 = vadd.f32 0.0, %v231
  %v233 = vpop.f32.mrf.mxu0
  %234 = vmatprep.mubr.f32.mxu0 %v30
  %235 = vmatmul.mubr.f32.gmra.mxu0 %v29
  %v236 = vpop.f32.mrf.mxu0
  %v237 = vadd.f32 0.0, %v236
  %v238 = vpop.f32.mrf.mxu0
  %239 = vmatprep.mubr.f32.mxu0 %v33
  %240 = vmatmul.mubr.f32.gmra.mxu0 %v32
  %v241 = vpop.f32.mrf.mxu0
  %v242 = vadd.f32 0.0, %v241
  %v243 = vpop.f32.mrf.mxu0
  %244 = vmatprep.mubr.f32.mxu0 %v36
  %245 = vmatmul.mubr.f32.gmra.mxu0 %v35
  %v246 = vpop.f32.mrf.mxu0
  %v247 = vadd.f32 0.0, %v246
  %v248 = vpop.f32.mrf.mxu0
  %249 = vmatprep.mubr.f32.mxu0 %v39
  %250 = vmatmul.mubr.f32.gmra.mxu0 %v38
  %v251 = vpop.f32.mrf.mxu0
  %v252 = vadd.f32 0.0, %v251
  %v253 = vpop.f32.mrf.mxu0
  %254 = vmatprep.mubr.f32.mxu0 %v42
  %255 = vmatmul.mubr.f32.gmra.mxu0 %v41
  %v256 = vpop.f32.mrf.mxu0
  %v257 = vadd.f32 0.0, %v256
  %v258 = vpop.f32.mrf.mxu0
  %259 = vmatprep.mubr.f32.mxu0 %v45
  %260 = vmatmul.mubr.f32.gmra.mxu0 %v44
  %v261 = vpop.f32.mrf.mxu0
  %v262 = vadd.f32 0.0, %v261
  %v263 = vpop.f32.mrf.mxu0
  %264 = vmatprep.mubr.f32.mxu0 %v48
  %265 = vmatmul.mubr.f32.gmra.mxu0 %v47
  %v266 = vpop.f32.mrf.mxu0
  %v267 = vadd.f32 0.0, %v266
  %v268 = vpop.f32.mrf.mxu0
  %269 = vmatprep.mubr.f32.mxu0 %v51
  %270 = vmatmul.mubr.f32.gmra.mxu0 %v50
  %v271 = vpop.f32.mrf.mxu0
  %v272 = vadd.f32 0.0, %v271
  %v273 = vpop.f32.mrf.mxu0
  %274 = vmatprep.mubr.f32.mxu0 %v54
  %275 = vmatmul.mubr.f32.gmra.mxu0 %v53
  %v276 = vpop.f32.mrf.mxu0
  %v277 = vadd.f32 0.0, %v276
  %v278 = vpop.f32.mrf.mxu0
  %279 = vmatprep.mubr.f32.mxu0 %v57
  %280 = vmatmul.mubr.f32.gmra.mxu0 %v56
  %v281 = vpop.f32.mrf.mxu0
  %v282 = vadd.f32 0.0, %v281
  %v283 = vpop.f32.mrf.mxu0
  %284 = vmatprep.mubr.f32.mxu0 %v60
  %285 = vmatmul.mubr.f32.gmra.mxu0 %v59
  %v286 = vpop.f32.mrf.mxu0
  %v287 = vadd.f32 0.0, %v286
  %v288 = vpop.f32.mrf.mxu0
  %289 = vmatprep.mubr.f32.mxu0 %v63
  %290 = vmatmul.mubr.f32.gmra.mxu0 %v62
  %v291 = vpop.f32.mrf.mxu0
  %v292 = vadd.f32 0.0, %v291
  %v293 = vpop.f32.mrf.mxu0
  %294 = vdwg.mxu0
  %295 = vmatprep.subr.mxu0 0.0
  %296 = vmatpush1.msra.mxu0 0.0
  %297 = vmatprep.subr.mxu0 0.0
  %298 = vmatpush1.msra.mxu0 0.0
  %299 = vmatprep.subr.mxu0 0.0
  %300 = vmatpush1.msra.mxu0 0.0
  %301 = vmatprep.subr.mxu0 0.0
  %302 = vmatpush1.msra.mxu0 0.0
  %303 = vmatprep.subr.mxu0 0.0
  %304 = vmatpush1.msra.mxu0 0.0
  %305 = vmatprep.subr.mxu0 0.0
  %306 = vmatpush1.msra.mxu0 0.0
  %307 = vmatprep.subr.mxu0 0.0
  %308 = vmatpush1.msra.mxu0 0.0
  %309 = vmatprep.subr.mxu0 0.0
  %310 = vmatpush1.msra.mxu0 0.0
  %311 = vmatprep.subr.mxu0 0.0
  %312 = vmatpush1.msra.mxu0 0.0
  %313 = vmatprep.subr.mxu0 0.0
  %314 = vmatpush1.msra.mxu0 0.0
  %315 = vmatprep.subr.mxu0 0.0
  %316 = vmatpush1.msra.mxu0 0.0
  %317 = vmatprep.subr.mxu0 0.0
  %318 = vmatpush1.msra.mxu0 0.0
  %319 = vmatprep.subr.mxu0 0.0
  %320 = vmatpush1.msra.mxu0 %v100
  %321 = vmatprep.subr.mxu0 0.0
  %322 = vmatpush1.msra.mxu0 %v99
  %323 = vmatprep.subr.mxu0 0.0
  %324 = vmatpush1.msra.mxu0 %v98
  %325 = vmatprep.subr.mxu0 0.0
  %326 = vmatpush1.msra.mxu0 %v97
  %327 = vmatprep.subr.mxu0 0.0
  %328 = vmatpush2.msra.mxu0 0.0
  %329 = vmatprep.subr.mxu0 0.0
  %330 = vmatpush2.msra.mxu0 0.0
  %331 = vmatprep.subr.mxu0 0.0
  %332 = vmatpush2.msra.mxu0 0.0
  %333 = vmatprep.subr.mxu0 0.0
  %334 = vmatpush2.msra.mxu0 0.0
  %335 = vmatprep.subr.mxu0 0.0
  %336 = vmatpush2.msra.mxu0 0.0
  %337 = vmatprep.subr.mxu0 0.0
  %338 = vmatpush2.msra.mxu0 0.0
  %339 = vmatprep.subr.mxu0 0.0
  %340 = vmatpush2.msra.mxu0 0.0
  %341 = vmatprep.subr.mxu0 0.0
  %342 = vmatpush2.msra.mxu0 0.0
  %343 = vmatprep.subr.mxu0 0.0
  %344 = vmatpush2.msra.mxu0 0.0
  %345 = vmatprep.subr.mxu0 0.0
  %346 = vmatpush2.msra.mxu0 0.0
  %347 = vmatprep.subr.mxu0 0.0
  %348 = vmatpush2.msra.mxu0 0.0
  %349 = vmatprep.subr.mxu0 0.0
  %350 = vmatpush2.msra.mxu0 0.0
  %351 = vmatprep.subr.mxu0 0.0
  %352 = vmatpush2.msra.mxu0 0.0
  %353 = vmatprep.subr.mxu0 0.0
  %354 = vmatpush2.msra.mxu0 0.0
  %355 = vmatprep.subr.mxu0 0.0
  %356 = vmatpush2.msra.mxu0 0.0
  %357 = vmatprep.subr.mxu0 0.0
  %358 = vmatpush2.msra.mxu0 0.0
  %359 = vmatprep.mubr.f32.mxu0 0.0
  %360 = vmatmul.mubr.f32.gmra.mxu0 %v103
  %v361 = vpop.f32.mrf.mxu0
  %v362 = vadd.f32 %v217, %v361
  %v363 = vpop.f32.mrf.mxu0
  %364 = vmatprep.mubr.f32.mxu0 0.0
  %365 = vmatmul.mubr.f32.gmra.mxu0 %v106
  %v366 = vpop.f32.mrf.mxu0
  %v367 = vadd.f32 %v222, %v366
  %v368 = vpop.f32.mrf.mxu0
  %369 = vmatprep.mubr.f32.mxu0 0.0
  %370 = vmatmul.mubr.f32.gmra.mxu0 %v109
  %v371 = vpop.f32.mrf.mxu0
  %v372 = vadd.f32 %v227, %v371
  %v373 = vpop.f32.mrf.mxu0
  %374 = vmatprep.mubr.f32.mxu0 0.0
  %375 = vmatmul.mubr.f32.gmra.mxu0 %v112
  %v376 = vpop.f32.mrf.mxu0
  %v377 = vadd.f32 %v232, %v376
  %v378 = vpop.f32.mrf.mxu0
  %379 = vmatprep.mubr.f32.mxu0 0.0
  %380 = vmatmul.mubr.f32.gmra.mxu0 %v115
  %v381 = vpop.f32.mrf.mxu0
  %v382 = vadd.f32 %v237, %v381
  %v383 = vpop.f32.mrf.mxu0
  %384 = vmatprep.mubr.f32.mxu0 0.0
  %385 = vmatmul.mubr.f32.gmra.mxu0 %v118
  %v386 = vpop.f32.mrf.mxu0
  %v387 = vadd.f32 %v242, %v386
  %v388 = vpop.f32.mrf.mxu0
  %389 = vmatprep.mubr.f32.mxu0 0.0
  %390 = vmatmul.mubr.f32.gmra.mxu0 %v121
  %v391 = vpop.f32.mrf.mxu0
  %v392 = vadd.f32 %v247, %v391
  %v393 = vpop.f32.mrf.mxu0
  %394 = vmatprep.mubr.f32.mxu0 0.0
  %395 = vmatmul.mubr.f32.gmra.mxu0 %v124
  %v396 = vpop.f32.mrf.mxu0
  %v397 = vadd.f32 %v252, %v396
  %v398 = vpop.f32.mrf.mxu0
  %399 = vmatprep.mubr.f32.mxu0 0.0
  %400 = vmatmul.mubr.f32.gmra.mxu0 %v127
  %v401 = vpop.f32.mrf.mxu0
  %v402 = vadd.f32 %v257, %v401
  %v403 = vpop.f32.mrf.mxu0
  %404 = vmatprep.mubr.f32.mxu0 0.0
  %405 = vmatmul.mubr.f32.gmra.mxu0 %v130
  %v406 = vpop.f32.mrf.mxu0
  %v407 = vadd.f32 %v262, %v406
  %v408 = vpop.f32.mrf.mxu0
  %409 = vmatprep.mubr.f32.mxu0 0.0
  %410 = vmatmul.mubr.f32.gmra.mxu0 %v133
  %v411 = vpop.f32.mrf.mxu0
  %v412 = vadd.f32 %v267, %v411
  %v413 = vpop.f32.mrf.mxu0
  %414 = vmatprep.mubr.f32.mxu0 0.0
  %415 = vmatmul.mubr.f32.gmra.mxu0 %v136
  %v416 = vpop.f32.mrf.mxu0
  %v417 = vadd.f32 %v272, %v416
  %v418 = vpop.f32.mrf.mxu0
  %419 = vmatprep.mubr.f32.mxu0 0.0
  %420 = vmatmul.mubr.f32.gmra.mxu0 %v139
  %v421 = vpop.f32.mrf.mxu0
  %v422 = vadd.f32 %v277, %v421
  %v423 = vpop.f32.mrf.mxu0
  %424 = vmatprep.mubr.f32.mxu0 0.0
  %425 = vmatmul.mubr.f32.gmra.mxu0 %v142
  %v426 = vpop.f32.mrf.mxu0
  %v427 = vadd.f32 %v282, %v426
  %v428 = vpop.f32.mrf.mxu0
  %429 = vmatprep.mubr.f32.mxu0 0.0
  %430 = vmatmul.mubr.f32.gmra.mxu0 %v145
  %v431 = vpop.f32.mrf.mxu0
  %v432 = vadd.f32 %v287, %v431
  %v433 = vpop.f32.mrf.mxu0
  %434 = vmatprep.mubr.f32.mxu0 0.0
  %435 = vmatmul.mubr.f32.gmra.mxu0 %v148
  %v436 = vpop.f32.mrf.mxu0
  %v437 = vadd.f32 %v292, %v436
  %v438 = vpop.f32.mrf.mxu0
  %439 = vdwg.mxu0
  %v440 = vld [vmem:[%s2] sm:$0x1]
  %v442 = vlaneseq
  %v443 = vshrl.u32 %v442, 7
  %v444 = vsub.s32 0, %v443
  %v445 = vrot.slane %v440, %v444
  %v447 = vmul.f32 %v362, %v445
  %v448 = vmul.f32 %v367, %v445
  %v449 = vmul.f32 %v372, %v445
  %v450 = vmul.f32 %v377, %v445
  %v451 = vmul.f32 %v382, %v445
  %v452 = vmul.f32 %v387, %v445
  %v453 = vmul.f32 %v392, %v445
  %v454 = vmul.f32 %v397, %v445
  %v455 = vmul.f32 %v402, %v445
  %v456 = vmul.f32 %v407, %v445
  %v457 = vmul.f32 %v412, %v445
  %v458 = vmul.f32 %v417, %v445
  %v459 = vmul.f32 %v422, %v445
  %v460 = vmul.f32 %v427, %v445
  %v461 = vmul.f32 %v432, %v445
  %v462 = vmul.f32 %v437, %v445
  %v463 = vld [vmem:[%s3] sm:$0x1]
  %v465 = vlaneseq
  %v466 = vshrl.u32 %v465, 7
  %v467 = vsub.s32 0, %v466
  %v468 = vrot.slane %v463, %v467
  %v470 = vadd.f32 %v447, %v468
  %v471 = vadd.f32 %v448, %v468
  %v472 = vadd.f32 %v449, %v468
  %v473 = vadd.f32 %v450, %v468
  %v474 = vadd.f32 %v451, %v468
  %v475 = vadd.f32 %v452, %v468
  %v476 = vadd.f32 %v453, %v468
  %v477 = vadd.f32 %v454, %v468
  %v478 = vadd.f32 %v455, %v468
  %v479 = vadd.f32 %v456, %v468
  %v480 = vadd.f32 %v457, %v468
  %v481 = vadd.f32 %v458, %v468
  %v482 = vadd.f32 %v459, %v468
  %v483 = vadd.f32 %v460, %v468
  %v484 = vadd.f32 %v461, %v468
  %v485 = vadd.f32 %v462, %v468
  %v486 = vmax.f32 %v470, 0.0
  %v487 = vmax.f32 %v471, 0.0
  %v488 = vmax.f32 %v472, 0.0
  %v489 = vmax.f32 %v473, 0.0
  %v490 = vmax.f32 %v474, 0.0
  %v491 = vmax.f32 %v475, 0.0
  %v492 = vmax.f32 %v476, 0.0
  %v493 = vmax.f32 %v477, 0.0
  %v494 = vmax.f32 %v478, 0.0
  %v495 = vmax.f32 %v479, 0.0
  %v496 = vmax.f32 %v480, 0.0
  %v497 = vmax.f32 %v481, 0.0
  %v498 = vmax.f32 %v482, 0.0
  %v499 = vmax.f32 %v483, 0.0
  %v500 = vmax.f32 %v484, 0.0
  %v501 = vmax.f32 %v485, 0.0
  %502 = vst.msk [vmem:[%s4] sm:$0xff] %vm101, %v486
  %503 = vst.msk [vmem:[%s4 + $0x8] sm:$0xff] %vm101, %v487
  %504 = vst.msk [vmem:[%s4 + $0x10] sm:$0xff] %vm101, %v488
  %505 = vst.msk [vmem:[%s4 + $0x18] sm:$0xff] %vm101, %v489
  %506 = vst.msk [vmem:[%s4 + $0x20] sm:$0xff] %vm101, %v490
  %507 = vst.msk [vmem:[%s4 + $0x28] sm:$0xff] %vm101, %v491
  %508 = vst.msk [vmem:[%s4 + $0x30] sm:$0xff] %vm101, %v492
  %509 = vst.msk [vmem:[%s4 + $0x38] sm:$0xff] %vm101, %v493
  %510 = vst.msk [vmem:[%s4 + $0x40] sm:$0xff] %vm101, %v494
  %511 = vst.msk [vmem:[%s4 + $0x48] sm:$0xff] %vm101, %v495
  %512 = vst.msk [vmem:[%s4 + $0x50] sm:$0xff] %vm101, %v496
  %513 = vst.msk [vmem:[%s4 + $0x58] sm:$0xff] %vm101, %v497
  %514 = vst.msk [vmem:[%s4 + $0x60] sm:$0xff] %vm101, %v498
  %515 = vst.msk [vmem:[%s4 + $0x68] sm:$0xff] %vm101, %v499
  %516 = vst.msk [vmem:[%s4 + $0x70] sm:$0xff] %vm101, %v500
  %517 = vst.msk [vmem:[%s4 + $0x78] sm:$0xff] %vm101, %v501
  // Predicated region
  $region18: #{frbnet_forward.21} parent=0 // pred_check
    _
  $region19: #{frbnet_forward.21} parent=0 // pred_check_branch
    %519 = sbr.rel (0) target = $region21
  $region20: #{frbnet_forward.21} parent=0 // pred_region
    _
  $region21: #{frbnet_forward.21} parent=0 // pred_fallthru
    _
  // Predicated region
  $region22: #{frbnet_forward.21} parent=0 // pred_check
    _
  $region23: #{frbnet_forward.21} parent=0 // pred_check_branch
    %521 = sbr.rel (0) target = $region25
  $region24: #{frbnet_forward.21} parent=0 // pred_region
    _
  $region25: #{frbnet_forward.21} parent=0 // pred_fallthru
    _

// kernel: frbnet_forward.23
$region0: #{frbnet_forward.23}
  #allocation0 [shape = 'u32[]', space=smem, size = 0x4, offset = 0x4, fixed_abs, tag = 'smem constant byte address 0x4 - core index']
  #allocation1 [shape = 'u32[144,128]{1,0:T(1,128)}', space=vmem, size = 0x12000, scoped, tag = 'internal scratch']
  %s0 = inlined_call_operand.vmem [shape: f32[128,1728], index: 0, kind: input, shape index: {}]
  %s1 = inlined_call_operand.vmem [shape: f32[1728,64], index: 1, kind: input, shape index: {}]
  %s2 = inlined_call_operand.vmem [shape: f32[1,64], index: 2, kind: input, shape index: {}]
  %s3 = inlined_call_operand.vmem [shape: f32[1,64], index: 3, kind: input, shape index: {}]
  %s4 = inlined_call_operand.vmem [shape: f32[128,64], index: 4, kind: output, shape index: {}]
  %s5 = sld [smem:[#allocation0]]
  $region26: #{frbnet_forward.23} parent=0
    _
  %s7 = ssub.s32 1, %s5
  %s8 = scalar_select 0, %s7, %s5
  // Predicated region
  $region2: #{frbnet_forward.23} parent=0 // pred_check
    _
  $region3: #{frbnet_forward.23} parent=0 // pred_check_branch
    %10 = sbr.rel (0) target = $region5
  $region4: #{frbnet_forward.23} parent=0 // pred_region
    _
  $region5: #{frbnet_forward.23} parent=0 // pred_fallthru
    _
  // Predicated region
  $region6: #{frbnet_forward.23} parent=0 // pred_check
    _
  $region7: #{frbnet_forward.23} parent=0 // pred_check_branch
    %12 = sbr.rel (0) target = $region9
  $region8: #{frbnet_forward.23} parent=0 // pred_region
    _
  $region9: #{frbnet_forward.23} parent=0 // pred_fallthru
    _
  // Predicated region
  $region10: #{frbnet_forward.23} parent=0 // pred_check
    _
  $region11: #{frbnet_forward.23} parent=0 // pred_check_branch
    %14 = sbr.rel (0) target = $region13
  $region12: #{frbnet_forward.23} parent=0 // pred_region
    _
  $region13: #{frbnet_forward.23} parent=0 // pred_fallthru
    _
  // Predicated region
  $region14: #{frbnet_forward.23} parent=0 // pred_check
    _
  $region15: #{frbnet_forward.23} parent=0 // pred_check_branch
    %16 = sbr.rel (0) target = $region17
  $region16: #{frbnet_forward.23} parent=0 // pred_region
    _
  $region17: #{frbnet_forward.23} parent=0 // pred_fallthru
    _
  %v17 = vld [vmem:[%s0] sm:$0xff]
  %v18 = vld [vmem:[%s0 + $0x8] sm:$0xff]
  %v19 = vld [vmem:[%s0 + $0x10] sm:$0xff]
  %v20 = vld [vmem:[%s0 + $0x18] sm:$0xff]
  %v21 = vld [vmem:[%s0 + $0x20] sm:$0xff]
  %v22 = vld [vmem:[%s0 + $0x28] sm:$0xff]
  %v23 = vld [vmem:[%s0 + $0x30] sm:$0xff]
  %v24 = vld [vmem:[%s0 + $0x38] sm:$0xff]
  %v25 = vld [vmem:[%s0 + $0x40] sm:$0xff]
  %v26 = vld [vmem:[%s0 + $0x48] sm:$0xff]
  %v27 = vld [vmem:[%s0 + $0x50] sm:$0xff]
  %v28 = vld [vmem:[%s0 + $0x58] sm:$0xff]
  %v29 = vld [vmem:[%s0 + $0x60] sm:$0xff]
  %v30 = vld [vmem:[%s0 + $0x68] sm:$0xff]
  %v31 = vld [vmem:[%s0 + $0x70] sm:$0xff]
  %v32 = vld [vmem:[%s0 + $0x78] sm:$0xff]
  %v33 = vld [vmem:[%s0 + $0x80] sm:$0xff]
  %v34 = vld [vmem:[%s0 + $0x88] sm:$0xff]
  %v35 = vld [vmem:[%s0 + $0x90] sm:$0xff]
  %v36 = vld [vmem:[%s0 + $0x98] sm:$0xff]
  %v37 = vld [vmem:[%s0 + $0xa0] sm:$0xff]
  %v38 = vld [vmem:[%s0 + $0xa8] sm:$0xff]
  %v39 = vld [vmem:[%s0 + $0xb0] sm:$0xff]
  %v40 = vld [vmem:[%s0 + $0xb8] sm:$0xff]
  %v41 = vld [vmem:[%s0 + $0xc0] sm:$0xff]
  %v42 = vld [vmem:[%s0 + $0xc8] sm:$0xff]
  %v43 = vld [vmem:[%s0 + $0xd0] sm:$0xff]
  %v44 = vld [vmem:[%s0 + $0xd8] sm:$0xff]
  %v45 = vld [vmem:[%s0 + $0xe0] sm:$0xff]
  %v46 = vld [vmem:[%s0 + $0xe8] sm:$0xff]
  %v47 = vld [vmem:[%s0 + $0xf0] sm:$0xff]
  %v48 = vld [vmem:[%s0 + $0xf8] sm:$0xff]
  %v49 = vld [vmem:[%s0 + $0x100] sm:$0xff]
  %v50 = vld [vmem:[%s0 + $0x108] sm:$0xff]
  %v51 = vld [vmem:[%s0 + $0x110] sm:$0xff]
  %v52 = vld [vmem:[%s0 + $0x118] sm:$0xff]
  %v53 = vld [vmem:[%s0 + $0x120] sm:$0xff]
  %v54 = vld [vmem:[%s0 + $0x128] sm:$0xff]
  %v55 = vld [vmem:[%s0 + $0x130] sm:$0xff]
  %v56 = vld [vmem:[%s0 + $0x138] sm:$0xff]
  %v57 = vld [vmem:[%s0 + $0x140] sm:$0xff]
  %v58 = vld [vmem:[%s0 + $0x148] sm:$0xff]
  %v59 = vld [vmem:[%s0 + $0x150] sm:$0xff]
  %v60 = vld [vmem:[%s0 + $0x158] sm:$0xff]
  %v61 = vld [vmem:[%s0 + $0x160] sm:$0xff]
  %v62 = vld [vmem:[%s0 + $0x168] sm:$0xff]
  %v63 = vld [vmem:[%s0 + $0x170] sm:$0xff]
  %v64 = vld [vmem:[%s0 + $0x178] sm:$0xff]
  %v65 = vld [vmem:[%s0 + $0x180] sm:$0xff]
  %v66 = vld [vmem:[%s0 + $0x188] sm:$0xff]
  %v67 = vld [vmem:[%s0 + $0x190] sm:$0xff]
  %v68 = vld [vmem:[%s0 + $0x198] sm:$0xff]
  %v69 = vld [vmem:[%s0 + $0x1a0] sm:$0xff]
  %v70 = vld [vmem:[%s0 + $0x1a8] sm:$0xff]
  %v71 = vld [vmem:[%s0 + $0x1b0] sm:$0xff]
  %v72 = vld [vmem:[%s0 + $0x1b8] sm:$0xff]
  %v73 = vld [vmem:[%s0 + $0x1c0] sm:$0xff]
  %v74 = vld [vmem:[%s0 + $0x1c8] sm:$0xff]
  %v75 = vld [vmem:[%s0 + $0x1d0] sm:$0xff]
  %v76 = vld [vmem:[%s0 + $0x1d8] sm:$0xff]
  %v77 = vld [vmem:[%s0 + $0x1e0] sm:$0xff]
  %v78 = vld [vmem:[%s0 + $0x1e8] sm:$0xff]
  %v79 = vld [vmem:[%s0 + $0x1f0] sm:$0xff]
  %v80 = vld [vmem:[%s0 + $0x1f8] sm:$0xff]
  %v81 = vld [vmem:[%s0 + $0x200] sm:$0xff]
  %v82 = vld [vmem:[%s0 + $0x208] sm:$0xff]
  %v83 = vld [vmem:[%s0 + $0x210] sm:$0xff]
  %v84 = vld [vmem:[%s0 + $0x218] sm:$0xff]
  %v85 = vld [vmem:[%s0 + $0x220] sm:$0xff]
  %v86 = vld [vmem:[%s0 + $0x228] sm:$0xff]
  %v87 = vld [vmem:[%s0 + $0x230] sm:$0xff]
  %v88 = vld [vmem:[%s0 + $0x238] sm:$0xff]
  %v89 = vld [vmem:[%s0 + $0x240] sm:$0xff]
  %v90 = vld [vmem:[%s0 + $0x248] sm:$0xff]
  %v91 = vld [vmem:[%s0 + $0x250] sm:$0xff]
  %v92 = vld [vmem:[%s0 + $0x258] sm:$0xff]
  %v93 = vld [vmem:[%s0 + $0x260] sm:$0xff]
  %v94 = vld [vmem:[%s0 + $0x268] sm:$0xff]
  %v95 = vld [vmem:[%s0 + $0x270] sm:$0xff]
  %v96 = vld [vmem:[%s0 + $0x278] sm:$0xff]
  %v97 = vld [vmem:[%s0 + $0x280] sm:$0xff]
  %v98 = vld [vmem:[%s0 + $0x288] sm:$0xff]
  %v99 = vld [vmem:[%s0 + $0x290] sm:$0xff]
  %v100 = vld [vmem:[%s0 + $0x298] sm:$0xff]
  %v101 = vld [vmem:[%s0 + $0x2a0] sm:$0xff]
  %v102 = vld [vmem:[%s0 + $0x2a8] sm:$0xff]
  %v103 = vld [vmem:[%s0 + $0x2b0] sm:$0xff]
  %v104 = vld [vmem:[%s0 + $0x2b8] sm:$0xff]
  %v105 = vld [vmem:[%s0 + $0x2c0] sm:$0xff]
  %v106 = vld [vmem:[%s0 + $0x2c8] sm:$0xff]
  %v107 = vld [vmem:[%s0 + $0x2d0] sm:$0xff]
  %v108 = vld [vmem:[%s0 + $0x2d8] sm:$0xff]
  %v109 = vld [vmem:[%s0 + $0x2e0] sm:$0xff]
  %v110 = vld [vmem:[%s0 + $0x2e8] sm:$0xff]
  %v111 = vld [vmem:[%s0 + $0x2f0] sm:$0xff]
  %v112 = vld [vmem:[%s0 + $0x2f8] sm:$0xff]
  %v113 = vld [vmem:[%s0 + $0x300] sm:$0xff]
  %v114 = vld [vmem:[%s0 + $0x308] sm:$0xff]
  %v115 = vld [vmem:[%s0 + $0x310] sm:$0xff]
  %v116 = vld [vmem:[%s0 + $0x318] sm:$0xff]
  %v117 = vld [vmem:[%s0 + $0x320] sm:$0xff]
  %v118 = vld [vmem:[%s0 + $0x328] sm:$0xff]
  %v119 = vld [vmem:[%s0 + $0x330] sm:$0xff]
  %v120 = vld [vmem:[%s0 + $0x338] sm:$0xff]
  %v121 = vld [vmem:[%s0 + $0x340] sm:$0xff]
  %v122 = vld [vmem:[%s0 + $0x348] sm:$0xff]
  %v123 = vld [vmem:[%s0 + $0x350] sm:$0xff]
  %v124 = vld [vmem:[%s0 + $0x358] sm:$0xff]
  %v125 = vld [vmem:[%s0 + $0x360] sm:$0xff]
  %v126 = vld [vmem:[%s0 + $0x368] sm:$0xff]
  %v127 = vld [vmem:[%s0 + $0x370] sm:$0xff]
  %v128 = vld [vmem:[%s0 + $0x378] sm:$0xff]
  %v129 = vld [vmem:[%s0 + $0x380] sm:$0xff]
  %v130 = vld [vmem:[%s0 + $0x388] sm:$0xff]
  %v131 = vld [vmem:[%s0 + $0x390] sm:$0xff]
  %v132 = vld [vmem:[%s0 + $0x398] sm:$0xff]
  %v133 = vld [vmem:[%s0 + $0x3a0] sm:$0xff]
  %v134 = vld [vmem:[%s0 + $0x3a8] sm:$0xff]
  %v135 = vld [vmem:[%s0 + $0x3b0] sm:$0xff]
  %v136 = vld [vmem:[%s0 + $0x3b8] sm:$0xff]
  %v137 = vld [vmem:[%s0 + $0x3c0] sm:$0xff]
  %v138 = vld [vmem:[%s0 + $0x3c8] sm:$0xff]
  %v139 = vld [vmem:[%s0 + $0x3d0] sm:$0xff]
  %v140 = vld [vmem:[%s0 + $0x3d8] sm:$0xff]
  %v141 = vld [vmem:[%s0 + $0x3e0] sm:$0xff]
  %v142 = vld [vmem:[%s0 + $0x3e8] sm:$0xff]
  %v143 = vld [vmem:[%s0 + $0x3f0] sm:$0xff]
  %v144 = vld [vmem:[%s0 + $0x3f8] sm:$0xff]
  %v145 = vld [vmem:[%s0 + $0x400] sm:$0xff]
  %v146 = vld [vmem:[%s0 + $0x408] sm:$0xff]
  %v147 = vld [vmem:[%s0 + $0x410] sm:$0xff]
  %v148 = vld [vmem:[%s0 + $0x418] sm:$0xff]
  %v149 = vld [vmem:[%s0 + $0x420] sm:$0xff]
  %v150 = vld [vmem:[%s0 + $0x428] sm:$0xff]
  %v151 = vld [vmem:[%s0 + $0x430] sm:$0xff]
  %v152 = vld [vmem:[%s0 + $0x438] sm:$0xff]
  %v153 = vld [vmem:[%s0 + $0x440] sm:$0xff]
  %v154 = vld [vmem:[%s0 + $0x448] sm:$0xff]
  %v155 = vld [vmem:[%s0 + $0x450] sm:$0xff]
  %v156 = vld [vmem:[%s0 + $0x458] sm:$0xff]
  %v157 = vld [vmem:[%s0 + $0x460] sm:$0xff]
  %v158 = vld [vmem:[%s0 + $0x468] sm:$0xff]
  %v159 = vld [vmem:[%s0 + $0x470] sm:$0xff]
  %v160 = vld [vmem:[%s0 + $0x478] sm:$0xff]
  %v161 = vld [vmem:[%s0 + $0x480] sm:$0xff]
  %v162 = vld [vmem:[%s0 + $0x488] sm:$0xff]
  %v163 = vld [vmem:[%s0 + $0x490] sm:$0xff]
  %v164 = vld [vmem:[%s0 + $0x498] sm:$0xff]
  %v165 = vld [vmem:[%s0 + $0x4a0] sm:$0xff]
  %v166 = vld [vmem:[%s0 + $0x4a8] sm:$0xff]
  %v167 = vld [vmem:[%s0 + $0x4b0] sm:$0xff]
  %v168 = vld [vmem:[%s0 + $0x4b8] sm:$0xff]
  %v169 = vld [vmem:[%s0 + $0x4c0] sm:$0xff]
  %v170 = vld [vmem:[%s0 + $0x4c8] sm:$0xff]
  %v171 = vld [vmem:[%s0 + $0x4d0] sm:$0xff]
  %v172 = vld [vmem:[%s0 + $0x4d8] sm:$0xff]
  %v173 = vld [vmem:[%s0 + $0x4e0] sm:$0xff]
  %v174 = vld [vmem:[%s0 + $0x4e8] sm:$0xff]
  %v175 = vld [vmem:[%s0 + $0x4f0] sm:$0xff]
  %v176 = vld [vmem:[%s0 + $0x4f8] sm:$0xff]
  %v177 = vld [vmem:[%s0 + $0x500] sm:$0xff]
  %v178 = vld [vmem:[%s0 + $0x508] sm:$0xff]
  %v179 = vld [vmem:[%s0 + $0x510] sm:$0xff]
  %v180 = vld [vmem:[%s0 + $0x518] sm:$0xff]
  %v181 = vld [vmem:[%s0 + $0x520] sm:$0xff]
  %v182 = vld [vmem:[%s0 + $0x528] sm:$0xff]
  %v183 = vld [vmem:[%s0 + $0x530] sm:$0xff]
  %v184 = vld [vmem:[%s0 + $0x538] sm:$0xff]
  %v185 = vld [vmem:[%s0 + $0x540] sm:$0xff]
  %v186 = vld [vmem:[%s0 + $0x548] sm:$0xff]
  %v187 = vld [vmem:[%s0 + $0x550] sm:$0xff]
  %v188 = vld [vmem:[%s0 + $0x558] sm:$0xff]
  %v189 = vld [vmem:[%s0 + $0x560] sm:$0xff]
  %v190 = vld [vmem:[%s0 + $0x568] sm:$0xff]
  %v191 = vld [vmem:[%s0 + $0x570] sm:$0xff]
  %v192 = vld [vmem:[%s0 + $0x578] sm:$0xff]
  %v193 = vld [vmem:[%s0 + $0x580] sm:$0xff]
  %v194 = vld [vmem:[%s0 + $0x588] sm:$0xff]
  %v195 = vld [vmem:[%s0 + $0x590] sm:$0xff]
  %v196 = vld [vmem:[%s0 + $0x598] sm:$0xff]
  %v197 = vld [vmem:[%s0 + $0x5a0] sm:$0xff]
  %v198 = vld [vmem:[%s0 + $0x5a8] sm:$0xff]
  %v199 = vld [vmem:[%s0 + $0x5b0] sm:$0xff]
  %v200 = vld [vmem:[%s0 + $0x5b8] sm:$0xff]
  %v201 = vld [vmem:[%s0 + $0x5c0] sm:$0xff]
  %v202 = vld [vmem:[%s0 + $0x5c8] sm:$0xff]
  %v203 = vld [vmem:[%s0 + $0x5d0] sm:$0xff]
  %v204 = vld [vmem:[%s0 + $0x5d8] sm:$0xff]
  %v205 = vld [vmem:[%s0 + $0x5e0] sm:$0xff]
  %v206 = vld [vmem:[%s0 + $0x5e8] sm:$0xff]
  %v207 = vld [vmem:[%s0 + $0x5f0] sm:$0xff]
  %v208 = vld [vmem:[%s0 + $0x5f8] sm:$0xff]
  %v209 = vld [vmem:[%s0 + $0x600] sm:$0xff]
  %v210 = vld [vmem:[%s0 + $0x608] sm:$0xff]
  %v211 = vld [vmem:[%s0 + $0x610] sm:$0xff]
  %v212 = vld [vmem:[%s0 + $0x618] sm:$0xff]
  %v213 = vld [vmem:[%s0 + $0x620] sm:$0xff]
  %v214 = vld [vmem:[%s0 + $0x628] sm:$0xff]
  %v215 = vld [vmem:[%s0 + $0x630] sm:$0xff]
  %v216 = vld [vmem:[%s0 + $0x638] sm:$0xff]
  %v217 = vld [vmem:[%s0 + $0x640] sm:$0xff]
  %v218 = vld [vmem:[%s0 + $0x648] sm:$0xff]
  %v219 = vld [vmem:[%s0 + $0x650] sm:$0xff]
  %v220 = vld [vmem:[%s0 + $0x658] sm:$0xff]
  %v221 = vld [vmem:[%s0 + $0x660] sm:$0xff]
  %v222 = vld [vmem:[%s0 + $0x668] sm:$0xff]
  %v223 = vld [vmem:[%s0 + $0x670] sm:$0xff]
  %v224 = vld [vmem:[%s0 + $0x678] sm:$0xff]
  %v225 = vld [vmem:[%s0 + $0x680] sm:$0xff]
  %v226 = vld [vmem:[%s0 + $0x688] sm:$0xff]
  %v227 = vld [vmem:[%s0 + $0x690] sm:$0xff]
  %v228 = vld [vmem:[%s0 + $0x698] sm:$0xff]
  %v229 = vld [vmem:[%s0 + $0x6a0] sm:$0xff]
  %v230 = vld [vmem:[%s0 + $0x6a8] sm:$0xff]
  %v231 = vld [vmem:[%s0 + $0x6b0] sm:$0xff]
  %v232 = vld [vmem:[%s0 + $0x6b8] sm:$0xff]
  %v233 = vld [vmem:[%s0 + $0x6c0] sm:$0xff]
  %v234 = vld [vmem:[%s0 + $0x6c8] sm:$0xff]
  %v235 = vld [vmem:[%s0 + $0x6d0] sm:$0xff]
  %v236 = vld [vmem:[%s0 + $0x6d8] sm:$0xff]
  %v237 = vld [vmem:[%s0 + $0x6e0] sm:$0xff]
  %v238 = vld [vmem:[%s0 + $0x6e8] sm:$0xff]
  %v239 = vld [vmem:[%s0 + $0x6f0] sm:$0xff]
  %v240 = vld [vmem:[%s0 + $0x6f8] sm:$0xff]
  %v241 = vld [vmem:[%s1] sm:$0xff]
  %v242 = vld [vmem:[%s1 + $0x8] sm:$0xff]
  %v243 = vld [vmem:[%s1 + $0x10] sm:$0xff]
  %v244 = vld [vmem:[%s1 + $0x18] sm:$0xff]
  %v245 = vld [vmem:[%s1 + $0x20] sm:$0xff]
  %v246 = vld [vmem:[%s1 + $0x28] sm:$0xff]
  %v247 = vld [vmem:[%s1 + $0x30] sm:$0xff]
  %v248 = vld [vmem:[%s1 + $0x38] sm:$0xff]
  %v249 = vld [vmem:[%s1 + $0x40] sm:$0xff]
  %v250 = vld [vmem:[%s1 + $0x48] sm:$0xff]
  %v251 = vld [vmem:[%s1 + $0x50] sm:$0xff]
  %v252 = vld [vmem:[%s1 + $0x58] sm:$0xff]
  %v253 = vld [vmem:[%s1 + $0x60] sm:$0xff]
  %v254 = vld [vmem:[%s1 + $0x68] sm:$0xff]
  %v255 = vld [vmem:[%s1 + $0x70] sm:$0xff]
  %v256 = vld [vmem:[%s1 + $0x78] sm:$0xff]
  %v257 = vld [vmem:[%s1 + $0x80] sm:$0xff]
  %v258 = vld [vmem:[%s1 + $0x88] sm:$0xff]
  %v259 = vld [vmem:[%s1 + $0x90] sm:$0xff]
  %v260 = vld [vmem:[%s1 + $0x98] sm:$0xff]
  %v261 = vld [vmem:[%s1 + $0xa0] sm:$0xff]
  %v262 = vld [vmem:[%s1 + $0xa8] sm:$0xff]
  %v263 = vld [vmem:[%s1 + $0xb0] sm:$0xff]
  %v264 = vld [vmem:[%s1 + $0xb8] sm:$0xff]
  %v265 = vld [vmem:[%s1 + $0xc0] sm:$0xff]
  %v266 = vld [vmem:[%s1 + $0xc8] sm:$0xff]
  %v267 = vld [vmem:[%s1 + $0xd0] sm:$0xff]
  %v268 = vld [vmem:[%s1 + $0xd8] sm:$0xff]
  %v269 = vld [vmem:[%s1 + $0xe0] sm:$0xff]
  %v270 = vld [vmem:[%s1 + $0xe8] sm:$0xff]
  %v271 = vld [vmem:[%s1 + $0xf0] sm:$0xff]
  %v272 = vld [vmem:[%s1 + $0xf8] sm:$0xff]
  %v273 = vld [vmem:[%s1 + $0x100] sm:$0xff]
  %v274 = vld [vmem:[%s1 + $0x108] sm:$0xff]
  %v275 = vld [vmem:[%s1 + $0x110] sm:$0xff]
  %v276 = vld [vmem:[%s1 + $0x118] sm:$0xff]
  %v277 = vld [vmem:[%s1 + $0x120] sm:$0xff]
  %v278 = vld [vmem:[%s1 + $0x128] sm:$0xff]
  %v279 = vld [vmem:[%s1 + $0x130] sm:$0xff]
  %v280 = vld [vmem:[%s1 + $0x138] sm:$0xff]
  %v281 = vld [vmem:[%s1 + $0x140] sm:$0xff]
  %v282 = vld [vmem:[%s1 + $0x148] sm:$0xff]
  %v283 = vld [vmem:[%s1 + $0x150] sm:$0xff]
  %v284 = vld [vmem:[%s1 + $0x158] sm:$0xff]
  %v285 = vld [vmem:[%s1 + $0x160] sm:$0xff]
  %v286 = vld [vmem:[%s1 + $0x168] sm:$0xff]
  %v287 = vld [vmem:[%s1 + $0x170] sm:$0xff]
  %v288 = vld [vmem:[%s1 + $0x178] sm:$0xff]
  %v289 = vld [vmem:[%s1 + $0x180] sm:$0xff]
  %v290 = vld [vmem:[%s1 + $0x188] sm:$0xff]
  %v291 = vld [vmem:[%s1 + $0x190] sm:$0xff]
  %v292 = vld [vmem:[%s1 + $0x198] sm:$0xff]
  %v293 = vld [vmem:[%s1 + $0x1a0] sm:$0xff]
  %v294 = vld [vmem:[%s1 + $0x1a8] sm:$0xff]
  %v295 = vld [vmem:[%s1 + $0x1b0] sm:$0xff]
  %v296 = vld [vmem:[%s1 + $0x1b8] sm:$0xff]
  %v297 = vld [vmem:[%s1 + $0x1c0] sm:$0xff]
  %v298 = vld [vmem:[%s1 + $0x1c8] sm:$0xff]
  %v299 = vld [vmem:[%s1 + $0x1d0] sm:$0xff]
  %v300 = vld [vmem:[%s1 + $0x1d8] sm:$0xff]
  %v301 = vld [vmem:[%s1 + $0x1e0] sm:$0xff]
  %v302 = vld [vmem:[%s1 + $0x1e8] sm:$0xff]
  %v303 = vld [vmem:[%s1 + $0x1f0] sm:$0xff]
  %v304 = vld [vmem:[%s1 + $0x1f8] sm:$0xff]
  %v305 = vld [vmem:[%s1 + $0x200] sm:$0xff]
  %v306 = vld [vmem:[%s1 + $0x208] sm:$0xff]
  %v307 = vld [vmem:[%s1 + $0x210] sm:$0xff]
  %v308 = vld [vmem:[%s1 + $0x218] sm:$0xff]
  %v309 = vld [vmem:[%s1 + $0x220] sm:$0xff]
  %v310 = vld [vmem:[%s1 + $0x228] sm:$0xff]
  %v311 = vld [vmem:[%s1 + $0x230] sm:$0xff]
  %v312 = vld [vmem:[%s1 + $0x238] sm:$0xff]
  %v313 = vld [vmem:[%s1 + $0x240] sm:$0xff]
  %v314 = vld [vmem:[%s1 + $0x248] sm:$0xff]
  %v315 = vld [vmem:[%s1 + $0x250] sm:$0xff]
  %v316 = vld [vmem:[%s1 + $0x258] sm:$0xff]
  %v317 = vld [vmem:[%s1 + $0x260] sm:$0xff]
  %v318 = vld [vmem:[%s1 + $0x268] sm:$0xff]
  %v319 = vld [vmem:[%s1 + $0x270] sm:$0xff]
  %v320 = vld [vmem:[%s1 + $0x278] sm:$0xff]
  %v321 = vld [vmem:[%s1 + $0x280] sm:$0xff]
  %v322 = vld [vmem:[%s1 + $0x288] sm:$0xff]
  %v323 = vld [vmem:[%s1 + $0x290] sm:$0xff]
  %v324 = vld [vmem:[%s1 + $0x298] sm:$0xff]
  %v325 = vld [vmem:[%s1 + $0x2a0] sm:$0xff]
  %v326 = vld [vmem:[%s1 + $0x2a8] sm:$0xff]
  %v327 = vld [vmem:[%s1 + $0x2b0] sm:$0xff]
  %v328 = vld [vmem:[%s1 + $0x2b8] sm:$0xff]
  %v329 = vld [vmem:[%s1 + $0x2c0] sm:$0xff]
  %v330 = vld [vmem:[%s1 + $0x2c8] sm:$0xff]
  %v331 = vld [vmem:[%s1 + $0x2d0] sm:$0xff]
  %v332 = vld [vmem:[%s1 + $0x2d8] sm:$0xff]
  %v333 = vld [vmem:[%s1 + $0x2e0] sm:$0xff]
  %v334 = vld [vmem:[%s1 + $0x2e8] sm:$0xff]
  %v335 = vld [vmem:[%s1 + $0x2f0] sm:$0xff]
  %v336 = vld [vmem:[%s1 + $0x2f8] sm:$0xff]
  %v337 = vld [vmem:[%s1 + $0x300] sm:$0xff]
  %v338 = vld [vmem:[%s1 + $0x308] sm:$0xff]
  %v339 = vld [vmem:[%s1 + $0x310] sm:$0xff]
  %v340 = vld [vmem:[%s1 + $0x318] sm:$0xff]
  %v341 = vld [vmem:[%s1 + $0x320] sm:$0xff]
  %v342 = vld [vmem:[%s1 + $0x328] sm:$0xff]
  %v343 = vld [vmem:[%s1 + $0x330] sm:$0xff]
  %v344 = vld [vmem:[%s1 + $0x338] sm:$0xff]
  %v345 = vld [vmem:[%s1 + $0x340] sm:$0xff]
  %v346 = vld [vmem:[%s1 + $0x348] sm:$0xff]
  %v347 = vld [vmem:[%s1 + $0x350] sm:$0xff]
  %v348 = vld [vmem:[%s1 + $0x358] sm:$0xff]
  %v349 = vld [vmem:[%s1 + $0x360] sm:$0xff]
  %v350 = vld [vmem:[%s1 + $0x368] sm:$0xff]
  %v351 = vld [vmem:[%s1 + $0x370] sm:$0xff]
  %v352 = vld [vmem:[%s1 + $0x378] sm:$0xff]
  %v353 = vld [vmem:[%s1 + $0x380] sm:$0xff]
  %v354 = vld [vmem:[%s1 + $0x388] sm:$0xff]
  %v355 = vld [vmem:[%s1 + $0x390] sm:$0xff]
  %v356 = vld [vmem:[%s1 + $0x398] sm:$0xff]
  %v357 = vld [vmem:[%s1 + $0x3a0] sm:$0xff]
  %v358 = vld [vmem:[%s1 + $0x3a8] sm:$0xff]
  %v359 = vld [vmem:[%s1 + $0x3b0] sm:$0xff]
  %v360 = vld [vmem:[%s1 + $0x3b8] sm:$0xff]
  %v361 = vld [vmem:[%s1 + $0x3c0] sm:$0xff]
  %v362 = vld [vmem:[%s1 + $0x3c8] sm:$0xff]
  %v363 = vld [vmem:[%s1 + $0x3d0] sm:$0xff]
  %v364 = vld [vmem:[%s1 + $0x3d8] sm:$0xff]
  %v365 = vld [vmem:[%s1 + $0x3e0] sm:$0xff]
  %v366 = vld [vmem:[%s1 + $0x3e8] sm:$0xff]
  %v367 = vld [vmem:[%s1 + $0x3f0] sm:$0xff]
  %v368 = vld [vmem:[%s1 + $0x3f8] sm:$0xff]
  %v369 = vld [vmem:[%s1 + $0x400] sm:$0xff]
  %v370 = vld [vmem:[%s1 + $0x408] sm:$0xff]
  %v371 = vld [vmem:[%s1 + $0x410] sm:$0xff]
  %v372 = vld [vmem:[%s1 + $0x418] sm:$0xff]
  %v373 = vld [vmem:[%s1 + $0x420] sm:$0xff]
  %v374 = vld [vmem:[%s1 + $0x428] sm:$0xff]
  %v375 = vld [vmem:[%s1 + $0x430] sm:$0xff]
  %v376 = vld [vmem:[%s1 + $0x438] sm:$0xff]
  %v377 = vld [vmem:[%s1 + $0x440] sm:$0xff]
  %v378 = vld [vmem:[%s1 + $0x448] sm:$0xff]
  %v379 = vld [vmem:[%s1 + $0x450] sm:$0xff]
  %v380 = vld [vmem:[%s1 + $0x458] sm:$0xff]
  %v381 = vld [vmem:[%s1 + $0x460] sm:$0xff]
  %v382 = vld [vmem:[%s1 + $0x468] sm:$0xff]
  %v383 = vld [vmem:[%s1 + $0x470] sm:$0xff]
  %v384 = vld [vmem:[%s1 + $0x478] sm:$0xff]
  %v385 = vld [vmem:[%s1 + $0x480] sm:$0xff]
  %v386 = vld [vmem:[%s1 + $0x488] sm:$0xff]
  %v387 = vld [vmem:[%s1 + $0x490] sm:$0xff]
  %v388 = vld [vmem:[%s1 + $0x498] sm:$0xff]
  %v389 = vld [vmem:[%s1 + $0x4a0] sm:$0xff]
  %v390 = vld [vmem:[%s1 + $0x4a8] sm:$0xff]
  %v391 = vld [vmem:[%s1 + $0x4b0] sm:$0xff]
  %v392 = vld [vmem:[%s1 + $0x4b8] sm:$0xff]
  %v393 = vld [vmem:[%s1 + $0x4c0] sm:$0xff]
  %v394 = vld [vmem:[%s1 + $0x4c8] sm:$0xff]
  %v395 = vld [vmem:[%s1 + $0x4d0] sm:$0xff]
  %v396 = vld [vmem:[%s1 + $0x4d8] sm:$0xff]
  %v397 = vld [vmem:[%s1 + $0x4e0] sm:$0xff]
  %v398 = vld [vmem:[%s1 + $0x4e8] sm:$0xff]
  %v399 = vld [vmem:[%s1 + $0x4f0] sm:$0xff]
  %v400 = vld [vmem:[%s1 + $0x4f8] sm:$0xff]
  %v401 = vld [vmem:[%s1 + $0x500] sm:$0xff]
  %v402 = vld [vmem:[%s1 + $0x508] sm:$0xff]
  %v403 = vld [vmem:[%s1 + $0x510] sm:$0xff]
  %v404 = vld [vmem:[%s1 + $0x518] sm:$0xff]
  %v405 = vld [vmem:[%s1 + $0x520] sm:$0xff]
  %v406 = vld [vmem:[%s1 + $0x528] sm:$0xff]
  %v407 = vld [vmem:[%s1 + $0x530] sm:$0xff]
  %v408 = vld [vmem:[%s1 + $0x538] sm:$0xff]
  %v409 = vld [vmem:[%s1 + $0x540] sm:$0xff]
  %v410 = vld [vmem:[%s1 + $0x548] sm:$0xff]
  %v411 = vld [vmem:[%s1 + $0x550] sm:$0xff]
  %v412 = vld [vmem:[%s1 + $0x558] sm:$0xff]
  %v413 = vld [vmem:[%s1 + $0x560] sm:$0xff]
  %v414 = vld [vmem:[%s1 + $0x568] sm:$0xff]
  %v415 = vld [vmem:[%s1 + $0x570] sm:$0xff]
  %v416 = vld [vmem:[%s1 + $0x578] sm:$0xff]
  %v417 = vld [vmem:[%s1 + $0x580] sm:$0xff]
  %v418 = vld [vmem:[%s1 + $0x588] sm:$0xff]
  %v419 = vld [vmem:[%s1 + $0x590] sm:$0xff]
  %v420 = vld [vmem:[%s1 + $0x598] sm:$0xff]
  %v421 = vld [vmem:[%s1 + $0x5a0] sm:$0xff]
  %v422 = vld [vmem:[%s1 + $0x5a8] sm:$0xff]
  %v423 = vld [vmem:[%s1 + $0x5b0] sm:$0xff]
  %v424 = vld [vmem:[%s1 + $0x5b8] sm:$0xff]
  %v425 = vld [vmem:[%s1 + $0x5c0] sm:$0xff]
  %v426 = vld [vmem:[%s1 + $0x5c8] sm:$0xff]
  %v427 = vld [vmem:[%s1 + $0x5d0] sm:$0xff]
  %v428 = vld [vmem:[%s1 + $0x5d8] sm:$0xff]
  %v429 = vld [vmem:[%s1 + $0x5e0] sm:$0xff]
  %v430 = vld [vmem:[%s1 + $0x5e8] sm:$0xff]
  %v431 = vld [vmem:[%s1 + $0x5f0] sm:$0xff]
  %v432 = vld [vmem:[%s1 + $0x5f8] sm:$0xff]
  %v433 = vld [vmem:[%s1 + $0x600] sm:$0xff]
  %v434 = vld [vmem:[%s1 + $0x608] sm:$0xff]
  %v435 = vld [vmem:[%s1 + $0x610] sm:$0xff]
  %v436 = vld [vmem:[%s1 + $0x618] sm:$0xff]
  %v437 = vld [vmem:[%s1 + $0x620] sm:$0xff]
  %v438 = vld [vmem:[%s1 + $0x628] sm:$0xff]
  %v439 = vld [vmem:[%s1 + $0x630] sm:$0xff]
  %v440 = vld [vmem:[%s1 + $0x638] sm:$0xff]
  %v441 = vld [vmem:[%s1 + $0x640] sm:$0xff]
  %v442 = vld [vmem:[%s1 + $0x648] sm:$0xff]
  %v443 = vld [vmem:[%s1 + $0x650] sm:$0xff]
  %v444 = vld [vmem:[%s1 + $0x658] sm:$0xff]
  %v445 = vld [vmem:[%s1 + $0x660] sm:$0xff]
  %v446 = vld [vmem:[%s1 + $0x668] sm:$0xff]
  %v447 = vld [vmem:[%s1 + $0x670] sm:$0xff]
  %v448 = vld [vmem:[%s1 + $0x678] sm:$0xff]
  %v449 = vld [vmem:[%s1 + $0x680] sm:$0xff]
  %v450 = vld [vmem:[%s1 + $0x688] sm:$0xff]
  %v451 = vld [vmem:[%s1 + $0x690] sm:$0xff]
  %v452 = vld [vmem:[%s1 + $0x698] sm:$0xff]
  %v453 = vld [vmem:[%s1 + $0x6a0] sm:$0xff]
  %v454 = vld [vmem:[%s1 + $0x6a8] sm:$0xff]
  %v455 = vld [vmem:[%s1 + $0x6b0] sm:$0xff]
  %v456 = vld [vmem:[%s1 + $0x6b8] sm:$0xff]
  %vm457 = vcmask 523264
  %v459 = vsel %vm457, %v30, 0
  %v462 = vsel %vm457, %v44, 0
  %v465 = vsel %vm457, %v58, 0
  %v468 = vsel %vm457, %v72, 0
  %v471 = vsel %vm457, %v86, 0
  %v474 = vsel %vm457, %v100, 0
  %v477 = vsel %vm457, %v114, 0
  %v480 = vsel %vm457, %v128, 0
  %v483 = vsel %vm457, %v142, 0
  %v486 = vsel %vm457, %v156, 0
  %v489 = vsel %vm457, %v170, 0
  %v492 = vsel %vm457, %v184, 0
  %v495 = vsel %vm457, %v198, 0
  %v498 = vsel %vm457, %v212, 0
  %v501 = vsel %vm457, %v226, 0
  %v504 = vsel %vm457, %v240, 0
  %506 = vmatprep.subr.mxu0 0.0
  %507 = vmatpush1.msra.mxu0 %v256
  %508 = vmatprep.subr.mxu0 0.0
  %509 = vmatpush1.msra.mxu0 %v255
  %510 = vmatprep.subr.mxu0 0.0
  %511 = vmatpush1.msra.mxu0 %v254
  %512 = vmatprep.subr.mxu0 0.0
  %513 = vmatpush1.msra.mxu0 %v253
  %514 = vmatprep.subr.mxu0 0.0
  %515 = vmatpush1.msra.mxu0 %v252
  %516 = vmatprep.subr.mxu0 0.0
  %517 = vmatpush1.msra.mxu0 %v251
  %518 = vmatprep.subr.mxu0 0.0
  %519 = vmatpush1.msra.mxu0 %v250
  %520 = vmatprep.subr.mxu0 0.0
  %521 = vmatpush1.msra.mxu0 %v249
  %522 = vmatprep.subr.mxu0 0.0
  %523 = vmatpush1.msra.mxu0 %v248
  %524 = vmatprep.subr.mxu0 0.0
  %525 = vmatpush1.msra.mxu0 %v247
  %526 = vmatprep.subr.mxu0 0.0
  %527 = vmatpush1.msra.mxu0 %v246
  %528 = vmatprep.subr.mxu0 0.0
  %529 = vmatpush1.msra.mxu0 %v245
  %530 = vmatprep.subr.mxu0 0.0
  %531 = vmatpush1.msra.mxu0 %v244
  %532 = vmatprep.subr.mxu0 0.0
  %533 = vmatpush1.msra.mxu0 %v243
  %534 = vmatprep.subr.mxu0 0.0
  %535 = vmatpush1.msra.mxu0 %v242
  %536 = vmatprep.subr.mxu0 0.0
  %537 = vmatpush1.msra.mxu0 %v241
  %538 = vmatprep.subr.mxu0 0.0
  %539 = vmatpush2.msra.mxu0 %v272
  %540 = vmatprep.subr.mxu0 0.0
  %541 = vmatpush2.msra.mxu0 %v271
  %542 = vmatprep.subr.mxu0 0.0
  %543 = vmatpush2.msra.mxu0 %v270
  %544 = vmatprep.subr.mxu0 0.0
  %545 = vmatpush2.msra.mxu0 %v269
  %546 = vmatprep.subr.mxu0 0.0
  %547 = vmatpush2.msra.mxu0 %v268
  %548 = vmatprep.subr.mxu0 0.0
  %549 = vmatpush2.msra.mxu0 %v267
  %550 = vmatprep.subr.mxu0 0.0
  %551 = vmatpush2.msra.mxu0 %v266
  %552 = vmatprep.subr.mxu0 0.0
  %553 = vmatpush2.msra.mxu0 %v265
  %554 = vmatprep.subr.mxu0 0.0
  %555 = vmatpush2.msra.mxu0 %v264
  %556 = vmatprep.subr.mxu0 0.0
  %557 = vmatpush2.msra.mxu0 %v263
  %558 = vmatprep.subr.mxu0 0.0
  %559 = vmatpush2.msra.mxu0 %v262
  %560 = vmatprep.subr.mxu0 0.0
  %561 = vmatpush2.msra.mxu0 %v261
  %562 = vmatprep.subr.mxu0 0.0
  %563 = vmatpush2.msra.mxu0 %v260
  %564 = vmatprep.subr.mxu0 0.0
  %565 = vmatpush2.msra.mxu0 %v259
  %566 = vmatprep.subr.mxu0 0.0
  %567 = vmatpush2.msra.mxu0 %v258
  %568 = vmatprep.subr.mxu0 0.0
  %569 = vmatpush2.msra.mxu0 %v257
  %570 = vmatprep.mubr.f32.mxu0 %v18
  %571 = vmatmul.mubr.f32.gmra.mxu0 %v17
  %v572 = vpop.f32.mrf.mxu0
  %v573 = vadd.f32 0.0, %v572
  %v574 = vpop.f32.mrf.mxu0
  %575 = vmatprep.mubr.f32.mxu0 %v32
  %576 = vmatmul.mubr.f32.gmra.mxu0 %v31
  %v577 = vpop.f32.mrf.mxu0
  %v578 = vadd.f32 0.0, %v577
  %v579 = vpop.f32.mrf.mxu0
  %580 = vmatprep.mubr.f32.mxu0 %v46
  %581 = vmatmul.mubr.f32.gmra.mxu0 %v45
  %v582 = vpop.f32.mrf.mxu0
  %v583 = vadd.f32 0.0, %v582
  %v584 = vpop.f32.mrf.mxu0
  %585 = vmatprep.mubr.f32.mxu0 %v60
  %586 = vmatmul.mubr.f32.gmra.mxu0 %v59
  %v587 = vpop.f32.mrf.mxu0
  %v588 = vadd.f32 0.0, %v587
  %v589 = vpop.f32.mrf.mxu0
  %590 = vmatprep.mubr.f32.mxu0 %v74
  %591 = vmatmul.mubr.f32.gmra.mxu0 %v73
  %v592 = vpop.f32.mrf.mxu0
  %v593 = vadd.f32 0.0, %v592
  %v594 = vpop.f32.mrf.mxu0
  %595 = vmatprep.mubr.f32.mxu0 %v88
  %596 = vmatmul.mubr.f32.gmra.mxu0 %v87
  %v597 = vpop.f32.mrf.mxu0
  %v598 = vadd.f32 0.0, %v597
  %v599 = vpop.f32.mrf.mxu0
  %600 = vmatprep.mubr.f32.mxu0 %v102
  %601 = vmatmul.mubr.f32.gmra.mxu0 %v101
  %v602 = vpop.f32.mrf.mxu0
  %v603 = vadd.f32 0.0, %v602
  %v604 = vpop.f32.mrf.mxu0
  %605 = vmatprep.mubr.f32.mxu0 %v116
  %606 = vmatmul.mubr.f32.gmra.mxu0 %v115
  %v607 = vpop.f32.mrf.mxu0
  %v608 = vadd.f32 0.0, %v607
  %v609 = vpop.f32.mrf.mxu0
  %610 = vmatprep.mubr.f32.mxu0 %v130
  %611 = vmatmul.mubr.f32.gmra.mxu0 %v129
  %v612 = vpop.f32.mrf.mxu0
  %v613 = vadd.f32 0.0, %v612
  %v614 = vpop.f32.mrf.mxu0
  %615 = vmatprep.mubr.f32.mxu0 %v144
  %616 = vmatmul.mubr.f32.gmra.mxu0 %v143
  %v617 = vpop.f32.mrf.mxu0
  %v618 = vadd.f32 0.0, %v617
  %v619 = vpop.f32.mrf.mxu0
  %620 = vmatprep.mubr.f32.mxu0 %v158
  %621 = vmatmul.mubr.f32.gmra.mxu0 %v157
  %v622 = vpop.f32.mrf.mxu0
  %v623 = vadd.f32 0.0, %v622
  %v624 = vpop.f32.mrf.mxu0
  %625 = vmatprep.mubr.f32.mxu0 %v172
  %626 = vmatmul.mubr.f32.gmra.mxu0 %v171
  %v627 = vpop.f32.mrf.mxu0
  %v628 = vadd.f32 0.0, %v627
  %v629 = vpop.f32.mrf.mxu0
  %630 = vmatprep.mubr.f32.mxu0 %v186
  %631 = vmatmul.mubr.f32.gmra.mxu0 %v185
  %v632 = vpop.f32.mrf.mxu0
  %v633 = vadd.f32 0.0, %v632
  %v634 = vpop.f32.mrf.mxu0
  %635 = vmatprep.mubr.f32.mxu0 %v200
  %636 = vmatmul.mubr.f32.gmra.mxu0 %v199
  %v637 = vpop.f32.mrf.mxu0
  %v638 = vadd.f32 0.0, %v637
  %v639 = vpop.f32.mrf.mxu0
  %640 = vmatprep.mubr.f32.mxu0 %v214
  %641 = vmatmul.mubr.f32.gmra.mxu0 %v213
  %v642 = vpop.f32.mrf.mxu0
  %v643 = vadd.f32 0.0, %v642
  %v644 = vpop.f32.mrf.mxu0
  %645 = vmatprep.mubr.f32.mxu0 %v228
  %646 = vmatmul.mubr.f32.gmra.mxu0 %v227
  %v647 = vpop.f32.mrf.mxu0
  %v648 = vadd.f32 0.0, %v647
  %v649 = vpop.f32.mrf.mxu0
  %650 = vdwg.mxu0
  %651 = vmatprep.subr.mxu0 0.0
  %652 = vmatpush1.msra.mxu0 %v288
  %653 = vmatprep.subr.mxu0 0.0
  %654 = vmatpush1.msra.mxu0 %v287
  %655 = vmatprep.subr.mxu0 0.0
  %656 = vmatpush1.msra.mxu0 %v286
  %657 = vmatprep.subr.mxu0 0.0
  %658 = vmatpush1.msra.mxu0 %v285
  %659 = vmatprep.subr.mxu0 0.0
  %660 = vmatpush1.msra.mxu0 %v284
  %661 = vmatprep.subr.mxu0 0.0
  %662 = vmatpush1.msra.mxu0 %v283
  %663 = vmatprep.subr.mxu0 0.0
  %664 = vmatpush1.msra.mxu0 %v282
  %665 = vmatprep.subr.mxu0 0.0
  %666 = vmatpush1.msra.mxu0 %v281
  %667 = vmatprep.subr.mxu0 0.0
  %668 = vmatpush1.msra.mxu0 %v280
  %669 = vmatprep.subr.mxu0 0.0
  %670 = vmatpush1.msra.mxu0 %v279
  %671 = vmatprep.subr.mxu0 0.0
  %672 = vmatpush1.msra.mxu0 %v278
  %673 = vmatprep.subr.mxu0 0.0
  %674 = vmatpush1.msra.mxu0 %v277
  %675 = vmatprep.subr.mxu0 0.0
  %676 = vmatpush1.msra.mxu0 %v276
  %677 = vmatprep.subr.mxu0 0.0
  %678 = vmatpush1.msra.mxu0 %v275
  %679 = vmatprep.subr.mxu0 0.0
  %680 = vmatpush1.msra.mxu0 %v274
  %681 = vmatprep.subr.mxu0 0.0
  %682 = vmatpush1.msra.mxu0 %v273
  %683 = vmatprep.subr.mxu0 0.0
  %684 = vmatpush2.msra.mxu0 %v304
  %685 = vmatprep.subr.mxu0 0.0
  %686 = vmatpush2.msra.mxu0 %v303
  %687 = vmatprep.subr.mxu0 0.0
  %688 = vmatpush2.msra.mxu0 %v302
  %689 = vmatprep.subr.mxu0 0.0
  %690 = vmatpush2.msra.mxu0 %v301
  %691 = vmatprep.subr.mxu0 0.0
  %692 = vmatpush2.msra.mxu0 %v300
  %693 = vmatprep.subr.mxu0 0.0
  %694 = vmatpush2.msra.mxu0 %v299
  %695 = vmatprep.subr.mxu0 0.0
  %696 = vmatpush2.msra.mxu0 %v298
  %697 = vmatprep.subr.mxu0 0.0
  %698 = vmatpush2.msra.mxu0 %v297
  %699 = vmatprep.subr.mxu0 0.0
  %700 = vmatpush2.msra.mxu0 %v296
  %701 = vmatprep.subr.mxu0 0.0
  %702 = vmatpush2.msra.mxu0 %v295
  %703 = vmatprep.subr.mxu0 0.0
  %704 = vmatpush2.msra.mxu0 %v294
  %705 = vmatprep.subr.mxu0 0.0
  %706 = vmatpush2.msra.mxu0 %v293
  %707 = vmatprep.subr.mxu0 0.0
  %708 = vmatpush2.msra.mxu0 %v292
  %709 = vmatprep.subr.mxu0 0.0
  %710 = vmatpush2.msra.mxu0 %v291
  %711 = vmatprep.subr.mxu0 0.0
  %712 = vmatpush2.msra.mxu0 %v290
  %713 = vmatprep.subr.mxu0 0.0
  %714 = vmatpush2.msra.mxu0 %v289
  %715 = vmatprep.mubr.f32.mxu0 %v20
  %716 = vmatmul.mubr.f32.gmra.mxu0 %v19
  %v717 = vpop.f32.mrf.mxu0
  %v718 = vadd.f32 %v573, %v717
  %v719 = vpop.f32.mrf.mxu0
  %720 = vmatprep.mubr.f32.mxu0 %v34
  %721 = vmatmul.mubr.f32.gmra.mxu0 %v33
  %v722 = vpop.f32.mrf.mxu0
  %v723 = vadd.f32 %v578, %v722
  %v724 = vpop.f32.mrf.mxu0
  %725 = vmatprep.mubr.f32.mxu0 %v48
  %726 = vmatmul.mubr.f32.gmra.mxu0 %v47
  %v727 = vpop.f32.mrf.mxu0
  %v728 = vadd.f32 %v583, %v727
  %v729 = vpop.f32.mrf.mxu0
  %730 = vmatprep.mubr.f32.mxu0 %v62
  %731 = vmatmul.mubr.f32.gmra.mxu0 %v61
  %v732 = vpop.f32.mrf.mxu0
  %v733 = vadd.f32 %v588, %v732
  %v734 = vpop.f32.mrf.mxu0
  %735 = vmatprep.mubr.f32.mxu0 %v76
  %736 = vmatmul.mubr.f32.gmra.mxu0 %v75
  %v737 = vpop.f32.mrf.mxu0
  %v738 = vadd.f32 %v593, %v737
  %v739 = vpop.f32.mrf.mxu0
  %740 = vmatprep.mubr.f32.mxu0 %v90
  %741 = vmatmul.mubr.f32.gmra.mxu0 %v89
  %v742 = vpop.f32.mrf.mxu0
  %v743 = vadd.f32 %v598, %v742
  %v744 = vpop.f32.mrf.mxu0
  %745 = vmatprep.mubr.f32.mxu0 %v104
  %746 = vmatmul.mubr.f32.gmra.mxu0 %v103
  %v747 = vpop.f32.mrf.mxu0
  %v748 = vadd.f32 %v603, %v747
  %v749 = vpop.f32.mrf.mxu0
  %750 = vmatprep.mubr.f32.mxu0 %v118
  %751 = vmatmul.mubr.f32.gmra.mxu0 %v117
  %v752 = vpop.f32.mrf.mxu0
  %v753 = vadd.f32 %v608, %v752
  %v754 = vpop.f32.mrf.mxu0
  %755 = vmatprep.mubr.f32.mxu0 %v132
  %756 = vmatmul.mubr.f32.gmra.mxu0 %v131
  %v757 = vpop.f32.mrf.mxu0
  %v758 = vadd.f32 %v613, %v757
  %v759 = vpop.f32.mrf.mxu0
  %760 = vmatprep.mubr.f32.mxu0 %v146
  %761 = vmatmul.mubr.f32.gmra.mxu0 %v145
  %v762 = vpop.f32.mrf.mxu0
  %v763 = vadd.f32 %v618, %v762
  %v764 = vpop.f32.mrf.mxu0
  %765 = vmatprep.mubr.f32.mxu0 %v160
  %766 = vmatmul.mubr.f32.gmra.mxu0 %v159
  %v767 = vpop.f32.mrf.mxu0
  %v768 = vadd.f32 %v623, %v767
  %v769 = vpop.f32.mrf.mxu0
  %770 = vmatprep.mubr.f32.mxu0 %v174
  %771 = vmatmul.mubr.f32.gmra.mxu0 %v173
  %v772 = vpop.f32.mrf.mxu0
  %v773 = vadd.f32 %v628, %v772
  %v774 = vpop.f32.mrf.mxu0
  %775 = vmatprep.mubr.f32.mxu0 %v188
  %776 = vmatmul.mubr.f32.gmra.mxu0 %v187
  %v777 = vpop.f32.mrf.mxu0
  %v778 = vadd.f32 %v633, %v777
  %v779 = vpop.f32.mrf.mxu0
  %780 = vmatprep.mubr.f32.mxu0 %v202
  %781 = vmatmul.mubr.f32.gmra.mxu0 %v201
  %v782 = vpop.f32.mrf.mxu0
  %v783 = vadd.f32 %v638, %v782
  %v784 = vpop.f32.mrf.mxu0
  %785 = vmatprep.mubr.f32.mxu0 %v216
  %786 = vmatmul.mubr.f32.gmra.mxu0 %v215
  %v787 = vpop.f32.mrf.mxu0
  %v788 = vadd.f32 %v643, %v787
  %v789 = vpop.f32.mrf.mxu0
  %790 = vmatprep.mubr.f32.mxu0 %v230
  %791 = vmatmul.mubr.f32.gmra.mxu0 %v229
  %v792 = vpop.f32.mrf.mxu0
  %v793 = vadd.f32 %v648, %v792
  %v794 = vpop.f32.mrf.mxu0
  %795 = vdwg.mxu0
  %796 = vmatprep.subr.mxu0 0.0
  %797 = vmatpush1.msra.mxu0 %v320
  %798 = vmatprep.subr.mxu0 0.0
  %799 = vmatpush1.msra.mxu0 %v319
  %800 = vmatprep.subr.mxu0 0.0
  %801 = vmatpush1.msra.mxu0 %v318
  %802 = vmatprep.subr.mxu0 0.0
  %803 = vmatpush1.msra.mxu0 %v317
  %804 = vmatprep.subr.mxu0 0.0
  %805 = vmatpush1.msra.mxu0 %v316
  %806 = vmatprep.subr.mxu0 0.0
  %807 = vmatpush1.msra.mxu0 %v315
  %808 = vmatprep.subr.mxu0 0.0
  %809 = vmatpush1.msra.mxu0 %v314
  %810 = vmatprep.subr.mxu0 0.0
  %811 = vmatpush1.msra.mxu0 %v313
  %812 = vmatprep.subr.mxu0 0.0
  %813 = vmatpush1.msra.mxu0 %v312
  %814 = vmatprep.subr.mxu0 0.0
  %815 = vmatpush1.msra.mxu0 %v311
  %816 = vmatprep.subr.mxu0 0.0
  %817 = vmatpush1.msra.mxu0 %v310
  %818 = vmatprep.subr.mxu0 0.0
  %819 = vmatpush1.msra.mxu0 %v309
  %820 = vmatprep.subr.mxu0 0.0
  %821 = vmatpush1.msra.mxu0 %v308
  %822 = vmatprep.subr.mxu0 0.0
  %823 = vmatpush1.msra.mxu0 %v307
  %824 = vmatprep.subr.mxu0 0.0
  %825 = vmatpush1.msra.mxu0 %v306
  %826 = vmatprep.subr.mxu0 0.0
  %827 = vmatpush1.msra.mxu0 %v305
  %828 = vmatprep.subr.mxu0 0.0
  %829 = vmatpush2.msra.mxu0 %v336
  %830 = vmatprep.subr.mxu0 0.0
  %831 = vmatpush2.msra.mxu0 %v335
  %832 = vmatprep.subr.mxu0 0.0
  %833 = vmatpush2.msra.mxu0 %v334
  %834 = vmatprep.subr.mxu0 0.0
  %835 = vmatpush2.msra.mxu0 %v333
  %836 = vmatprep.subr.mxu0 0.0
  %837 = vmatpush2.msra.mxu0 %v332
  %838 = vmatprep.subr.mxu0 0.0
  %839 = vmatpush2.msra.mxu0 %v331
  %840 = vmatprep.subr.mxu0 0.0
  %841 = vmatpush2.msra.mxu0 %v330
  %842 = vmatprep.subr.mxu0 0.0
  %843 = vmatpush2.msra.mxu0 %v329
  %844 = vmatprep.subr.mxu0 0.0
  %845 = vmatpush2.msra.mxu0 %v328
  %846 = vmatprep.subr.mxu0 0.0
  %847 = vmatpush2.msra.mxu0 %v327
  %848 = vmatprep.subr.mxu0 0.0
  %849 = vmatpush2.msra.mxu0 %v326
  %850 = vmatprep.subr.mxu0 0.0
  %851 = vmatpush2.msra.mxu0 %v325
  %852 = vmatprep.subr.mxu0 0.0
  %853 = vmatpush2.msra.mxu0 %v324
  %854 = vmatprep.subr.mxu0 0.0
  %855 = vmatpush2.msra.mxu0 %v323
  %856 = vmatprep.subr.mxu0 0.0
  %857 = vmatpush2.msra.mxu0 %v322
  %858 = vmatprep.subr.mxu0 0.0
  %859 = vmatpush2.msra.mxu0 %v321
  %860 = vmatprep.mubr.f32.mxu0 %v22
  %861 = vmatmul.mubr.f32.gmra.mxu0 %v21
  %v862 = vpop.f32.mrf.mxu0
  %v863 = vadd.f32 %v718, %v862
  %v864 = vpop.f32.mrf.mxu0
  %865 = vmatprep.mubr.f32.mxu0 %v36
  %866 = vmatmul.mubr.f32.gmra.mxu0 %v35
  %v867 = vpop.f32.mrf.mxu0
  %v868 = vadd.f32 %v723, %v867
  %v869 = vpop.f32.mrf.mxu0
  %870 = vmatprep.mubr.f32.mxu0 %v50
  %871 = vmatmul.mubr.f32.gmra.mxu0 %v49
  %v872 = vpop.f32.mrf.mxu0
  %v873 = vadd.f32 %v728, %v872
  %v874 = vpop.f32.mrf.mxu0
  %875 = vmatprep.mubr.f32.mxu0 %v64
  %876 = vmatmul.mubr.f32.gmra.mxu0 %v63
  %v877 = vpop.f32.mrf.mxu0
  %v878 = vadd.f32 %v733, %v877
  %v879 = vpop.f32.mrf.mxu0
  %880 = vmatprep.mubr.f32.mxu0 %v78
  %881 = vmatmul.mubr.f32.gmra.mxu0 %v77
  %v882 = vpop.f32.mrf.mxu0
  %v883 = vadd.f32 %v738, %v882
  %v884 = vpop.f32.mrf.mxu0
  %885 = vmatprep.mubr.f32.mxu0 %v92
  %886 = vmatmul.mubr.f32.gmra.mxu0 %v91
  %v887 = vpop.f32.mrf.mxu0
  %v888 = vadd.f32 %v743, %v887
  %v889 = vpop.f32.mrf.mxu0
  %890 = vmatprep.mubr.f32.mxu0 %v106
  %891 = vmatmul.mubr.f32.gmra.mxu0 %v105
  %v892 = vpop.f32.mrf.mxu0
  %v893 = vadd.f32 %v748, %v892
  %v894 = vpop.f32.mrf.mxu0
  %895 = vmatprep.mubr.f32.mxu0 %v120
  %896 = vmatmul.mubr.f32.gmra.mxu0 %v119
  %v897 = vpop.f32.mrf.mxu0
  %v898 = vadd.f32 %v753, %v897
  %v899 = vpop.f32.mrf.mxu0
  %900 = vmatprep.mubr.f32.mxu0 %v134
  %901 = vmatmul.mubr.f32.gmra.mxu0 %v133
  %v902 = vpop.f32.mrf.mxu0
  %v903 = vadd.f32 %v758, %v902
  %v904 = vpop.f32.mrf.mxu0
  %905 = vmatprep.mubr.f32.mxu0 %v148
  %906 = vmatmul.mubr.f32.gmra.mxu0 %v147
  %v907 = vpop.f32.mrf.mxu0
  %v908 = vadd.f32 %v763, %v907
  %v909 = vpop.f32.mrf.mxu0
  %910 = vmatprep.mubr.f32.mxu0 %v162
  %911 = vmatmul.mubr.f32.gmra.mxu0 %v161
  %v912 = vpop.f32.mrf.mxu0
  %v913 = vadd.f32 %v768, %v912
  %v914 = vpop.f32.mrf.mxu0
  %915 = vmatprep.mubr.f32.mxu0 %v176
  %916 = vmatmul.mubr.f32.gmra.mxu0 %v175
  %v917 = vpop.f32.mrf.mxu0
  %v918 = vadd.f32 %v773, %v917
  %v919 = vpop.f32.mrf.mxu0
  %920 = vmatprep.mubr.f32.mxu0 %v190
  %921 = vmatmul.mubr.f32.gmra.mxu0 %v189
  %v922 = vpop.f32.mrf.mxu0
  %v923 = vadd.f32 %v778, %v922
  %v924 = vpop.f32.mrf.mxu0
  %925 = vmatprep.mubr.f32.mxu0 %v204
  %926 = vmatmul.mubr.f32.gmra.mxu0 %v203
  %v927 = vpop.f32.mrf.mxu0
  %v928 = vadd.f32 %v783, %v927
  %v929 = vpop.f32.mrf.mxu0
  %930 = vmatprep.mubr.f32.mxu0 %v218
  %931 = vmatmul.mubr.f32.gmra.mxu0 %v217
  %v932 = vpop.f32.mrf.mxu0
  %v933 = vadd.f32 %v788, %v932
  %v934 = vpop.f32.mrf.mxu0
  %935 = vmatprep.mubr.f32.mxu0 %v232
  %936 = vmatmul.mubr.f32.gmra.mxu0 %v231
  %v937 = vpop.f32.mrf.mxu0
  %v938 = vadd.f32 %v793, %v937
  %v939 = vpop.f32.mrf.mxu0
  %940 = vdwg.mxu0
  %941 = vmatprep.subr.mxu0 0.0
  %942 = vmatpush1.msra.mxu0 %v352
  %943 = vmatprep.subr.mxu0 0.0
  %944 = vmatpush1.msra.mxu0 %v351
  %945 = vmatprep.subr.mxu0 0.0
  %946 = vmatpush1.msra.mxu0 %v350
  %947 = vmatprep.subr.mxu0 0.0
  %948 = vmatpush1.msra.mxu0 %v349
  %949 = vmatprep.subr.mxu0 0.0
  %950 = vmatpush1.msra.mxu0 %v348
  %951 = vmatprep.subr.mxu0 0.0
  %952 = vmatpush1.msra.mxu0 %v347
  %953 = vmatprep.subr.mxu0 0.0
  %954 = vmatpush1.msra.mxu0 %v346
  %955 = vmatprep.subr.mxu0 0.0
  %956 = vmatpush1.msra.mxu0 %v345
  %957 = vmatprep.subr.mxu0 0.0
  %958 = vmatpush1.msra.mxu0 %v344
  %959 = vmatprep.subr.mxu0 0.0
  %960 = vmatpush1.msra.mxu0 %v343
  %961 = vmatprep.subr.mxu0 0.0
  %962 = vmatpush1.msra.mxu0 %v342
  %963 = vmatprep.subr.mxu0 0.0
  %964 = vmatpush1.msra.mxu0 %v341
  %965 = vmatprep.subr.mxu0 0.0
  %966 = vmatpush1.msra.mxu0 %v340
  %967 = vmatprep.subr.mxu0 0.0
  %968 = vmatpush1.msra.mxu0 %v339
  %969 = vmatprep.subr.mxu0 0.0
  %970 = vmatpush1.msra.mxu0 %v338
  %971 = vmatprep.subr.mxu0 0.0
  %972 = vmatpush1.msra.mxu0 %v337
  %973 = vmatprep.subr.mxu0 0.0
  %974 = vmatpush2.msra.mxu0 %v368
  %975 = vmatprep.subr.mxu0 0.0
  %976 = vmatpush2.msra.mxu0 %v367
  %977 = vmatprep.subr.mxu0 0.0
  %978 = vmatpush2.msra.mxu0 %v366
  %979 = vmatprep.subr.mxu0 0.0
  %980 = vmatpush2.msra.mxu0 %v365
  %981 = vmatprep.subr.mxu0 0.0
  %982 = vmatpush2.msra.mxu0 %v364
  %983 = vmatprep.subr.mxu0 0.0
  %984 = vmatpush2.msra.mxu0 %v363
  %985 = vmatprep.subr.mxu0 0.0
  %986 = vmatpush2.msra.mxu0 %v362
  %987 = vmatprep.subr.mxu0 0.0
  %988 = vmatpush2.msra.mxu0 %v361
  %989 = vmatprep.subr.mxu0 0.0
  %990 = vmatpush2.msra.mxu0 %v360
  %991 = vmatprep.subr.mxu0 0.0
  %992 = vmatpush2.msra.mxu0 %v359
  %993 = vmatprep.subr.mxu0 0.0
  %994 = vmatpush2.msra.mxu0 %v358
  %995 = vmatprep.subr.mxu0 0.0
  %996 = vmatpush2.msra.mxu0 %v357
  %997 = vmatprep.subr.mxu0 0.0
  %998 = vmatpush2.msra.mxu0 %v356
  %999 = vmatprep.subr.mxu0 0.0
  %1000 = vmatpush2.msra.mxu0 %v355
  %1001 = vmatprep.subr.mxu0 0.0
  %1002 = vmatpush2.msra.mxu0 %v354
  %1003 = vmatprep.subr.mxu0 0.0
  %1004 = vmatpush2.msra.mxu0 %v353
  %1005 = vmatprep.mubr.f32.mxu0 %v24
  %1006 = vmatmul.mubr.f32.gmra.mxu0 %v23
  %v1007 = vpop.f32.mrf.mxu0
  %v1008 = vadd.f32 %v863, %v1007
  %v1009 = vpop.f32.mrf.mxu0
  %1010 = vmatprep.mubr.f32.mxu0 %v38
  %1011 = vmatmul.mubr.f32.gmra.mxu0 %v37
  %v1012 = vpop.f32.mrf.mxu0
  %v1013 = vadd.f32 %v868, %v1012
  %v1014 = vpop.f32.mrf.mxu0
  %1015 = vmatprep.mubr.f32.mxu0 %v52
  %1016 = vmatmul.mubr.f32.gmra.mxu0 %v51
  %v1017 = vpop.f32.mrf.mxu0
  %v1018 = vadd.f32 %v873, %v1017
  %v1019 = vpop.f32.mrf.mxu0
  %1020 = vmatprep.mubr.f32.mxu0 %v66
  %1021 = vmatmul.mubr.f32.gmra.mxu0 %v65
  %v1022 = vpop.f32.mrf.mxu0
  %v1023 = vadd.f32 %v878, %v1022
  %v1024 = vpop.f32.mrf.mxu0
  %1025 = vmatprep.mubr.f32.mxu0 %v80
  %1026 = vmatmul.mubr.f32.gmra.mxu0 %v79
  %v1027 = vpop.f32.mrf.mxu0
  %v1028 = vadd.f32 %v883, %v1027
  %v1029 = vpop.f32.mrf.mxu0
  %1030 = vmatprep.mubr.f32.mxu0 %v94
  %1031 = vmatmul.mubr.f32.gmra.mxu0 %v93
  %v1032 = vpop.f32.mrf.mxu0
  %v1033 = vadd.f32 %v888, %v1032
  %v1034 = vpop.f32.mrf.mxu0
  %1035 = vmatprep.mubr.f32.mxu0 %v108
  %1036 = vmatmul.mubr.f32.gmra.mxu0 %v107
  %v1037 = vpop.f32.mrf.mxu0
  %v1038 = vadd.f32 %v893, %v1037
  %v1039 = vpop.f32.mrf.mxu0
  %1040 = vmatprep.mubr.f32.mxu0 %v122
  %1041 = vmatmul.mubr.f32.gmra.mxu0 %v121
  %v1042 = vpop.f32.mrf.mxu0
  %v1043 = vadd.f32 %v898, %v1042
  %v1044 = vpop.f32.mrf.mxu0
  %1045 = vmatprep.mubr.f32.mxu0 %v136
  %1046 = vmatmul.mubr.f32.gmra.mxu0 %v135
  %v1047 = vpop.f32.mrf.mxu0
  %v1048 = vadd.f32 %v903, %v1047
  %v1049 = vpop.f32.mrf.mxu0
  %1050 = vmatprep.mubr.f32.mxu0 %v150
  %1051 = vmatmul.mubr.f32.gmra.mxu0 %v149
  %v1052 = vpop.f32.mrf.mxu0
  %v1053 = vadd.f32 %v908, %v1052
  %v1054 = vpop.f32.mrf.mxu0
  %1055 = vmatprep.mubr.f32.mxu0 %v164
  %1056 = vmatmul.mubr.f32.gmra.mxu0 %v163
  %v1057 = vpop.f32.mrf.mxu0
  %v1058 = vadd.f32 %v913, %v1057
  %v1059 = vpop.f32.mrf.mxu0
  %1060 = vmatprep.mubr.f32.mxu0 %v178
  %1061 = vmatmul.mubr.f32.gmra.mxu0 %v177
  %v1062 = vpop.f32.mrf.mxu0
  %v1063 = vadd.f32 %v918, %v1062
  %v1064 = vpop.f32.mrf.mxu0
  %1065 = vmatprep.mubr.f32.mxu0 %v192
  %1066 = vmatmul.mubr.f32.gmra.mxu0 %v191
  %v1067 = vpop.f32.mrf.mxu0
  %v1068 = vadd.f32 %v923, %v1067
  %v1069 = vpop.f32.mrf.mxu0
  %1070 = vmatprep.mubr.f32.mxu0 %v206
  %1071 = vmatmul.mubr.f32.gmra.mxu0 %v205
  %v1072 = vpop.f32.mrf.mxu0
  %v1073 = vadd.f32 %v928, %v1072
  %v1074 = vpop.f32.mrf.mxu0
  %1075 = vmatprep.mubr.f32.mxu0 %v220
  %1076 = vmatmul.mubr.f32.gmra.mxu0 %v219
  %v1077 = vpop.f32.mrf.mxu0
  %v1078 = vadd.f32 %v933, %v1077
  %v1079 = vpop.f32.mrf.mxu0
  %1080 = vmatprep.mubr.f32.mxu0 %v234
  %1081 = vmatmul.mubr.f32.gmra.mxu0 %v233
  %v1082 = vpop.f32.mrf.mxu0
  %v1083 = vadd.f32 %v938, %v1082
  %v1084 = vpop.f32.mrf.mxu0
  %1085 = vdwg.mxu0
  %1086 = vmatprep.subr.mxu0 0.0
  %1087 = vmatpush1.msra.mxu0 %v384
  %1088 = vmatprep.subr.mxu0 0.0
  %1089 = vmatpush1.msra.mxu0 %v383
  %1090 = vmatprep.subr.mxu0 0.0
  %1091 = vmatpush1.msra.mxu0 %v382
  %1092 = vmatprep.subr.mxu0 0.0
  %1093 = vmatpush1.msra.mxu0 %v381
  %1094 = vmatprep.subr.mxu0 0.0
  %1095 = vmatpush1.msra.mxu0 %v380
  %1096 = vmatprep.subr.mxu0 0.0
  %1097 = vmatpush1.msra.mxu0 %v379
  %1098 = vmatprep.subr.mxu0 0.0
  %1099 = vmatpush1.msra.mxu0 %v378
  %1100 = vmatprep.subr.mxu0 0.0
  %1101 = vmatpush1.msra.mxu0 %v377
  %1102 = vmatprep.subr.mxu0 0.0
  %1103 = vmatpush1.msra.mxu0 %v376
  %1104 = vmatprep.subr.mxu0 0.0
  %1105 = vmatpush1.msra.mxu0 %v375
  %1106 = vmatprep.subr.mxu0 0.0
  %1107 = vmatpush1.msra.mxu0 %v374
  %1108 = vmatprep.subr.mxu0 0.0
  %1109 = vmatpush1.msra.mxu0 %v373
  %1110 = vmatprep.subr.mxu0 0.0
  %1111 = vmatpush1.msra.mxu0 %v372
  %1112 = vmatprep.subr.mxu0 0.0
  %1113 = vmatpush1.msra.mxu0 %v371
  %1114 = vmatprep.subr.mxu0 0.0
  %1115 = vmatpush1.msra.mxu0 %v370
  %1116 = vmatprep.subr.mxu0 0.0
  %1117 = vmatpush1.msra.mxu0 %v369
  %1118 = vmatprep.subr.mxu0 0.0
  %1119 = vmatpush2.msra.mxu0 %v400
  %1120 = vmatprep.subr.mxu0 0.0
  %1121 = vmatpush2.msra.mxu0 %v399
  %1122 = vmatprep.subr.mxu0 0.0
  %1123 = vmatpush2.msra.mxu0 %v398
  %1124 = vmatprep.subr.mxu0 0.0
  %1125 = vmatpush2.msra.mxu0 %v397
  %1126 = vmatprep.subr.mxu0 0.0
  %1127 = vmatpush2.msra.mxu0 %v396
  %1128 = vmatprep.subr.mxu0 0.0
  %1129 = vmatpush2.msra.mxu0 %v395
  %1130 = vmatprep.subr.mxu0 0.0
  %1131 = vmatpush2.msra.mxu0 %v394
  %1132 = vmatprep.subr.mxu0 0.0
  %1133 = vmatpush2.msra.mxu0 %v393
  %1134 = vmatprep.subr.mxu0 0.0
  %1135 = vmatpush2.msra.mxu0 %v392
  %1136 = vmatprep.subr.mxu0 0.0
  %1137 = vmatpush2.msra.mxu0 %v391
  %1138 = vmatprep.subr.mxu0 0.0
  %1139 = vmatpush2.msra.mxu0 %v390
  %1140 = vmatprep.subr.mxu0 0.0
  %1141 = vmatpush2.msra.mxu0 %v389
  %1142 = vmatprep.subr.mxu0 0.0
  %1143 = vmatpush2.msra.mxu0 %v388
  %1144 = vmatprep.subr.mxu0 0.0
  %1145 = vmatpush2.msra.mxu0 %v387
  %1146 = vmatprep.subr.mxu0 0.0
  %1147 = vmatpush2.msra.mxu0 %v386
  %1148 = vmatprep.subr.mxu0 0.0
  %1149 = vmatpush2.msra.mxu0 %v385
  %1150 = vmatprep.mubr.f32.mxu0 %v26
  %1151 = vmatmul.mubr.f32.gmra.mxu0 %v25
  %v1152 = vpop.f32.mrf.mxu0
  %v1153 = vadd.f32 %v1008, %v1152
  %v1154 = vpop.f32.mrf.mxu0
  %1155 = vmatprep.mubr.f32.mxu0 %v40
  %1156 = vmatmul.mubr.f32.gmra.mxu0 %v39
  %v1157 = vpop.f32.mrf.mxu0
  %v1158 = vadd.f32 %v1013, %v1157
  %v1159 = vpop.f32.mrf.mxu0
  %1160 = vmatprep.mubr.f32.mxu0 %v54
  %1161 = vmatmul.mubr.f32.gmra.mxu0 %v53
  %v1162 = vpop.f32.mrf.mxu0
  %v1163 = vadd.f32 %v1018, %v1162
  %v1164 = vpop.f32.mrf.mxu0
  %1165 = vmatprep.mubr.f32.mxu0 %v68
  %1166 = vmatmul.mubr.f32.gmra.mxu0 %v67
  %v1167 = vpop.f32.mrf.mxu0
  %v1168 = vadd.f32 %v1023, %v1167
  %v1169 = vpop.f32.mrf.mxu0
  %1170 = vmatprep.mubr.f32.mxu0 %v82
  %1171 = vmatmul.mubr.f32.gmra.mxu0 %v81
  %v1172 = vpop.f32.mrf.mxu0
  %v1173 = vadd.f32 %v1028, %v1172
  %v1174 = vpop.f32.mrf.mxu0
  %1175 = vmatprep.mubr.f32.mxu0 %v96
  %1176 = vmatmul.mubr.f32.gmra.mxu0 %v95
  %v1177 = vpop.f32.mrf.mxu0
  %v1178 = vadd.f32 %v1033, %v1177
  %v1179 = vpop.f32.mrf.mxu0
  %1180 = vmatprep.mubr.f32.mxu0 %v110
  %1181 = vmatmul.mubr.f32.gmra.mxu0 %v109
  %v1182 = vpop.f32.mrf.mxu0
  %v1183 = vadd.f32 %v1038, %v1182
  %v1184 = vpop.f32.mrf.mxu0
  %1185 = vmatprep.mubr.f32.mxu0 %v124
  %1186 = vmatmul.mubr.f32.gmra.mxu0 %v123
  %v1187 = vpop.f32.mrf.mxu0
  %v1188 = vadd.f32 %v1043, %v1187
  %v1189 = vpop.f32.mrf.mxu0
  %1190 = vmatprep.mubr.f32.mxu0 %v138
  %1191 = vmatmul.mubr.f32.gmra.mxu0 %v137
  %v1192 = vpop.f32.mrf.mxu0
  %v1193 = vadd.f32 %v1048, %v1192
  %v1194 = vpop.f32.mrf.mxu0
  %1195 = vmatprep.mubr.f32.mxu0 %v152
  %1196 = vmatmul.mubr.f32.gmra.mxu0 %v151
  %v1197 = vpop.f32.mrf.mxu0
  %v1198 = vadd.f32 %v1053, %v1197
  %v1199 = vpop.f32.mrf.mxu0
  %1200 = vmatprep.mubr.f32.mxu0 %v166
  %1201 = vmatmul.mubr.f32.gmra.mxu0 %v165
  %v1202 = vpop.f32.mrf.mxu0
  %v1203 = vadd.f32 %v1058, %v1202
  %v1204 = vpop.f32.mrf.mxu0
  %1205 = vmatprep.mubr.f32.mxu0 %v180
  %1206 = vmatmul.mubr.f32.gmra.mxu0 %v179
  %v1207 = vpop.f32.mrf.mxu0
  %v1208 = vadd.f32 %v1063, %v1207
  %v1209 = vpop.f32.mrf.mxu0
  %1210 = vmatprep.mubr.f32.mxu0 %v194
  %1211 = vmatmul.mubr.f32.gmra.mxu0 %v193
  %v1212 = vpop.f32.mrf.mxu0
  %v1213 = vadd.f32 %v1068, %v1212
  %v1214 = vpop.f32.mrf.mxu0
  %1215 = vmatprep.mubr.f32.mxu0 %v208
  %1216 = vmatmul.mubr.f32.gmra.mxu0 %v207
  %v1217 = vpop.f32.mrf.mxu0
  %v1218 = vadd.f32 %v1073, %v1217
  %v1219 = vpop.f32.mrf.mxu0
  %1220 = vmatprep.mubr.f32.mxu0 %v222
  %1221 = vmatmul.mubr.f32.gmra.mxu0 %v221
  %v1222 = vpop.f32.mrf.mxu0
  %v1223 = vadd.f32 %v1078, %v1222
  %v1224 = vpop.f32.mrf.mxu0
  %1225 = vmatprep.mubr.f32.mxu0 %v236
  %1226 = vmatmul.mubr.f32.gmra.mxu0 %v235
  %v1227 = vpop.f32.mrf.mxu0
  %v1228 = vadd.f32 %v1083, %v1227
  %v1229 = vpop.f32.mrf.mxu0
  %1230 = vdwg.mxu0
  %1231 = vmatprep.subr.mxu0 0.0
  %1232 = vmatpush1.msra.mxu0 %v416
  %1233 = vmatprep.subr.mxu0 0.0
  %1234 = vmatpush1.msra.mxu0 %v415
  %1235 = vmatprep.subr.mxu0 0.0
  %1236 = vmatpush1.msra.mxu0 %v414
  %1237 = vmatprep.subr.mxu0 0.0
  %1238 = vmatpush1.msra.mxu0 %v413
  %1239 = vmatprep.subr.mxu0 0.0
  %1240 = vmatpush1.msra.mxu0 %v412
  %1241 = vmatprep.subr.mxu0 0.0
  %1242 = vmatpush1.msra.mxu0 %v411
  %1243 = vmatprep.subr.mxu0 0.0
  %1244 = vmatpush1.msra.mxu0 %v410
  %1245 = vmatprep.subr.mxu0 0.0
  %1246 = vmatpush1.msra.mxu0 %v409
  %1247 = vmatprep.subr.mxu0 0.0
  %1248 = vmatpush1.msra.mxu0 %v408
  %1249 = vmatprep.subr.mxu0 0.0
  %1250 = vmatpush1.msra.mxu0 %v407
  %1251 = vmatprep.subr.mxu0 0.0
  %1252 = vmatpush1.msra.mxu0 %v406
  %1253 = vmatprep.subr.mxu0 0.0
  %1254 = vmatpush1.msra.mxu0 %v405
  %1255 = vmatprep.subr.mxu0 0.0
  %1256 = vmatpush1.msra.mxu0 %v404
  %1257 = vmatprep.subr.mxu0 0.0
  %1258 = vmatpush1.msra.mxu0 %v403
  %1259 = vmatprep.subr.mxu0 0.0
  %1260 = vmatpush1.msra.mxu0 %v402
  %1261 = vmatprep.subr.mxu0 0.0
  %1262 = vmatpush1.msra.mxu0 %v401
  %1263 = vmatprep.subr.mxu0 0.0
  %1264 = vmatpush2.msra.mxu0 %v432
  %1265 = vmatprep.subr.mxu0 0.0
  %1266 = vmatpush2.msra.mxu0 %v431
  %1267 = vmatprep.subr.mxu0 0.0
  %1268 = vmatpush2.msra.mxu0 %v430
  %1269 = vmatprep.subr.mxu0 0.0
  %1270 = vmatpush2.msra.mxu0 %v429
  %1271 = vmatprep.subr.mxu0 0.0
  %1272 = vmatpush2.msra.mxu0 %v428
  %1273 = vmatprep.subr.mxu0 0.0
  %1274 = vmatpush2.msra.mxu0 %v427
  %1275 = vmatprep.subr.mxu0 0.0
  %1276 = vmatpush2.msra.mxu0 %v426
  %1277 = vmatprep.subr.mxu0 0.0
  %1278 = vmatpush2.msra.mxu0 %v425
  %1279 = vmatprep.subr.mxu0 0.0
  %1280 = vmatpush2.msra.mxu0 %v424
  %1281 = vmatprep.subr.mxu0 0.0
  %1282 = vmatpush2.msra.mxu0 %v423
  %1283 = vmatprep.subr.mxu0 0.0
  %1284 = vmatpush2.msra.mxu0 %v422
  %1285 = vmatprep.subr.mxu0 0.0
  %1286 = vmatpush2.msra.mxu0 %v421
  %1287 = vmatprep.subr.mxu0 0.0
  %1288 = vmatpush2.msra.mxu0 %v420
  %1289 = vmatprep.subr.mxu0 0.0
  %1290 = vmatpush2.msra.mxu0 %v419
  %1291 = vmatprep.subr.mxu0 0.0
  %1292 = vmatpush2.msra.mxu0 %v418
  %1293 = vmatprep.subr.mxu0 0.0
  %1294 = vmatpush2.msra.mxu0 %v417
  %1295 = vmatprep.mubr.f32.mxu0 %v28
  %1296 = vmatmul.mubr.f32.gmra.mxu0 %v27
  %v1297 = vpop.f32.mrf.mxu0
  %v1298 = vadd.f32 %v1153, %v1297
  %v1299 = vpop.f32.mrf.mxu0
  %1300 = vmatprep.mubr.f32.mxu0 %v42
  %1301 = vmatmul.mubr.f32.gmra.mxu0 %v41
  %v1302 = vpop.f32.mrf.mxu0
  %v1303 = vadd.f32 %v1158, %v1302
  %v1304 = vpop.f32.mrf.mxu0
  %1305 = vmatprep.mubr.f32.mxu0 %v56
  %1306 = vmatmul.mubr.f32.gmra.mxu0 %v55
  %v1307 = vpop.f32.mrf.mxu0
  %v1308 = vadd.f32 %v1163, %v1307
  %v1309 = vpop.f32.mrf.mxu0
  %1310 = vmatprep.mubr.f32.mxu0 %v70
  %1311 = vmatmul.mubr.f32.gmra.mxu0 %v69
  %v1312 = vpop.f32.mrf.mxu0
  %v1313 = vadd.f32 %v1168, %v1312
  %v1314 = vpop.f32.mrf.mxu0
  %1315 = vmatprep.mubr.f32.mxu0 %v84
  %1316 = vmatmul.mubr.f32.gmra.mxu0 %v83
  %v1317 = vpop.f32.mrf.mxu0
  %v1318 = vadd.f32 %v1173, %v1317
  %v1319 = vpop.f32.mrf.mxu0
  %1320 = vmatprep.mubr.f32.mxu0 %v98
  %1321 = vmatmul.mubr.f32.gmra.mxu0 %v97
  %v1322 = vpop.f32.mrf.mxu0
  %v1323 = vadd.f32 %v1178, %v1322
  %v1324 = vpop.f32.mrf.mxu0
  %1325 = vmatprep.mubr.f32.mxu0 %v112
  %1326 = vmatmul.mubr.f32.gmra.mxu0 %v111
  %v1327 = vpop.f32.mrf.mxu0
  %v1328 = vadd.f32 %v1183, %v1327
  %v1329 = vpop.f32.mrf.mxu0
  %1330 = vmatprep.mubr.f32.mxu0 %v126
  %1331 = vmatmul.mubr.f32.gmra.mxu0 %v125
  %v1332 = vpop.f32.mrf.mxu0
  %v1333 = vadd.f32 %v1188, %v1332
  %v1334 = vpop.f32.mrf.mxu0
  %1335 = vmatprep.mubr.f32.mxu0 %v140
  %1336 = vmatmul.mubr.f32.gmra.mxu0 %v139
  %v1337 = vpop.f32.mrf.mxu0
  %v1338 = vadd.f32 %v1193, %v1337
  %v1339 = vpop.f32.mrf.mxu0
  %1340 = vmatprep.mubr.f32.mxu0 %v154
  %1341 = vmatmul.mubr.f32.gmra.mxu0 %v153
  %v1342 = vpop.f32.mrf.mxu0
  %v1343 = vadd.f32 %v1198, %v1342
  %v1344 = vpop.f32.mrf.mxu0
  %1345 = vmatprep.mubr.f32.mxu0 %v168
  %1346 = vmatmul.mubr.f32.gmra.mxu0 %v167
  %v1347 = vpop.f32.mrf.mxu0
  %v1348 = vadd.f32 %v1203, %v1347
  %v1349 = vpop.f32.mrf.mxu0
  %1350 = vmatprep.mubr.f32.mxu0 %v182
  %1351 = vmatmul.mubr.f32.gmra.mxu0 %v181
  %v1352 = vpop.f32.mrf.mxu0
  %v1353 = vadd.f32 %v1208, %v1352
  %v1354 = vpop.f32.mrf.mxu0
  %1355 = vmatprep.mubr.f32.mxu0 %v196
  %1356 = vmatmul.mubr.f32.gmra.mxu0 %v195
  %v1357 = vpop.f32.mrf.mxu0
  %v1358 = vadd.f32 %v1213, %v1357
  %v1359 = vpop.f32.mrf.mxu0
  %1360 = vmatprep.mubr.f32.mxu0 %v210
  %1361 = vmatmul.mubr.f32.gmra.mxu0 %v209
  %v1362 = vpop.f32.mrf.mxu0
  %v1363 = vadd.f32 %v1218, %v1362
  %v1364 = vpop.f32.mrf.mxu0
  %1365 = vmatprep.mubr.f32.mxu0 %v224
  %1366 = vmatmul.mubr.f32.gmra.mxu0 %v223
  %v1367 = vpop.f32.mrf.mxu0
  %v1368 = vadd.f32 %v1223, %v1367
  %v1369 = vpop.f32.mrf.mxu0
  %1370 = vmatprep.mubr.f32.mxu0 %v238
  %1371 = vmatmul.mubr.f32.gmra.mxu0 %v237
  %v1372 = vpop.f32.mrf.mxu0
  %v1373 = vadd.f32 %v1228, %v1372
  %v1374 = vpop.f32.mrf.mxu0
  %1375 = vdwg.mxu0
  %1376 = vmatprep.subr.mxu0 0.0
  %1377 = vmatpush1.msra.mxu0 %v448
  %1378 = vmatprep.subr.mxu0 0.0
  %1379 = vmatpush1.msra.mxu0 %v447
  %1380 = vmatprep.subr.mxu0 0.0
  %1381 = vmatpush1.msra.mxu0 %v446
  %1382 = vmatprep.subr.mxu0 0.0
  %1383 = vmatpush1.msra.mxu0 %v445
  %1384 = vmatprep.subr.mxu0 0.0
  %1385 = vmatpush1.msra.mxu0 %v444
  %1386 = vmatprep.subr.mxu0 0.0
  %1387 = vmatpush1.msra.mxu0 %v443
  %1388 = vmatprep.subr.mxu0 0.0
  %1389 = vmatpush1.msra.mxu0 %v442
  %1390 = vmatprep.subr.mxu0 0.0
  %1391 = vmatpush1.msra.mxu0 %v441
  %1392 = vmatprep.subr.mxu0 0.0
  %1393 = vmatpush1.msra.mxu0 %v440
  %1394 = vmatprep.subr.mxu0 0.0
  %1395 = vmatpush1.msra.mxu0 %v439
  %1396 = vmatprep.subr.mxu0 0.0
  %1397 = vmatpush1.msra.mxu0 %v438
  %1398 = vmatprep.subr.mxu0 0.0
  %1399 = vmatpush1.msra.mxu0 %v437
  %1400 = vmatprep.subr.mxu0 0.0
  %1401 = vmatpush1.msra.mxu0 %v436
  %1402 = vmatprep.subr.mxu0 0.0
  %1403 = vmatpush1.msra.mxu0 %v435
  %1404 = vmatprep.subr.mxu0 0.0
  %1405 = vmatpush1.msra.mxu0 %v434
  %1406 = vmatprep.subr.mxu0 0.0
  %1407 = vmatpush1.msra.mxu0 %v433
  %1408 = vmatprep.subr.mxu0 0.0
  %1409 = vmatpush2.msra.mxu0 0.0
  %1410 = vmatprep.subr.mxu0 0.0
  %1411 = vmatpush2.msra.mxu0 0.0
  %1412 = vmatprep.subr.mxu0 0.0
  %1413 = vmatpush2.msra.mxu0 0.0
  %1414 = vmatprep.subr.mxu0 0.0
  %1415 = vmatpush2.msra.mxu0 0.0
  %1416 = vmatprep.subr.mxu0 0.0
  %1417 = vmatpush2.msra.mxu0 0.0
  %1418 = vmatprep.subr.mxu0 0.0
  %1419 = vmatpush2.msra.mxu0 0.0
  %1420 = vmatprep.subr.mxu0 0.0
  %1421 = vmatpush2.msra.mxu0 0.0
  %1422 = vmatprep.subr.mxu0 0.0
  %1423 = vmatpush2.msra.mxu0 0.0
  %1424 = vmatprep.subr.mxu0 0.0
  %1425 = vmatpush2.msra.mxu0 %v456
  %1426 = vmatprep.subr.mxu0 0.0
  %1427 = vmatpush2.msra.mxu0 %v455
  %1428 = vmatprep.subr.mxu0 0.0
  %1429 = vmatpush2.msra.mxu0 %v454
  %1430 = vmatprep.subr.mxu0 0.0
  %1431 = vmatpush2.msra.mxu0 %v453
  %1432 = vmatprep.subr.mxu0 0.0
  %1433 = vmatpush2.msra.mxu0 %v452
  %1434 = vmatprep.subr.mxu0 0.0
  %1435 = vmatpush2.msra.mxu0 %v451
  %1436 = vmatprep.subr.mxu0 0.0
  %1437 = vmatpush2.msra.mxu0 %v450
  %1438 = vmatprep.subr.mxu0 0.0
  %1439 = vmatpush2.msra.mxu0 %v449
  %1440 = vmatprep.mubr.f32.mxu0 %v459
  %1441 = vmatmul.mubr.f32.gmra.mxu0 %v29
  %v1442 = vpop.f32.mrf.mxu0
  %v1443 = vadd.f32 %v1298, %v1442
  %v1444 = vpop.f32.mrf.mxu0
  %1445 = vmatprep.mubr.f32.mxu0 %v462
  %1446 = vmatmul.mubr.f32.gmra.mxu0 %v43
  %v1447 = vpop.f32.mrf.mxu0
  %v1448 = vadd.f32 %v1303, %v1447
  %v1449 = vpop.f32.mrf.mxu0
  %1450 = vmatprep.mubr.f32.mxu0 %v465
  %1451 = vmatmul.mubr.f32.gmra.mxu0 %v57
  %v1452 = vpop.f32.mrf.mxu0
  %v1453 = vadd.f32 %v1308, %v1452
  %v1454 = vpop.f32.mrf.mxu0
  %1455 = vmatprep.mubr.f32.mxu0 %v468
  %1456 = vmatmul.mubr.f32.gmra.mxu0 %v71
  %v1457 = vpop.f32.mrf.mxu0
  %v1458 = vadd.f32 %v1313, %v1457
  %v1459 = vpop.f32.mrf.mxu0
  %1460 = vmatprep.mubr.f32.mxu0 %v471
  %1461 = vmatmul.mubr.f32.gmra.mxu0 %v85
  %v1462 = vpop.f32.mrf.mxu0
  %v1463 = vadd.f32 %v1318, %v1462
  %v1464 = vpop.f32.mrf.mxu0
  %1465 = vmatprep.mubr.f32.mxu0 %v474
  %1466 = vmatmul.mubr.f32.gmra.mxu0 %v99
  %v1467 = vpop.f32.mrf.mxu0
  %v1468 = vadd.f32 %v1323, %v1467
  %v1469 = vpop.f32.mrf.mxu0
  %1470 = vmatprep.mubr.f32.mxu0 %v477
  %1471 = vmatmul.mubr.f32.gmra.mxu0 %v113
  %v1472 = vpop.f32.mrf.mxu0
  %v1473 = vadd.f32 %v1328, %v1472
  %v1474 = vpop.f32.mrf.mxu0
  %1475 = vmatprep.mubr.f32.mxu0 %v480
  %1476 = vmatmul.mubr.f32.gmra.mxu0 %v127
  %v1477 = vpop.f32.mrf.mxu0
  %v1478 = vadd.f32 %v1333, %v1477
  %v1479 = vpop.f32.mrf.mxu0
  %1480 = vmatprep.mubr.f32.mxu0 %v483
  %1481 = vmatmul.mubr.f32.gmra.mxu0 %v141
  %v1482 = vpop.f32.mrf.mxu0
  %v1483 = vadd.f32 %v1338, %v1482
  %v1484 = vpop.f32.mrf.mxu0
  %1485 = vmatprep.mubr.f32.mxu0 %v486
  %1486 = vmatmul.mubr.f32.gmra.mxu0 %v155
  %v1487 = vpop.f32.mrf.mxu0
  %v1488 = vadd.f32 %v1343, %v1487
  %v1489 = vpop.f32.mrf.mxu0
  %1490 = vmatprep.mubr.f32.mxu0 %v489
  %1491 = vmatmul.mubr.f32.gmra.mxu0 %v169
  %v1492 = vpop.f32.mrf.mxu0
  %v1493 = vadd.f32 %v1348, %v1492
  %v1494 = vpop.f32.mrf.mxu0
  %1495 = vmatprep.mubr.f32.mxu0 %v492
  %1496 = vmatmul.mubr.f32.gmra.mxu0 %v183
  %v1497 = vpop.f32.mrf.mxu0
  %v1498 = vadd.f32 %v1353, %v1497
  %v1499 = vpop.f32.mrf.mxu0
  %1500 = vmatprep.mubr.f32.mxu0 %v495
  %1501 = vmatmul.mubr.f32.gmra.mxu0 %v197
  %v1502 = vpop.f32.mrf.mxu0
  %v1503 = vadd.f32 %v1358, %v1502
  %v1504 = vpop.f32.mrf.mxu0
  %1505 = vmatprep.mubr.f32.mxu0 %v498
  %1506 = vmatmul.mubr.f32.gmra.mxu0 %v211
  %v1507 = vpop.f32.mrf.mxu0
  %v1508 = vadd.f32 %v1363, %v1507
  %v1509 = vpop.f32.mrf.mxu0
  %1510 = vmatprep.mubr.f32.mxu0 %v501
  %1511 = vmatmul.mubr.f32.gmra.mxu0 %v225
  %v1512 = vpop.f32.mrf.mxu0
  %v1513 = vadd.f32 %v1368, %v1512
  %v1514 = vpop.f32.mrf.mxu0
  %1515 = vmatprep.mubr.f32.mxu0 %v504
  %1516 = vmatmul.mubr.f32.gmra.mxu0 %v239
  %v1517 = vpop.f32.mrf.mxu0
  %v1518 = vadd.f32 %v1373, %v1517
  %v1519 = vpop.f32.mrf.mxu0
  %1520 = vdwg.mxu0
  %v1521 = vld [vmem:[%s2] sm:$0x1]
  %v1523 = vlaneseq
  %v1524 = vshrl.u32 %v1523, 7
  %v1525 = vsub.s32 0, %v1524
  %v1526 = vrot.slane %v1521, %v1525
  %v1528 = vmul.f32 %v1443, %v1526
  %v1529 = vmul.f32 %v1448, %v1526
  %v1530 = vmul.f32 %v1453, %v1526
  %v1531 = vmul.f32 %v1458, %v1526
  %v1532 = vmul.f32 %v1463, %v1526
  %v1533 = vmul.f32 %v1468, %v1526
  %v1534 = vmul.f32 %v1473, %v1526
  %v1535 = vmul.f32 %v1478, %v1526
  %v1536 = vmul.f32 %v1483, %v1526
  %v1537 = vmul.f32 %v1488, %v1526
  %v1538 = vmul.f32 %v1493, %v1526
  %v1539 = vmul.f32 %v1498, %v1526
  %v1540 = vmul.f32 %v1503, %v1526
  %v1541 = vmul.f32 %v1508, %v1526
  %v1542 = vmul.f32 %v1513, %v1526
  %v1543 = vmul.f32 %v1518, %v1526
  %v1544 = vld [vmem:[%s3] sm:$0x1]
  %v1546 = vlaneseq
  %v1547 = vshrl.u32 %v1546, 7
  %v1548 = vsub.s32 0, %v1547
  %v1549 = vrot.slane %v1544, %v1548
  %v1551 = vadd.f32 %v1528, %v1549
  %v1552 = vadd.f32 %v1529, %v1549
  %v1553 = vadd.f32 %v1530, %v1549
  %v1554 = vadd.f32 %v1531, %v1549
  %v1555 = vadd.f32 %v1532, %v1549
  %v1556 = vadd.f32 %v1533, %v1549
  %v1557 = vadd.f32 %v1534, %v1549
  %v1558 = vadd.f32 %v1535, %v1549
  %v1559 = vadd.f32 %v1536, %v1549
  %v1560 = vadd.f32 %v1537, %v1549
  %v1561 = vadd.f32 %v1538, %v1549
  %v1562 = vadd.f32 %v1539, %v1549
  %v1563 = vadd.f32 %v1540, %v1549
  %v1564 = vadd.f32 %v1541, %v1549
  %v1565 = vadd.f32 %v1542, %v1549
  %v1566 = vadd.f32 %v1543, %v1549
  %v1567 = vmax.f32 %v1551, 0.0
  %v1568 = vmax.f32 %v1552, 0.0
  %v1569 = vmax.f32 %v1553, 0.0
  %v1570 = vmax.f32 %v1554, 0.0
  %v1571 = vmax.f32 %v1555, 0.0
  %v1572 = vmax.f32 %v1556, 0.0
  %v1573 = vmax.f32 %v1557, 0.0
  %v1574 = vmax.f32 %v1558, 0.0
  %v1575 = vmax.f32 %v1559, 0.0
  %v1576 = vmax.f32 %v1560, 0.0
  %v1577 = vmax.f32 %v1561, 0.0
  %v1578 = vmax.f32 %v1562, 0.0
  %v1579 = vmax.f32 %v1563, 0.0
  %v1580 = vmax.f32 %v1564, 0.0
  %v1581 = vmax.f32 %v1565, 0.0
  %v1582 = vmax.f32 %v1566, 0.0
  %1583 = vst.msk [vmem:[%s4] sm:$0xff] %vm457, %v1567
  %1584 = vst.msk [vmem:[%s4 + $0x8] sm:$0xff] %vm457, %v1568
  %1585 = vst.msk [vmem:[%s4 + $0x10] sm:$0xff] %vm457, %v1569
  %1586 = vst.msk [vmem:[%s4 + $0x18] sm:$0xff] %vm457, %v1570
  %1587 = vst.msk [vmem:[%s4 + $0x20] sm:$0xff] %vm457, %v1571
  %1588 = vst.msk [vmem:[%s4 + $0x28] sm:$0xff] %vm457, %v1572
  %1589 = vst.msk [vmem:[%s4 + $0x30] sm:$0xff] %vm457, %v1573
  %1590 = vst.msk [vmem:[%s4 + $0x38] sm:$0xff] %vm457, %v1574
  %1591 = vst.msk [vmem:[%s4 + $0x40] sm:$0xff] %vm457, %v1575
  %1592 = vst.msk [vmem:[%s4 + $0x48] sm:$0xff] %vm457, %v1576
  %1593 = vst.msk [vmem:[%s4 + $0x50] sm:$0xff] %vm457, %v1577
  %1594 = vst.msk [vmem:[%s4 + $0x58] sm:$0xff] %vm457, %v1578
  %1595 = vst.msk [vmem:[%s4 + $0x60] sm:$0xff] %vm457, %v1579
  %1596 = vst.msk [vmem:[%s4 + $0x68] sm:$0xff] %vm457, %v1580
  %1597 = vst.msk [vmem:[%s4 + $0x70] sm:$0xff] %vm457, %v1581
  %1598 = vst.msk [vmem:[%s4 + $0x78] sm:$0xff] %vm457, %v1582
  // Predicated region
  $region18: #{frbnet_forward.23} parent=0 // pred_check
    _
  $region19: #{frbnet_forward.23} parent=0 // pred_check_branch
    %1600 = sbr.rel (0) target = $region21
  $region20: #{frbnet_forward.23} parent=0 // pred_region
    _
  $region21: #{frbnet_forward.23} parent=0 // pred_fallthru
    _
  // Predicated region
  $region22: #{frbnet_forward.23} parent=0 // pred_check
    _
  $region23: #{frbnet_forward.23} parent=0 // pred_check_branch
    %1602 = sbr.rel (0) target = $region25
  $region24: #{frbnet_forward.23} parent=0 // pred_region
    _
  $region25: #{frbnet_forward.23} parent=0 // pred_fallthru
    _

// kernel: frbnet_forward.25
$region0: #{frbnet_forward.25}
  #allocation0 [shape = 'u32[]', space=smem, size = 0x4, offset = 0x4, fixed_abs, tag = 'smem constant byte address 0x4 - core index']
  #allocation1 [shape = 'u32[144,128]{1,0:T(1,128)}', space=vmem, size = 0x12000, scoped, tag = 'internal scratch']
  %s0 = inlined_call_operand.vmem [shape: f32[128,64], index: 0, kind: input, shape index: {}]
  %s1 = inlined_call_operand.vmem [shape: f32[64,64], index: 1, kind: input, shape index: {}]
  %s2 = inlined_call_operand.vmem [shape: f32[1,64], index: 2, kind: input, shape index: {}]
  %s3 = inlined_call_operand.vmem [shape: f32[1,64], index: 3, kind: input, shape index: {}]
  %s4 = inlined_call_operand.vmem [shape: f32[128,64], index: 4, kind: output, shape index: {}]
  %s5 = sld [smem:[#allocation0]]
  $region26: #{frbnet_forward.25} parent=0
    _
  %s7 = ssub.s32 1, %s5
  %s8 = scalar_select 0, %s7, %s5
  // Predicated region
  $region2: #{frbnet_forward.25} parent=0 // pred_check
    _
  $region3: #{frbnet_forward.25} parent=0 // pred_check_branch
    %10 = sbr.rel (0) target = $region5
  $region4: #{frbnet_forward.25} parent=0 // pred_region
    _
  $region5: #{frbnet_forward.25} parent=0 // pred_fallthru
    _
  // Predicated region
  $region6: #{frbnet_forward.25} parent=0 // pred_check
    _
  $region7: #{frbnet_forward.25} parent=0 // pred_check_branch
    %12 = sbr.rel (0) target = $region9
  $region8: #{frbnet_forward.25} parent=0 // pred_region
    _
  $region9: #{frbnet_forward.25} parent=0 // pred_fallthru
    _
  // Predicated region
  $region10: #{frbnet_forward.25} parent=0 // pred_check
    _
  $region11: #{frbnet_forward.25} parent=0 // pred_check_branch
    %14 = sbr.rel (0) target = $region13
  $region12: #{frbnet_forward.25} parent=0 // pred_region
    _
  $region13: #{frbnet_forward.25} parent=0 // pred_fallthru
    _
  // Predicated region
  $region14: #{frbnet_forward.25} parent=0 // pred_check
    _
  $region15: #{frbnet_forward.25} parent=0 // pred_check_branch
    %16 = sbr.rel (0) target = $region17
  $region16: #{frbnet_forward.25} parent=0 // pred_region
    _
  $region17: #{frbnet_forward.25} parent=0 // pred_fallthru
    _
  %v17 = vld [vmem:[%s0] sm:$0xff]
  %v18 = vld [vmem:[%s0 + $0x8] sm:$0xff]
  %v19 = vld [vmem:[%s0 + $0x10] sm:$0xff]
  %v20 = vld [vmem:[%s0 + $0x18] sm:$0xff]
  %v21 = vld [vmem:[%s0 + $0x20] sm:$0xff]
  %v22 = vld [vmem:[%s0 + $0x28] sm:$0xff]
  %v23 = vld [vmem:[%s0 + $0x30] sm:$0xff]
  %v24 = vld [vmem:[%s0 + $0x38] sm:$0xff]
  %v25 = vld [vmem:[%s0 + $0x40] sm:$0xff]
  %v26 = vld [vmem:[%s0 + $0x48] sm:$0xff]
  %v27 = vld [vmem:[%s0 + $0x50] sm:$0xff]
  %v28 = vld [vmem:[%s0 + $0x58] sm:$0xff]
  %v29 = vld [vmem:[%s0 + $0x60] sm:$0xff]
  %v30 = vld [vmem:[%s0 + $0x68] sm:$0xff]
  %v31 = vld [vmem:[%s0 + $0x70] sm:$0xff]
  %v32 = vld [vmem:[%s0 + $0x78] sm:$0xff]
  %v33 = vld [vmem:[%s1] sm:$0xff]
  %v34 = vld [vmem:[%s1 + $0x8] sm:$0xff]
  %v35 = vld [vmem:[%s1 + $0x10] sm:$0xff]
  %v36 = vld [vmem:[%s1 + $0x18] sm:$0xff]
  %v37 = vld [vmem:[%s1 + $0x20] sm:$0xff]
  %v38 = vld [vmem:[%s1 + $0x28] sm:$0xff]
  %v39 = vld [vmem:[%s1 + $0x30] sm:$0xff]
  %v40 = vld [vmem:[%s1 + $0x38] sm:$0xff]
  %vm41 = vcmask 523264
  %v43 = vsel %vm41, %v17, 0
  %v46 = vsel %vm41, %v18, 0
  %v49 = vsel %vm41, %v19, 0
  %v52 = vsel %vm41, %v20, 0
  %v55 = vsel %vm41, %v21, 0
  %v58 = vsel %vm41, %v22, 0
  %v61 = vsel %vm41, %v23, 0
  %v64 = vsel %vm41, %v24, 0
  %v67 = vsel %vm41, %v25, 0
  %v70 = vsel %vm41, %v26, 0
  %v73 = vsel %vm41, %v27, 0
  %v76 = vsel %vm41, %v28, 0
  %v79 = vsel %vm41, %v29, 0
  %v82 = vsel %vm41, %v30, 0
  %v85 = vsel %vm41, %v31, 0
  %v88 = vsel %vm41, %v32, 0
  %90 = vmatprep.subr.mxu0 0.0
  %91 = vmatpush1.msra.mxu0 0.0
  %92 = vmatprep.subr.mxu0 0.0
  %93 = vmatpush1.msra.mxu0 0.0
  %94 = vmatprep.subr.mxu0 0.0
  %95 = vmatpush1.msra.mxu0 0.0
  %96 = vmatprep.subr.mxu0 0.0
  %97 = vmatpush1.msra.mxu0 0.0
  %98 = vmatprep.subr.mxu0 0.0
  %99 = vmatpush1.msra.mxu0 0.0
  %100 = vmatprep.subr.mxu0 0.0
  %101 = vmatpush1.msra.mxu0 0.0
  %102 = vmatprep.subr.mxu0 0.0
  %103 = vmatpush1.msra.mxu0 0.0
  %104 = vmatprep.subr.mxu0 0.0
  %105 = vmatpush1.msra.mxu0 0.0
  %106 = vmatprep.subr.mxu0 0.0
  %107 = vmatpush1.msra.mxu0 %v40
  %108 = vmatprep.subr.mxu0 0.0
  %109 = vmatpush1.msra.mxu0 %v39
  %110 = vmatprep.subr.mxu0 0.0
  %111 = vmatpush1.msra.mxu0 %v38
  %112 = vmatprep.subr.mxu0 0.0
  %113 = vmatpush1.msra.mxu0 %v37
  %114 = vmatprep.subr.mxu0 0.0
  %115 = vmatpush1.msra.mxu0 %v36
  %116 = vmatprep.subr.mxu0 0.0
  %117 = vmatpush1.msra.mxu0 %v35
  %118 = vmatprep.subr.mxu0 0.0
  %119 = vmatpush1.msra.mxu0 %v34
  %120 = vmatprep.subr.mxu0 0.0
  %121 = vmatpush1.msra.mxu0 %v33
  %122 = vmatprep.subr.mxu0 0.0
  %123 = vmatpush2.msra.mxu0 0.0
  %124 = vmatprep.subr.mxu0 0.0
  %125 = vmatpush2.msra.mxu0 0.0
  %126 = vmatprep.subr.mxu0 0.0
  %127 = vmatpush2.msra.mxu0 0.0
  %128 = vmatprep.subr.mxu0 0.0
  %129 = vmatpush2.msra.mxu0 0.0
  %130 = vmatprep.subr.mxu0 0.0
  %131 = vmatpush2.msra.mxu0 0.0
  %132 = vmatprep.subr.mxu0 0.0
  %133 = vmatpush2.msra.mxu0 0.0
  %134 = vmatprep.subr.mxu0 0.0
  %135 = vmatpush2.msra.mxu0 0.0
  %136 = vmatprep.subr.mxu0 0.0
  %137 = vmatpush2.msra.mxu0 0.0
  %138 = vmatprep.subr.mxu0 0.0
  %139 = vmatpush2.msra.mxu0 0.0
  %140 = vmatprep.subr.mxu0 0.0
  %141 = vmatpush2.msra.mxu0 0.0
  %142 = vmatprep.subr.mxu0 0.0
  %143 = vmatpush2.msra.mxu0 0.0
  %144 = vmatprep.subr.mxu0 0.0
  %145 = vmatpush2.msra.mxu0 0.0
  %146 = vmatprep.subr.mxu0 0.0
  %147 = vmatpush2.msra.mxu0 0.0
  %148 = vmatprep.subr.mxu0 0.0
  %149 = vmatpush2.msra.mxu0 0.0
  %150 = vmatprep.subr.mxu0 0.0
  %151 = vmatpush2.msra.mxu0 0.0
  %152 = vmatprep.subr.mxu0 0.0
  %153 = vmatpush2.msra.mxu0 0.0
  %154 = vmatprep.mubr.f32.mxu0 0.0
  %155 = vmatmul.mubr.f32.gmra.mxu0 %v43
  %v156 = vpop.f32.mrf.mxu0
  %v157 = vadd.f32 0.0, %v156
  %v158 = vpop.f32.mrf.mxu0
  %159 = vmatprep.mubr.f32.mxu0 0.0
  %160 = vmatmul.mubr.f32.gmra.mxu0 %v46
  %v161 = vpop.f32.mrf.mxu0
  %v162 = vadd.f32 0.0, %v161
  %v163 = vpop.f32.mrf.mxu0
  %164 = vmatprep.mubr.f32.mxu0 0.0
  %165 = vmatmul.mubr.f32.gmra.mxu0 %v49
  %v166 = vpop.f32.mrf.mxu0
  %v167 = vadd.f32 0.0, %v166
  %v168 = vpop.f32.mrf.mxu0
  %169 = vmatprep.mubr.f32.mxu0 0.0
  %170 = vmatmul.mubr.f32.gmra.mxu0 %v52
  %v171 = vpop.f32.mrf.mxu0
  %v172 = vadd.f32 0.0, %v171
  %v173 = vpop.f32.mrf.mxu0
  %174 = vmatprep.mubr.f32.mxu0 0.0
  %175 = vmatmul.mubr.f32.gmra.mxu0 %v55
  %v176 = vpop.f32.mrf.mxu0
  %v177 = vadd.f32 0.0, %v176
  %v178 = vpop.f32.mrf.mxu0
  %179 = vmatprep.mubr.f32.mxu0 0.0
  %180 = vmatmul.mubr.f32.gmra.mxu0 %v58
  %v181 = vpop.f32.mrf.mxu0
  %v182 = vadd.f32 0.0, %v181
  %v183 = vpop.f32.mrf.mxu0
  %184 = vmatprep.mubr.f32.mxu0 0.0
  %185 = vmatmul.mubr.f32.gmra.mxu0 %v61
  %v186 = vpop.f32.mrf.mxu0
  %v187 = vadd.f32 0.0, %v186
  %v188 = vpop.f32.mrf.mxu0
  %189 = vmatprep.mubr.f32.mxu0 0.0
  %190 = vmatmul.mubr.f32.gmra.mxu0 %v64
  %v191 = vpop.f32.mrf.mxu0
  %v192 = vadd.f32 0.0, %v191
  %v193 = vpop.f32.mrf.mxu0
  %194 = vmatprep.mubr.f32.mxu0 0.0
  %195 = vmatmul.mubr.f32.gmra.mxu0 %v67
  %v196 = vpop.f32.mrf.mxu0
  %v197 = vadd.f32 0.0, %v196
  %v198 = vpop.f32.mrf.mxu0
  %199 = vmatprep.mubr.f32.mxu0 0.0
  %200 = vmatmul.mubr.f32.gmra.mxu0 %v70
  %v201 = vpop.f32.mrf.mxu0
  %v202 = vadd.f32 0.0, %v201
  %v203 = vpop.f32.mrf.mxu0
  %204 = vmatprep.mubr.f32.mxu0 0.0
  %205 = vmatmul.mubr.f32.gmra.mxu0 %v73
  %v206 = vpop.f32.mrf.mxu0
  %v207 = vadd.f32 0.0, %v206
  %v208 = vpop.f32.mrf.mxu0
  %209 = vmatprep.mubr.f32.mxu0 0.0
  %210 = vmatmul.mubr.f32.gmra.mxu0 %v76
  %v211 = vpop.f32.mrf.mxu0
  %v212 = vadd.f32 0.0, %v211
  %v213 = vpop.f32.mrf.mxu0
  %214 = vmatprep.mubr.f32.mxu0 0.0
  %215 = vmatmul.mubr.f32.gmra.mxu0 %v79
  %v216 = vpop.f32.mrf.mxu0
  %v217 = vadd.f32 0.0, %v216
  %v218 = vpop.f32.mrf.mxu0
  %219 = vmatprep.mubr.f32.mxu0 0.0
  %220 = vmatmul.mubr.f32.gmra.mxu0 %v82
  %v221 = vpop.f32.mrf.mxu0
  %v222 = vadd.f32 0.0, %v221
  %v223 = vpop.f32.mrf.mxu0
  %224 = vmatprep.mubr.f32.mxu0 0.0
  %225 = vmatmul.mubr.f32.gmra.mxu0 %v85
  %v226 = vpop.f32.mrf.mxu0
  %v227 = vadd.f32 0.0, %v226
  %v228 = vpop.f32.mrf.mxu0
  %229 = vmatprep.mubr.f32.mxu0 0.0
  %230 = vmatmul.mubr.f32.gmra.mxu0 %v88
  %v231 = vpop.f32.mrf.mxu0
  %v232 = vadd.f32 0.0, %v231
  %v233 = vpop.f32.mrf.mxu0
  %234 = vdwg.mxu0
  %v235 = vld [vmem:[%s2] sm:$0x1]
  %v237 = vlaneseq
  %v238 = vshrl.u32 %v237, 7
  %v239 = vsub.s32 0, %v238
  %v240 = vrot.slane %v235, %v239
  %v242 = vmul.f32 %v157, %v240
  %v243 = vmul.f32 %v162, %v240
  %v244 = vmul.f32 %v167, %v240
  %v245 = vmul.f32 %v172, %v240
  %v246 = vmul.f32 %v177, %v240
  %v247 = vmul.f32 %v182, %v240
  %v248 = vmul.f32 %v187, %v240
  %v249 = vmul.f32 %v192, %v240
  %v250 = vmul.f32 %v197, %v240
  %v251 = vmul.f32 %v202, %v240
  %v252 = vmul.f32 %v207, %v240
  %v253 = vmul.f32 %v212, %v240
  %v254 = vmul.f32 %v217, %v240
  %v255 = vmul.f32 %v222, %v240
  %v256 = vmul.f32 %v227, %v240
  %v257 = vmul.f32 %v232, %v240
  %v258 = vld [vmem:[%s3] sm:$0x1]
  %v260 = vlaneseq
  %v261 = vshrl.u32 %v260, 7
  %v262 = vsub.s32 0, %v261
  %v263 = vrot.slane %v258, %v262
  %v265 = vadd.f32 %v242, %v263
  %v266 = vadd.f32 %v243, %v263
  %v267 = vadd.f32 %v244, %v263
  %v268 = vadd.f32 %v245, %v263
  %v269 = vadd.f32 %v246, %v263
  %v270 = vadd.f32 %v247, %v263
  %v271 = vadd.f32 %v248, %v263
  %v272 = vadd.f32 %v249, %v263
  %v273 = vadd.f32 %v250, %v263
  %v274 = vadd.f32 %v251, %v263
  %v275 = vadd.f32 %v252, %v263
  %v276 = vadd.f32 %v253, %v263
  %v277 = vadd.f32 %v254, %v263
  %v278 = vadd.f32 %v255, %v263
  %v279 = vadd.f32 %v256, %v263
  %v280 = vadd.f32 %v257, %v263
  %v281 = vmax.f32 %v265, 0.0
  %v282 = vmax.f32 %v266, 0.0
  %v283 = vmax.f32 %v267, 0.0
  %v284 = vmax.f32 %v268, 0.0
  %v285 = vmax.f32 %v269, 0.0
  %v286 = vmax.f32 %v270, 0.0
  %v287 = vmax.f32 %v271, 0.0
  %v288 = vmax.f32 %v272, 0.0
  %v289 = vmax.f32 %v273, 0.0
  %v290 = vmax.f32 %v274, 0.0
  %v291 = vmax.f32 %v275, 0.0
  %v292 = vmax.f32 %v276, 0.0
  %v293 = vmax.f32 %v277, 0.0
  %v294 = vmax.f32 %v278, 0.0
  %v295 = vmax.f32 %v279, 0.0
  %v296 = vmax.f32 %v280, 0.0
  %297 = vst.msk [vmem:[%s4] sm:$0xff] %vm41, %v281
  %298 = vst.msk [vmem:[%s4 + $0x8] sm:$0xff] %vm41, %v282
  %299 = vst.msk [vmem:[%s4 + $0x10] sm:$0xff] %vm41, %v283
  %300 = vst.msk [vmem:[%s4 + $0x18] sm:$0xff] %vm41, %v284
  %301 = vst.msk [vmem:[%s4 + $0x20] sm:$0xff] %vm41, %v285
  %302 = vst.msk [vmem:[%s4 + $0x28] sm:$0xff] %vm41, %v286
  %303 = vst.msk [vmem:[%s4 + $0x30] sm:$0xff] %vm41, %v287
  %304 = vst.msk [vmem:[%s4 + $0x38] sm:$0xff] %vm41, %v288
  %305 = vst.msk [vmem:[%s4 + $0x40] sm:$0xff] %vm41, %v289
  %306 = vst.msk [vmem:[%s4 + $0x48] sm:$0xff] %vm41, %v290
  %307 = vst.msk [vmem:[%s4 + $0x50] sm:$0xff] %vm41, %v291
  %308 = vst.msk [vmem:[%s4 + $0x58] sm:$0xff] %vm41, %v292
  %309 = vst.msk [vmem:[%s4 + $0x60] sm:$0xff] %vm41, %v293
  %310 = vst.msk [vmem:[%s4 + $0x68] sm:$0xff] %vm41, %v294
  %311 = vst.msk [vmem:[%s4 + $0x70] sm:$0xff] %vm41, %v295
  %312 = vst.msk [vmem:[%s4 + $0x78] sm:$0xff] %vm41, %v296
  // Predicated region
  $region18: #{frbnet_forward.25} parent=0 // pred_check
    _
  $region19: #{frbnet_forward.25} parent=0 // pred_check_branch
    %314 = sbr.rel (0) target = $region21
  $region20: #{frbnet_forward.25} parent=0 // pred_region
    _
  $region21: #{frbnet_forward.25} parent=0 // pred_fallthru
    _
  // Predicated region
  $region22: #{frbnet_forward.25} parent=0 // pred_check
    _
  $region23: #{frbnet_forward.25} parent=0 // pred_check_branch
    %316 = sbr.rel (0) target = $region25
  $region24: #{frbnet_forward.25} parent=0 // pred_region
    _
  $region25: #{frbnet_forward.25} parent=0 // pred_fallthru
    _

// kernel: frbnet_forward.27
$region0: #{frbnet_forward.27}
  #allocation0 [shape = 'u32[]', space=smem, size = 0x4, offset = 0x4, fixed_abs, tag = 'smem constant byte address 0x4 - core index']
  #allocation1 [shape = 'u32[144,128]{1,0:T(1,128)}', space=vmem, size = 0x12000, scoped, tag = 'internal scratch']
  %s0 = inlined_call_operand.vmem [shape: f32[32,64], index: 0, kind: input, shape index: {}]
  %s1 = inlined_call_operand.vmem [shape: f32[64,128], index: 1, kind: input, shape index: {}]
  %s2 = inlined_call_operand.vmem [shape: f32[1,128], index: 2, kind: input, shape index: {}]
  %s3 = inlined_call_operand.vmem [shape: f32[1,128], index: 3, kind: input, shape index: {}]
  %s4 = inlined_call_operand.vmem [shape: f32[32,128], index: 4, kind: input, shape index: {}]
  %s5 = inlined_call_operand.vmem [shape: f32[32,128], index: 5, kind: output, shape index: {}]
  %s6 = sld [smem:[#allocation0]]
  $region30: #{frbnet_forward.27} parent=0
    _
  %s8 = ssub.s32 1, %s6
  %s9 = scalar_select 0, %s8, %s6
  // Predicated region
  $region2: #{frbnet_forward.27} parent=0 // pred_check
    _
  $region3: #{frbnet_forward.27} parent=0 // pred_check_branch
    %11 = sbr.rel (0) target = $region5
  $region4: #{frbnet_forward.27} parent=0 // pred_region
    _
  $region5: #{frbnet_forward.27} parent=0 // pred_fallthru
    _
  // Predicated region
  $region6: #{frbnet_forward.27} parent=0 // pred_check
    _
  $region7: #{frbnet_forward.27} parent=0 // pred_check_branch
    %13 = sbr.rel (0) target = $region9
  $region8: #{frbnet_forward.27} parent=0 // pred_region
    _
  $region9: #{frbnet_forward.27} parent=0 // pred_fallthru
    _
  // Predicated region
  $region10: #{frbnet_forward.27} parent=0 // pred_check
    _
  $region11: #{frbnet_forward.27} parent=0 // pred_check_branch
    %15 = sbr.rel (0) target = $region13
  $region12: #{frbnet_forward.27} parent=0 // pred_region
    _
  $region13: #{frbnet_forward.27} parent=0 // pred_fallthru
    _
  // Predicated region
  $region14: #{frbnet_forward.27} parent=0 // pred_check
    _
  $region15: #{frbnet_forward.27} parent=0 // pred_check_branch
    %17 = sbr.rel (0) target = $region17
  $region16: #{frbnet_forward.27} parent=0 // pred_region
    _
  $region17: #{frbnet_forward.27} parent=0 // pred_fallthru
    _
  // Predicated region
  $region18: #{frbnet_forward.27} parent=0 // pred_check
    _
  $region19: #{frbnet_forward.27} parent=0 // pred_check_branch
    %19 = sbr.rel (0) target = $region21
  $region20: #{frbnet_forward.27} parent=0 // pred_region
    _
  $region21: #{frbnet_forward.27} parent=0 // pred_fallthru
    _
  %v20 = vld [vmem:[%s0] sm:$0xff]
  %v21 = vld [vmem:[%s0 + $0x8] sm:$0xff]
  %v22 = vld [vmem:[%s0 + $0x10] sm:$0xff]
  %v23 = vld [vmem:[%s0 + $0x18] sm:$0xff]
  %v24 = vld [vmem:[%s1] sm:$0xff]
  %v25 = vld [vmem:[%s1 + $0x8] sm:$0xff]
  %v26 = vld [vmem:[%s1 + $0x10] sm:$0xff]
  %v27 = vld [vmem:[%s1 + $0x18] sm:$0xff]
  %v28 = vld [vmem:[%s1 + $0x20] sm:$0xff]
  %v29 = vld [vmem:[%s1 + $0x28] sm:$0xff]
  %v30 = vld [vmem:[%s1 + $0x30] sm:$0xff]
  %v31 = vld [vmem:[%s1 + $0x38] sm:$0xff]
  %vm32 = vcmask 523264
  %v34 = vsel %vm32, %v20, 0
  %v37 = vsel %vm32, %v21, 0
  %v40 = vsel %vm32, %v22, 0
  %v43 = vsel %vm32, %v23, 0
  %45 = vmatprep.subr.mxu0 0.0
  %46 = vmatpush1.msra.mxu0 0.0
  %47 = vmatprep.subr.mxu0 0.0
  %48 = vmatpush1.msra.mxu0 0.0
  %49 = vmatprep.subr.mxu0 0.0
  %50 = vmatpush1.msra.mxu0 0.0
  %51 = vmatprep.subr.mxu0 0.0
  %52 = vmatpush1.msra.mxu0 0.0
  %53 = vmatprep.subr.mxu0 0.0
  %54 = vmatpush1.msra.mxu0 0.0
  %55 = vmatprep.subr.mxu0 0.0
  %56 = vmatpush1.msra.mxu0 0.0
  %57 = vmatprep.subr.mxu0 0.0
  %58 = vmatpush1.msra.mxu0 0.0
  %59 = vmatprep.subr.mxu0 0.0
  %60 = vmatpush1.msra.mxu0 0.0
  %61 = vmatprep.subr.mxu0 0.0
  %62 = vmatpush1.msra.mxu0 %v31
  %63 = vmatprep.subr.mxu0 0.0
  %64 = vmatpush1.msra.mxu0 %v30
  %65 = vmatprep.subr.mxu0 0.0
  %66 = vmatpush1.msra.mxu0 %v29
  %67 = vmatprep.subr.mxu0 0.0
  %68 = vmatpush1.msra.mxu0 %v28
  %69 = vmatprep.subr.mxu0 0.0
  %70 = vmatpush1.msra.mxu0 %v27
  %71 = vmatprep.subr.mxu0 0.0
  %72 = vmatpush1.msra.mxu0 %v26
  %73 = vmatprep.subr.mxu0 0.0
  %74 = vmatpush1.msra.mxu0 %v25
  %75 = vmatprep.subr.mxu0 0.0
  %76 = vmatpush1.msra.mxu0 %v24
  %77 = vmatprep.subr.mxu0 0.0
  %78 = vmatpush2.msra.mxu0 0.0
  %79 = vmatprep.subr.mxu0 0.0
  %80 = vmatpush2.msra.mxu0 0.0
  %81 = vmatprep.subr.mxu0 0.0
  %82 = vmatpush2.msra.mxu0 0.0
  %83 = vmatprep.subr.mxu0 0.0
  %84 = vmatpush2.msra.mxu0 0.0
  %85 = vmatprep.subr.mxu0 0.0
  %86 = vmatpush2.msra.mxu0 0.0
  %87 = vmatprep.subr.mxu0 0.0
  %88 = vmatpush2.msra.mxu0 0.0
  %89 = vmatprep.subr.mxu0 0.0
  %90 = vmatpush2.msra.mxu0 0.0
  %91 = vmatprep.subr.mxu0 0.0
  %92 = vmatpush2.msra.mxu0 0.0
  %93 = vmatprep.subr.mxu0 0.0
  %94 = vmatpush2.msra.mxu0 0.0
  %95 = vmatprep.subr.mxu0 0.0
  %96 = vmatpush2.msra.mxu0 0.0
  %97 = vmatprep.subr.mxu0 0.0
  %98 = vmatpush2.msra.mxu0 0.0
  %99 = vmatprep.subr.mxu0 0.0
  %100 = vmatpush2.msra.mxu0 0.0
  %101 = vmatprep.subr.mxu0 0.0
  %102 = vmatpush2.msra.mxu0 0.0
  %103 = vmatprep.subr.mxu0 0.0
  %104 = vmatpush2.msra.mxu0 0.0
  %105 = vmatprep.subr.mxu0 0.0
  %106 = vmatpush2.msra.mxu0 0.0
  %107 = vmatprep.subr.mxu0 0.0
  %108 = vmatpush2.msra.mxu0 0.0
  %109 = vmatprep.mubr.f32.mxu0 0.0
  %110 = vmatmul.mubr.f32.gmra.mxu0 %v34
  %v111 = vpop.f32.mrf.mxu0
  %v112 = vadd.f32 0.0, %v111
  %v113 = vpop.f32.mrf.mxu0
  %114 = vmatprep.mubr.f32.mxu0 0.0
  %115 = vmatmul.mubr.f32.gmra.mxu0 %v37
  %v116 = vpop.f32.mrf.mxu0
  %v117 = vadd.f32 0.0, %v116
  %v118 = vpop.f32.mrf.mxu0
  %119 = vmatprep.mubr.f32.mxu0 0.0
  %120 = vmatmul.mubr.f32.gmra.mxu0 %v40
  %v121 = vpop.f32.mrf.mxu0
  %v122 = vadd.f32 0.0, %v121
  %v123 = vpop.f32.mrf.mxu0
  %124 = vmatprep.mubr.f32.mxu0 0.0
  %125 = vmatmul.mubr.f32.gmra.mxu0 %v43
  %v126 = vpop.f32.mrf.mxu0
  %v127 = vadd.f32 0.0, %v126
  %v128 = vpop.f32.mrf.mxu0
  %129 = vdwg.mxu0
  %v130 = vld [vmem:[%s2] sm:$0x1]
  %v132 = vlaneseq
  %v133 = vshrl.u32 %v132, 7
  %v134 = vsub.s32 0, %v133
  %v135 = vrot.slane %v130, %v134
  %v137 = vmul.f32 %v112, %v135
  %v138 = vmul.f32 %v117, %v135
  %v139 = vmul.f32 %v122, %v135
  %v140 = vmul.f32 %v127, %v135
  %v141 = vld [vmem:[%s3] sm:$0x1]
  %v143 = vlaneseq
  %v144 = vshrl.u32 %v143, 7
  %v145 = vsub.s32 0, %v144
  %v146 = vrot.slane %v141, %v145
  %v148 = vadd.f32 %v137, %v146
  %v149 = vadd.f32 %v138, %v146
  %v150 = vadd.f32 %v139, %v146
  %v151 = vadd.f32 %v140, %v146
  %v152 = vld [vmem:[%s4] sm:$0xff]
  %v153 = vld [vmem:[%s4 + $0x8] sm:$0xff]
  %v154 = vld [vmem:[%s4 + $0x10] sm:$0xff]
  %v155 = vld [vmem:[%s4 + $0x18] sm:$0xff]
  %v156 = vadd.f32 %v148, %v152
  %v157 = vadd.f32 %v149, %v153
  %v158 = vadd.f32 %v150, %v154
  %v159 = vadd.f32 %v151, %v155
  %v160 = vmax.f32 %v156, 0.0
  %v161 = vmax.f32 %v157, 0.0
  %v162 = vmax.f32 %v158, 0.0
  %v163 = vmax.f32 %v159, 0.0
  %164 = vst [vmem:[%s5] sm:$0xff] %v160
  %165 = vst [vmem:[%s5 + $0x8] sm:$0xff] %v161
  %166 = vst [vmem:[%s5 + $0x10] sm:$0xff] %v162
  %167 = vst [vmem:[%s5 + $0x18] sm:$0xff] %v163
  // Predicated region
  $region22: #{frbnet_forward.27} parent=0 // pred_check
    _
  $region23: #{frbnet_forward.27} parent=0 // pred_check_branch
    %169 = sbr.rel (0) target = $region25
  $region24: #{frbnet_forward.27} parent=0 // pred_region
    _
  $region25: #{frbnet_forward.27} parent=0 // pred_fallthru
    _
  // Predicated region
  $region26: #{frbnet_forward.27} parent=0 // pred_check
    _
  $region27: #{frbnet_forward.27} parent=0 // pred_check_branch
    %171 = sbr.rel (0) target = $region29
  $region28: #{frbnet_forward.27} parent=0 // pred_region
    _
  $region29: #{frbnet_forward.27} parent=0 // pred_fallthru
    _

// kernel: frbnet_forward.26
$region0: #{frbnet_forward.26}
  #allocation0 [shape = 'u32[]', space=smem, size = 0x4, offset = 0x4, fixed_abs, tag = 'smem constant byte address 0x4 - core index']
  #allocation1 [shape = 'u32[144,128]{1,0:T(1,128)}', space=vmem, size = 0x12000, scoped, tag = 'internal scratch']
  %s0 = inlined_call_operand.vmem [shape: f32[32,576], index: 0, kind: input, shape index: {}]
  %s1 = inlined_call_operand.vmem [shape: f32[576,64], index: 1, kind: input, shape index: {}]
  %s2 = inlined_call_operand.vmem [shape: f32[1,64], index: 2, kind: input, shape index: {}]
  %s3 = inlined_call_operand.vmem [shape: f32[1,64], index: 3, kind: input, shape index: {}]
  %s4 = inlined_call_operand.vmem [shape: f32[32,64], index: 4, kind: output, shape index: {}]
  %s5 = sld [smem:[#allocation0]]
  $region26: #{frbnet_forward.26} parent=0
    _
  %s7 = ssub.s32 1, %s5
  %s8 = scalar_select 0, %s7, %s5
  // Predicated region
  $region2: #{frbnet_forward.26} parent=0 // pred_check
    _
  $region3: #{frbnet_forward.26} parent=0 // pred_check_branch
    %10 = sbr.rel (0) target = $region5
  $region4: #{frbnet_forward.26} parent=0 // pred_region
    _
  $region5: #{frbnet_forward.26} parent=0 // pred_fallthru
    _
  // Predicated region
  $region6: #{frbnet_forward.26} parent=0 // pred_check
    _
  $region7: #{frbnet_forward.26} parent=0 // pred_check_branch
    %12 = sbr.rel (0) target = $region9
  $region8: #{frbnet_forward.26} parent=0 // pred_region
    _
  $region9: #{frbnet_forward.26} parent=0 // pred_fallthru
    _
  // Predicated region
  $region10: #{frbnet_forward.26} parent=0 // pred_check
    _
  $region11: #{frbnet_forward.26} parent=0 // pred_check_branch
    %14 = sbr.rel (0) target = $region13
  $region12: #{frbnet_forward.26} parent=0 // pred_region
    _
  $region13: #{frbnet_forward.26} parent=0 // pred_fallthru
    _
  // Predicated region
  $region14: #{frbnet_forward.26} parent=0 // pred_check
    _
  $region15: #{frbnet_forward.26} parent=0 // pred_check_branch
    %16 = sbr.rel (0) target = $region17
  $region16: #{frbnet_forward.26} parent=0 // pred_region
    _
  $region17: #{frbnet_forward.26} parent=0 // pred_fallthru
    _
  %v17 = vld [vmem:[%s0] sm:$0xff]
  %v18 = vld [vmem:[%s0 + $0x8] sm:$0xff]
  %v19 = vld [vmem:[%s0 + $0x10] sm:$0xff]
  %v20 = vld [vmem:[%s0 + $0x18] sm:$0xff]
  %v21 = vld [vmem:[%s0 + $0x20] sm:$0xff]
  %v22 = vld [vmem:[%s0 + $0x28] sm:$0xff]
  %v23 = vld [vmem:[%s0 + $0x30] sm:$0xff]
  %v24 = vld [vmem:[%s0 + $0x38] sm:$0xff]
  %v25 = vld [vmem:[%s0 + $0x40] sm:$0xff]
  %v26 = vld [vmem:[%s0 + $0x48] sm:$0xff]
  %v27 = vld [vmem:[%s0 + $0x50] sm:$0xff]
  %v28 = vld [vmem:[%s0 + $0x58] sm:$0xff]
  %v29 = vld [vmem:[%s0 + $0x60] sm:$0xff]
  %v30 = vld [vmem:[%s0 + $0x68] sm:$0xff]
  %v31 = vld [vmem:[%s0 + $0x70] sm:$0xff]
  %v32 = vld [vmem:[%s0 + $0x78] sm:$0xff]
  %v33 = vld [vmem:[%s0 + $0x80] sm:$0xff]
  %v34 = vld [vmem:[%s0 + $0x88] sm:$0xff]
  %v35 = vld [vmem:[%s0 + $0x90] sm:$0xff]
  %v36 = vld [vmem:[%s0 + $0x98] sm:$0xff]
  %v37 = vld [vmem:[%s1] sm:$0xff]
  %v38 = vld [vmem:[%s1 + $0x8] sm:$0xff]
  %v39 = vld [vmem:[%s1 + $0x10] sm:$0xff]
  %v40 = vld [vmem:[%s1 + $0x18] sm:$0xff]
  %v41 = vld [vmem:[%s1 + $0x20] sm:$0xff]
  %v42 = vld [vmem:[%s1 + $0x28] sm:$0xff]
  %v43 = vld [vmem:[%s1 + $0x30] sm:$0xff]
  %v44 = vld [vmem:[%s1 + $0x38] sm:$0xff]
  %v45 = vld [vmem:[%s1 + $0x40] sm:$0xff]
  %v46 = vld [vmem:[%s1 + $0x48] sm:$0xff]
  %v47 = vld [vmem:[%s1 + $0x50] sm:$0xff]
  %v48 = vld [vmem:[%s1 + $0x58] sm:$0xff]
  %v49 = vld [vmem:[%s1 + $0x60] sm:$0xff]
  %v50 = vld [vmem:[%s1 + $0x68] sm:$0xff]
  %v51 = vld [vmem:[%s1 + $0x70] sm:$0xff]
  %v52 = vld [vmem:[%s1 + $0x78] sm:$0xff]
  %v53 = vld [vmem:[%s1 + $0x80] sm:$0xff]
  %v54 = vld [vmem:[%s1 + $0x88] sm:$0xff]
  %v55 = vld [vmem:[%s1 + $0x90] sm:$0xff]
  %v56 = vld [vmem:[%s1 + $0x98] sm:$0xff]
  %v57 = vld [vmem:[%s1 + $0xa0] sm:$0xff]
  %v58 = vld [vmem:[%s1 + $0xa8] sm:$0xff]
  %v59 = vld [vmem:[%s1 + $0xb0] sm:$0xff]
  %v60 = vld [vmem:[%s1 + $0xb8] sm:$0xff]
  %v61 = vld [vmem:[%s1 + $0xc0] sm:$0xff]
  %v62 = vld [vmem:[%s1 + $0xc8] sm:$0xff]
  %v63 = vld [vmem:[%s1 + $0xd0] sm:$0xff]
  %v64 = vld [vmem:[%s1 + $0xd8] sm:$0xff]
  %v65 = vld [vmem:[%s1 + $0xe0] sm:$0xff]
  %v66 = vld [vmem:[%s1 + $0xe8] sm:$0xff]
  %v67 = vld [vmem:[%s1 + $0xf0] sm:$0xff]
  %v68 = vld [vmem:[%s1 + $0xf8] sm:$0xff]
  %v69 = vld [vmem:[%s1 + $0x100] sm:$0xff]
  %v70 = vld [vmem:[%s1 + $0x108] sm:$0xff]
  %v71 = vld [vmem:[%s1 + $0x110] sm:$0xff]
  %v72 = vld [vmem:[%s1 + $0x118] sm:$0xff]
  %v73 = vld [vmem:[%s1 + $0x120] sm:$0xff]
  %v74 = vld [vmem:[%s1 + $0x128] sm:$0xff]
  %v75 = vld [vmem:[%s1 + $0x130] sm:$0xff]
  %v76 = vld [vmem:[%s1 + $0x138] sm:$0xff]
  %v77 = vld [vmem:[%s1 + $0x140] sm:$0xff]
  %v78 = vld [vmem:[%s1 + $0x148] sm:$0xff]
  %v79 = vld [vmem:[%s1 + $0x150] sm:$0xff]
  %v80 = vld [vmem:[%s1 + $0x158] sm:$0xff]
  %v81 = vld [vmem:[%s1 + $0x160] sm:$0xff]
  %v82 = vld [vmem:[%s1 + $0x168] sm:$0xff]
  %v83 = vld [vmem:[%s1 + $0x170] sm:$0xff]
  %v84 = vld [vmem:[%s1 + $0x178] sm:$0xff]
  %v85 = vld [vmem:[%s1 + $0x180] sm:$0xff]
  %v86 = vld [vmem:[%s1 + $0x188] sm:$0xff]
  %v87 = vld [vmem:[%s1 + $0x190] sm:$0xff]
  %v88 = vld [vmem:[%s1 + $0x198] sm:$0xff]
  %v89 = vld [vmem:[%s1 + $0x1a0] sm:$0xff]
  %v90 = vld [vmem:[%s1 + $0x1a8] sm:$0xff]
  %v91 = vld [vmem:[%s1 + $0x1b0] sm:$0xff]
  %v92 = vld [vmem:[%s1 + $0x1b8] sm:$0xff]
  %v93 = vld [vmem:[%s1 + $0x1c0] sm:$0xff]
  %v94 = vld [vmem:[%s1 + $0x1c8] sm:$0xff]
  %v95 = vld [vmem:[%s1 + $0x1d0] sm:$0xff]
  %v96 = vld [vmem:[%s1 + $0x1d8] sm:$0xff]
  %v97 = vld [vmem:[%s1 + $0x1e0] sm:$0xff]
  %v98 = vld [vmem:[%s1 + $0x1e8] sm:$0xff]
  %v99 = vld [vmem:[%s1 + $0x1f0] sm:$0xff]
  %v100 = vld [vmem:[%s1 + $0x1f8] sm:$0xff]
  %v101 = vld [vmem:[%s1 + $0x200] sm:$0xff]
  %v102 = vld [vmem:[%s1 + $0x208] sm:$0xff]
  %v103 = vld [vmem:[%s1 + $0x210] sm:$0xff]
  %v104 = vld [vmem:[%s1 + $0x218] sm:$0xff]
  %v105 = vld [vmem:[%s1 + $0x220] sm:$0xff]
  %v106 = vld [vmem:[%s1 + $0x228] sm:$0xff]
  %v107 = vld [vmem:[%s1 + $0x230] sm:$0xff]
  %v108 = vld [vmem:[%s1 + $0x238] sm:$0xff]
  %vm109 = vcmask 523264
  %v111 = vsel %vm109, %v21, 0
  %v114 = vsel %vm109, %v26, 0
  %v117 = vsel %vm109, %v31, 0
  %v120 = vsel %vm109, %v36, 0
  %122 = vmatprep.subr.mxu0 0.0
  %123 = vmatpush1.msra.mxu0 %v52
  %124 = vmatprep.subr.mxu0 0.0
  %125 = vmatpush1.msra.mxu0 %v51
  %126 = vmatprep.subr.mxu0 0.0
  %127 = vmatpush1.msra.mxu0 %v50
  %128 = vmatprep.subr.mxu0 0.0
  %129 = vmatpush1.msra.mxu0 %v49
  %130 = vmatprep.subr.mxu0 0.0
  %131 = vmatpush1.msra.mxu0 %v48
  %132 = vmatprep.subr.mxu0 0.0
  %133 = vmatpush1.msra.mxu0 %v47
  %134 = vmatprep.subr.mxu0 0.0
  %135 = vmatpush1.msra.mxu0 %v46
  %136 = vmatprep.subr.mxu0 0.0
  %137 = vmatpush1.msra.mxu0 %v45
  %138 = vmatprep.subr.mxu0 0.0
  %139 = vmatpush1.msra.mxu0 %v44
  %140 = vmatprep.subr.mxu0 0.0
  %141 = vmatpush1.msra.mxu0 %v43
  %142 = vmatprep.subr.mxu0 0.0
  %143 = vmatpush1.msra.mxu0 %v42
  %144 = vmatprep.subr.mxu0 0.0
  %145 = vmatpush1.msra.mxu0 %v41
  %146 = vmatprep.subr.mxu0 0.0
  %147 = vmatpush1.msra.mxu0 %v40
  %148 = vmatprep.subr.mxu0 0.0
  %149 = vmatpush1.msra.mxu0 %v39
  %150 = vmatprep.subr.mxu0 0.0
  %151 = vmatpush1.msra.mxu0 %v38
  %152 = vmatprep.subr.mxu0 0.0
  %153 = vmatpush1.msra.mxu0 %v37
  %154 = vmatprep.subr.mxu0 0.0
  %155 = vmatpush2.msra.mxu0 %v68
  %156 = vmatprep.subr.mxu0 0.0
  %157 = vmatpush2.msra.mxu0 %v67
  %158 = vmatprep.subr.mxu0 0.0
  %159 = vmatpush2.msra.mxu0 %v66
  %160 = vmatprep.subr.mxu0 0.0
  %161 = vmatpush2.msra.mxu0 %v65
  %162 = vmatprep.subr.mxu0 0.0
  %163 = vmatpush2.msra.mxu0 %v64
  %164 = vmatprep.subr.mxu0 0.0
  %165 = vmatpush2.msra.mxu0 %v63
  %166 = vmatprep.subr.mxu0 0.0
  %167 = vmatpush2.msra.mxu0 %v62
  %168 = vmatprep.subr.mxu0 0.0
  %169 = vmatpush2.msra.mxu0 %v61
  %170 = vmatprep.subr.mxu0 0.0
  %171 = vmatpush2.msra.mxu0 %v60
  %172 = vmatprep.subr.mxu0 0.0
  %173 = vmatpush2.msra.mxu0 %v59
  %174 = vmatprep.subr.mxu0 0.0
  %175 = vmatpush2.msra.mxu0 %v58
  %176 = vmatprep.subr.mxu0 0.0
  %177 = vmatpush2.msra.mxu0 %v57
  %178 = vmatprep.subr.mxu0 0.0
  %179 = vmatpush2.msra.mxu0 %v56
  %180 = vmatprep.subr.mxu0 0.0
  %181 = vmatpush2.msra.mxu0 %v55
  %182 = vmatprep.subr.mxu0 0.0
  %183 = vmatpush2.msra.mxu0 %v54
  %184 = vmatprep.subr.mxu0 0.0
  %185 = vmatpush2.msra.mxu0 %v53
  %186 = vmatprep.mubr.f32.mxu0 %v18
  %187 = vmatmul.mubr.f32.gmra.mxu0 %v17
  %v188 = vpop.f32.mrf.mxu0
  %v189 = vadd.f32 0.0, %v188
  %v190 = vpop.f32.mrf.mxu0
  %191 = vmatprep.mubr.f32.mxu0 %v23
  %192 = vmatmul.mubr.f32.gmra.mxu0 %v22
  %v193 = vpop.f32.mrf.mxu0
  %v194 = vadd.f32 0.0, %v193
  %v195 = vpop.f32.mrf.mxu0
  %196 = vmatprep.mubr.f32.mxu0 %v28
  %197 = vmatmul.mubr.f32.gmra.mxu0 %v27
  %v198 = vpop.f32.mrf.mxu0
  %v199 = vadd.f32 0.0, %v198
  %v200 = vpop.f32.mrf.mxu0
  %201 = vmatprep.mubr.f32.mxu0 %v33
  %202 = vmatmul.mubr.f32.gmra.mxu0 %v32
  %v203 = vpop.f32.mrf.mxu0
  %v204 = vadd.f32 0.0, %v203
  %v205 = vpop.f32.mrf.mxu0
  %206 = vdwg.mxu0
  %207 = vmatprep.subr.mxu0 0.0
  %208 = vmatpush1.msra.mxu0 %v84
  %209 = vmatprep.subr.mxu0 0.0
  %210 = vmatpush1.msra.mxu0 %v83
  %211 = vmatprep.subr.mxu0 0.0
  %212 = vmatpush1.msra.mxu0 %v82
  %213 = vmatprep.subr.mxu0 0.0
  %214 = vmatpush1.msra.mxu0 %v81
  %215 = vmatprep.subr.mxu0 0.0
  %216 = vmatpush1.msra.mxu0 %v80
  %217 = vmatprep.subr.mxu0 0.0
  %218 = vmatpush1.msra.mxu0 %v79
  %219 = vmatprep.subr.mxu0 0.0
  %220 = vmatpush1.msra.mxu0 %v78
  %221 = vmatprep.subr.mxu0 0.0
  %222 = vmatpush1.msra.mxu0 %v77
  %223 = vmatprep.subr.mxu0 0.0
  %224 = vmatpush1.msra.mxu0 %v76
  %225 = vmatprep.subr.mxu0 0.0
  %226 = vmatpush1.msra.mxu0 %v75
  %227 = vmatprep.subr.mxu0 0.0
  %228 = vmatpush1.msra.mxu0 %v74
  %229 = vmatprep.subr.mxu0 0.0
  %230 = vmatpush1.msra.mxu0 %v73
  %231 = vmatprep.subr.mxu0 0.0
  %232 = vmatpush1.msra.mxu0 %v72
  %233 = vmatprep.subr.mxu0 0.0
  %234 = vmatpush1.msra.mxu0 %v71
  %235 = vmatprep.subr.mxu0 0.0
  %236 = vmatpush1.msra.mxu0 %v70
  %237 = vmatprep.subr.mxu0 0.0
  %238 = vmatpush1.msra.mxu0 %v69
  %239 = vmatprep.subr.mxu0 0.0
  %240 = vmatpush2.msra.mxu0 %v100
  %241 = vmatprep.subr.mxu0 0.0
  %242 = vmatpush2.msra.mxu0 %v99
  %243 = vmatprep.subr.mxu0 0.0
  %244 = vmatpush2.msra.mxu0 %v98
  %245 = vmatprep.subr.mxu0 0.0
  %246 = vmatpush2.msra.mxu0 %v97
  %247 = vmatprep.subr.mxu0 0.0
  %248 = vmatpush2.msra.mxu0 %v96
  %249 = vmatprep.subr.mxu0 0.0
  %250 = vmatpush2.msra.mxu0 %v95
  %251 = vmatprep.subr.mxu0 0.0
  %252 = vmatpush2.msra.mxu0 %v94
  %253 = vmatprep.subr.mxu0 0.0
  %254 = vmatpush2.msra.mxu0 %v93
  %255 = vmatprep.subr.mxu0 0.0
  %256 = vmatpush2.msra.mxu0 %v92
  %257 = vmatprep.subr.mxu0 0.0
  %258 = vmatpush2.msra.mxu0 %v91
  %259 = vmatprep.subr.mxu0 0.0
  %260 = vmatpush2.msra.mxu0 %v90
  %261 = vmatprep.subr.mxu0 0.0
  %262 = vmatpush2.msra.mxu0 %v89
  %263 = vmatprep.subr.mxu0 0.0
  %264 = vmatpush2.msra.mxu0 %v88
  %265 = vmatprep.subr.mxu0 0.0
  %266 = vmatpush2.msra.mxu0 %v87
  %267 = vmatprep.subr.mxu0 0.0
  %268 = vmatpush2.msra.mxu0 %v86
  %269 = vmatprep.subr.mxu0 0.0
  %270 = vmatpush2.msra.mxu0 %v85
  %271 = vmatprep.mubr.f32.mxu0 %v20
  %272 = vmatmul.mubr.f32.gmra.mxu0 %v19
  %v273 = vpop.f32.mrf.mxu0
  %v274 = vadd.f32 %v189, %v273
  %v275 = vpop.f32.mrf.mxu0
  %276 = vmatprep.mubr.f32.mxu0 %v25
  %277 = vmatmul.mubr.f32.gmra.mxu0 %v24
  %v278 = vpop.f32.mrf.mxu0
  %v279 = vadd.f32 %v194, %v278
  %v280 = vpop.f32.mrf.mxu0
  %281 = vmatprep.mubr.f32.mxu0 %v30
  %282 = vmatmul.mubr.f32.gmra.mxu0 %v29
  %v283 = vpop.f32.mrf.mxu0
  %v284 = vadd.f32 %v199, %v283
  %v285 = vpop.f32.mrf.mxu0
  %286 = vmatprep.mubr.f32.mxu0 %v35
  %287 = vmatmul.mubr.f32.gmra.mxu0 %v34
  %v288 = vpop.f32.mrf.mxu0
  %v289 = vadd.f32 %v204, %v288
  %v290 = vpop.f32.mrf.mxu0
  %291 = vdwg.mxu0
  %292 = vmatprep.subr.mxu0 0.0
  %293 = vmatpush1.msra.mxu0 0.0
  %294 = vmatprep.subr.mxu0 0.0
  %295 = vmatpush1.msra.mxu0 0.0
  %296 = vmatprep.subr.mxu0 0.0
  %297 = vmatpush1.msra.mxu0 0.0
  %298 = vmatprep.subr.mxu0 0.0
  %299 = vmatpush1.msra.mxu0 0.0
  %300 = vmatprep.subr.mxu0 0.0
  %301 = vmatpush1.msra.mxu0 0.0
  %302 = vmatprep.subr.mxu0 0.0
  %303 = vmatpush1.msra.mxu0 0.0
  %304 = vmatprep.subr.mxu0 0.0
  %305 = vmatpush1.msra.mxu0 0.0
  %306 = vmatprep.subr.mxu0 0.0
  %307 = vmatpush1.msra.mxu0 0.0
  %308 = vmatprep.subr.mxu0 0.0
  %309 = vmatpush1.msra.mxu0 %v108
  %310 = vmatprep.subr.mxu0 0.0
  %311 = vmatpush1.msra.mxu0 %v107
  %312 = vmatprep.subr.mxu0 0.0
  %313 = vmatpush1.msra.mxu0 %v106
  %314 = vmatprep.subr.mxu0 0.0
  %315 = vmatpush1.msra.mxu0 %v105
  %316 = vmatprep.subr.mxu0 0.0
  %317 = vmatpush1.msra.mxu0 %v104
  %318 = vmatprep.subr.mxu0 0.0
  %319 = vmatpush1.msra.mxu0 %v103
  %320 = vmatprep.subr.mxu0 0.0
  %321 = vmatpush1.msra.mxu0 %v102
  %322 = vmatprep.subr.mxu0 0.0
  %323 = vmatpush1.msra.mxu0 %v101
  %324 = vmatprep.subr.mxu0 0.0
  %325 = vmatpush2.msra.mxu0 0.0
  %326 = vmatprep.subr.mxu0 0.0
  %327 = vmatpush2.msra.mxu0 0.0
  %328 = vmatprep.subr.mxu0 0.0
  %329 = vmatpush2.msra.mxu0 0.0
  %330 = vmatprep.subr.mxu0 0.0
  %331 = vmatpush2.msra.mxu0 0.0
  %332 = vmatprep.subr.mxu0 0.0
  %333 = vmatpush2.msra.mxu0 0.0
  %334 = vmatprep.subr.mxu0 0.0
  %335 = vmatpush2.msra.mxu0 0.0
  %336 = vmatprep.subr.mxu0 0.0
  %337 = vmatpush2.msra.mxu0 0.0
  %338 = vmatprep.subr.mxu0 0.0
  %339 = vmatpush2.msra.mxu0 0.0
  %340 = vmatprep.subr.mxu0 0.0
  %341 = vmatpush2.msra.mxu0 0.0
  %342 = vmatprep.subr.mxu0 0.0
  %343 = vmatpush2.msra.mxu0 0.0
  %344 = vmatprep.subr.mxu0 0.0
  %345 = vmatpush2.msra.mxu0 0.0
  %346 = vmatprep.subr.mxu0 0.0
  %347 = vmatpush2.msra.mxu0 0.0
  %348 = vmatprep.subr.mxu0 0.0
  %349 = vmatpush2.msra.mxu0 0.0
  %350 = vmatprep.subr.mxu0 0.0
  %351 = vmatpush2.msra.mxu0 0.0
  %352 = vmatprep.subr.mxu0 0.0
  %353 = vmatpush2.msra.mxu0 0.0
  %354 = vmatprep.subr.mxu0 0.0
  %355 = vmatpush2.msra.mxu0 0.0
  %356 = vmatprep.mubr.f32.mxu0 0.0
  %357 = vmatmul.mubr.f32.gmra.mxu0 %v111
  %v358 = vpop.f32.mrf.mxu0
  %v359 = vadd.f32 %v274, %v358
  %v360 = vpop.f32.mrf.mxu0
  %361 = vmatprep.mubr.f32.mxu0 0.0
  %362 = vmatmul.mubr.f32.gmra.mxu0 %v114
  %v363 = vpop.f32.mrf.mxu0
  %v364 = vadd.f32 %v279, %v363
  %v365 = vpop.f32.mrf.mxu0
  %366 = vmatprep.mubr.f32.mxu0 0.0
  %367 = vmatmul.mubr.f32.gmra.mxu0 %v117
  %v368 = vpop.f32.mrf.mxu0
  %v369 = vadd.f32 %v284, %v368
  %v370 = vpop.f32.mrf.mxu0
  %371 = vmatprep.mubr.f32.mxu0 0.0
  %372 = vmatmul.mubr.f32.gmra.mxu0 %v120
  %v373 = vpop.f32.mrf.mxu0
  %v374 = vadd.f32 %v289, %v373
  %v375 = vpop.f32.mrf.mxu0
  %376 = vdwg.mxu0
  %v377 = vld [vmem:[%s2] sm:$0x1]
  %v379 = vlaneseq
  %v380 = vshrl.u32 %v379, 7
  %v381 = vsub.s32 0, %v380
  %v382 = vrot.slane %v377, %v381
  %v384 = vmul.f32 %v359, %v382
  %v385 = vmul.f32 %v364, %v382
  %v386 = vmul.f32 %v369, %v382
  %v387 = vmul.f32 %v374, %v382
  %v388 = vld [vmem:[%s3] sm:$0x1]
  %v390 = vlaneseq
  %v391 = vshrl.u32 %v390, 7
  %v392 = vsub.s32 0, %v391
  %v393 = vrot.slane %v388, %v392
  %v395 = vadd.f32 %v384, %v393
  %v396 = vadd.f32 %v385, %v393
  %v397 = vadd.f32 %v386, %v393
  %v398 = vadd.f32 %v387, %v393
  %v399 = vmax.f32 %v395, 0.0
  %v400 = vmax.f32 %v396, 0.0
  %v401 = vmax.f32 %v397, 0.0
  %v402 = vmax.f32 %v398, 0.0
  %403 = vst.msk [vmem:[%s4] sm:$0xff] %vm109, %v399
  %404 = vst.msk [vmem:[%s4 + $0x8] sm:$0xff] %vm109, %v400
  %405 = vst.msk [vmem:[%s4 + $0x10] sm:$0xff] %vm109, %v401
  %406 = vst.msk [vmem:[%s4 + $0x18] sm:$0xff] %vm109, %v402
  // Predicated region
  $region18: #{frbnet_forward.26} parent=0 // pred_check
    _
  $region19: #{frbnet_forward.26} parent=0 // pred_check_branch
    %408 = sbr.rel (0) target = $region21
  $region20: #{frbnet_forward.26} parent=0 // pred_region
    _
  $region21: #{frbnet_forward.26} parent=0 // pred_fallthru
    _
  // Predicated region
  $region22: #{frbnet_forward.26} parent=0 // pred_check
    _
  $region23: #{frbnet_forward.26} parent=0 // pred_check_branch
    %410 = sbr.rel (0) target = $region25
  $region24: #{frbnet_forward.26} parent=0 // pred_region
    _
  $region25: #{frbnet_forward.26} parent=0 // pred_fallthru
    _

// kernel: frbnet_forward.24
$region0: #{frbnet_forward.24}
  #allocation0 [shape = 'u32[]', space=smem, size = 0x4, offset = 0x4, fixed_abs, tag = 'smem constant byte address 0x4 - core index']
  #allocation1 [shape = 'u32[144,128]{1,0:T(1,128)}', space=vmem, size = 0x12000, scoped, tag = 'internal scratch']
  %s0 = inlined_call_operand.vmem [shape: f32[32,64], index: 0, kind: input, shape index: {}]
  %s1 = inlined_call_operand.vmem [shape: f32[64,128], index: 1, kind: input, shape index: {}]
  %s2 = inlined_call_operand.vmem [shape: f32[1,128], index: 2, kind: input, shape index: {}]
  %s3 = inlined_call_operand.vmem [shape: f32[1,128], index: 3, kind: input, shape index: {}]
  %s4 = inlined_call_operand.vmem [shape: f32[32,128], index: 4, kind: output, shape index: {}]
  %s5 = sld [smem:[#allocation0]]
  $region26: #{frbnet_forward.24} parent=0
    _
  %s7 = ssub.s32 1, %s5
  %s8 = scalar_select 0, %s7, %s5
  // Predicated region
  $region2: #{frbnet_forward.24} parent=0 // pred_check
    _
  $region3: #{frbnet_forward.24} parent=0 // pred_check_branch
    %10 = sbr.rel (0) target = $region5
  $region4: #{frbnet_forward.24} parent=0 // pred_region
    _
  $region5: #{frbnet_forward.24} parent=0 // pred_fallthru
    _
  // Predicated region
  $region6: #{frbnet_forward.24} parent=0 // pred_check
    _
  $region7: #{frbnet_forward.24} parent=0 // pred_check_branch
    %12 = sbr.rel (0) target = $region9
  $region8: #{frbnet_forward.24} parent=0 // pred_region
    _
  $region9: #{frbnet_forward.24} parent=0 // pred_fallthru
    _
  // Predicated region
  $region10: #{frbnet_forward.24} parent=0 // pred_check
    _
  $region11: #{frbnet_forward.24} parent=0 // pred_check_branch
    %14 = sbr.rel (0) target = $region13
  $region12: #{frbnet_forward.24} parent=0 // pred_region
    _
  $region13: #{frbnet_forward.24} parent=0 // pred_fallthru
    _
  // Predicated region
  $region14: #{frbnet_forward.24} parent=0 // pred_check
    _
  $region15: #{frbnet_forward.24} parent=0 // pred_check_branch
    %16 = sbr.rel (0) target = $region17
  $region16: #{frbnet_forward.24} parent=0 // pred_region
    _
  $region17: #{frbnet_forward.24} parent=0 // pred_fallthru
    _
  %v17 = vld [vmem:[%s0] sm:$0xff]
  %v18 = vld [vmem:[%s0 + $0x8] sm:$0xff]
  %v19 = vld [vmem:[%s0 + $0x10] sm:$0xff]
  %v20 = vld [vmem:[%s0 + $0x18] sm:$0xff]
  %v21 = vld [vmem:[%s1] sm:$0xff]
  %v22 = vld [vmem:[%s1 + $0x8] sm:$0xff]
  %v23 = vld [vmem:[%s1 + $0x10] sm:$0xff]
  %v24 = vld [vmem:[%s1 + $0x18] sm:$0xff]
  %v25 = vld [vmem:[%s1 + $0x20] sm:$0xff]
  %v26 = vld [vmem:[%s1 + $0x28] sm:$0xff]
  %v27 = vld [vmem:[%s1 + $0x30] sm:$0xff]
  %v28 = vld [vmem:[%s1 + $0x38] sm:$0xff]
  %vm29 = vcmask 523264
  %v31 = vsel %vm29, %v17, 0
  %v34 = vsel %vm29, %v18, 0
  %v37 = vsel %vm29, %v19, 0
  %v40 = vsel %vm29, %v20, 0
  %42 = vmatprep.subr.mxu0 0.0
  %43 = vmatpush1.msra.mxu0 0.0
  %44 = vmatprep.subr.mxu0 0.0
  %45 = vmatpush1.msra.mxu0 0.0
  %46 = vmatprep.subr.mxu0 0.0
  %47 = vmatpush1.msra.mxu0 0.0
  %48 = vmatprep.subr.mxu0 0.0
  %49 = vmatpush1.msra.mxu0 0.0
  %50 = vmatprep.subr.mxu0 0.0
  %51 = vmatpush1.msra.mxu0 0.0
  %52 = vmatprep.subr.mxu0 0.0
  %53 = vmatpush1.msra.mxu0 0.0
  %54 = vmatprep.subr.mxu0 0.0
  %55 = vmatpush1.msra.mxu0 0.0
  %56 = vmatprep.subr.mxu0 0.0
  %57 = vmatpush1.msra.mxu0 0.0
  %58 = vmatprep.subr.mxu0 0.0
  %59 = vmatpush1.msra.mxu0 %v28
  %60 = vmatprep.subr.mxu0 0.0
  %61 = vmatpush1.msra.mxu0 %v27
  %62 = vmatprep.subr.mxu0 0.0
  %63 = vmatpush1.msra.mxu0 %v26
  %64 = vmatprep.subr.mxu0 0.0
  %65 = vmatpush1.msra.mxu0 %v25
  %66 = vmatprep.subr.mxu0 0.0
  %67 = vmatpush1.msra.mxu0 %v24
  %68 = vmatprep.subr.mxu0 0.0
  %69 = vmatpush1.msra.mxu0 %v23
  %70 = vmatprep.subr.mxu0 0.0
  %71 = vmatpush1.msra.mxu0 %v22
  %72 = vmatprep.subr.mxu0 0.0
  %73 = vmatpush1.msra.mxu0 %v21
  %74 = vmatprep.subr.mxu0 0.0
  %75 = vmatpush2.msra.mxu0 0.0
  %76 = vmatprep.subr.mxu0 0.0
  %77 = vmatpush2.msra.mxu0 0.0
  %78 = vmatprep.subr.mxu0 0.0
  %79 = vmatpush2.msra.mxu0 0.0
  %80 = vmatprep.subr.mxu0 0.0
  %81 = vmatpush2.msra.mxu0 0.0
  %82 = vmatprep.subr.mxu0 0.0
  %83 = vmatpush2.msra.mxu0 0.0
  %84 = vmatprep.subr.mxu0 0.0
  %85 = vmatpush2.msra.mxu0 0.0
  %86 = vmatprep.subr.mxu0 0.0
  %87 = vmatpush2.msra.mxu0 0.0
  %88 = vmatprep.subr.mxu0 0.0
  %89 = vmatpush2.msra.mxu0 0.0
  %90 = vmatprep.subr.mxu0 0.0
  %91 = vmatpush2.msra.mxu0 0.0
  %92 = vmatprep.subr.mxu0 0.0
  %93 = vmatpush2.msra.mxu0 0.0
  %94 = vmatprep.subr.mxu0 0.0
  %95 = vmatpush2.msra.mxu0 0.0
  %96 = vmatprep.subr.mxu0 0.0
  %97 = vmatpush2.msra.mxu0 0.0
  %98 = vmatprep.subr.mxu0 0.0
  %99 = vmatpush2.msra.mxu0 0.0
  %100 = vmatprep.subr.mxu0 0.0
  %101 = vmatpush2.msra.mxu0 0.0
  %102 = vmatprep.subr.mxu0 0.0
  %103 = vmatpush2.msra.mxu0 0.0
  %104 = vmatprep.subr.mxu0 0.0
  %105 = vmatpush2.msra.mxu0 0.0
  %106 = vmatprep.mubr.f32.mxu0 0.0
  %107 = vmatmul.mubr.f32.gmra.mxu0 %v31
  %v108 = vpop.f32.mrf.mxu0
  %v109 = vadd.f32 0.0, %v108
  %v110 = vpop.f32.mrf.mxu0
  %111 = vmatprep.mubr.f32.mxu0 0.0
  %112 = vmatmul.mubr.f32.gmra.mxu0 %v34
  %v113 = vpop.f32.mrf.mxu0
  %v114 = vadd.f32 0.0, %v113
  %v115 = vpop.f32.mrf.mxu0
  %116 = vmatprep.mubr.f32.mxu0 0.0
  %117 = vmatmul.mubr.f32.gmra.mxu0 %v37
  %v118 = vpop.f32.mrf.mxu0
  %v119 = vadd.f32 0.0, %v118
  %v120 = vpop.f32.mrf.mxu0
  %121 = vmatprep.mubr.f32.mxu0 0.0
  %122 = vmatmul.mubr.f32.gmra.mxu0 %v40
  %v123 = vpop.f32.mrf.mxu0
  %v124 = vadd.f32 0.0, %v123
  %v125 = vpop.f32.mrf.mxu0
  %126 = vdwg.mxu0
  %v127 = vld [vmem:[%s2] sm:$0x1]
  %v129 = vlaneseq
  %v130 = vshrl.u32 %v129, 7
  %v131 = vsub.s32 0, %v130
  %v132 = vrot.slane %v127, %v131
  %v134 = vmul.f32 %v109, %v132
  %v135 = vmul.f32 %v114, %v132
  %v136 = vmul.f32 %v119, %v132
  %v137 = vmul.f32 %v124, %v132
  %v138 = vld [vmem:[%s3] sm:$0x1]
  %v140 = vlaneseq
  %v141 = vshrl.u32 %v140, 7
  %v142 = vsub.s32 0, %v141
  %v143 = vrot.slane %v138, %v142
  %v145 = vadd.f32 %v134, %v143
  %v146 = vadd.f32 %v135, %v143
  %v147 = vadd.f32 %v136, %v143
  %v148 = vadd.f32 %v137, %v143
  %149 = vst [vmem:[%s4] sm:$0xff] %v145
  %150 = vst [vmem:[%s4 + $0x8] sm:$0xff] %v146
  %151 = vst [vmem:[%s4 + $0x10] sm:$0xff] %v147
  %152 = vst [vmem:[%s4 + $0x18] sm:$0xff] %v148
  // Predicated region
  $region18: #{frbnet_forward.24} parent=0 // pred_check
    _
  $region19: #{frbnet_forward.24} parent=0 // pred_check_branch
    %154 = sbr.rel (0) target = $region21
  $region20: #{frbnet_forward.24} parent=0 // pred_region
    _
  $region21: #{frbnet_forward.24} parent=0 // pred_fallthru
    _
  // Predicated region
  $region22: #{frbnet_forward.24} parent=0 // pred_check
    _
  $region23: #{frbnet_forward.24} parent=0 // pred_check_branch
    %156 = sbr.rel (0) target = $region25
  $region24: #{frbnet_forward.24} parent=0 // pred_region
    _
  $region25: #{frbnet_forward.24} parent=0 // pred_fallthru
    _

// kernel: frbnet_forward.30
$region0: #{frbnet_forward.30}
  #allocation0 [shape = 'u32[]', space=smem, size = 0x4, offset = 0x4, fixed_abs, tag = 'smem constant byte address 0x4 - core index']
  #allocation1 [shape = 'u32[144,128]{1,0:T(1,128)}', space=vmem, size = 0x12000, scoped, tag = 'internal scratch']
  %s0 = inlined_call_operand.vmem [shape: f32[32,128], index: 0, kind: input, shape index: {}]
  %s1 = inlined_call_operand.vmem [shape: f32[128,128], index: 1, kind: input, shape index: {}]
  %s2 = inlined_call_operand.vmem [shape: f32[1,128], index: 2, kind: input, shape index: {}]
  %s3 = inlined_call_operand.vmem [shape: f32[1,128], index: 3, kind: input, shape index: {}]
  %s4 = inlined_call_operand.vmem [shape: f32[32,128], index: 4, kind: output, shape index: {}]
  %s5 = sld [smem:[#allocation0]]
  $region26: #{frbnet_forward.30} parent=0
    _
  %s7 = ssub.s32 1, %s5
  %s8 = scalar_select 0, %s7, %s5
  // Predicated region
  $region2: #{frbnet_forward.30} parent=0 // pred_check
    _
  $region3: #{frbnet_forward.30} parent=0 // pred_check_branch
    %10 = sbr.rel (0) target = $region5
  $region4: #{frbnet_forward.30} parent=0 // pred_region
    _
  $region5: #{frbnet_forward.30} parent=0 // pred_fallthru
    _
  // Predicated region
  $region6: #{frbnet_forward.30} parent=0 // pred_check
    _
  $region7: #{frbnet_forward.30} parent=0 // pred_check_branch
    %12 = sbr.rel (0) target = $region9
  $region8: #{frbnet_forward.30} parent=0 // pred_region
    _
  $region9: #{frbnet_forward.30} parent=0 // pred_fallthru
    _
  // Predicated region
  $region10: #{frbnet_forward.30} parent=0 // pred_check
    _
  $region11: #{frbnet_forward.30} parent=0 // pred_check_branch
    %14 = sbr.rel (0) target = $region13
  $region12: #{frbnet_forward.30} parent=0 // pred_region
    _
  $region13: #{frbnet_forward.30} parent=0 // pred_fallthru
    _
  // Predicated region
  $region14: #{frbnet_forward.30} parent=0 // pred_check
    _
  $region15: #{frbnet_forward.30} parent=0 // pred_check_branch
    %16 = sbr.rel (0) target = $region17
  $region16: #{frbnet_forward.30} parent=0 // pred_region
    _
  $region17: #{frbnet_forward.30} parent=0 // pred_fallthru
    _
  %v17 = vld [vmem:[%s0] sm:$0xff]
  %v18 = vld [vmem:[%s0 + $0x8] sm:$0xff]
  %v19 = vld [vmem:[%s0 + $0x10] sm:$0xff]
  %v20 = vld [vmem:[%s0 + $0x18] sm:$0xff]
  %v21 = vld [vmem:[%s1] sm:$0xff]
  %v22 = vld [vmem:[%s1 + $0x8] sm:$0xff]
  %v23 = vld [vmem:[%s1 + $0x10] sm:$0xff]
  %v24 = vld [vmem:[%s1 + $0x18] sm:$0xff]
  %v25 = vld [vmem:[%s1 + $0x20] sm:$0xff]
  %v26 = vld [vmem:[%s1 + $0x28] sm:$0xff]
  %v27 = vld [vmem:[%s1 + $0x30] sm:$0xff]
  %v28 = vld [vmem:[%s1 + $0x38] sm:$0xff]
  %v29 = vld [vmem:[%s1 + $0x40] sm:$0xff]
  %v30 = vld [vmem:[%s1 + $0x48] sm:$0xff]
  %v31 = vld [vmem:[%s1 + $0x50] sm:$0xff]
  %v32 = vld [vmem:[%s1 + $0x58] sm:$0xff]
  %v33 = vld [vmem:[%s1 + $0x60] sm:$0xff]
  %v34 = vld [vmem:[%s1 + $0x68] sm:$0xff]
  %v35 = vld [vmem:[%s1 + $0x70] sm:$0xff]
  %v36 = vld [vmem:[%s1 + $0x78] sm:$0xff]
  %37 = vmatprep.subr.mxu0 0.0
  %38 = vmatpush1.msra.mxu0 %v36
  %39 = vmatprep.subr.mxu0 0.0
  %40 = vmatpush1.msra.mxu0 %v35
  %41 = vmatprep.subr.mxu0 0.0
  %42 = vmatpush1.msra.mxu0 %v34
  %43 = vmatprep.subr.mxu0 0.0
  %44 = vmatpush1.msra.mxu0 %v33
  %45 = vmatprep.subr.mxu0 0.0
  %46 = vmatpush1.msra.mxu0 %v32
  %47 = vmatprep.subr.mxu0 0.0
  %48 = vmatpush1.msra.mxu0 %v31
  %49 = vmatprep.subr.mxu0 0.0
  %50 = vmatpush1.msra.mxu0 %v30
  %51 = vmatprep.subr.mxu0 0.0
  %52 = vmatpush1.msra.mxu0 %v29
  %53 = vmatprep.subr.mxu0 0.0
  %54 = vmatpush1.msra.mxu0 %v28
  %55 = vmatprep.subr.mxu0 0.0
  %56 = vmatpush1.msra.mxu0 %v27
  %57 = vmatprep.subr.mxu0 0.0
  %58 = vmatpush1.msra.mxu0 %v26
  %59 = vmatprep.subr.mxu0 0.0
  %60 = vmatpush1.msra.mxu0 %v25
  %61 = vmatprep.subr.mxu0 0.0
  %62 = vmatpush1.msra.mxu0 %v24
  %63 = vmatprep.subr.mxu0 0.0
  %64 = vmatpush1.msra.mxu0 %v23
  %65 = vmatprep.subr.mxu0 0.0
  %66 = vmatpush1.msra.mxu0 %v22
  %67 = vmatprep.subr.mxu0 0.0
  %68 = vmatpush1.msra.mxu0 %v21
  %69 = vmatprep.subr.mxu0 0.0
  %70 = vmatpush2.msra.mxu0 0.0
  %71 = vmatprep.subr.mxu0 0.0
  %72 = vmatpush2.msra.mxu0 0.0
  %73 = vmatprep.subr.mxu0 0.0
  %74 = vmatpush2.msra.mxu0 0.0
  %75 = vmatprep.subr.mxu0 0.0
  %76 = vmatpush2.msra.mxu0 0.0
  %77 = vmatprep.subr.mxu0 0.0
  %78 = vmatpush2.msra.mxu0 0.0
  %79 = vmatprep.subr.mxu0 0.0
  %80 = vmatpush2.msra.mxu0 0.0
  %81 = vmatprep.subr.mxu0 0.0
  %82 = vmatpush2.msra.mxu0 0.0
  %83 = vmatprep.subr.mxu0 0.0
  %84 = vmatpush2.msra.mxu0 0.0
  %85 = vmatprep.subr.mxu0 0.0
  %86 = vmatpush2.msra.mxu0 0.0
  %87 = vmatprep.subr.mxu0 0.0
  %88 = vmatpush2.msra.mxu0 0.0
  %89 = vmatprep.subr.mxu0 0.0
  %90 = vmatpush2.msra.mxu0 0.0
  %91 = vmatprep.subr.mxu0 0.0
  %92 = vmatpush2.msra.mxu0 0.0
  %93 = vmatprep.subr.mxu0 0.0
  %94 = vmatpush2.msra.mxu0 0.0
  %95 = vmatprep.subr.mxu0 0.0
  %96 = vmatpush2.msra.mxu0 0.0
  %97 = vmatprep.subr.mxu0 0.0
  %98 = vmatpush2.msra.mxu0 0.0
  %99 = vmatprep.subr.mxu0 0.0
  %100 = vmatpush2.msra.mxu0 0.0
  %101 = vmatprep.mubr.f32.mxu0 0.0
  %102 = vmatmul.mubr.f32.gmra.mxu0 %v17
  %v103 = vpop.f32.mrf.mxu0
  %v104 = vadd.f32 0.0, %v103
  %v105 = vpop.f32.mrf.mxu0
  %106 = vmatprep.mubr.f32.mxu0 0.0
  %107 = vmatmul.mubr.f32.gmra.mxu0 %v18
  %v108 = vpop.f32.mrf.mxu0
  %v109 = vadd.f32 0.0, %v108
  %v110 = vpop.f32.mrf.mxu0
  %111 = vmatprep.mubr.f32.mxu0 0.0
  %112 = vmatmul.mubr.f32.gmra.mxu0 %v19
  %v113 = vpop.f32.mrf.mxu0
  %v114 = vadd.f32 0.0, %v113
  %v115 = vpop.f32.mrf.mxu0
  %116 = vmatprep.mubr.f32.mxu0 0.0
  %117 = vmatmul.mubr.f32.gmra.mxu0 %v20
  %v118 = vpop.f32.mrf.mxu0
  %v119 = vadd.f32 0.0, %v118
  %v120 = vpop.f32.mrf.mxu0
  %121 = vdwg.mxu0
  %v122 = vld [vmem:[%s2] sm:$0x1]
  %v124 = vlaneseq
  %v125 = vshrl.u32 %v124, 7
  %v126 = vsub.s32 0, %v125
  %v127 = vrot.slane %v122, %v126
  %v129 = vmul.f32 %v104, %v127
  %v130 = vmul.f32 %v109, %v127
  %v131 = vmul.f32 %v114, %v127
  %v132 = vmul.f32 %v119, %v127
  %v133 = vld [vmem:[%s3] sm:$0x1]
  %v135 = vlaneseq
  %v136 = vshrl.u32 %v135, 7
  %v137 = vsub.s32 0, %v136
  %v138 = vrot.slane %v133, %v137
  %v140 = vadd.f32 %v129, %v138
  %v141 = vadd.f32 %v130, %v138
  %v142 = vadd.f32 %v131, %v138
  %v143 = vadd.f32 %v132, %v138
  %v144 = vmax.f32 %v140, 0.0
  %v145 = vmax.f32 %v141, 0.0
  %v146 = vmax.f32 %v142, 0.0
  %v147 = vmax.f32 %v143, 0.0
  %148 = vst [vmem:[%s4] sm:$0xff] %v144
  %149 = vst [vmem:[%s4 + $0x8] sm:$0xff] %v145
  %150 = vst [vmem:[%s4 + $0x10] sm:$0xff] %v146
  %151 = vst [vmem:[%s4 + $0x18] sm:$0xff] %v147
  // Predicated region
  $region18: #{frbnet_forward.30} parent=0 // pred_check
    _
  $region19: #{frbnet_forward.30} parent=0 // pred_check_branch
    %153 = sbr.rel (0) target = $region21
  $region20: #{frbnet_forward.30} parent=0 // pred_region
    _
  $region21: #{frbnet_forward.30} parent=0 // pred_fallthru
    _
  // Predicated region
  $region22: #{frbnet_forward.30} parent=0 // pred_check
    _
  $region23: #{frbnet_forward.30} parent=0 // pred_check_branch
    %155 = sbr.rel (0) target = $region25
  $region24: #{frbnet_forward.30} parent=0 // pred_region
    _
  $region25: #{frbnet_forward.30} parent=0 // pred_fallthru
    _

// kernel: frbnet_forward.31
$region0: #{frbnet_forward.31}
  #allocation0 [shape = 'u32[]', space=smem, size = 0x4, offset = 0x4, fixed_abs, tag = 'smem constant byte address 0x4 - core index']
  #allocation1 [shape = 'u32[144,128]{1,0:T(1,128)}', space=vmem, size = 0x12000, scoped, tag = 'internal scratch']
  %s0 = inlined_call_operand.vmem [shape: f32[8,1152], index: 0, kind: input, shape index: {}]
  %s1 = inlined_call_operand.vmem [shape: f32[1152,128], index: 1, kind: input, shape index: {}]
  %s2 = inlined_call_operand.vmem [shape: f32[1,128], index: 2, kind: input, shape index: {}]
  %s3 = inlined_call_operand.vmem [shape: f32[1,128], index: 3, kind: input, shape index: {}]
  %s4 = inlined_call_operand.vmem [shape: f32[8,128], index: 4, kind: output, shape index: {}]
  %s5 = sld [smem:[#allocation0]]
  $region26: #{frbnet_forward.31} parent=0
    _
  %s7 = ssub.s32 1, %s5
  %s8 = scalar_select 0, %s7, %s5
  // Predicated region
  $region2: #{frbnet_forward.31} parent=0 // pred_check
    _
  $region3: #{frbnet_forward.31} parent=0 // pred_check_branch
    %10 = sbr.rel (0) target = $region5
  $region4: #{frbnet_forward.31} parent=0 // pred_region
    _
  $region5: #{frbnet_forward.31} parent=0 // pred_fallthru
    _
  // Predicated region
  $region6: #{frbnet_forward.31} parent=0 // pred_check
    _
  $region7: #{frbnet_forward.31} parent=0 // pred_check_branch
    %12 = sbr.rel (0) target = $region9
  $region8: #{frbnet_forward.31} parent=0 // pred_region
    _
  $region9: #{frbnet_forward.31} parent=0 // pred_fallthru
    _
  // Predicated region
  $region10: #{frbnet_forward.31} parent=0 // pred_check
    _
  $region11: #{frbnet_forward.31} parent=0 // pred_check_branch
    %14 = sbr.rel (0) target = $region13
  $region12: #{frbnet_forward.31} parent=0 // pred_region
    _
  $region13: #{frbnet_forward.31} parent=0 // pred_fallthru
    _
  // Predicated region
  $region14: #{frbnet_forward.31} parent=0 // pred_check
    _
  $region15: #{frbnet_forward.31} parent=0 // pred_check_branch
    %16 = sbr.rel (0) target = $region17
  $region16: #{frbnet_forward.31} parent=0 // pred_region
    _
  $region17: #{frbnet_forward.31} parent=0 // pred_fallthru
    _
  %v17 = vld [vmem:[%s0] sm:$0xff]
  %v18 = vld [vmem:[%s0 + $0x8] sm:$0xff]
  %v19 = vld [vmem:[%s0 + $0x10] sm:$0xff]
  %v20 = vld [vmem:[%s0 + $0x18] sm:$0xff]
  %v21 = vld [vmem:[%s0 + $0x20] sm:$0xff]
  %v22 = vld [vmem:[%s0 + $0x28] sm:$0xff]
  %v23 = vld [vmem:[%s0 + $0x30] sm:$0xff]
  %v24 = vld [vmem:[%s0 + $0x38] sm:$0xff]
  %v25 = vld [vmem:[%s0 + $0x40] sm:$0xff]
  %v26 = vld [vmem:[%s1] sm:$0xff]
  %v27 = vld [vmem:[%s1 + $0x8] sm:$0xff]
  %v28 = vld [vmem:[%s1 + $0x10] sm:$0xff]
  %v29 = vld [vmem:[%s1 + $0x18] sm:$0xff]
  %v30 = vld [vmem:[%s1 + $0x20] sm:$0xff]
  %v31 = vld [vmem:[%s1 + $0x28] sm:$0xff]
  %v32 = vld [vmem:[%s1 + $0x30] sm:$0xff]
  %v33 = vld [vmem:[%s1 + $0x38] sm:$0xff]
  %v34 = vld [vmem:[%s1 + $0x40] sm:$0xff]
  %v35 = vld [vmem:[%s1 + $0x48] sm:$0xff]
  %v36 = vld [vmem:[%s1 + $0x50] sm:$0xff]
  %v37 = vld [vmem:[%s1 + $0x58] sm:$0xff]
  %v38 = vld [vmem:[%s1 + $0x60] sm:$0xff]
  %v39 = vld [vmem:[%s1 + $0x68] sm:$0xff]
  %v40 = vld [vmem:[%s1 + $0x70] sm:$0xff]
  %v41 = vld [vmem:[%s1 + $0x78] sm:$0xff]
  %v42 = vld [vmem:[%s1 + $0x80] sm:$0xff]
  %v43 = vld [vmem:[%s1 + $0x88] sm:$0xff]
  %v44 = vld [vmem:[%s1 + $0x90] sm:$0xff]
  %v45 = vld [vmem:[%s1 + $0x98] sm:$0xff]
  %v46 = vld [vmem:[%s1 + $0xa0] sm:$0xff]
  %v47 = vld [vmem:[%s1 + $0xa8] sm:$0xff]
  %v48 = vld [vmem:[%s1 + $0xb0] sm:$0xff]
  %v49 = vld [vmem:[%s1 + $0xb8] sm:$0xff]
  %v50 = vld [vmem:[%s1 + $0xc0] sm:$0xff]
  %v51 = vld [vmem:[%s1 + $0xc8] sm:$0xff]
  %v52 = vld [vmem:[%s1 + $0xd0] sm:$0xff]
  %v53 = vld [vmem:[%s1 + $0xd8] sm:$0xff]
  %v54 = vld [vmem:[%s1 + $0xe0] sm:$0xff]
  %v55 = vld [vmem:[%s1 + $0xe8] sm:$0xff]
  %v56 = vld [vmem:[%s1 + $0xf0] sm:$0xff]
  %v57 = vld [vmem:[%s1 + $0xf8] sm:$0xff]
  %v58 = vld [vmem:[%s1 + $0x100] sm:$0xff]
  %v59 = vld [vmem:[%s1 + $0x108] sm:$0xff]
  %v60 = vld [vmem:[%s1 + $0x110] sm:$0xff]
  %v61 = vld [vmem:[%s1 + $0x118] sm:$0xff]
  %v62 = vld [vmem:[%s1 + $0x120] sm:$0xff]
  %v63 = vld [vmem:[%s1 + $0x128] sm:$0xff]
  %v64 = vld [vmem:[%s1 + $0x130] sm:$0xff]
  %v65 = vld [vmem:[%s1 + $0x138] sm:$0xff]
  %v66 = vld [vmem:[%s1 + $0x140] sm:$0xff]
  %v67 = vld [vmem:[%s1 + $0x148] sm:$0xff]
  %v68 = vld [vmem:[%s1 + $0x150] sm:$0xff]
  %v69 = vld [vmem:[%s1 + $0x158] sm:$0xff]
  %v70 = vld [vmem:[%s1 + $0x160] sm:$0xff]
  %v71 = vld [vmem:[%s1 + $0x168] sm:$0xff]
  %v72 = vld [vmem:[%s1 + $0x170] sm:$0xff]
  %v73 = vld [vmem:[%s1 + $0x178] sm:$0xff]
  %v74 = vld [vmem:[%s1 + $0x180] sm:$0xff]
  %v75 = vld [vmem:[%s1 + $0x188] sm:$0xff]
  %v76 = vld [vmem:[%s1 + $0x190] sm:$0xff]
  %v77 = vld [vmem:[%s1 + $0x198] sm:$0xff]
  %v78 = vld [vmem:[%s1 + $0x1a0] sm:$0xff]
  %v79 = vld [vmem:[%s1 + $0x1a8] sm:$0xff]
  %v80 = vld [vmem:[%s1 + $0x1b0] sm:$0xff]
  %v81 = vld [vmem:[%s1 + $0x1b8] sm:$0xff]
  %v82 = vld [vmem:[%s1 + $0x1c0] sm:$0xff]
  %v83 = vld [vmem:[%s1 + $0x1c8] sm:$0xff]
  %v84 = vld [vmem:[%s1 + $0x1d0] sm:$0xff]
  %v85 = vld [vmem:[%s1 + $0x1d8] sm:$0xff]
  %v86 = vld [vmem:[%s1 + $0x1e0] sm:$0xff]
  %v87 = vld [vmem:[%s1 + $0x1e8] sm:$0xff]
  %v88 = vld [vmem:[%s1 + $0x1f0] sm:$0xff]
  %v89 = vld [vmem:[%s1 + $0x1f8] sm:$0xff]
  %v90 = vld [vmem:[%s1 + $0x200] sm:$0xff]
  %v91 = vld [vmem:[%s1 + $0x208] sm:$0xff]
  %v92 = vld [vmem:[%s1 + $0x210] sm:$0xff]
  %v93 = vld [vmem:[%s1 + $0x218] sm:$0xff]
  %v94 = vld [vmem:[%s1 + $0x220] sm:$0xff]
  %v95 = vld [vmem:[%s1 + $0x228] sm:$0xff]
  %v96 = vld [vmem:[%s1 + $0x230] sm:$0xff]
  %v97 = vld [vmem:[%s1 + $0x238] sm:$0xff]
  %v98 = vld [vmem:[%s1 + $0x240] sm:$0xff]
  %v99 = vld [vmem:[%s1 + $0x248] sm:$0xff]
  %v100 = vld [vmem:[%s1 + $0x250] sm:$0xff]
  %v101 = vld [vmem:[%s1 + $0x258] sm:$0xff]
  %v102 = vld [vmem:[%s1 + $0x260] sm:$0xff]
  %v103 = vld [vmem:[%s1 + $0x268] sm:$0xff]
  %v104 = vld [vmem:[%s1 + $0x270] sm:$0xff]
  %v105 = vld [vmem:[%s1 + $0x278] sm:$0xff]
  %v106 = vld [vmem:[%s1 + $0x280] sm:$0xff]
  %v107 = vld [vmem:[%s1 + $0x288] sm:$0xff]
  %v108 = vld [vmem:[%s1 + $0x290] sm:$0xff]
  %v109 = vld [vmem:[%s1 + $0x298] sm:$0xff]
  %v110 = vld [vmem:[%s1 + $0x2a0] sm:$0xff]
  %v111 = vld [vmem:[%s1 + $0x2a8] sm:$0xff]
  %v112 = vld [vmem:[%s1 + $0x2b0] sm:$0xff]
  %v113 = vld [vmem:[%s1 + $0x2b8] sm:$0xff]
  %v114 = vld [vmem:[%s1 + $0x2c0] sm:$0xff]
  %v115 = vld [vmem:[%s1 + $0x2c8] sm:$0xff]
  %v116 = vld [vmem:[%s1 + $0x2d0] sm:$0xff]
  %v117 = vld [vmem:[%s1 + $0x2d8] sm:$0xff]
  %v118 = vld [vmem:[%s1 + $0x2e0] sm:$0xff]
  %v119 = vld [vmem:[%s1 + $0x2e8] sm:$0xff]
  %v120 = vld [vmem:[%s1 + $0x2f0] sm:$0xff]
  %v121 = vld [vmem:[%s1 + $0x2f8] sm:$0xff]
  %v122 = vld [vmem:[%s1 + $0x300] sm:$0xff]
  %v123 = vld [vmem:[%s1 + $0x308] sm:$0xff]
  %v124 = vld [vmem:[%s1 + $0x310] sm:$0xff]
  %v125 = vld [vmem:[%s1 + $0x318] sm:$0xff]
  %v126 = vld [vmem:[%s1 + $0x320] sm:$0xff]
  %v127 = vld [vmem:[%s1 + $0x328] sm:$0xff]
  %v128 = vld [vmem:[%s1 + $0x330] sm:$0xff]
  %v129 = vld [vmem:[%s1 + $0x338] sm:$0xff]
  %v130 = vld [vmem:[%s1 + $0x340] sm:$0xff]
  %v131 = vld [vmem:[%s1 + $0x348] sm:$0xff]
  %v132 = vld [vmem:[%s1 + $0x350] sm:$0xff]
  %v133 = vld [vmem:[%s1 + $0x358] sm:$0xff]
  %v134 = vld [vmem:[%s1 + $0x360] sm:$0xff]
  %v135 = vld [vmem:[%s1 + $0x368] sm:$0xff]
  %v136 = vld [vmem:[%s1 + $0x370] sm:$0xff]
  %v137 = vld [vmem:[%s1 + $0x378] sm:$0xff]
  %v138 = vld [vmem:[%s1 + $0x380] sm:$0xff]
  %v139 = vld [vmem:[%s1 + $0x388] sm:$0xff]
  %v140 = vld [vmem:[%s1 + $0x390] sm:$0xff]
  %v141 = vld [vmem:[%s1 + $0x398] sm:$0xff]
  %v142 = vld [vmem:[%s1 + $0x3a0] sm:$0xff]
  %v143 = vld [vmem:[%s1 + $0x3a8] sm:$0xff]
  %v144 = vld [vmem:[%s1 + $0x3b0] sm:$0xff]
  %v145 = vld [vmem:[%s1 + $0x3b8] sm:$0xff]
  %v146 = vld [vmem:[%s1 + $0x3c0] sm:$0xff]
  %v147 = vld [vmem:[%s1 + $0x3c8] sm:$0xff]
  %v148 = vld [vmem:[%s1 + $0x3d0] sm:$0xff]
  %v149 = vld [vmem:[%s1 + $0x3d8] sm:$0xff]
  %v150 = vld [vmem:[%s1 + $0x3e0] sm:$0xff]
  %v151 = vld [vmem:[%s1 + $0x3e8] sm:$0xff]
  %v152 = vld [vmem:[%s1 + $0x3f0] sm:$0xff]
  %v153 = vld [vmem:[%s1 + $0x3f8] sm:$0xff]
  %v154 = vld [vmem:[%s1 + $0x400] sm:$0xff]
  %v155 = vld [vmem:[%s1 + $0x408] sm:$0xff]
  %v156 = vld [vmem:[%s1 + $0x410] sm:$0xff]
  %v157 = vld [vmem:[%s1 + $0x418] sm:$0xff]
  %v158 = vld [vmem:[%s1 + $0x420] sm:$0xff]
  %v159 = vld [vmem:[%s1 + $0x428] sm:$0xff]
  %v160 = vld [vmem:[%s1 + $0x430] sm:$0xff]
  %v161 = vld [vmem:[%s1 + $0x438] sm:$0xff]
  %v162 = vld [vmem:[%s1 + $0x440] sm:$0xff]
  %v163 = vld [vmem:[%s1 + $0x448] sm:$0xff]
  %v164 = vld [vmem:[%s1 + $0x450] sm:$0xff]
  %v165 = vld [vmem:[%s1 + $0x458] sm:$0xff]
  %v166 = vld [vmem:[%s1 + $0x460] sm:$0xff]
  %v167 = vld [vmem:[%s1 + $0x468] sm:$0xff]
  %v168 = vld [vmem:[%s1 + $0x470] sm:$0xff]
  %v169 = vld [vmem:[%s1 + $0x478] sm:$0xff]
  %170 = vmatprep.subr.mxu0 0.0
  %171 = vmatpush1.msra.mxu0 %v41
  %172 = vmatprep.subr.mxu0 0.0
  %173 = vmatpush1.msra.mxu0 %v40
  %174 = vmatprep.subr.mxu0 0.0
  %175 = vmatpush1.msra.mxu0 %v39
  %176 = vmatprep.subr.mxu0 0.0
  %177 = vmatpush1.msra.mxu0 %v38
  %178 = vmatprep.subr.mxu0 0.0
  %179 = vmatpush1.msra.mxu0 %v37
  %180 = vmatprep.subr.mxu0 0.0
  %181 = vmatpush1.msra.mxu0 %v36
  %182 = vmatprep.subr.mxu0 0.0
  %183 = vmatpush1.msra.mxu0 %v35
  %184 = vmatprep.subr.mxu0 0.0
  %185 = vmatpush1.msra.mxu0 %v34
  %186 = vmatprep.subr.mxu0 0.0
  %187 = vmatpush1.msra.mxu0 %v33
  %188 = vmatprep.subr.mxu0 0.0
  %189 = vmatpush1.msra.mxu0 %v32
  %190 = vmatprep.subr.mxu0 0.0
  %191 = vmatpush1.msra.mxu0 %v31
  %192 = vmatprep.subr.mxu0 0.0
  %193 = vmatpush1.msra.mxu0 %v30
  %194 = vmatprep.subr.mxu0 0.0
  %195 = vmatpush1.msra.mxu0 %v29
  %196 = vmatprep.subr.mxu0 0.0
  %197 = vmatpush1.msra.mxu0 %v28
  %198 = vmatprep.subr.mxu0 0.0
  %199 = vmatpush1.msra.mxu0 %v27
  %200 = vmatprep.subr.mxu0 0.0
  %201 = vmatpush1.msra.mxu0 %v26
  %202 = vmatprep.subr.mxu0 0.0
  %203 = vmatpush2.msra.mxu0 %v57
  %204 = vmatprep.subr.mxu0 0.0
  %205 = vmatpush2.msra.mxu0 %v56
  %206 = vmatprep.subr.mxu0 0.0
  %207 = vmatpush2.msra.mxu0 %v55
  %208 = vmatprep.subr.mxu0 0.0
  %209 = vmatpush2.msra.mxu0 %v54
  %210 = vmatprep.subr.mxu0 0.0
  %211 = vmatpush2.msra.mxu0 %v53
  %212 = vmatprep.subr.mxu0 0.0
  %213 = vmatpush2.msra.mxu0 %v52
  %214 = vmatprep.subr.mxu0 0.0
  %215 = vmatpush2.msra.mxu0 %v51
  %216 = vmatprep.subr.mxu0 0.0
  %217 = vmatpush2.msra.mxu0 %v50
  %218 = vmatprep.subr.mxu0 0.0
  %219 = vmatpush2.msra.mxu0 %v49
  %220 = vmatprep.subr.mxu0 0.0
  %221 = vmatpush2.msra.mxu0 %v48
  %222 = vmatprep.subr.mxu0 0.0
  %223 = vmatpush2.msra.mxu0 %v47
  %224 = vmatprep.subr.mxu0 0.0
  %225 = vmatpush2.msra.mxu0 %v46
  %226 = vmatprep.subr.mxu0 0.0
  %227 = vmatpush2.msra.mxu0 %v45
  %228 = vmatprep.subr.mxu0 0.0
  %229 = vmatpush2.msra.mxu0 %v44
  %230 = vmatprep.subr.mxu0 0.0
  %231 = vmatpush2.msra.mxu0 %v43
  %232 = vmatprep.subr.mxu0 0.0
  %233 = vmatpush2.msra.mxu0 %v42
  %234 = vmatprep.mubr.f32.mxu0 %v18
  %235 = vmatmul.mubr.f32.gmra.mxu0 %v17
  %v236 = vpop.f32.mrf.mxu0
  %v237 = vadd.f32 0.0, %v236
  %v238 = vpop.f32.mrf.mxu0
  %239 = vdwg.mxu0
  %240 = vmatprep.subr.mxu0 0.0
  %241 = vmatpush1.msra.mxu0 %v73
  %242 = vmatprep.subr.mxu0 0.0
  %243 = vmatpush1.msra.mxu0 %v72
  %244 = vmatprep.subr.mxu0 0.0
  %245 = vmatpush1.msra.mxu0 %v71
  %246 = vmatprep.subr.mxu0 0.0
  %247 = vmatpush1.msra.mxu0 %v70
  %248 = vmatprep.subr.mxu0 0.0
  %249 = vmatpush1.msra.mxu0 %v69
  %250 = vmatprep.subr.mxu0 0.0
  %251 = vmatpush1.msra.mxu0 %v68
  %252 = vmatprep.subr.mxu0 0.0
  %253 = vmatpush1.msra.mxu0 %v67
  %254 = vmatprep.subr.mxu0 0.0
  %255 = vmatpush1.msra.mxu0 %v66
  %256 = vmatprep.subr.mxu0 0.0
  %257 = vmatpush1.msra.mxu0 %v65
  %258 = vmatprep.subr.mxu0 0.0
  %259 = vmatpush1.msra.mxu0 %v64
  %260 = vmatprep.subr.mxu0 0.0
  %261 = vmatpush1.msra.mxu0 %v63
  %262 = vmatprep.subr.mxu0 0.0
  %263 = vmatpush1.msra.mxu0 %v62
  %264 = vmatprep.subr.mxu0 0.0
  %265 = vmatpush1.msra.mxu0 %v61
  %266 = vmatprep.subr.mxu0 0.0
  %267 = vmatpush1.msra.mxu0 %v60
  %268 = vmatprep.subr.mxu0 0.0
  %269 = vmatpush1.msra.mxu0 %v59
  %270 = vmatprep.subr.mxu0 0.0
  %271 = vmatpush1.msra.mxu0 %v58
  %272 = vmatprep.subr.mxu0 0.0
  %273 = vmatpush2.msra.mxu0 %v89
  %274 = vmatprep.subr.mxu0 0.0
  %275 = vmatpush2.msra.mxu0 %v88
  %276 = vmatprep.subr.mxu0 0.0
  %277 = vmatpush2.msra.mxu0 %v87
  %278 = vmatprep.subr.mxu0 0.0
  %279 = vmatpush2.msra.mxu0 %v86
  %280 = vmatprep.subr.mxu0 0.0
  %281 = vmatpush2.msra.mxu0 %v85
  %282 = vmatprep.subr.mxu0 0.0
  %283 = vmatpush2.msra.mxu0 %v84
  %284 = vmatprep.subr.mxu0 0.0
  %285 = vmatpush2.msra.mxu0 %v83
  %286 = vmatprep.subr.mxu0 0.0
  %287 = vmatpush2.msra.mxu0 %v82
  %288 = vmatprep.subr.mxu0 0.0
  %289 = vmatpush2.msra.mxu0 %v81
  %290 = vmatprep.subr.mxu0 0.0
  %291 = vmatpush2.msra.mxu0 %v80
  %292 = vmatprep.subr.mxu0 0.0
  %293 = vmatpush2.msra.mxu0 %v79
  %294 = vmatprep.subr.mxu0 0.0
  %295 = vmatpush2.msra.mxu0 %v78
  %296 = vmatprep.subr.mxu0 0.0
  %297 = vmatpush2.msra.mxu0 %v77
  %298 = vmatprep.subr.mxu0 0.0
  %299 = vmatpush2.msra.mxu0 %v76
  %300 = vmatprep.subr.mxu0 0.0
  %301 = vmatpush2.msra.mxu0 %v75
  %302 = vmatprep.subr.mxu0 0.0
  %303 = vmatpush2.msra.mxu0 %v74
  %304 = vmatprep.mubr.f32.mxu0 %v20
  %305 = vmatmul.mubr.f32.gmra.mxu0 %v19
  %v306 = vpop.f32.mrf.mxu0
  %v307 = vadd.f32 %v237, %v306
  %v308 = vpop.f32.mrf.mxu0
  %309 = vdwg.mxu0
  %310 = vmatprep.subr.mxu0 0.0
  %311 = vmatpush1.msra.mxu0 %v105
  %312 = vmatprep.subr.mxu0 0.0
  %313 = vmatpush1.msra.mxu0 %v104
  %314 = vmatprep.subr.mxu0 0.0
  %315 = vmatpush1.msra.mxu0 %v103
  %316 = vmatprep.subr.mxu0 0.0
  %317 = vmatpush1.msra.mxu0 %v102
  %318 = vmatprep.subr.mxu0 0.0
  %319 = vmatpush1.msra.mxu0 %v101
  %320 = vmatprep.subr.mxu0 0.0
  %321 = vmatpush1.msra.mxu0 %v100
  %322 = vmatprep.subr.mxu0 0.0
  %323 = vmatpush1.msra.mxu0 %v99
  %324 = vmatprep.subr.mxu0 0.0
  %325 = vmatpush1.msra.mxu0 %v98
  %326 = vmatprep.subr.mxu0 0.0
  %327 = vmatpush1.msra.mxu0 %v97
  %328 = vmatprep.subr.mxu0 0.0
  %329 = vmatpush1.msra.mxu0 %v96
  %330 = vmatprep.subr.mxu0 0.0
  %331 = vmatpush1.msra.mxu0 %v95
  %332 = vmatprep.subr.mxu0 0.0
  %333 = vmatpush1.msra.mxu0 %v94
  %334 = vmatprep.subr.mxu0 0.0
  %335 = vmatpush1.msra.mxu0 %v93
  %336 = vmatprep.subr.mxu0 0.0
  %337 = vmatpush1.msra.mxu0 %v92
  %338 = vmatprep.subr.mxu0 0.0
  %339 = vmatpush1.msra.mxu0 %v91
  %340 = vmatprep.subr.mxu0 0.0
  %341 = vmatpush1.msra.mxu0 %v90
  %342 = vmatprep.subr.mxu0 0.0
  %343 = vmatpush2.msra.mxu0 %v121
  %344 = vmatprep.subr.mxu0 0.0
  %345 = vmatpush2.msra.mxu0 %v120
  %346 = vmatprep.subr.mxu0 0.0
  %347 = vmatpush2.msra.mxu0 %v119
  %348 = vmatprep.subr.mxu0 0.0
  %349 = vmatpush2.msra.mxu0 %v118
  %350 = vmatprep.subr.mxu0 0.0
  %351 = vmatpush2.msra.mxu0 %v117
  %352 = vmatprep.subr.mxu0 0.0
  %353 = vmatpush2.msra.mxu0 %v116
  %354 = vmatprep.subr.mxu0 0.0
  %355 = vmatpush2.msra.mxu0 %v115
  %356 = vmatprep.subr.mxu0 0.0
  %357 = vmatpush2.msra.mxu0 %v114
  %358 = vmatprep.subr.mxu0 0.0
  %359 = vmatpush2.msra.mxu0 %v113
  %360 = vmatprep.subr.mxu0 0.0
  %361 = vmatpush2.msra.mxu0 %v112
  %362 = vmatprep.subr.mxu0 0.0
  %363 = vmatpush2.msra.mxu0 %v111
  %364 = vmatprep.subr.mxu0 0.0
  %365 = vmatpush2.msra.mxu0 %v110
  %366 = vmatprep.subr.mxu0 0.0
  %367 = vmatpush2.msra.mxu0 %v109
  %368 = vmatprep.subr.mxu0 0.0
  %369 = vmatpush2.msra.mxu0 %v108
  %370 = vmatprep.subr.mxu0 0.0
  %371 = vmatpush2.msra.mxu0 %v107
  %372 = vmatprep.subr.mxu0 0.0
  %373 = vmatpush2.msra.mxu0 %v106
  %374 = vmatprep.mubr.f32.mxu0 %v22
  %375 = vmatmul.mubr.f32.gmra.mxu0 %v21
  %v376 = vpop.f32.mrf.mxu0
  %v377 = vadd.f32 %v307, %v376
  %v378 = vpop.f32.mrf.mxu0
  %379 = vdwg.mxu0
  %380 = vmatprep.subr.mxu0 0.0
  %381 = vmatpush1.msra.mxu0 %v137
  %382 = vmatprep.subr.mxu0 0.0
  %383 = vmatpush1.msra.mxu0 %v136
  %384 = vmatprep.subr.mxu0 0.0
  %385 = vmatpush1.msra.mxu0 %v135
  %386 = vmatprep.subr.mxu0 0.0
  %387 = vmatpush1.msra.mxu0 %v134
  %388 = vmatprep.subr.mxu0 0.0
  %389 = vmatpush1.msra.mxu0 %v133
  %390 = vmatprep.subr.mxu0 0.0
  %391 = vmatpush1.msra.mxu0 %v132
  %392 = vmatprep.subr.mxu0 0.0
  %393 = vmatpush1.msra.mxu0 %v131
  %394 = vmatprep.subr.mxu0 0.0
  %395 = vmatpush1.msra.mxu0 %v130
  %396 = vmatprep.subr.mxu0 0.0
  %397 = vmatpush1.msra.mxu0 %v129
  %398 = vmatprep.subr.mxu0 0.0
  %399 = vmatpush1.msra.mxu0 %v128
  %400 = vmatprep.subr.mxu0 0.0
  %401 = vmatpush1.msra.mxu0 %v127
  %402 = vmatprep.subr.mxu0 0.0
  %403 = vmatpush1.msra.mxu0 %v126
  %404 = vmatprep.subr.mxu0 0.0
  %405 = vmatpush1.msra.mxu0 %v125
  %406 = vmatprep.subr.mxu0 0.0
  %407 = vmatpush1.msra.mxu0 %v124
  %408 = vmatprep.subr.mxu0 0.0
  %409 = vmatpush1.msra.mxu0 %v123
  %410 = vmatprep.subr.mxu0 0.0
  %411 = vmatpush1.msra.mxu0 %v122
  %412 = vmatprep.subr.mxu0 0.0
  %413 = vmatpush2.msra.mxu0 %v153
  %414 = vmatprep.subr.mxu0 0.0
  %415 = vmatpush2.msra.mxu0 %v152
  %416 = vmatprep.subr.mxu0 0.0
  %417 = vmatpush2.msra.mxu0 %v151
  %418 = vmatprep.subr.mxu0 0.0
  %419 = vmatpush2.msra.mxu0 %v150
  %420 = vmatprep.subr.mxu0 0.0
  %421 = vmatpush2.msra.mxu0 %v149
  %422 = vmatprep.subr.mxu0 0.0
  %423 = vmatpush2.msra.mxu0 %v148
  %424 = vmatprep.subr.mxu0 0.0
  %425 = vmatpush2.msra.mxu0 %v147
  %426 = vmatprep.subr.mxu0 0.0
  %427 = vmatpush2.msra.mxu0 %v146
  %428 = vmatprep.subr.mxu0 0.0
  %429 = vmatpush2.msra.mxu0 %v145
  %430 = vmatprep.subr.mxu0 0.0
  %431 = vmatpush2.msra.mxu0 %v144
  %432 = vmatprep.subr.mxu0 0.0
  %433 = vmatpush2.msra.mxu0 %v143
  %434 = vmatprep.subr.mxu0 0.0
  %435 = vmatpush2.msra.mxu0 %v142
  %436 = vmatprep.subr.mxu0 0.0
  %437 = vmatpush2.msra.mxu0 %v141
  %438 = vmatprep.subr.mxu0 0.0
  %439 = vmatpush2.msra.mxu0 %v140
  %440 = vmatprep.subr.mxu0 0.0
  %441 = vmatpush2.msra.mxu0 %v139
  %442 = vmatprep.subr.mxu0 0.0
  %443 = vmatpush2.msra.mxu0 %v138
  %444 = vmatprep.mubr.f32.mxu0 %v24
  %445 = vmatmul.mubr.f32.gmra.mxu0 %v23
  %v446 = vpop.f32.mrf.mxu0
  %v447 = vadd.f32 %v377, %v446
  %v448 = vpop.f32.mrf.mxu0
  %449 = vdwg.mxu0
  %450 = vmatprep.subr.mxu0 0.0
  %451 = vmatpush1.msra.mxu0 %v169
  %452 = vmatprep.subr.mxu0 0.0
  %453 = vmatpush1.msra.mxu0 %v168
  %454 = vmatprep.subr.mxu0 0.0
  %455 = vmatpush1.msra.mxu0 %v167
  %456 = vmatprep.subr.mxu0 0.0
  %457 = vmatpush1.msra.mxu0 %v166
  %458 = vmatprep.subr.mxu0 0.0
  %459 = vmatpush1.msra.mxu0 %v165
  %460 = vmatprep.subr.mxu0 0.0
  %461 = vmatpush1.msra.mxu0 %v164
  %462 = vmatprep.subr.mxu0 0.0
  %463 = vmatpush1.msra.mxu0 %v163
  %464 = vmatprep.subr.mxu0 0.0
  %465 = vmatpush1.msra.mxu0 %v162
  %466 = vmatprep.subr.mxu0 0.0
  %467 = vmatpush1.msra.mxu0 %v161
  %468 = vmatprep.subr.mxu0 0.0
  %469 = vmatpush1.msra.mxu0 %v160
  %470 = vmatprep.subr.mxu0 0.0
  %471 = vmatpush1.msra.mxu0 %v159
  %472 = vmatprep.subr.mxu0 0.0
  %473 = vmatpush1.msra.mxu0 %v158
  %474 = vmatprep.subr.mxu0 0.0
  %475 = vmatpush1.msra.mxu0 %v157
  %476 = vmatprep.subr.mxu0 0.0
  %477 = vmatpush1.msra.mxu0 %v156
  %478 = vmatprep.subr.mxu0 0.0
  %479 = vmatpush1.msra.mxu0 %v155
  %480 = vmatprep.subr.mxu0 0.0
  %481 = vmatpush1.msra.mxu0 %v154
  %482 = vmatprep.subr.mxu0 0.0
  %483 = vmatpush2.msra.mxu0 0.0
  %484 = vmatprep.subr.mxu0 0.0
  %485 = vmatpush2.msra.mxu0 0.0
  %486 = vmatprep.subr.mxu0 0.0
  %487 = vmatpush2.msra.mxu0 0.0
  %488 = vmatprep.subr.mxu0 0.0
  %489 = vmatpush2.msra.mxu0 0.0
  %490 = vmatprep.subr.mxu0 0.0
  %491 = vmatpush2.msra.mxu0 0.0
  %492 = vmatprep.subr.mxu0 0.0
  %493 = vmatpush2.msra.mxu0 0.0
  %494 = vmatprep.subr.mxu0 0.0
  %495 = vmatpush2.msra.mxu0 0.0
  %496 = vmatprep.subr.mxu0 0.0
  %497 = vmatpush2.msra.mxu0 0.0
  %498 = vmatprep.subr.mxu0 0.0
  %499 = vmatpush2.msra.mxu0 0.0
  %500 = vmatprep.subr.mxu0 0.0
  %501 = vmatpush2.msra.mxu0 0.0
  %502 = vmatprep.subr.mxu0 0.0
  %503 = vmatpush2.msra.mxu0 0.0
  %504 = vmatprep.subr.mxu0 0.0
  %505 = vmatpush2.msra.mxu0 0.0
  %506 = vmatprep.subr.mxu0 0.0
  %507 = vmatpush2.msra.mxu0 0.0
  %508 = vmatprep.subr.mxu0 0.0
  %509 = vmatpush2.msra.mxu0 0.0
  %510 = vmatprep.subr.mxu0 0.0
  %511 = vmatpush2.msra.mxu0 0.0
  %512 = vmatprep.subr.mxu0 0.0
  %513 = vmatpush2.msra.mxu0 0.0
  %514 = vmatprep.mubr.f32.mxu0 0.0
  %515 = vmatmul.mubr.f32.gmra.mxu0 %v25
  %v516 = vpop.f32.mrf.mxu0
  %v517 = vadd.f32 %v447, %v516
  %v518 = vpop.f32.mrf.mxu0
  %519 = vdwg.mxu0
  %v520 = vld [vmem:[%s2] sm:$0x1]
  %v522 = vlaneseq
  %v523 = vshrl.u32 %v522, 7
  %v524 = vsub.s32 0, %v523
  %v525 = vrot.slane %v520, %v524
  %v527 = vmul.f32 %v517, %v525
  %v528 = vld [vmem:[%s3] sm:$0x1]
  %v530 = vlaneseq
  %v531 = vshrl.u32 %v530, 7
  %v532 = vsub.s32 0, %v531
  %v533 = vrot.slane %v528, %v532
  %v535 = vadd.f32 %v527, %v533
  %v536 = vmax.f32 %v535, 0.0
  %537 = vst [vmem:[%s4] sm:$0xff] %v536
  // Predicated region
  $region18: #{frbnet_forward.31} parent=0 // pred_check
    _
  $region19: #{frbnet_forward.31} parent=0 // pred_check_branch
    %539 = sbr.rel (0) target = $region21
  $region20: #{frbnet_forward.31} parent=0 // pred_region
    _
  $region21: #{frbnet_forward.31} parent=0 // pred_fallthru
    _
  // Predicated region
  $region22: #{frbnet_forward.31} parent=0 // pred_check
    _
  $region23: #{frbnet_forward.31} parent=0 // pred_check_branch
    %541 = sbr.rel (0) target = $region25
  $region24: #{frbnet_forward.31} parent=0 // pred_region
    _
  $region25: #{frbnet_forward.31} parent=0 // pred_fallthru
    _

// kernel: frbnet_forward.28
$region0: #{frbnet_forward.28}
  #allocation0 [shape = 'u32[]', space=smem, size = 0x4, offset = 0x4, fixed_abs, tag = 'smem constant byte address 0x4 - core index']
  #allocation1 [shape = 'u32[144,128]{1,0:T(1,128)}', space=vmem, size = 0x12000, scoped, tag = 'internal scratch']
  %s0 = inlined_call_operand.vmem [shape: f32[32,3456], index: 0, kind: input, shape index: {}]
  %s1 = inlined_call_operand.vmem [shape: f32[3456,128], index: 1, kind: input, shape index: {}]
  %s2 = inlined_call_operand.vmem [shape: f32[1,128], index: 2, kind: input, shape index: {}]
  %s3 = inlined_call_operand.vmem [shape: f32[1,128], index: 3, kind: input, shape index: {}]
  %s4 = inlined_call_operand.vmem [shape: f32[32,128], index: 4, kind: output, shape index: {}]
  %s5 = sld [smem:[#allocation0]]
  $region26: #{frbnet_forward.28} parent=0
    _
  %s7 = ssub.s32 1, %s5
  %s8 = scalar_select 0, %s7, %s5
  // Predicated region
  $region2: #{frbnet_forward.28} parent=0 // pred_check
    _
  $region3: #{frbnet_forward.28} parent=0 // pred_check_branch
    %10 = sbr.rel (0) target = $region5
  $region4: #{frbnet_forward.28} parent=0 // pred_region
    _
  $region5: #{frbnet_forward.28} parent=0 // pred_fallthru
    _
  // Predicated region
  $region6: #{frbnet_forward.28} parent=0 // pred_check
    _
  $region7: #{frbnet_forward.28} parent=0 // pred_check_branch
    %12 = sbr.rel (0) target = $region9
  $region8: #{frbnet_forward.28} parent=0 // pred_region
    _
  $region9: #{frbnet_forward.28} parent=0 // pred_fallthru
    _
  // Predicated region
  $region10: #{frbnet_forward.28} parent=0 // pred_check
    _
  $region11: #{frbnet_forward.28} parent=0 // pred_check_branch
    %14 = sbr.rel (0) target = $region13
  $region12: #{frbnet_forward.28} parent=0 // pred_region
    _
  $region13: #{frbnet_forward.28} parent=0 // pred_fallthru
    _
  // Predicated region
  $region14: #{frbnet_forward.28} parent=0 // pred_check
    _
  $region15: #{frbnet_forward.28} parent=0 // pred_check_branch
    %16 = sbr.rel (0) target = $region17
  $region16: #{frbnet_forward.28} parent=0 // pred_region
    _
  $region17: #{frbnet_forward.28} parent=0 // pred_fallthru
    _
  %v17 = vld [vmem:[%s0] sm:$0xff]
  %v18 = vld [vmem:[%s0 + $0x8] sm:$0xff]
  %v19 = vld [vmem:[%s0 + $0x10] sm:$0xff]
  %v20 = vld [vmem:[%s0 + $0x18] sm:$0xff]
  %v21 = vld [vmem:[%s0 + $0x20] sm:$0xff]
  %v22 = vld [vmem:[%s0 + $0x28] sm:$0xff]
  %v23 = vld [vmem:[%s0 + $0x30] sm:$0xff]
  %v24 = vld [vmem:[%s0 + $0x38] sm:$0xff]
  %v25 = vld [vmem:[%s0 + $0x40] sm:$0xff]
  %v26 = vld [vmem:[%s0 + $0x48] sm:$0xff]
  %v27 = vld [vmem:[%s0 + $0x50] sm:$0xff]
  %v28 = vld [vmem:[%s0 + $0x58] sm:$0xff]
  %v29 = vld [vmem:[%s0 + $0x60] sm:$0xff]
  %v30 = vld [vmem:[%s0 + $0x68] sm:$0xff]
  %v31 = vld [vmem:[%s0 + $0x70] sm:$0xff]
  %v32 = vld [vmem:[%s0 + $0x78] sm:$0xff]
  %v33 = vld [vmem:[%s0 + $0x80] sm:$0xff]
  %v34 = vld [vmem:[%s0 + $0x88] sm:$0xff]
  %v35 = vld [vmem:[%s0 + $0x90] sm:$0xff]
  %v36 = vld [vmem:[%s0 + $0x98] sm:$0xff]
  %v37 = vld [vmem:[%s0 + $0xa0] sm:$0xff]
  %v38 = vld [vmem:[%s0 + $0xa8] sm:$0xff]
  %v39 = vld [vmem:[%s0 + $0xb0] sm:$0xff]
  %v40 = vld [vmem:[%s0 + $0xb8] sm:$0xff]
  %v41 = vld [vmem:[%s0 + $0xc0] sm:$0xff]
  %v42 = vld [vmem:[%s0 + $0xc8] sm:$0xff]
  %v43 = vld [vmem:[%s0 + $0xd0] sm:$0xff]
  %v44 = vld [vmem:[%s0 + $0xd8] sm:$0xff]
  %v45 = vld [vmem:[%s0 + $0xe0] sm:$0xff]
  %v46 = vld [vmem:[%s0 + $0xe8] sm:$0xff]
  %v47 = vld [vmem:[%s0 + $0xf0] sm:$0xff]
  %v48 = vld [vmem:[%s0 + $0xf8] sm:$0xff]
  %v49 = vld [vmem:[%s0 + $0x100] sm:$0xff]
  %v50 = vld [vmem:[%s0 + $0x108] sm:$0xff]
  %v51 = vld [vmem:[%s0 + $0x110] sm:$0xff]
  %v52 = vld [vmem:[%s0 + $0x118] sm:$0xff]
  %v53 = vld [vmem:[%s0 + $0x120] sm:$0xff]
  %v54 = vld [vmem:[%s0 + $0x128] sm:$0xff]
  %v55 = vld [vmem:[%s0 + $0x130] sm:$0xff]
  %v56 = vld [vmem:[%s0 + $0x138] sm:$0xff]
  %v57 = vld [vmem:[%s0 + $0x140] sm:$0xff]
  %v58 = vld [vmem:[%s0 + $0x148] sm:$0xff]
  %v59 = vld [vmem:[%s0 + $0x150] sm:$0xff]
  %v60 = vld [vmem:[%s0 + $0x158] sm:$0xff]
  %v61 = vld [vmem:[%s0 + $0x160] sm:$0xff]
  %v62 = vld [vmem:[%s0 + $0x168] sm:$0xff]
  %v63 = vld [vmem:[%s0 + $0x170] sm:$0xff]
  %v64 = vld [vmem:[%s0 + $0x178] sm:$0xff]
  %v65 = vld [vmem:[%s0 + $0x180] sm:$0xff]
  %v66 = vld [vmem:[%s0 + $0x188] sm:$0xff]
  %v67 = vld [vmem:[%s0 + $0x190] sm:$0xff]
  %v68 = vld [vmem:[%s0 + $0x198] sm:$0xff]
  %v69 = vld [vmem:[%s0 + $0x1a0] sm:$0xff]
  %v70 = vld [vmem:[%s0 + $0x1a8] sm:$0xff]
  %v71 = vld [vmem:[%s0 + $0x1b0] sm:$0xff]
  %v72 = vld [vmem:[%s0 + $0x1b8] sm:$0xff]
  %v73 = vld [vmem:[%s0 + $0x1c0] sm:$0xff]
  %v74 = vld [vmem:[%s0 + $0x1c8] sm:$0xff]
  %v75 = vld [vmem:[%s0 + $0x1d0] sm:$0xff]
  %v76 = vld [vmem:[%s0 + $0x1d8] sm:$0xff]
  %v77 = vld [vmem:[%s0 + $0x1e0] sm:$0xff]
  %v78 = vld [vmem:[%s0 + $0x1e8] sm:$0xff]
  %v79 = vld [vmem:[%s0 + $0x1f0] sm:$0xff]
  %v80 = vld [vmem:[%s0 + $0x1f8] sm:$0xff]
  %v81 = vld [vmem:[%s0 + $0x200] sm:$0xff]
  %v82 = vld [vmem:[%s0 + $0x208] sm:$0xff]
  %v83 = vld [vmem:[%s0 + $0x210] sm:$0xff]
  %v84 = vld [vmem:[%s0 + $0x218] sm:$0xff]
  %v85 = vld [vmem:[%s0 + $0x220] sm:$0xff]
  %v86 = vld [vmem:[%s0 + $0x228] sm:$0xff]
  %v87 = vld [vmem:[%s0 + $0x230] sm:$0xff]
  %v88 = vld [vmem:[%s0 + $0x238] sm:$0xff]
  %v89 = vld [vmem:[%s0 + $0x240] sm:$0xff]
  %v90 = vld [vmem:[%s0 + $0x248] sm:$0xff]
  %v91 = vld [vmem:[%s0 + $0x250] sm:$0xff]
  %v92 = vld [vmem:[%s0 + $0x258] sm:$0xff]
  %v93 = vld [vmem:[%s0 + $0x260] sm:$0xff]
  %v94 = vld [vmem:[%s0 + $0x268] sm:$0xff]
  %v95 = vld [vmem:[%s0 + $0x270] sm:$0xff]
  %v96 = vld [vmem:[%s0 + $0x278] sm:$0xff]
  %v97 = vld [vmem:[%s0 + $0x280] sm:$0xff]
  %v98 = vld [vmem:[%s0 + $0x288] sm:$0xff]
  %v99 = vld [vmem:[%s0 + $0x290] sm:$0xff]
  %v100 = vld [vmem:[%s0 + $0x298] sm:$0xff]
  %v101 = vld [vmem:[%s0 + $0x2a0] sm:$0xff]
  %v102 = vld [vmem:[%s0 + $0x2a8] sm:$0xff]
  %v103 = vld [vmem:[%s0 + $0x2b0] sm:$0xff]
  %v104 = vld [vmem:[%s0 + $0x2b8] sm:$0xff]
  %v105 = vld [vmem:[%s0 + $0x2c0] sm:$0xff]
  %v106 = vld [vmem:[%s0 + $0x2c8] sm:$0xff]
  %v107 = vld [vmem:[%s0 + $0x2d0] sm:$0xff]
  %v108 = vld [vmem:[%s0 + $0x2d8] sm:$0xff]
  %v109 = vld [vmem:[%s0 + $0x2e0] sm:$0xff]
  %v110 = vld [vmem:[%s0 + $0x2e8] sm:$0xff]
  %v111 = vld [vmem:[%s0 + $0x2f0] sm:$0xff]
  %v112 = vld [vmem:[%s0 + $0x2f8] sm:$0xff]
  %v113 = vld [vmem:[%s0 + $0x300] sm:$0xff]
  %v114 = vld [vmem:[%s0 + $0x308] sm:$0xff]
  %v115 = vld [vmem:[%s0 + $0x310] sm:$0xff]
  %v116 = vld [vmem:[%s0 + $0x318] sm:$0xff]
  %v117 = vld [vmem:[%s0 + $0x320] sm:$0xff]
  %v118 = vld [vmem:[%s0 + $0x328] sm:$0xff]
  %v119 = vld [vmem:[%s0 + $0x330] sm:$0xff]
  %v120 = vld [vmem:[%s0 + $0x338] sm:$0xff]
  %v121 = vld [vmem:[%s0 + $0x340] sm:$0xff]
  %v122 = vld [vmem:[%s0 + $0x348] sm:$0xff]
  %v123 = vld [vmem:[%s0 + $0x350] sm:$0xff]
  %v124 = vld [vmem:[%s0 + $0x358] sm:$0xff]
  %v125 = vld [vmem:[%s1] sm:$0xff]
  %v126 = vld [vmem:[%s1 + $0x8] sm:$0xff]
  %v127 = vld [vmem:[%s1 + $0x10] sm:$0xff]
  %v128 = vld [vmem:[%s1 + $0x18] sm:$0xff]
  %v129 = vld [vmem:[%s1 + $0x20] sm:$0xff]
  %v130 = vld [vmem:[%s1 + $0x28] sm:$0xff]
  %v131 = vld [vmem:[%s1 + $0x30] sm:$0xff]
  %v132 = vld [vmem:[%s1 + $0x38] sm:$0xff]
  %v133 = vld [vmem:[%s1 + $0x40] sm:$0xff]
  %v134 = vld [vmem:[%s1 + $0x48] sm:$0xff]
  %v135 = vld [vmem:[%s1 + $0x50] sm:$0xff]
  %v136 = vld [vmem:[%s1 + $0x58] sm:$0xff]
  %v137 = vld [vmem:[%s1 + $0x60] sm:$0xff]
  %v138 = vld [vmem:[%s1 + $0x68] sm:$0xff]
  %v139 = vld [vmem:[%s1 + $0x70] sm:$0xff]
  %v140 = vld [vmem:[%s1 + $0x78] sm:$0xff]
  %v141 = vld [vmem:[%s1 + $0x80] sm:$0xff]
  %v142 = vld [vmem:[%s1 + $0x88] sm:$0xff]
  %v143 = vld [vmem:[%s1 + $0x90] sm:$0xff]
  %v144 = vld [vmem:[%s1 + $0x98] sm:$0xff]
  %v145 = vld [vmem:[%s1 + $0xa0] sm:$0xff]
  %v146 = vld [vmem:[%s1 + $0xa8] sm:$0xff]
  %v147 = vld [vmem:[%s1 + $0xb0] sm:$0xff]
  %v148 = vld [vmem:[%s1 + $0xb8] sm:$0xff]
  %v149 = vld [vmem:[%s1 + $0xc0] sm:$0xff]
  %v150 = vld [vmem:[%s1 + $0xc8] sm:$0xff]
  %v151 = vld [vmem:[%s1 + $0xd0] sm:$0xff]
  %v152 = vld [vmem:[%s1 + $0xd8] sm:$0xff]
  %v153 = vld [vmem:[%s1 + $0xe0] sm:$0xff]
  %v154 = vld [vmem:[%s1 + $0xe8] sm:$0xff]
  %v155 = vld [vmem:[%s1 + $0xf0] sm:$0xff]
  %v156 = vld [vmem:[%s1 + $0xf8] sm:$0xff]
  %v157 = vld [vmem:[%s1 + $0x100] sm:$0xff]
  %v158 = vld [vmem:[%s1 + $0x108] sm:$0xff]
  %v159 = vld [vmem:[%s1 + $0x110] sm:$0xff]
  %v160 = vld [vmem:[%s1 + $0x118] sm:$0xff]
  %v161 = vld [vmem:[%s1 + $0x120] sm:$0xff]
  %v162 = vld [vmem:[%s1 + $0x128] sm:$0xff]
  %v163 = vld [vmem:[%s1 + $0x130] sm:$0xff]
  %v164 = vld [vmem:[%s1 + $0x138] sm:$0xff]
  %v165 = vld [vmem:[%s1 + $0x140] sm:$0xff]
  %v166 = vld [vmem:[%s1 + $0x148] sm:$0xff]
  %v167 = vld [vmem:[%s1 + $0x150] sm:$0xff]
  %v168 = vld [vmem:[%s1 + $0x158] sm:$0xff]
  %v169 = vld [vmem:[%s1 + $0x160] sm:$0xff]
  %v170 = vld [vmem:[%s1 + $0x168] sm:$0xff]
  %v171 = vld [vmem:[%s1 + $0x170] sm:$0xff]
  %v172 = vld [vmem:[%s1 + $0x178] sm:$0xff]
  %v173 = vld [vmem:[%s1 + $0x180] sm:$0xff]
  %v174 = vld [vmem:[%s1 + $0x188] sm:$0xff]
  %v175 = vld [vmem:[%s1 + $0x190] sm:$0xff]
  %v176 = vld [vmem:[%s1 + $0x198] sm:$0xff]
  %v177 = vld [vmem:[%s1 + $0x1a0] sm:$0xff]
  %v178 = vld [vmem:[%s1 + $0x1a8] sm:$0xff]
  %v179 = vld [vmem:[%s1 + $0x1b0] sm:$0xff]
  %v180 = vld [vmem:[%s1 + $0x1b8] sm:$0xff]
  %v181 = vld [vmem:[%s1 + $0x1c0] sm:$0xff]
  %v182 = vld [vmem:[%s1 + $0x1c8] sm:$0xff]
  %v183 = vld [vmem:[%s1 + $0x1d0] sm:$0xff]
  %v184 = vld [vmem:[%s1 + $0x1d8] sm:$0xff]
  %v185 = vld [vmem:[%s1 + $0x1e0] sm:$0xff]
  %v186 = vld [vmem:[%s1 + $0x1e8] sm:$0xff]
  %v187 = vld [vmem:[%s1 + $0x1f0] sm:$0xff]
  %v188 = vld [vmem:[%s1 + $0x1f8] sm:$0xff]
  %v189 = vld [vmem:[%s1 + $0x200] sm:$0xff]
  %v190 = vld [vmem:[%s1 + $0x208] sm:$0xff]
  %v191 = vld [vmem:[%s1 + $0x210] sm:$0xff]
  %v192 = vld [vmem:[%s1 + $0x218] sm:$0xff]
  %v193 = vld [vmem:[%s1 + $0x220] sm:$0xff]
  %v194 = vld [vmem:[%s1 + $0x228] sm:$0xff]
  %v195 = vld [vmem:[%s1 + $0x230] sm:$0xff]
  %v196 = vld [vmem:[%s1 + $0x238] sm:$0xff]
  %v197 = vld [vmem:[%s1 + $0x240] sm:$0xff]
  %v198 = vld [vmem:[%s1 + $0x248] sm:$0xff]
  %v199 = vld [vmem:[%s1 + $0x250] sm:$0xff]
  %v200 = vld [vmem:[%s1 + $0x258] sm:$0xff]
  %v201 = vld [vmem:[%s1 + $0x260] sm:$0xff]
  %v202 = vld [vmem:[%s1 + $0x268] sm:$0xff]
  %v203 = vld [vmem:[%s1 + $0x270] sm:$0xff]
  %v204 = vld [vmem:[%s1 + $0x278] sm:$0xff]
  %v205 = vld [vmem:[%s1 + $0x280] sm:$0xff]
  %v206 = vld [vmem:[%s1 + $0x288] sm:$0xff]
  %v207 = vld [vmem:[%s1 + $0x290] sm:$0xff]
  %v208 = vld [vmem:[%s1 + $0x298] sm:$0xff]
  %v209 = vld [vmem:[%s1 + $0x2a0] sm:$0xff]
  %v210 = vld [vmem:[%s1 + $0x2a8] sm:$0xff]
  %v211 = vld [vmem:[%s1 + $0x2b0] sm:$0xff]
  %v212 = vld [vmem:[%s1 + $0x2b8] sm:$0xff]
  %v213 = vld [vmem:[%s1 + $0x2c0] sm:$0xff]
  %v214 = vld [vmem:[%s1 + $0x2c8] sm:$0xff]
  %v215 = vld [vmem:[%s1 + $0x2d0] sm:$0xff]
  %v216 = vld [vmem:[%s1 + $0x2d8] sm:$0xff]
  %v217 = vld [vmem:[%s1 + $0x2e0] sm:$0xff]
  %v218 = vld [vmem:[%s1 + $0x2e8] sm:$0xff]
  %v219 = vld [vmem:[%s1 + $0x2f0] sm:$0xff]
  %v220 = vld [vmem:[%s1 + $0x2f8] sm:$0xff]
  %v221 = vld [vmem:[%s1 + $0x300] sm:$0xff]
  %v222 = vld [vmem:[%s1 + $0x308] sm:$0xff]
  %v223 = vld [vmem:[%s1 + $0x310] sm:$0xff]
  %v224 = vld [vmem:[%s1 + $0x318] sm:$0xff]
  %v225 = vld [vmem:[%s1 + $0x320] sm:$0xff]
  %v226 = vld [vmem:[%s1 + $0x328] sm:$0xff]
  %v227 = vld [vmem:[%s1 + $0x330] sm:$0xff]
  %v228 = vld [vmem:[%s1 + $0x338] sm:$0xff]
  %v229 = vld [vmem:[%s1 + $0x340] sm:$0xff]
  %v230 = vld [vmem:[%s1 + $0x348] sm:$0xff]
  %v231 = vld [vmem:[%s1 + $0x350] sm:$0xff]
  %v232 = vld [vmem:[%s1 + $0x358] sm:$0xff]
  %v233 = vld [vmem:[%s1 + $0x360] sm:$0xff]
  %v234 = vld [vmem:[%s1 + $0x368] sm:$0xff]
  %v235 = vld [vmem:[%s1 + $0x370] sm:$0xff]
  %v236 = vld [vmem:[%s1 + $0x378] sm:$0xff]
  %v237 = vld [vmem:[%s1 + $0x380] sm:$0xff]
  %v238 = vld [vmem:[%s1 + $0x388] sm:$0xff]
  %v239 = vld [vmem:[%s1 + $0x390] sm:$0xff]
  %v240 = vld [vmem:[%s1 + $0x398] sm:$0xff]
  %v241 = vld [vmem:[%s1 + $0x3a0] sm:$0xff]
  %v242 = vld [vmem:[%s1 + $0x3a8] sm:$0xff]
  %v243 = vld [vmem:[%s1 + $0x3b0] sm:$0xff]
  %v244 = vld [vmem:[%s1 + $0x3b8] sm:$0xff]
  %v245 = vld [vmem:[%s1 + $0x3c0] sm:$0xff]
  %v246 = vld [vmem:[%s1 + $0x3c8] sm:$0xff]
  %v247 = vld [vmem:[%s1 + $0x3d0] sm:$0xff]
  %v248 = vld [vmem:[%s1 + $0x3d8] sm:$0xff]
  %v249 = vld [vmem:[%s1 + $0x3e0] sm:$0xff]
  %v250 = vld [vmem:[%s1 + $0x3e8] sm:$0xff]
  %v251 = vld [vmem:[%s1 + $0x3f0] sm:$0xff]
  %v252 = vld [vmem:[%s1 + $0x3f8] sm:$0xff]
  %v253 = vld [vmem:[%s1 + $0x400] sm:$0xff]
  %v254 = vld [vmem:[%s1 + $0x408] sm:$0xff]
  %v255 = vld [vmem:[%s1 + $0x410] sm:$0xff]
  %v256 = vld [vmem:[%s1 + $0x418] sm:$0xff]
  %v257 = vld [vmem:[%s1 + $0x420] sm:$0xff]
  %v258 = vld [vmem:[%s1 + $0x428] sm:$0xff]
  %v259 = vld [vmem:[%s1 + $0x430] sm:$0xff]
  %v260 = vld [vmem:[%s1 + $0x438] sm:$0xff]
  %v261 = vld [vmem:[%s1 + $0x440] sm:$0xff]
  %v262 = vld [vmem:[%s1 + $0x448] sm:$0xff]
  %v263 = vld [vmem:[%s1 + $0x450] sm:$0xff]
  %v264 = vld [vmem:[%s1 + $0x458] sm:$0xff]
  %v265 = vld [vmem:[%s1 + $0x460] sm:$0xff]
  %v266 = vld [vmem:[%s1 + $0x468] sm:$0xff]
  %v267 = vld [vmem:[%s1 + $0x470] sm:$0xff]
  %v268 = vld [vmem:[%s1 + $0x478] sm:$0xff]
  %v269 = vld [vmem:[%s1 + $0x480] sm:$0xff]
  %v270 = vld [vmem:[%s1 + $0x488] sm:$0xff]
  %v271 = vld [vmem:[%s1 + $0x490] sm:$0xff]
  %v272 = vld [vmem:[%s1 + $0x498] sm:$0xff]
  %v273 = vld [vmem:[%s1 + $0x4a0] sm:$0xff]
  %v274 = vld [vmem:[%s1 + $0x4a8] sm:$0xff]
  %v275 = vld [vmem:[%s1 + $0x4b0] sm:$0xff]
  %v276 = vld [vmem:[%s1 + $0x4b8] sm:$0xff]
  %v277 = vld [vmem:[%s1 + $0x4c0] sm:$0xff]
  %v278 = vld [vmem:[%s1 + $0x4c8] sm:$0xff]
  %v279 = vld [vmem:[%s1 + $0x4d0] sm:$0xff]
  %v280 = vld [vmem:[%s1 + $0x4d8] sm:$0xff]
  %v281 = vld [vmem:[%s1 + $0x4e0] sm:$0xff]
  %v282 = vld [vmem:[%s1 + $0x4e8] sm:$0xff]
  %v283 = vld [vmem:[%s1 + $0x4f0] sm:$0xff]
  %v284 = vld [vmem:[%s1 + $0x4f8] sm:$0xff]
  %v285 = vld [vmem:[%s1 + $0x500] sm:$0xff]
  %v286 = vld [vmem:[%s1 + $0x508] sm:$0xff]
  %v287 = vld [vmem:[%s1 + $0x510] sm:$0xff]
  %v288 = vld [vmem:[%s1 + $0x518] sm:$0xff]
  %v289 = vld [vmem:[%s1 + $0x520] sm:$0xff]
  %v290 = vld [vmem:[%s1 + $0x528] sm:$0xff]
  %v291 = vld [vmem:[%s1 + $0x530] sm:$0xff]
  %v292 = vld [vmem:[%s1 + $0x538] sm:$0xff]
  %v293 = vld [vmem:[%s1 + $0x540] sm:$0xff]
  %v294 = vld [vmem:[%s1 + $0x548] sm:$0xff]
  %v295 = vld [vmem:[%s1 + $0x550] sm:$0xff]
  %v296 = vld [vmem:[%s1 + $0x558] sm:$0xff]
  %v297 = vld [vmem:[%s1 + $0x560] sm:$0xff]
  %v298 = vld [vmem:[%s1 + $0x568] sm:$0xff]
  %v299 = vld [vmem:[%s1 + $0x570] sm:$0xff]
  %v300 = vld [vmem:[%s1 + $0x578] sm:$0xff]
  %v301 = vld [vmem:[%s1 + $0x580] sm:$0xff]
  %v302 = vld [vmem:[%s1 + $0x588] sm:$0xff]
  %v303 = vld [vmem:[%s1 + $0x590] sm:$0xff]
  %v304 = vld [vmem:[%s1 + $0x598] sm:$0xff]
  %v305 = vld [vmem:[%s1 + $0x5a0] sm:$0xff]
  %v306 = vld [vmem:[%s1 + $0x5a8] sm:$0xff]
  %v307 = vld [vmem:[%s1 + $0x5b0] sm:$0xff]
  %v308 = vld [vmem:[%s1 + $0x5b8] sm:$0xff]
  %v309 = vld [vmem:[%s1 + $0x5c0] sm:$0xff]
  %v310 = vld [vmem:[%s1 + $0x5c8] sm:$0xff]
  %v311 = vld [vmem:[%s1 + $0x5d0] sm:$0xff]
  %v312 = vld [vmem:[%s1 + $0x5d8] sm:$0xff]
  %v313 = vld [vmem:[%s1 + $0x5e0] sm:$0xff]
  %v314 = vld [vmem:[%s1 + $0x5e8] sm:$0xff]
  %v315 = vld [vmem:[%s1 + $0x5f0] sm:$0xff]
  %v316 = vld [vmem:[%s1 + $0x5f8] sm:$0xff]
  %v317 = vld [vmem:[%s1 + $0x600] sm:$0xff]
  %v318 = vld [vmem:[%s1 + $0x608] sm:$0xff]
  %v319 = vld [vmem:[%s1 + $0x610] sm:$0xff]
  %v320 = vld [vmem:[%s1 + $0x618] sm:$0xff]
  %v321 = vld [vmem:[%s1 + $0x620] sm:$0xff]
  %v322 = vld [vmem:[%s1 + $0x628] sm:$0xff]
  %v323 = vld [vmem:[%s1 + $0x630] sm:$0xff]
  %v324 = vld [vmem:[%s1 + $0x638] sm:$0xff]
  %v325 = vld [vmem:[%s1 + $0x640] sm:$0xff]
  %v326 = vld [vmem:[%s1 + $0x648] sm:$0xff]
  %v327 = vld [vmem:[%s1 + $0x650] sm:$0xff]
  %v328 = vld [vmem:[%s1 + $0x658] sm:$0xff]
  %v329 = vld [vmem:[%s1 + $0x660] sm:$0xff]
  %v330 = vld [vmem:[%s1 + $0x668] sm:$0xff]
  %v331 = vld [vmem:[%s1 + $0x670] sm:$0xff]
  %v332 = vld [vmem:[%s1 + $0x678] sm:$0xff]
  %v333 = vld [vmem:[%s1 + $0x680] sm:$0xff]
  %v334 = vld [vmem:[%s1 + $0x688] sm:$0xff]
  %v335 = vld [vmem:[%s1 + $0x690] sm:$0xff]
  %v336 = vld [vmem:[%s1 + $0x698] sm:$0xff]
  %v337 = vld [vmem:[%s1 + $0x6a0] sm:$0xff]
  %v338 = vld [vmem:[%s1 + $0x6a8] sm:$0xff]
  %v339 = vld [vmem:[%s1 + $0x6b0] sm:$0xff]
  %v340 = vld [vmem:[%s1 + $0x6b8] sm:$0xff]
  %v341 = vld [vmem:[%s1 + $0x6c0] sm:$0xff]
  %v342 = vld [vmem:[%s1 + $0x6c8] sm:$0xff]
  %v343 = vld [vmem:[%s1 + $0x6d0] sm:$0xff]
  %v344 = vld [vmem:[%s1 + $0x6d8] sm:$0xff]
  %v345 = vld [vmem:[%s1 + $0x6e0] sm:$0xff]
  %v346 = vld [vmem:[%s1 + $0x6e8] sm:$0xff]
  %v347 = vld [vmem:[%s1 + $0x6f0] sm:$0xff]
  %v348 = vld [vmem:[%s1 + $0x6f8] sm:$0xff]
  %v349 = vld [vmem:[%s1 + $0x700] sm:$0xff]
  %v350 = vld [vmem:[%s1 + $0x708] sm:$0xff]
  %v351 = vld [vmem:[%s1 + $0x710] sm:$0xff]
  %v352 = vld [vmem:[%s1 + $0x718] sm:$0xff]
  %v353 = vld [vmem:[%s1 + $0x720] sm:$0xff]
  %v354 = vld [vmem:[%s1 + $0x728] sm:$0xff]
  %v355 = vld [vmem:[%s1 + $0x730] sm:$0xff]
  %v356 = vld [vmem:[%s1 + $0x738] sm:$0xff]
  %v357 = vld [vmem:[%s1 + $0x740] sm:$0xff]
  %v358 = vld [vmem:[%s1 + $0x748] sm:$0xff]
  %v359 = vld [vmem:[%s1 + $0x750] sm:$0xff]
  %v360 = vld [vmem:[%s1 + $0x758] sm:$0xff]
  %v361 = vld [vmem:[%s1 + $0x760] sm:$0xff]
  %v362 = vld [vmem:[%s1 + $0x768] sm:$0xff]
  %v363 = vld [vmem:[%s1 + $0x770] sm:$0xff]
  %v364 = vld [vmem:[%s1 + $0x778] sm:$0xff]
  %v365 = vld [vmem:[%s1 + $0x780] sm:$0xff]
  %v366 = vld [vmem:[%s1 + $0x788] sm:$0xff]
  %v367 = vld [vmem:[%s1 + $0x790] sm:$0xff]
  %v368 = vld [vmem:[%s1 + $0x798] sm:$0xff]
  %v369 = vld [vmem:[%s1 + $0x7a0] sm:$0xff]
  %v370 = vld [vmem:[%s1 + $0x7a8] sm:$0xff]
  %v371 = vld [vmem:[%s1 + $0x7b0] sm:$0xff]
  %v372 = vld [vmem:[%s1 + $0x7b8] sm:$0xff]
  %v373 = vld [vmem:[%s1 + $0x7c0] sm:$0xff]
  %v374 = vld [vmem:[%s1 + $0x7c8] sm:$0xff]
  %v375 = vld [vmem:[%s1 + $0x7d0] sm:$0xff]
  %v376 = vld [vmem:[%s1 + $0x7d8] sm:$0xff]
  %v377 = vld [vmem:[%s1 + $0x7e0] sm:$0xff]
  %v378 = vld [vmem:[%s1 + $0x7e8] sm:$0xff]
  %v379 = vld [vmem:[%s1 + $0x7f0] sm:$0xff]
  %v380 = vld [vmem:[%s1 + $0x7f8] sm:$0xff]
  %v381 = vld [vmem:[%s1 + $0x800] sm:$0xff]
  %v382 = vld [vmem:[%s1 + $0x808] sm:$0xff]
  %v383 = vld [vmem:[%s1 + $0x810] sm:$0xff]
  %v384 = vld [vmem:[%s1 + $0x818] sm:$0xff]
  %v385 = vld [vmem:[%s1 + $0x820] sm:$0xff]
  %v386 = vld [vmem:[%s1 + $0x828] sm:$0xff]
  %v387 = vld [vmem:[%s1 + $0x830] sm:$0xff]
  %v388 = vld [vmem:[%s1 + $0x838] sm:$0xff]
  %v389 = vld [vmem:[%s1 + $0x840] sm:$0xff]
  %v390 = vld [vmem:[%s1 + $0x848] sm:$0xff]
  %v391 = vld [vmem:[%s1 + $0x850] sm:$0xff]
  %v392 = vld [vmem:[%s1 + $0x858] sm:$0xff]
  %v393 = vld [vmem:[%s1 + $0x860] sm:$0xff]
  %v394 = vld [vmem:[%s1 + $0x868] sm:$0xff]
  %v395 = vld [vmem:[%s1 + $0x870] sm:$0xff]
  %v396 = vld [vmem:[%s1 + $0x878] sm:$0xff]
  %v397 = vld [vmem:[%s1 + $0x880] sm:$0xff]
  %v398 = vld [vmem:[%s1 + $0x888] sm:$0xff]
  %v399 = vld [vmem:[%s1 + $0x890] sm:$0xff]
  %v400 = vld [vmem:[%s1 + $0x898] sm:$0xff]
  %v401 = vld [vmem:[%s1 + $0x8a0] sm:$0xff]
  %v402 = vld [vmem:[%s1 + $0x8a8] sm:$0xff]
  %v403 = vld [vmem:[%s1 + $0x8b0] sm:$0xff]
  %v404 = vld [vmem:[%s1 + $0x8b8] sm:$0xff]
  %v405 = vld [vmem:[%s1 + $0x8c0] sm:$0xff]
  %v406 = vld [vmem:[%s1 + $0x8c8] sm:$0xff]
  %v407 = vld [vmem:[%s1 + $0x8d0] sm:$0xff]
  %v408 = vld [vmem:[%s1 + $0x8d8] sm:$0xff]
  %v409 = vld [vmem:[%s1 + $0x8e0] sm:$0xff]
  %v410 = vld [vmem:[%s1 + $0x8e8] sm:$0xff]
  %v411 = vld [vmem:[%s1 + $0x8f0] sm:$0xff]
  %v412 = vld [vmem:[%s1 + $0x8f8] sm:$0xff]
  %v413 = vld [vmem:[%s1 + $0x900] sm:$0xff]
  %v414 = vld [vmem:[%s1 + $0x908] sm:$0xff]
  %v415 = vld [vmem:[%s1 + $0x910] sm:$0xff]
  %v416 = vld [vmem:[%s1 + $0x918] sm:$0xff]
  %v417 = vld [vmem:[%s1 + $0x920] sm:$0xff]
  %v418 = vld [vmem:[%s1 + $0x928] sm:$0xff]
  %v419 = vld [vmem:[%s1 + $0x930] sm:$0xff]
  %v420 = vld [vmem:[%s1 + $0x938] sm:$0xff]
  %v421 = vld [vmem:[%s1 + $0x940] sm:$0xff]
  %v422 = vld [vmem:[%s1 + $0x948] sm:$0xff]
  %v423 = vld [vmem:[%s1 + $0x950] sm:$0xff]
  %v424 = vld [vmem:[%s1 + $0x958] sm:$0xff]
  %v425 = vld [vmem:[%s1 + $0x960] sm:$0xff]
  %v426 = vld [vmem:[%s1 + $0x968] sm:$0xff]
  %v427 = vld [vmem:[%s1 + $0x970] sm:$0xff]
  %v428 = vld [vmem:[%s1 + $0x978] sm:$0xff]
  %v429 = vld [vmem:[%s1 + $0x980] sm:$0xff]
  %v430 = vld [vmem:[%s1 + $0x988] sm:$0xff]
  %v431 = vld [vmem:[%s1 + $0x990] sm:$0xff]
  %v432 = vld [vmem:[%s1 + $0x998] sm:$0xff]
  %v433 = vld [vmem:[%s1 + $0x9a0] sm:$0xff]
  %v434 = vld [vmem:[%s1 + $0x9a8] sm:$0xff]
  %v435 = vld [vmem:[%s1 + $0x9b0] sm:$0xff]
  %v436 = vld [vmem:[%s1 + $0x9b8] sm:$0xff]
  %v437 = vld [vmem:[%s1 + $0x9c0] sm:$0xff]
  %v438 = vld [vmem:[%s1 + $0x9c8] sm:$0xff]
  %v439 = vld [vmem:[%s1 + $0x9d0] sm:$0xff]
  %v440 = vld [vmem:[%s1 + $0x9d8] sm:$0xff]
  %v441 = vld [vmem:[%s1 + $0x9e0] sm:$0xff]
  %v442 = vld [vmem:[%s1 + $0x9e8] sm:$0xff]
  %v443 = vld [vmem:[%s1 + $0x9f0] sm:$0xff]
  %v444 = vld [vmem:[%s1 + $0x9f8] sm:$0xff]
  %v445 = vld [vmem:[%s1 + $0xa00] sm:$0xff]
  %v446 = vld [vmem:[%s1 + $0xa08] sm:$0xff]
  %v447 = vld [vmem:[%s1 + $0xa10] sm:$0xff]
  %v448 = vld [vmem:[%s1 + $0xa18] sm:$0xff]
  %v449 = vld [vmem:[%s1 + $0xa20] sm:$0xff]
  %v450 = vld [vmem:[%s1 + $0xa28] sm:$0xff]
  %v451 = vld [vmem:[%s1 + $0xa30] sm:$0xff]
  %v452 = vld [vmem:[%s1 + $0xa38] sm:$0xff]
  %v453 = vld [vmem:[%s1 + $0xa40] sm:$0xff]
  %v454 = vld [vmem:[%s1 + $0xa48] sm:$0xff]
  %v455 = vld [vmem:[%s1 + $0xa50] sm:$0xff]
  %v456 = vld [vmem:[%s1 + $0xa58] sm:$0xff]
  %v457 = vld [vmem:[%s1 + $0xa60] sm:$0xff]
  %v458 = vld [vmem:[%s1 + $0xa68] sm:$0xff]
  %v459 = vld [vmem:[%s1 + $0xa70] sm:$0xff]
  %v460 = vld [vmem:[%s1 + $0xa78] sm:$0xff]
  %v461 = vld [vmem:[%s1 + $0xa80] sm:$0xff]
  %v462 = vld [vmem:[%s1 + $0xa88] sm:$0xff]
  %v463 = vld [vmem:[%s1 + $0xa90] sm:$0xff]
  %v464 = vld [vmem:[%s1 + $0xa98] sm:$0xff]
  %v465 = vld [vmem:[%s1 + $0xaa0] sm:$0xff]
  %v466 = vld [vmem:[%s1 + $0xaa8] sm:$0xff]
  %v467 = vld [vmem:[%s1 + $0xab0] sm:$0xff]
  %v468 = vld [vmem:[%s1 + $0xab8] sm:$0xff]
  %v469 = vld [vmem:[%s1 + $0xac0] sm:$0xff]
  %v470 = vld [vmem:[%s1 + $0xac8] sm:$0xff]
  %v471 = vld [vmem:[%s1 + $0xad0] sm:$0xff]
  %v472 = vld [vmem:[%s1 + $0xad8] sm:$0xff]
  %v473 = vld [vmem:[%s1 + $0xae0] sm:$0xff]
  %v474 = vld [vmem:[%s1 + $0xae8] sm:$0xff]
  %v475 = vld [vmem:[%s1 + $0xaf0] sm:$0xff]
  %v476 = vld [vmem:[%s1 + $0xaf8] sm:$0xff]
  %v477 = vld [vmem:[%s1 + $0xb00] sm:$0xff]
  %v478 = vld [vmem:[%s1 + $0xb08] sm:$0xff]
  %v479 = vld [vmem:[%s1 + $0xb10] sm:$0xff]
  %v480 = vld [vmem:[%s1 + $0xb18] sm:$0xff]
  %v481 = vld [vmem:[%s1 + $0xb20] sm:$0xff]
  %v482 = vld [vmem:[%s1 + $0xb28] sm:$0xff]
  %v483 = vld [vmem:[%s1 + $0xb30] sm:$0xff]
  %v484 = vld [vmem:[%s1 + $0xb38] sm:$0xff]
  %v485 = vld [vmem:[%s1 + $0xb40] sm:$0xff]
  %v486 = vld [vmem:[%s1 + $0xb48] sm:$0xff]
  %v487 = vld [vmem:[%s1 + $0xb50] sm:$0xff]
  %v488 = vld [vmem:[%s1 + $0xb58] sm:$0xff]
  %v489 = vld [vmem:[%s1 + $0xb60] sm:$0xff]
  %v490 = vld [vmem:[%s1 + $0xb68] sm:$0xff]
  %v491 = vld [vmem:[%s1 + $0xb70] sm:$0xff]
  %v492 = vld [vmem:[%s1 + $0xb78] sm:$0xff]
  %v493 = vld [vmem:[%s1 + $0xb80] sm:$0xff]
  %v494 = vld [vmem:[%s1 + $0xb88] sm:$0xff]
  %v495 = vld [vmem:[%s1 + $0xb90] sm:$0xff]
  %v496 = vld [vmem:[%s1 + $0xb98] sm:$0xff]
  %v497 = vld [vmem:[%s1 + $0xba0] sm:$0xff]
  %v498 = vld [vmem:[%s1 + $0xba8] sm:$0xff]
  %v499 = vld [vmem:[%s1 + $0xbb0] sm:$0xff]
  %v500 = vld [vmem:[%s1 + $0xbb8] sm:$0xff]
  %v501 = vld [vmem:[%s1 + $0xbc0] sm:$0xff]
  %v502 = vld [vmem:[%s1 + $0xbc8] sm:$0xff]
  %v503 = vld [vmem:[%s1 + $0xbd0] sm:$0xff]
  %v504 = vld [vmem:[%s1 + $0xbd8] sm:$0xff]
  %v505 = vld [vmem:[%s1 + $0xbe0] sm:$0xff]
  %v506 = vld [vmem:[%s1 + $0xbe8] sm:$0xff]
  %v507 = vld [vmem:[%s1 + $0xbf0] sm:$0xff]
  %v508 = vld [vmem:[%s1 + $0xbf8] sm:$0xff]
  %v509 = vld [vmem:[%s1 + $0xc00] sm:$0xff]
  %v510 = vld [vmem:[%s1 + $0xc08] sm:$0xff]
  %v511 = vld [vmem:[%s1 + $0xc10] sm:$0xff]
  %v512 = vld [vmem:[%s1 + $0xc18] sm:$0xff]
  %v513 = vld [vmem:[%s1 + $0xc20] sm:$0xff]
  %v514 = vld [vmem:[%s1 + $0xc28] sm:$0xff]
  %v515 = vld [vmem:[%s1 + $0xc30] sm:$0xff]
  %v516 = vld [vmem:[%s1 + $0xc38] sm:$0xff]
  %v517 = vld [vmem:[%s1 + $0xc40] sm:$0xff]
  %v518 = vld [vmem:[%s1 + $0xc48] sm:$0xff]
  %v519 = vld [vmem:[%s1 + $0xc50] sm:$0xff]
  %v520 = vld [vmem:[%s1 + $0xc58] sm:$0xff]
  %v521 = vld [vmem:[%s1 + $0xc60] sm:$0xff]
  %v522 = vld [vmem:[%s1 + $0xc68] sm:$0xff]
  %v523 = vld [vmem:[%s1 + $0xc70] sm:$0xff]
  %v524 = vld [vmem:[%s1 + $0xc78] sm:$0xff]
  %v525 = vld [vmem:[%s1 + $0xc80] sm:$0xff]
  %v526 = vld [vmem:[%s1 + $0xc88] sm:$0xff]
  %v527 = vld [vmem:[%s1 + $0xc90] sm:$0xff]
  %v528 = vld [vmem:[%s1 + $0xc98] sm:$0xff]
  %v529 = vld [vmem:[%s1 + $0xca0] sm:$0xff]
  %v530 = vld [vmem:[%s1 + $0xca8] sm:$0xff]
  %v531 = vld [vmem:[%s1 + $0xcb0] sm:$0xff]
  %v532 = vld [vmem:[%s1 + $0xcb8] sm:$0xff]
  %v533 = vld [vmem:[%s1 + $0xcc0] sm:$0xff]
  %v534 = vld [vmem:[%s1 + $0xcc8] sm:$0xff]
  %v535 = vld [vmem:[%s1 + $0xcd0] sm:$0xff]
  %v536 = vld [vmem:[%s1 + $0xcd8] sm:$0xff]
  %v537 = vld [vmem:[%s1 + $0xce0] sm:$0xff]
  %v538 = vld [vmem:[%s1 + $0xce8] sm:$0xff]
  %v539 = vld [vmem:[%s1 + $0xcf0] sm:$0xff]
  %v540 = vld [vmem:[%s1 + $0xcf8] sm:$0xff]
  %v541 = vld [vmem:[%s1 + $0xd00] sm:$0xff]
  %v542 = vld [vmem:[%s1 + $0xd08] sm:$0xff]
  %v543 = vld [vmem:[%s1 + $0xd10] sm:$0xff]
  %v544 = vld [vmem:[%s1 + $0xd18] sm:$0xff]
  %v545 = vld [vmem:[%s1 + $0xd20] sm:$0xff]
  %v546 = vld [vmem:[%s1 + $0xd28] sm:$0xff]
  %v547 = vld [vmem:[%s1 + $0xd30] sm:$0xff]
  %v548 = vld [vmem:[%s1 + $0xd38] sm:$0xff]
  %v549 = vld [vmem:[%s1 + $0xd40] sm:$0xff]
  %v550 = vld [vmem:[%s1 + $0xd48] sm:$0xff]
  %v551 = vld [vmem:[%s1 + $0xd50] sm:$0xff]
  %v552 = vld [vmem:[%s1 + $0xd58] sm:$0xff]
  %v553 = vld [vmem:[%s1 + $0xd60] sm:$0xff]
  %v554 = vld [vmem:[%s1 + $0xd68] sm:$0xff]
  %v555 = vld [vmem:[%s1 + $0xd70] sm:$0xff]
  %v556 = vld [vmem:[%s1 + $0xd78] sm:$0xff]
  %557 = vmatprep.subr.mxu0 0.0
  %558 = vmatpush1.msra.mxu0 %v140
  %559 = vmatprep.subr.mxu0 0.0
  %560 = vmatpush1.msra.mxu0 %v139
  %561 = vmatprep.subr.mxu0 0.0
  %562 = vmatpush1.msra.mxu0 %v138
  %563 = vmatprep.subr.mxu0 0.0
  %564 = vmatpush1.msra.mxu0 %v137
  %565 = vmatprep.subr.mxu0 0.0
  %566 = vmatpush1.msra.mxu0 %v136
  %567 = vmatprep.subr.mxu0 0.0
  %568 = vmatpush1.msra.mxu0 %v135
  %569 = vmatprep.subr.mxu0 0.0
  %570 = vmatpush1.msra.mxu0 %v134
  %571 = vmatprep.subr.mxu0 0.0
  %572 = vmatpush1.msra.mxu0 %v133
  %573 = vmatprep.subr.mxu0 0.0
  %574 = vmatpush1.msra.mxu0 %v132
  %575 = vmatprep.subr.mxu0 0.0
  %576 = vmatpush1.msra.mxu0 %v131
  %577 = vmatprep.subr.mxu0 0.0
  %578 = vmatpush1.msra.mxu0 %v130
  %579 = vmatprep.subr.mxu0 0.0
  %580 = vmatpush1.msra.mxu0 %v129
  %581 = vmatprep.subr.mxu0 0.0
  %582 = vmatpush1.msra.mxu0 %v128
  %583 = vmatprep.subr.mxu0 0.0
  %584 = vmatpush1.msra.mxu0 %v127
  %585 = vmatprep.subr.mxu0 0.0
  %586 = vmatpush1.msra.mxu0 %v126
  %587 = vmatprep.subr.mxu0 0.0
  %588 = vmatpush1.msra.mxu0 %v125
  %589 = vmatprep.subr.mxu0 0.0
  %590 = vmatpush2.msra.mxu0 %v156
  %591 = vmatprep.subr.mxu0 0.0
  %592 = vmatpush2.msra.mxu0 %v155
  %593 = vmatprep.subr.mxu0 0.0
  %594 = vmatpush2.msra.mxu0 %v154
  %595 = vmatprep.subr.mxu0 0.0
  %596 = vmatpush2.msra.mxu0 %v153
  %597 = vmatprep.subr.mxu0 0.0
  %598 = vmatpush2.msra.mxu0 %v152
  %599 = vmatprep.subr.mxu0 0.0
  %600 = vmatpush2.msra.mxu0 %v151
  %601 = vmatprep.subr.mxu0 0.0
  %602 = vmatpush2.msra.mxu0 %v150
  %603 = vmatprep.subr.mxu0 0.0
  %604 = vmatpush2.msra.mxu0 %v149
  %605 = vmatprep.subr.mxu0 0.0
  %606 = vmatpush2.msra.mxu0 %v148
  %607 = vmatprep.subr.mxu0 0.0
  %608 = vmatpush2.msra.mxu0 %v147
  %609 = vmatprep.subr.mxu0 0.0
  %610 = vmatpush2.msra.mxu0 %v146
  %611 = vmatprep.subr.mxu0 0.0
  %612 = vmatpush2.msra.mxu0 %v145
  %613 = vmatprep.subr.mxu0 0.0
  %614 = vmatpush2.msra.mxu0 %v144
  %615 = vmatprep.subr.mxu0 0.0
  %616 = vmatpush2.msra.mxu0 %v143
  %617 = vmatprep.subr.mxu0 0.0
  %618 = vmatpush2.msra.mxu0 %v142
  %619 = vmatprep.subr.mxu0 0.0
  %620 = vmatpush2.msra.mxu0 %v141
  %621 = vmatprep.mubr.f32.mxu0 %v18
  %622 = vmatmul.mubr.f32.gmra.mxu0 %v17
  %v623 = vpop.f32.mrf.mxu0
  %v624 = vadd.f32 0.0, %v623
  %v625 = vpop.f32.mrf.mxu0
  %626 = vmatprep.mubr.f32.mxu0 %v45
  %627 = vmatmul.mubr.f32.gmra.mxu0 %v44
  %v628 = vpop.f32.mrf.mxu0
  %v629 = vadd.f32 0.0, %v628
  %v630 = vpop.f32.mrf.mxu0
  %631 = vmatprep.mubr.f32.mxu0 %v72
  %632 = vmatmul.mubr.f32.gmra.mxu0 %v71
  %v633 = vpop.f32.mrf.mxu0
  %v634 = vadd.f32 0.0, %v633
  %v635 = vpop.f32.mrf.mxu0
  %636 = vmatprep.mubr.f32.mxu0 %v99
  %637 = vmatmul.mubr.f32.gmra.mxu0 %v98
  %v638 = vpop.f32.mrf.mxu0
  %v639 = vadd.f32 0.0, %v638
  %v640 = vpop.f32.mrf.mxu0
  %641 = vdwg.mxu0
  %642 = vmatprep.subr.mxu0 0.0
  %643 = vmatpush1.msra.mxu0 %v172
  %644 = vmatprep.subr.mxu0 0.0
  %645 = vmatpush1.msra.mxu0 %v171
  %646 = vmatprep.subr.mxu0 0.0
  %647 = vmatpush1.msra.mxu0 %v170
  %648 = vmatprep.subr.mxu0 0.0
  %649 = vmatpush1.msra.mxu0 %v169
  %650 = vmatprep.subr.mxu0 0.0
  %651 = vmatpush1.msra.mxu0 %v168
  %652 = vmatprep.subr.mxu0 0.0
  %653 = vmatpush1.msra.mxu0 %v167
  %654 = vmatprep.subr.mxu0 0.0
  %655 = vmatpush1.msra.mxu0 %v166
  %656 = vmatprep.subr.mxu0 0.0
  %657 = vmatpush1.msra.mxu0 %v165
  %658 = vmatprep.subr.mxu0 0.0
  %659 = vmatpush1.msra.mxu0 %v164
  %660 = vmatprep.subr.mxu0 0.0
  %661 = vmatpush1.msra.mxu0 %v163
  %662 = vmatprep.subr.mxu0 0.0
  %663 = vmatpush1.msra.mxu0 %v162
  %664 = vmatprep.subr.mxu0 0.0
  %665 = vmatpush1.msra.mxu0 %v161
  %666 = vmatprep.subr.mxu0 0.0
  %667 = vmatpush1.msra.mxu0 %v160
  %668 = vmatprep.subr.mxu0 0.0
  %669 = vmatpush1.msra.mxu0 %v159
  %670 = vmatprep.subr.mxu0 0.0
  %671 = vmatpush1.msra.mxu0 %v158
  %672 = vmatprep.subr.mxu0 0.0
  %673 = vmatpush1.msra.mxu0 %v157
  %674 = vmatprep.subr.mxu0 0.0
  %675 = vmatpush2.msra.mxu0 %v188
  %676 = vmatprep.subr.mxu0 0.0
  %677 = vmatpush2.msra.mxu0 %v187
  %678 = vmatprep.subr.mxu0 0.0
  %679 = vmatpush2.msra.mxu0 %v186
  %680 = vmatprep.subr.mxu0 0.0
  %681 = vmatpush2.msra.mxu0 %v185
  %682 = vmatprep.subr.mxu0 0.0
  %683 = vmatpush2.msra.mxu0 %v184
  %684 = vmatprep.subr.mxu0 0.0
  %685 = vmatpush2.msra.mxu0 %v183
  %686 = vmatprep.subr.mxu0 0.0
  %687 = vmatpush2.msra.mxu0 %v182
  %688 = vmatprep.subr.mxu0 0.0
  %689 = vmatpush2.msra.mxu0 %v181
  %690 = vmatprep.subr.mxu0 0.0
  %691 = vmatpush2.msra.mxu0 %v180
  %692 = vmatprep.subr.mxu0 0.0
  %693 = vmatpush2.msra.mxu0 %v179
  %694 = vmatprep.subr.mxu0 0.0
  %695 = vmatpush2.msra.mxu0 %v178
  %696 = vmatprep.subr.mxu0 0.0
  %697 = vmatpush2.msra.mxu0 %v177
  %698 = vmatprep.subr.mxu0 0.0
  %699 = vmatpush2.msra.mxu0 %v176
  %700 = vmatprep.subr.mxu0 0.0
  %701 = vmatpush2.msra.mxu0 %v175
  %702 = vmatprep.subr.mxu0 0.0
  %703 = vmatpush2.msra.mxu0 %v174
  %704 = vmatprep.subr.mxu0 0.0
  %705 = vmatpush2.msra.mxu0 %v173
  %706 = vmatprep.mubr.f32.mxu0 %v20
  %707 = vmatmul.mubr.f32.gmra.mxu0 %v19
  %v708 = vpop.f32.mrf.mxu0
  %v709 = vadd.f32 %v624, %v708
  %v710 = vpop.f32.mrf.mxu0
  %711 = vmatprep.mubr.f32.mxu0 %v47
  %712 = vmatmul.mubr.f32.gmra.mxu0 %v46
  %v713 = vpop.f32.mrf.mxu0
  %v714 = vadd.f32 %v629, %v713
  %v715 = vpop.f32.mrf.mxu0
  %716 = vmatprep.mubr.f32.mxu0 %v74
  %717 = vmatmul.mubr.f32.gmra.mxu0 %v73
  %v718 = vpop.f32.mrf.mxu0
  %v719 = vadd.f32 %v634, %v718
  %v720 = vpop.f32.mrf.mxu0
  %721 = vmatprep.mubr.f32.mxu0 %v101
  %722 = vmatmul.mubr.f32.gmra.mxu0 %v100
  %v723 = vpop.f32.mrf.mxu0
  %v724 = vadd.f32 %v639, %v723
  %v725 = vpop.f32.mrf.mxu0
  %726 = vdwg.mxu0
  %727 = vmatprep.subr.mxu0 0.0
  %728 = vmatpush1.msra.mxu0 %v204
  %729 = vmatprep.subr.mxu0 0.0
  %730 = vmatpush1.msra.mxu0 %v203
  %731 = vmatprep.subr.mxu0 0.0
  %732 = vmatpush1.msra.mxu0 %v202
  %733 = vmatprep.subr.mxu0 0.0
  %734 = vmatpush1.msra.mxu0 %v201
  %735 = vmatprep.subr.mxu0 0.0
  %736 = vmatpush1.msra.mxu0 %v200
  %737 = vmatprep.subr.mxu0 0.0
  %738 = vmatpush1.msra.mxu0 %v199
  %739 = vmatprep.subr.mxu0 0.0
  %740 = vmatpush1.msra.mxu0 %v198
  %741 = vmatprep.subr.mxu0 0.0
  %742 = vmatpush1.msra.mxu0 %v197
  %743 = vmatprep.subr.mxu0 0.0
  %744 = vmatpush1.msra.mxu0 %v196
  %745 = vmatprep.subr.mxu0 0.0
  %746 = vmatpush1.msra.mxu0 %v195
  %747 = vmatprep.subr.mxu0 0.0
  %748 = vmatpush1.msra.mxu0 %v194
  %749 = vmatprep.subr.mxu0 0.0
  %750 = vmatpush1.msra.mxu0 %v193
  %751 = vmatprep.subr.mxu0 0.0
  %752 = vmatpush1.msra.mxu0 %v192
  %753 = vmatprep.subr.mxu0 0.0
  %754 = vmatpush1.msra.mxu0 %v191
  %755 = vmatprep.subr.mxu0 0.0
  %756 = vmatpush1.msra.mxu0 %v190
  %757 = vmatprep.subr.mxu0 0.0
  %758 = vmatpush1.msra.mxu0 %v189
  %759 = vmatprep.subr.mxu0 0.0
  %760 = vmatpush2.msra.mxu0 %v220
  %761 = vmatprep.subr.mxu0 0.0
  %762 = vmatpush2.msra.mxu0 %v219
  %763 = vmatprep.subr.mxu0 0.0
  %764 = vmatpush2.msra.mxu0 %v218
  %765 = vmatprep.subr.mxu0 0.0
  %766 = vmatpush2.msra.mxu0 %v217
  %767 = vmatprep.subr.mxu0 0.0
  %768 = vmatpush2.msra.mxu0 %v216
  %769 = vmatprep.subr.mxu0 0.0
  %770 = vmatpush2.msra.mxu0 %v215
  %771 = vmatprep.subr.mxu0 0.0
  %772 = vmatpush2.msra.mxu0 %v214
  %773 = vmatprep.subr.mxu0 0.0
  %774 = vmatpush2.msra.mxu0 %v213
  %775 = vmatprep.subr.mxu0 0.0
  %776 = vmatpush2.msra.mxu0 %v212
  %777 = vmatprep.subr.mxu0 0.0
  %778 = vmatpush2.msra.mxu0 %v211
  %779 = vmatprep.subr.mxu0 0.0
  %780 = vmatpush2.msra.mxu0 %v210
  %781 = vmatprep.subr.mxu0 0.0
  %782 = vmatpush2.msra.mxu0 %v209
  %783 = vmatprep.subr.mxu0 0.0
  %784 = vmatpush2.msra.mxu0 %v208
  %785 = vmatprep.subr.mxu0 0.0
  %786 = vmatpush2.msra.mxu0 %v207
  %787 = vmatprep.subr.mxu0 0.0
  %788 = vmatpush2.msra.mxu0 %v206
  %789 = vmatprep.subr.mxu0 0.0
  %790 = vmatpush2.msra.mxu0 %v205
  %791 = vmatprep.mubr.f32.mxu0 %v22
  %792 = vmatmul.mubr.f32.gmra.mxu0 %v21
  %v793 = vpop.f32.mrf.mxu0
  %v794 = vadd.f32 %v709, %v793
  %v795 = vpop.f32.mrf.mxu0
  %796 = vmatprep.mubr.f32.mxu0 %v49
  %797 = vmatmul.mubr.f32.gmra.mxu0 %v48
  %v798 = vpop.f32.mrf.mxu0
  %v799 = vadd.f32 %v714, %v798
  %v800 = vpop.f32.mrf.mxu0
  %801 = vmatprep.mubr.f32.mxu0 %v76
  %802 = vmatmul.mubr.f32.gmra.mxu0 %v75
  %v803 = vpop.f32.mrf.mxu0
  %v804 = vadd.f32 %v719, %v803
  %v805 = vpop.f32.mrf.mxu0
  %806 = vmatprep.mubr.f32.mxu0 %v103
  %807 = vmatmul.mubr.f32.gmra.mxu0 %v102
  %v808 = vpop.f32.mrf.mxu0
  %v809 = vadd.f32 %v724, %v808
  %v810 = vpop.f32.mrf.mxu0
  %811 = vdwg.mxu0
  %812 = vmatprep.subr.mxu0 0.0
  %813 = vmatpush1.msra.mxu0 %v236
  %814 = vmatprep.subr.mxu0 0.0
  %815 = vmatpush1.msra.mxu0 %v235
  %816 = vmatprep.subr.mxu0 0.0
  %817 = vmatpush1.msra.mxu0 %v234
  %818 = vmatprep.subr.mxu0 0.0
  %819 = vmatpush1.msra.mxu0 %v233
  %820 = vmatprep.subr.mxu0 0.0
  %821 = vmatpush1.msra.mxu0 %v232
  %822 = vmatprep.subr.mxu0 0.0
  %823 = vmatpush1.msra.mxu0 %v231
  %824 = vmatprep.subr.mxu0 0.0
  %825 = vmatpush1.msra.mxu0 %v230
  %826 = vmatprep.subr.mxu0 0.0
  %827 = vmatpush1.msra.mxu0 %v229
  %828 = vmatprep.subr.mxu0 0.0
  %829 = vmatpush1.msra.mxu0 %v228
  %830 = vmatprep.subr.mxu0 0.0
  %831 = vmatpush1.msra.mxu0 %v227
  %832 = vmatprep.subr.mxu0 0.0
  %833 = vmatpush1.msra.mxu0 %v226
  %834 = vmatprep.subr.mxu0 0.0
  %835 = vmatpush1.msra.mxu0 %v225
  %836 = vmatprep.subr.mxu0 0.0
  %837 = vmatpush1.msra.mxu0 %v224
  %838 = vmatprep.subr.mxu0 0.0
  %839 = vmatpush1.msra.mxu0 %v223
  %840 = vmatprep.subr.mxu0 0.0
  %841 = vmatpush1.msra.mxu0 %v222
  %842 = vmatprep.subr.mxu0 0.0
  %843 = vmatpush1.msra.mxu0 %v221
  %844 = vmatprep.subr.mxu0 0.0
  %845 = vmatpush2.msra.mxu0 %v252
  %846 = vmatprep.subr.mxu0 0.0
  %847 = vmatpush2.msra.mxu0 %v251
  %848 = vmatprep.subr.mxu0 0.0
  %849 = vmatpush2.msra.mxu0 %v250
  %850 = vmatprep.subr.mxu0 0.0
  %851 = vmatpush2.msra.mxu0 %v249
  %852 = vmatprep.subr.mxu0 0.0
  %853 = vmatpush2.msra.mxu0 %v248
  %854 = vmatprep.subr.mxu0 0.0
  %855 = vmatpush2.msra.mxu0 %v247
  %856 = vmatprep.subr.mxu0 0.0
  %857 = vmatpush2.msra.mxu0 %v246
  %858 = vmatprep.subr.mxu0 0.0
  %859 = vmatpush2.msra.mxu0 %v245
  %860 = vmatprep.subr.mxu0 0.0
  %861 = vmatpush2.msra.mxu0 %v244
  %862 = vmatprep.subr.mxu0 0.0
  %863 = vmatpush2.msra.mxu0 %v243
  %864 = vmatprep.subr.mxu0 0.0
  %865 = vmatpush2.msra.mxu0 %v242
  %866 = vmatprep.subr.mxu0 0.0
  %867 = vmatpush2.msra.mxu0 %v241
  %868 = vmatprep.subr.mxu0 0.0
  %869 = vmatpush2.msra.mxu0 %v240
  %870 = vmatprep.subr.mxu0 0.0
  %871 = vmatpush2.msra.mxu0 %v239
  %872 = vmatprep.subr.mxu0 0.0
  %873 = vmatpush2.msra.mxu0 %v238
  %874 = vmatprep.subr.mxu0 0.0
  %875 = vmatpush2.msra.mxu0 %v237
  %876 = vmatprep.mubr.f32.mxu0 %v24
  %877 = vmatmul.mubr.f32.gmra.mxu0 %v23
  %v878 = vpop.f32.mrf.mxu0
  %v879 = vadd.f32 %v794, %v878
  %v880 = vpop.f32.mrf.mxu0
  %881 = vmatprep.mubr.f32.mxu0 %v51
  %882 = vmatmul.mubr.f32.gmra.mxu0 %v50
  %v883 = vpop.f32.mrf.mxu0
  %v884 = vadd.f32 %v799, %v883
  %v885 = vpop.f32.mrf.mxu0
  %886 = vmatprep.mubr.f32.mxu0 %v78
  %887 = vmatmul.mubr.f32.gmra.mxu0 %v77
  %v888 = vpop.f32.mrf.mxu0
  %v889 = vadd.f32 %v804, %v888
  %v890 = vpop.f32.mrf.mxu0
  %891 = vmatprep.mubr.f32.mxu0 %v105
  %892 = vmatmul.mubr.f32.gmra.mxu0 %v104
  %v893 = vpop.f32.mrf.mxu0
  %v894 = vadd.f32 %v809, %v893
  %v895 = vpop.f32.mrf.mxu0
  %896 = vdwg.mxu0
  %897 = vmatprep.subr.mxu0 0.0
  %898 = vmatpush1.msra.mxu0 %v268
  %899 = vmatprep.subr.mxu0 0.0
  %900 = vmatpush1.msra.mxu0 %v267
  %901 = vmatprep.subr.mxu0 0.0
  %902 = vmatpush1.msra.mxu0 %v266
  %903 = vmatprep.subr.mxu0 0.0
  %904 = vmatpush1.msra.mxu0 %v265
  %905 = vmatprep.subr.mxu0 0.0
  %906 = vmatpush1.msra.mxu0 %v264
  %907 = vmatprep.subr.mxu0 0.0
  %908 = vmatpush1.msra.mxu0 %v263
  %909 = vmatprep.subr.mxu0 0.0
  %910 = vmatpush1.msra.mxu0 %v262
  %911 = vmatprep.subr.mxu0 0.0
  %912 = vmatpush1.msra.mxu0 %v261
  %913 = vmatprep.subr.mxu0 0.0
  %914 = vmatpush1.msra.mxu0 %v260
  %915 = vmatprep.subr.mxu0 0.0
  %916 = vmatpush1.msra.mxu0 %v259
  %917 = vmatprep.subr.mxu0 0.0
  %918 = vmatpush1.msra.mxu0 %v258
  %919 = vmatprep.subr.mxu0 0.0
  %920 = vmatpush1.msra.mxu0 %v257
  %921 = vmatprep.subr.mxu0 0.0
  %922 = vmatpush1.msra.mxu0 %v256
  %923 = vmatprep.subr.mxu0 0.0
  %924 = vmatpush1.msra.mxu0 %v255
  %925 = vmatprep.subr.mxu0 0.0
  %926 = vmatpush1.msra.mxu0 %v254
  %927 = vmatprep.subr.mxu0 0.0
  %928 = vmatpush1.msra.mxu0 %v253
  %929 = vmatprep.subr.mxu0 0.0
  %930 = vmatpush2.msra.mxu0 %v284
  %931 = vmatprep.subr.mxu0 0.0
  %932 = vmatpush2.msra.mxu0 %v283
  %933 = vmatprep.subr.mxu0 0.0
  %934 = vmatpush2.msra.mxu0 %v282
  %935 = vmatprep.subr.mxu0 0.0
  %936 = vmatpush2.msra.mxu0 %v281
  %937 = vmatprep.subr.mxu0 0.0
  %938 = vmatpush2.msra.mxu0 %v280
  %939 = vmatprep.subr.mxu0 0.0
  %940 = vmatpush2.msra.mxu0 %v279
  %941 = vmatprep.subr.mxu0 0.0
  %942 = vmatpush2.msra.mxu0 %v278
  %943 = vmatprep.subr.mxu0 0.0
  %944 = vmatpush2.msra.mxu0 %v277
  %945 = vmatprep.subr.mxu0 0.0
  %946 = vmatpush2.msra.mxu0 %v276
  %947 = vmatprep.subr.mxu0 0.0
  %948 = vmatpush2.msra.mxu0 %v275
  %949 = vmatprep.subr.mxu0 0.0
  %950 = vmatpush2.msra.mxu0 %v274
  %951 = vmatprep.subr.mxu0 0.0
  %952 = vmatpush2.msra.mxu0 %v273
  %953 = vmatprep.subr.mxu0 0.0
  %954 = vmatpush2.msra.mxu0 %v272
  %955 = vmatprep.subr.mxu0 0.0
  %956 = vmatpush2.msra.mxu0 %v271
  %957 = vmatprep.subr.mxu0 0.0
  %958 = vmatpush2.msra.mxu0 %v270
  %959 = vmatprep.subr.mxu0 0.0
  %960 = vmatpush2.msra.mxu0 %v269
  %961 = vmatprep.mubr.f32.mxu0 %v26
  %962 = vmatmul.mubr.f32.gmra.mxu0 %v25
  %v963 = vpop.f32.mrf.mxu0
  %v964 = vadd.f32 %v879, %v963
  %v965 = vpop.f32.mrf.mxu0
  %966 = vmatprep.mubr.f32.mxu0 %v53
  %967 = vmatmul.mubr.f32.gmra.mxu0 %v52
  %v968 = vpop.f32.mrf.mxu0
  %v969 = vadd.f32 %v884, %v968
  %v970 = vpop.f32.mrf.mxu0
  %971 = vmatprep.mubr.f32.mxu0 %v80
  %972 = vmatmul.mubr.f32.gmra.mxu0 %v79
  %v973 = vpop.f32.mrf.mxu0
  %v974 = vadd.f32 %v889, %v973
  %v975 = vpop.f32.mrf.mxu0
  %976 = vmatprep.mubr.f32.mxu0 %v107
  %977 = vmatmul.mubr.f32.gmra.mxu0 %v106
  %v978 = vpop.f32.mrf.mxu0
  %v979 = vadd.f32 %v894, %v978
  %v980 = vpop.f32.mrf.mxu0
  %981 = vdwg.mxu0
  %982 = vmatprep.subr.mxu0 0.0
  %983 = vmatpush1.msra.mxu0 %v300
  %984 = vmatprep.subr.mxu0 0.0
  %985 = vmatpush1.msra.mxu0 %v299
  %986 = vmatprep.subr.mxu0 0.0
  %987 = vmatpush1.msra.mxu0 %v298
  %988 = vmatprep.subr.mxu0 0.0
  %989 = vmatpush1.msra.mxu0 %v297
  %990 = vmatprep.subr.mxu0 0.0
  %991 = vmatpush1.msra.mxu0 %v296
  %992 = vmatprep.subr.mxu0 0.0
  %993 = vmatpush1.msra.mxu0 %v295
  %994 = vmatprep.subr.mxu0 0.0
  %995 = vmatpush1.msra.mxu0 %v294
  %996 = vmatprep.subr.mxu0 0.0
  %997 = vmatpush1.msra.mxu0 %v293
  %998 = vmatprep.subr.mxu0 0.0
  %999 = vmatpush1.msra.mxu0 %v292
  %1000 = vmatprep.subr.mxu0 0.0
  %1001 = vmatpush1.msra.mxu0 %v291
  %1002 = vmatprep.subr.mxu0 0.0
  %1003 = vmatpush1.msra.mxu0 %v290
  %1004 = vmatprep.subr.mxu0 0.0
  %1005 = vmatpush1.msra.mxu0 %v289
  %1006 = vmatprep.subr.mxu0 0.0
  %1007 = vmatpush1.msra.mxu0 %v288
  %1008 = vmatprep.subr.mxu0 0.0
  %1009 = vmatpush1.msra.mxu0 %v287
  %1010 = vmatprep.subr.mxu0 0.0
  %1011 = vmatpush1.msra.mxu0 %v286
  %1012 = vmatprep.subr.mxu0 0.0
  %1013 = vmatpush1.msra.mxu0 %v285
  %1014 = vmatprep.subr.mxu0 0.0
  %1015 = vmatpush2.msra.mxu0 %v316
  %1016 = vmatprep.subr.mxu0 0.0
  %1017 = vmatpush2.msra.mxu0 %v315
  %1018 = vmatprep.subr.mxu0 0.0
  %1019 = vmatpush2.msra.mxu0 %v314
  %1020 = vmatprep.subr.mxu0 0.0
  %1021 = vmatpush2.msra.mxu0 %v313
  %1022 = vmatprep.subr.mxu0 0.0
  %1023 = vmatpush2.msra.mxu0 %v312
  %1024 = vmatprep.subr.mxu0 0.0
  %1025 = vmatpush2.msra.mxu0 %v311
  %1026 = vmatprep.subr.mxu0 0.0
  %1027 = vmatpush2.msra.mxu0 %v310
  %1028 = vmatprep.subr.mxu0 0.0
  %1029 = vmatpush2.msra.mxu0 %v309
  %1030 = vmatprep.subr.mxu0 0.0
  %1031 = vmatpush2.msra.mxu0 %v308
  %1032 = vmatprep.subr.mxu0 0.0
  %1033 = vmatpush2.msra.mxu0 %v307
  %1034 = vmatprep.subr.mxu0 0.0
  %1035 = vmatpush2.msra.mxu0 %v306
  %1036 = vmatprep.subr.mxu0 0.0
  %1037 = vmatpush2.msra.mxu0 %v305
  %1038 = vmatprep.subr.mxu0 0.0
  %1039 = vmatpush2.msra.mxu0 %v304
  %1040 = vmatprep.subr.mxu0 0.0
  %1041 = vmatpush2.msra.mxu0 %v303
  %1042 = vmatprep.subr.mxu0 0.0
  %1043 = vmatpush2.msra.mxu0 %v302
  %1044 = vmatprep.subr.mxu0 0.0
  %1045 = vmatpush2.msra.mxu0 %v301
  %1046 = vmatprep.mubr.f32.mxu0 %v28
  %1047 = vmatmul.mubr.f32.gmra.mxu0 %v27
  %v1048 = vpop.f32.mrf.mxu0
  %v1049 = vadd.f32 %v964, %v1048
  %v1050 = vpop.f32.mrf.mxu0
  %1051 = vmatprep.mubr.f32.mxu0 %v55
  %1052 = vmatmul.mubr.f32.gmra.mxu0 %v54
  %v1053 = vpop.f32.mrf.mxu0
  %v1054 = vadd.f32 %v969, %v1053
  %v1055 = vpop.f32.mrf.mxu0
  %1056 = vmatprep.mubr.f32.mxu0 %v82
  %1057 = vmatmul.mubr.f32.gmra.mxu0 %v81
  %v1058 = vpop.f32.mrf.mxu0
  %v1059 = vadd.f32 %v974, %v1058
  %v1060 = vpop.f32.mrf.mxu0
  %1061 = vmatprep.mubr.f32.mxu0 %v109
  %1062 = vmatmul.mubr.f32.gmra.mxu0 %v108
  %v1063 = vpop.f32.mrf.mxu0
  %v1064 = vadd.f32 %v979, %v1063
  %v1065 = vpop.f32.mrf.mxu0
  %1066 = vdwg.mxu0
  %1067 = vmatprep.subr.mxu0 0.0
  %1068 = vmatpush1.msra.mxu0 %v332
  %1069 = vmatprep.subr.mxu0 0.0
  %1070 = vmatpush1.msra.mxu0 %v331
  %1071 = vmatprep.subr.mxu0 0.0
  %1072 = vmatpush1.msra.mxu0 %v330
  %1073 = vmatprep.subr.mxu0 0.0
  %1074 = vmatpush1.msra.mxu0 %v329
  %1075 = vmatprep.subr.mxu0 0.0
  %1076 = vmatpush1.msra.mxu0 %v328
  %1077 = vmatprep.subr.mxu0 0.0
  %1078 = vmatpush1.msra.mxu0 %v327
  %1079 = vmatprep.subr.mxu0 0.0
  %1080 = vmatpush1.msra.mxu0 %v326
  %1081 = vmatprep.subr.mxu0 0.0
  %1082 = vmatpush1.msra.mxu0 %v325
  %1083 = vmatprep.subr.mxu0 0.0
  %1084 = vmatpush1.msra.mxu0 %v324
  %1085 = vmatprep.subr.mxu0 0.0
  %1086 = vmatpush1.msra.mxu0 %v323
  %1087 = vmatprep.subr.mxu0 0.0
  %1088 = vmatpush1.msra.mxu0 %v322
  %1089 = vmatprep.subr.mxu0 0.0
  %1090 = vmatpush1.msra.mxu0 %v321
  %1091 = vmatprep.subr.mxu0 0.0
  %1092 = vmatpush1.msra.mxu0 %v320
  %1093 = vmatprep.subr.mxu0 0.0
  %1094 = vmatpush1.msra.mxu0 %v319
  %1095 = vmatprep.subr.mxu0 0.0
  %1096 = vmatpush1.msra.mxu0 %v318
  %1097 = vmatprep.subr.mxu0 0.0
  %1098 = vmatpush1.msra.mxu0 %v317
  %1099 = vmatprep.subr.mxu0 0.0
  %1100 = vmatpush2.msra.mxu0 %v348
  %1101 = vmatprep.subr.mxu0 0.0
  %1102 = vmatpush2.msra.mxu0 %v347
  %1103 = vmatprep.subr.mxu0 0.0
  %1104 = vmatpush2.msra.mxu0 %v346
  %1105 = vmatprep.subr.mxu0 0.0
  %1106 = vmatpush2.msra.mxu0 %v345
  %1107 = vmatprep.subr.mxu0 0.0
  %1108 = vmatpush2.msra.mxu0 %v344
  %1109 = vmatprep.subr.mxu0 0.0
  %1110 = vmatpush2.msra.mxu0 %v343
  %1111 = vmatprep.subr.mxu0 0.0
  %1112 = vmatpush2.msra.mxu0 %v342
  %1113 = vmatprep.subr.mxu0 0.0
  %1114 = vmatpush2.msra.mxu0 %v341
  %1115 = vmatprep.subr.mxu0 0.0
  %1116 = vmatpush2.msra.mxu0 %v340
  %1117 = vmatprep.subr.mxu0 0.0
  %1118 = vmatpush2.msra.mxu0 %v339
  %1119 = vmatprep.subr.mxu0 0.0
  %1120 = vmatpush2.msra.mxu0 %v338
  %1121 = vmatprep.subr.mxu0 0.0
  %1122 = vmatpush2.msra.mxu0 %v337
  %1123 = vmatprep.subr.mxu0 0.0
  %1124 = vmatpush2.msra.mxu0 %v336
  %1125 = vmatprep.subr.mxu0 0.0
  %1126 = vmatpush2.msra.mxu0 %v335
  %1127 = vmatprep.subr.mxu0 0.0
  %1128 = vmatpush2.msra.mxu0 %v334
  %1129 = vmatprep.subr.mxu0 0.0
  %1130 = vmatpush2.msra.mxu0 %v333
  %1131 = vmatprep.mubr.f32.mxu0 %v30
  %1132 = vmatmul.mubr.f32.gmra.mxu0 %v29
  %v1133 = vpop.f32.mrf.mxu0
  %v1134 = vadd.f32 %v1049, %v1133
  %v1135 = vpop.f32.mrf.mxu0
  %1136 = vmatprep.mubr.f32.mxu0 %v57
  %1137 = vmatmul.mubr.f32.gmra.mxu0 %v56
  %v1138 = vpop.f32.mrf.mxu0
  %v1139 = vadd.f32 %v1054, %v1138
  %v1140 = vpop.f32.mrf.mxu0
  %1141 = vmatprep.mubr.f32.mxu0 %v84
  %1142 = vmatmul.mubr.f32.gmra.mxu0 %v83
  %v1143 = vpop.f32.mrf.mxu0
  %v1144 = vadd.f32 %v1059, %v1143
  %v1145 = vpop.f32.mrf.mxu0
  %1146 = vmatprep.mubr.f32.mxu0 %v111
  %1147 = vmatmul.mubr.f32.gmra.mxu0 %v110
  %v1148 = vpop.f32.mrf.mxu0
  %v1149 = vadd.f32 %v1064, %v1148
  %v1150 = vpop.f32.mrf.mxu0
  %1151 = vdwg.mxu0
  %1152 = vmatprep.subr.mxu0 0.0
  %1153 = vmatpush1.msra.mxu0 %v364
  %1154 = vmatprep.subr.mxu0 0.0
  %1155 = vmatpush1.msra.mxu0 %v363
  %1156 = vmatprep.subr.mxu0 0.0
  %1157 = vmatpush1.msra.mxu0 %v362
  %1158 = vmatprep.subr.mxu0 0.0
  %1159 = vmatpush1.msra.mxu0 %v361
  %1160 = vmatprep.subr.mxu0 0.0
  %1161 = vmatpush1.msra.mxu0 %v360
  %1162 = vmatprep.subr.mxu0 0.0
  %1163 = vmatpush1.msra.mxu0 %v359
  %1164 = vmatprep.subr.mxu0 0.0
  %1165 = vmatpush1.msra.mxu0 %v358
  %1166 = vmatprep.subr.mxu0 0.0
  %1167 = vmatpush1.msra.mxu0 %v357
  %1168 = vmatprep.subr.mxu0 0.0
  %1169 = vmatpush1.msra.mxu0 %v356
  %1170 = vmatprep.subr.mxu0 0.0
  %1171 = vmatpush1.msra.mxu0 %v355
  %1172 = vmatprep.subr.mxu0 0.0
  %1173 = vmatpush1.msra.mxu0 %v354
  %1174 = vmatprep.subr.mxu0 0.0
  %1175 = vmatpush1.msra.mxu0 %v353
  %1176 = vmatprep.subr.mxu0 0.0
  %1177 = vmatpush1.msra.mxu0 %v352
  %1178 = vmatprep.subr.mxu0 0.0
  %1179 = vmatpush1.msra.mxu0 %v351
  %1180 = vmatprep.subr.mxu0 0.0
  %1181 = vmatpush1.msra.mxu0 %v350
  %1182 = vmatprep.subr.mxu0 0.0
  %1183 = vmatpush1.msra.mxu0 %v349
  %1184 = vmatprep.subr.mxu0 0.0
  %1185 = vmatpush2.msra.mxu0 %v380
  %1186 = vmatprep.subr.mxu0 0.0
  %1187 = vmatpush2.msra.mxu0 %v379
  %1188 = vmatprep.subr.mxu0 0.0
  %1189 = vmatpush2.msra.mxu0 %v378
  %1190 = vmatprep.subr.mxu0 0.0
  %1191 = vmatpush2.msra.mxu0 %v377
  %1192 = vmatprep.subr.mxu0 0.0
  %1193 = vmatpush2.msra.mxu0 %v376
  %1194 = vmatprep.subr.mxu0 0.0
  %1195 = vmatpush2.msra.mxu0 %v375
  %1196 = vmatprep.subr.mxu0 0.0
  %1197 = vmatpush2.msra.mxu0 %v374
  %1198 = vmatprep.subr.mxu0 0.0
  %1199 = vmatpush2.msra.mxu0 %v373
  %1200 = vmatprep.subr.mxu0 0.0
  %1201 = vmatpush2.msra.mxu0 %v372
  %1202 = vmatprep.subr.mxu0 0.0
  %1203 = vmatpush2.msra.mxu0 %v371
  %1204 = vmatprep.subr.mxu0 0.0
  %1205 = vmatpush2.msra.mxu0 %v370
  %1206 = vmatprep.subr.mxu0 0.0
  %1207 = vmatpush2.msra.mxu0 %v369
  %1208 = vmatprep.subr.mxu0 0.0
  %1209 = vmatpush2.msra.mxu0 %v368
  %1210 = vmatprep.subr.mxu0 0.0
  %1211 = vmatpush2.msra.mxu0 %v367
  %1212 = vmatprep.subr.mxu0 0.0
  %1213 = vmatpush2.msra.mxu0 %v366
  %1214 = vmatprep.subr.mxu0 0.0
  %1215 = vmatpush2.msra.mxu0 %v365
  %1216 = vmatprep.mubr.f32.mxu0 %v32
  %1217 = vmatmul.mubr.f32.gmra.mxu0 %v31
  %v1218 = vpop.f32.mrf.mxu0
  %v1219 = vadd.f32 %v1134, %v1218
  %v1220 = vpop.f32.mrf.mxu0
  %1221 = vmatprep.mubr.f32.mxu0 %v59
  %1222 = vmatmul.mubr.f32.gmra.mxu0 %v58
  %v1223 = vpop.f32.mrf.mxu0
  %v1224 = vadd.f32 %v1139, %v1223
  %v1225 = vpop.f32.mrf.mxu0
  %1226 = vmatprep.mubr.f32.mxu0 %v86
  %1227 = vmatmul.mubr.f32.gmra.mxu0 %v85
  %v1228 = vpop.f32.mrf.mxu0
  %v1229 = vadd.f32 %v1144, %v1228
  %v1230 = vpop.f32.mrf.mxu0
  %1231 = vmatprep.mubr.f32.mxu0 %v113
  %1232 = vmatmul.mubr.f32.gmra.mxu0 %v112
  %v1233 = vpop.f32.mrf.mxu0
  %v1234 = vadd.f32 %v1149, %v1233
  %v1235 = vpop.f32.mrf.mxu0
  %1236 = vdwg.mxu0
  %1237 = vmatprep.subr.mxu0 0.0
  %1238 = vmatpush1.msra.mxu0 %v396
  %1239 = vmatprep.subr.mxu0 0.0
  %1240 = vmatpush1.msra.mxu0 %v395
  %1241 = vmatprep.subr.mxu0 0.0
  %1242 = vmatpush1.msra.mxu0 %v394
  %1243 = vmatprep.subr.mxu0 0.0
  %1244 = vmatpush1.msra.mxu0 %v393
  %1245 = vmatprep.subr.mxu0 0.0
  %1246 = vmatpush1.msra.mxu0 %v392
  %1247 = vmatprep.subr.mxu0 0.0
  %1248 = vmatpush1.msra.mxu0 %v391
  %1249 = vmatprep.subr.mxu0 0.0
  %1250 = vmatpush1.msra.mxu0 %v390
  %1251 = vmatprep.subr.mxu0 0.0
  %1252 = vmatpush1.msra.mxu0 %v389
  %1253 = vmatprep.subr.mxu0 0.0
  %1254 = vmatpush1.msra.mxu0 %v388
  %1255 = vmatprep.subr.mxu0 0.0
  %1256 = vmatpush1.msra.mxu0 %v387
  %1257 = vmatprep.subr.mxu0 0.0
  %1258 = vmatpush1.msra.mxu0 %v386
  %1259 = vmatprep.subr.mxu0 0.0
  %1260 = vmatpush1.msra.mxu0 %v385
  %1261 = vmatprep.subr.mxu0 0.0
  %1262 = vmatpush1.msra.mxu0 %v384
  %1263 = vmatprep.subr.mxu0 0.0
  %1264 = vmatpush1.msra.mxu0 %v383
  %1265 = vmatprep.subr.mxu0 0.0
  %1266 = vmatpush1.msra.mxu0 %v382
  %1267 = vmatprep.subr.mxu0 0.0
  %1268 = vmatpush1.msra.mxu0 %v381
  %1269 = vmatprep.subr.mxu0 0.0
  %1270 = vmatpush2.msra.mxu0 %v412
  %1271 = vmatprep.subr.mxu0 0.0
  %1272 = vmatpush2.msra.mxu0 %v411
  %1273 = vmatprep.subr.mxu0 0.0
  %1274 = vmatpush2.msra.mxu0 %v410
  %1275 = vmatprep.subr.mxu0 0.0
  %1276 = vmatpush2.msra.mxu0 %v409
  %1277 = vmatprep.subr.mxu0 0.0
  %1278 = vmatpush2.msra.mxu0 %v408
  %1279 = vmatprep.subr.mxu0 0.0
  %1280 = vmatpush2.msra.mxu0 %v407
  %1281 = vmatprep.subr.mxu0 0.0
  %1282 = vmatpush2.msra.mxu0 %v406
  %1283 = vmatprep.subr.mxu0 0.0
  %1284 = vmatpush2.msra.mxu0 %v405
  %1285 = vmatprep.subr.mxu0 0.0
  %1286 = vmatpush2.msra.mxu0 %v404
  %1287 = vmatprep.subr.mxu0 0.0
  %1288 = vmatpush2.msra.mxu0 %v403
  %1289 = vmatprep.subr.mxu0 0.0
  %1290 = vmatpush2.msra.mxu0 %v402
  %1291 = vmatprep.subr.mxu0 0.0
  %1292 = vmatpush2.msra.mxu0 %v401
  %1293 = vmatprep.subr.mxu0 0.0
  %1294 = vmatpush2.msra.mxu0 %v400
  %1295 = vmatprep.subr.mxu0 0.0
  %1296 = vmatpush2.msra.mxu0 %v399
  %1297 = vmatprep.subr.mxu0 0.0
  %1298 = vmatpush2.msra.mxu0 %v398
  %1299 = vmatprep.subr.mxu0 0.0
  %1300 = vmatpush2.msra.mxu0 %v397
  %1301 = vmatprep.mubr.f32.mxu0 %v34
  %1302 = vmatmul.mubr.f32.gmra.mxu0 %v33
  %v1303 = vpop.f32.mrf.mxu0
  %v1304 = vadd.f32 %v1219, %v1303
  %v1305 = vpop.f32.mrf.mxu0
  %1306 = vmatprep.mubr.f32.mxu0 %v61
  %1307 = vmatmul.mubr.f32.gmra.mxu0 %v60
  %v1308 = vpop.f32.mrf.mxu0
  %v1309 = vadd.f32 %v1224, %v1308
  %v1310 = vpop.f32.mrf.mxu0
  %1311 = vmatprep.mubr.f32.mxu0 %v88
  %1312 = vmatmul.mubr.f32.gmra.mxu0 %v87
  %v1313 = vpop.f32.mrf.mxu0
  %v1314 = vadd.f32 %v1229, %v1313
  %v1315 = vpop.f32.mrf.mxu0
  %1316 = vmatprep.mubr.f32.mxu0 %v115
  %1317 = vmatmul.mubr.f32.gmra.mxu0 %v114
  %v1318 = vpop.f32.mrf.mxu0
  %v1319 = vadd.f32 %v1234, %v1318
  %v1320 = vpop.f32.mrf.mxu0
  %1321 = vdwg.mxu0
  %1322 = vmatprep.subr.mxu0 0.0
  %1323 = vmatpush1.msra.mxu0 %v428
  %1324 = vmatprep.subr.mxu0 0.0
  %1325 = vmatpush1.msra.mxu0 %v427
  %1326 = vmatprep.subr.mxu0 0.0
  %1327 = vmatpush1.msra.mxu0 %v426
  %1328 = vmatprep.subr.mxu0 0.0
  %1329 = vmatpush1.msra.mxu0 %v425
  %1330 = vmatprep.subr.mxu0 0.0
  %1331 = vmatpush1.msra.mxu0 %v424
  %1332 = vmatprep.subr.mxu0 0.0
  %1333 = vmatpush1.msra.mxu0 %v423
  %1334 = vmatprep.subr.mxu0 0.0
  %1335 = vmatpush1.msra.mxu0 %v422
  %1336 = vmatprep.subr.mxu0 0.0
  %1337 = vmatpush1.msra.mxu0 %v421
  %1338 = vmatprep.subr.mxu0 0.0
  %1339 = vmatpush1.msra.mxu0 %v420
  %1340 = vmatprep.subr.mxu0 0.0
  %1341 = vmatpush1.msra.mxu0 %v419
  %1342 = vmatprep.subr.mxu0 0.0
  %1343 = vmatpush1.msra.mxu0 %v418
  %1344 = vmatprep.subr.mxu0 0.0
  %1345 = vmatpush1.msra.mxu0 %v417
  %1346 = vmatprep.subr.mxu0 0.0
  %1347 = vmatpush1.msra.mxu0 %v416
  %1348 = vmatprep.subr.mxu0 0.0
  %1349 = vmatpush1.msra.mxu0 %v415
  %1350 = vmatprep.subr.mxu0 0.0
  %1351 = vmatpush1.msra.mxu0 %v414
  %1352 = vmatprep.subr.mxu0 0.0
  %1353 = vmatpush1.msra.mxu0 %v413
  %1354 = vmatprep.subr.mxu0 0.0
  %1355 = vmatpush2.msra.mxu0 %v444
  %1356 = vmatprep.subr.mxu0 0.0
  %1357 = vmatpush2.msra.mxu0 %v443
  %1358 = vmatprep.subr.mxu0 0.0
  %1359 = vmatpush2.msra.mxu0 %v442
  %1360 = vmatprep.subr.mxu0 0.0
  %1361 = vmatpush2.msra.mxu0 %v441
  %1362 = vmatprep.subr.mxu0 0.0
  %1363 = vmatpush2.msra.mxu0 %v440
  %1364 = vmatprep.subr.mxu0 0.0
  %1365 = vmatpush2.msra.mxu0 %v439
  %1366 = vmatprep.subr.mxu0 0.0
  %1367 = vmatpush2.msra.mxu0 %v438
  %1368 = vmatprep.subr.mxu0 0.0
  %1369 = vmatpush2.msra.mxu0 %v437
  %1370 = vmatprep.subr.mxu0 0.0
  %1371 = vmatpush2.msra.mxu0 %v436
  %1372 = vmatprep.subr.mxu0 0.0
  %1373 = vmatpush2.msra.mxu0 %v435
  %1374 = vmatprep.subr.mxu0 0.0
  %1375 = vmatpush2.msra.mxu0 %v434
  %1376 = vmatprep.subr.mxu0 0.0
  %1377 = vmatpush2.msra.mxu0 %v433
  %1378 = vmatprep.subr.mxu0 0.0
  %1379 = vmatpush2.msra.mxu0 %v432
  %1380 = vmatprep.subr.mxu0 0.0
  %1381 = vmatpush2.msra.mxu0 %v431
  %1382 = vmatprep.subr.mxu0 0.0
  %1383 = vmatpush2.msra.mxu0 %v430
  %1384 = vmatprep.subr.mxu0 0.0
  %1385 = vmatpush2.msra.mxu0 %v429
  %1386 = vmatprep.mubr.f32.mxu0 %v36
  %1387 = vmatmul.mubr.f32.gmra.mxu0 %v35
  %v1388 = vpop.f32.mrf.mxu0
  %v1389 = vadd.f32 %v1304, %v1388
  %v1390 = vpop.f32.mrf.mxu0
  %1391 = vmatprep.mubr.f32.mxu0 %v63
  %1392 = vmatmul.mubr.f32.gmra.mxu0 %v62
  %v1393 = vpop.f32.mrf.mxu0
  %v1394 = vadd.f32 %v1309, %v1393
  %v1395 = vpop.f32.mrf.mxu0
  %1396 = vmatprep.mubr.f32.mxu0 %v90
  %1397 = vmatmul.mubr.f32.gmra.mxu0 %v89
  %v1398 = vpop.f32.mrf.mxu0
  %v1399 = vadd.f32 %v1314, %v1398
  %v1400 = vpop.f32.mrf.mxu0
  %1401 = vmatprep.mubr.f32.mxu0 %v117
  %1402 = vmatmul.mubr.f32.gmra.mxu0 %v116
  %v1403 = vpop.f32.mrf.mxu0
  %v1404 = vadd.f32 %v1319, %v1403
  %v1405 = vpop.f32.mrf.mxu0
  %1406 = vdwg.mxu0
  %1407 = vmatprep.subr.mxu0 0.0
  %1408 = vmatpush1.msra.mxu0 %v460
  %1409 = vmatprep.subr.mxu0 0.0
  %1410 = vmatpush1.msra.mxu0 %v459
  %1411 = vmatprep.subr.mxu0 0.0
  %1412 = vmatpush1.msra.mxu0 %v458
  %1413 = vmatprep.subr.mxu0 0.0
  %1414 = vmatpush1.msra.mxu0 %v457
  %1415 = vmatprep.subr.mxu0 0.0
  %1416 = vmatpush1.msra.mxu0 %v456
  %1417 = vmatprep.subr.mxu0 0.0
  %1418 = vmatpush1.msra.mxu0 %v455
  %1419 = vmatprep.subr.mxu0 0.0
  %1420 = vmatpush1.msra.mxu0 %v454
  %1421 = vmatprep.subr.mxu0 0.0
  %1422 = vmatpush1.msra.mxu0 %v453
  %1423 = vmatprep.subr.mxu0 0.0
  %1424 = vmatpush1.msra.mxu0 %v452
  %1425 = vmatprep.subr.mxu0 0.0
  %1426 = vmatpush1.msra.mxu0 %v451
  %1427 = vmatprep.subr.mxu0 0.0
  %1428 = vmatpush1.msra.mxu0 %v450
  %1429 = vmatprep.subr.mxu0 0.0
  %1430 = vmatpush1.msra.mxu0 %v449
  %1431 = vmatprep.subr.mxu0 0.0
  %1432 = vmatpush1.msra.mxu0 %v448
  %1433 = vmatprep.subr.mxu0 0.0
  %1434 = vmatpush1.msra.mxu0 %v447
  %1435 = vmatprep.subr.mxu0 0.0
  %1436 = vmatpush1.msra.mxu0 %v446
  %1437 = vmatprep.subr.mxu0 0.0
  %1438 = vmatpush1.msra.mxu0 %v445
  %1439 = vmatprep.subr.mxu0 0.0
  %1440 = vmatpush2.msra.mxu0 %v476
  %1441 = vmatprep.subr.mxu0 0.0
  %1442 = vmatpush2.msra.mxu0 %v475
  %1443 = vmatprep.subr.mxu0 0.0
  %1444 = vmatpush2.msra.mxu0 %v474
  %1445 = vmatprep.subr.mxu0 0.0
  %1446 = vmatpush2.msra.mxu0 %v473
  %1447 = vmatprep.subr.mxu0 0.0
  %1448 = vmatpush2.msra.mxu0 %v472
  %1449 = vmatprep.subr.mxu0 0.0
  %1450 = vmatpush2.msra.mxu0 %v471
  %1451 = vmatprep.subr.mxu0 0.0
  %1452 = vmatpush2.msra.mxu0 %v470
  %1453 = vmatprep.subr.mxu0 0.0
  %1454 = vmatpush2.msra.mxu0 %v469
  %1455 = vmatprep.subr.mxu0 0.0
  %1456 = vmatpush2.msra.mxu0 %v468
  %1457 = vmatprep.subr.mxu0 0.0
  %1458 = vmatpush2.msra.mxu0 %v467
  %1459 = vmatprep.subr.mxu0 0.0
  %1460 = vmatpush2.msra.mxu0 %v466
  %1461 = vmatprep.subr.mxu0 0.0
  %1462 = vmatpush2.msra.mxu0 %v465
  %1463 = vmatprep.subr.mxu0 0.0
  %1464 = vmatpush2.msra.mxu0 %v464
  %1465 = vmatprep.subr.mxu0 0.0
  %1466 = vmatpush2.msra.mxu0 %v463
  %1467 = vmatprep.subr.mxu0 0.0
  %1468 = vmatpush2.msra.mxu0 %v462
  %1469 = vmatprep.subr.mxu0 0.0
  %1470 = vmatpush2.msra.mxu0 %v461
  %1471 = vmatprep.mubr.f32.mxu0 %v38
  %1472 = vmatmul.mubr.f32.gmra.mxu0 %v37
  %v1473 = vpop.f32.mrf.mxu0
  %v1474 = vadd.f32 %v1389, %v1473
  %v1475 = vpop.f32.mrf.mxu0
  %1476 = vmatprep.mubr.f32.mxu0 %v65
  %1477 = vmatmul.mubr.f32.gmra.mxu0 %v64
  %v1478 = vpop.f32.mrf.mxu0
  %v1479 = vadd.f32 %v1394, %v1478
  %v1480 = vpop.f32.mrf.mxu0
  %1481 = vmatprep.mubr.f32.mxu0 %v92
  %1482 = vmatmul.mubr.f32.gmra.mxu0 %v91
  %v1483 = vpop.f32.mrf.mxu0
  %v1484 = vadd.f32 %v1399, %v1483
  %v1485 = vpop.f32.mrf.mxu0
  %1486 = vmatprep.mubr.f32.mxu0 %v119
  %1487 = vmatmul.mubr.f32.gmra.mxu0 %v118
  %v1488 = vpop.f32.mrf.mxu0
  %v1489 = vadd.f32 %v1404, %v1488
  %v1490 = vpop.f32.mrf.mxu0
  %1491 = vdwg.mxu0
  %1492 = vmatprep.subr.mxu0 0.0
  %1493 = vmatpush1.msra.mxu0 %v492
  %1494 = vmatprep.subr.mxu0 0.0
  %1495 = vmatpush1.msra.mxu0 %v491
  %1496 = vmatprep.subr.mxu0 0.0
  %1497 = vmatpush1.msra.mxu0 %v490
  %1498 = vmatprep.subr.mxu0 0.0
  %1499 = vmatpush1.msra.mxu0 %v489
  %1500 = vmatprep.subr.mxu0 0.0
  %1501 = vmatpush1.msra.mxu0 %v488
  %1502 = vmatprep.subr.mxu0 0.0
  %1503 = vmatpush1.msra.mxu0 %v487
  %1504 = vmatprep.subr.mxu0 0.0
  %1505 = vmatpush1.msra.mxu0 %v486
  %1506 = vmatprep.subr.mxu0 0.0
  %1507 = vmatpush1.msra.mxu0 %v485
  %1508 = vmatprep.subr.mxu0 0.0
  %1509 = vmatpush1.msra.mxu0 %v484
  %1510 = vmatprep.subr.mxu0 0.0
  %1511 = vmatpush1.msra.mxu0 %v483
  %1512 = vmatprep.subr.mxu0 0.0
  %1513 = vmatpush1.msra.mxu0 %v482
  %1514 = vmatprep.subr.mxu0 0.0
  %1515 = vmatpush1.msra.mxu0 %v481
  %1516 = vmatprep.subr.mxu0 0.0
  %1517 = vmatpush1.msra.mxu0 %v480
  %1518 = vmatprep.subr.mxu0 0.0
  %1519 = vmatpush1.msra.mxu0 %v479
  %1520 = vmatprep.subr.mxu0 0.0
  %1521 = vmatpush1.msra.mxu0 %v478
  %1522 = vmatprep.subr.mxu0 0.0
  %1523 = vmatpush1.msra.mxu0 %v477
  %1524 = vmatprep.subr.mxu0 0.0
  %1525 = vmatpush2.msra.mxu0 %v508
  %1526 = vmatprep.subr.mxu0 0.0
  %1527 = vmatpush2.msra.mxu0 %v507
  %1528 = vmatprep.subr.mxu0 0.0
  %1529 = vmatpush2.msra.mxu0 %v506
  %1530 = vmatprep.subr.mxu0 0.0
  %1531 = vmatpush2.msra.mxu0 %v505
  %1532 = vmatprep.subr.mxu0 0.0
  %1533 = vmatpush2.msra.mxu0 %v504
  %1534 = vmatprep.subr.mxu0 0.0
  %1535 = vmatpush2.msra.mxu0 %v503
  %1536 = vmatprep.subr.mxu0 0.0
  %1537 = vmatpush2.msra.mxu0 %v502
  %1538 = vmatprep.subr.mxu0 0.0
  %1539 = vmatpush2.msra.mxu0 %v501
  %1540 = vmatprep.subr.mxu0 0.0
  %1541 = vmatpush2.msra.mxu0 %v500
  %1542 = vmatprep.subr.mxu0 0.0
  %1543 = vmatpush2.msra.mxu0 %v499
  %1544 = vmatprep.subr.mxu0 0.0
  %1545 = vmatpush2.msra.mxu0 %v498
  %1546 = vmatprep.subr.mxu0 0.0
  %1547 = vmatpush2.msra.mxu0 %v497
  %1548 = vmatprep.subr.mxu0 0.0
  %1549 = vmatpush2.msra.mxu0 %v496
  %1550 = vmatprep.subr.mxu0 0.0
  %1551 = vmatpush2.msra.mxu0 %v495
  %1552 = vmatprep.subr.mxu0 0.0
  %1553 = vmatpush2.msra.mxu0 %v494
  %1554 = vmatprep.subr.mxu0 0.0
  %1555 = vmatpush2.msra.mxu0 %v493
  %1556 = vmatprep.mubr.f32.mxu0 %v40
  %1557 = vmatmul.mubr.f32.gmra.mxu0 %v39
  %v1558 = vpop.f32.mrf.mxu0
  %v1559 = vadd.f32 %v1474, %v1558
  %v1560 = vpop.f32.mrf.mxu0
  %1561 = vmatprep.mubr.f32.mxu0 %v67
  %1562 = vmatmul.mubr.f32.gmra.mxu0 %v66
  %v1563 = vpop.f32.mrf.mxu0
  %v1564 = vadd.f32 %v1479, %v1563
  %v1565 = vpop.f32.mrf.mxu0
  %1566 = vmatprep.mubr.f32.mxu0 %v94
  %1567 = vmatmul.mubr.f32.gmra.mxu0 %v93
  %v1568 = vpop.f32.mrf.mxu0
  %v1569 = vadd.f32 %v1484, %v1568
  %v1570 = vpop.f32.mrf.mxu0
  %1571 = vmatprep.mubr.f32.mxu0 %v121
  %1572 = vmatmul.mubr.f32.gmra.mxu0 %v120
  %v1573 = vpop.f32.mrf.mxu0
  %v1574 = vadd.f32 %v1489, %v1573
  %v1575 = vpop.f32.mrf.mxu0
  %1576 = vdwg.mxu0
  %1577 = vmatprep.subr.mxu0 0.0
  %1578 = vmatpush1.msra.mxu0 %v524
  %1579 = vmatprep.subr.mxu0 0.0
  %1580 = vmatpush1.msra.mxu0 %v523
  %1581 = vmatprep.subr.mxu0 0.0
  %1582 = vmatpush1.msra.mxu0 %v522
  %1583 = vmatprep.subr.mxu0 0.0
  %1584 = vmatpush1.msra.mxu0 %v521
  %1585 = vmatprep.subr.mxu0 0.0
  %1586 = vmatpush1.msra.mxu0 %v520
  %1587 = vmatprep.subr.mxu0 0.0
  %1588 = vmatpush1.msra.mxu0 %v519
  %1589 = vmatprep.subr.mxu0 0.0
  %1590 = vmatpush1.msra.mxu0 %v518
  %1591 = vmatprep.subr.mxu0 0.0
  %1592 = vmatpush1.msra.mxu0 %v517
  %1593 = vmatprep.subr.mxu0 0.0
  %1594 = vmatpush1.msra.mxu0 %v516
  %1595 = vmatprep.subr.mxu0 0.0
  %1596 = vmatpush1.msra.mxu0 %v515
  %1597 = vmatprep.subr.mxu0 0.0
  %1598 = vmatpush1.msra.mxu0 %v514
  %1599 = vmatprep.subr.mxu0 0.0
  %1600 = vmatpush1.msra.mxu0 %v513
  %1601 = vmatprep.subr.mxu0 0.0
  %1602 = vmatpush1.msra.mxu0 %v512
  %1603 = vmatprep.subr.mxu0 0.0
  %1604 = vmatpush1.msra.mxu0 %v511
  %1605 = vmatprep.subr.mxu0 0.0
  %1606 = vmatpush1.msra.mxu0 %v510
  %1607 = vmatprep.subr.mxu0 0.0
  %1608 = vmatpush1.msra.mxu0 %v509
  %1609 = vmatprep.subr.mxu0 0.0
  %1610 = vmatpush2.msra.mxu0 %v540
  %1611 = vmatprep.subr.mxu0 0.0
  %1612 = vmatpush2.msra.mxu0 %v539
  %1613 = vmatprep.subr.mxu0 0.0
  %1614 = vmatpush2.msra.mxu0 %v538
  %1615 = vmatprep.subr.mxu0 0.0
  %1616 = vmatpush2.msra.mxu0 %v537
  %1617 = vmatprep.subr.mxu0 0.0
  %1618 = vmatpush2.msra.mxu0 %v536
  %1619 = vmatprep.subr.mxu0 0.0
  %1620 = vmatpush2.msra.mxu0 %v535
  %1621 = vmatprep.subr.mxu0 0.0
  %1622 = vmatpush2.msra.mxu0 %v534
  %1623 = vmatprep.subr.mxu0 0.0
  %1624 = vmatpush2.msra.mxu0 %v533
  %1625 = vmatprep.subr.mxu0 0.0
  %1626 = vmatpush2.msra.mxu0 %v532
  %1627 = vmatprep.subr.mxu0 0.0
  %1628 = vmatpush2.msra.mxu0 %v531
  %1629 = vmatprep.subr.mxu0 0.0
  %1630 = vmatpush2.msra.mxu0 %v530
  %1631 = vmatprep.subr.mxu0 0.0
  %1632 = vmatpush2.msra.mxu0 %v529
  %1633 = vmatprep.subr.mxu0 0.0
  %1634 = vmatpush2.msra.mxu0 %v528
  %1635 = vmatprep.subr.mxu0 0.0
  %1636 = vmatpush2.msra.mxu0 %v527
  %1637 = vmatprep.subr.mxu0 0.0
  %1638 = vmatpush2.msra.mxu0 %v526
  %1639 = vmatprep.subr.mxu0 0.0
  %1640 = vmatpush2.msra.mxu0 %v525
  %1641 = vmatprep.mubr.f32.mxu0 %v42
  %1642 = vmatmul.mubr.f32.gmra.mxu0 %v41
  %v1643 = vpop.f32.mrf.mxu0
  %v1644 = vadd.f32 %v1559, %v1643
  %v1645 = vpop.f32.mrf.mxu0
  %1646 = vmatprep.mubr.f32.mxu0 %v69
  %1647 = vmatmul.mubr.f32.gmra.mxu0 %v68
  %v1648 = vpop.f32.mrf.mxu0
  %v1649 = vadd.f32 %v1564, %v1648
  %v1650 = vpop.f32.mrf.mxu0
  %1651 = vmatprep.mubr.f32.mxu0 %v96
  %1652 = vmatmul.mubr.f32.gmra.mxu0 %v95
  %v1653 = vpop.f32.mrf.mxu0
  %v1654 = vadd.f32 %v1569, %v1653
  %v1655 = vpop.f32.mrf.mxu0
  %1656 = vmatprep.mubr.f32.mxu0 %v123
  %1657 = vmatmul.mubr.f32.gmra.mxu0 %v122
  %v1658 = vpop.f32.mrf.mxu0
  %v1659 = vadd.f32 %v1574, %v1658
  %v1660 = vpop.f32.mrf.mxu0
  %1661 = vdwg.mxu0
  %1662 = vmatprep.subr.mxu0 0.0
  %1663 = vmatpush1.msra.mxu0 %v556
  %1664 = vmatprep.subr.mxu0 0.0
  %1665 = vmatpush1.msra.mxu0 %v555
  %1666 = vmatprep.subr.mxu0 0.0
  %1667 = vmatpush1.msra.mxu0 %v554
  %1668 = vmatprep.subr.mxu0 0.0
  %1669 = vmatpush1.msra.mxu0 %v553
  %1670 = vmatprep.subr.mxu0 0.0
  %1671 = vmatpush1.msra.mxu0 %v552
  %1672 = vmatprep.subr.mxu0 0.0
  %1673 = vmatpush1.msra.mxu0 %v551
  %1674 = vmatprep.subr.mxu0 0.0
  %1675 = vmatpush1.msra.mxu0 %v550
  %1676 = vmatprep.subr.mxu0 0.0
  %1677 = vmatpush1.msra.mxu0 %v549
  %1678 = vmatprep.subr.mxu0 0.0
  %1679 = vmatpush1.msra.mxu0 %v548
  %1680 = vmatprep.subr.mxu0 0.0
  %1681 = vmatpush1.msra.mxu0 %v547
  %1682 = vmatprep.subr.mxu0 0.0
  %1683 = vmatpush1.msra.mxu0 %v546
  %1684 = vmatprep.subr.mxu0 0.0
  %1685 = vmatpush1.msra.mxu0 %v545
  %1686 = vmatprep.subr.mxu0 0.0
  %1687 = vmatpush1.msra.mxu0 %v544
  %1688 = vmatprep.subr.mxu0 0.0
  %1689 = vmatpush1.msra.mxu0 %v543
  %1690 = vmatprep.subr.mxu0 0.0
  %1691 = vmatpush1.msra.mxu0 %v542
  %1692 = vmatprep.subr.mxu0 0.0
  %1693 = vmatpush1.msra.mxu0 %v541
  %1694 = vmatprep.subr.mxu0 0.0
  %1695 = vmatpush2.msra.mxu0 0.0
  %1696 = vmatprep.subr.mxu0 0.0
  %1697 = vmatpush2.msra.mxu0 0.0
  %1698 = vmatprep.subr.mxu0 0.0
  %1699 = vmatpush2.msra.mxu0 0.0
  %1700 = vmatprep.subr.mxu0 0.0
  %1701 = vmatpush2.msra.mxu0 0.0
  %1702 = vmatprep.subr.mxu0 0.0
  %1703 = vmatpush2.msra.mxu0 0.0
  %1704 = vmatprep.subr.mxu0 0.0
  %1705 = vmatpush2.msra.mxu0 0.0
  %1706 = vmatprep.subr.mxu0 0.0
  %1707 = vmatpush2.msra.mxu0 0.0
  %1708 = vmatprep.subr.mxu0 0.0
  %1709 = vmatpush2.msra.mxu0 0.0
  %1710 = vmatprep.subr.mxu0 0.0
  %1711 = vmatpush2.msra.mxu0 0.0
  %1712 = vmatprep.subr.mxu0 0.0
  %1713 = vmatpush2.msra.mxu0 0.0
  %1714 = vmatprep.subr.mxu0 0.0
  %1715 = vmatpush2.msra.mxu0 0.0
  %1716 = vmatprep.subr.mxu0 0.0
  %1717 = vmatpush2.msra.mxu0 0.0
  %1718 = vmatprep.subr.mxu0 0.0
  %1719 = vmatpush2.msra.mxu0 0.0
  %1720 = vmatprep.subr.mxu0 0.0
  %1721 = vmatpush2.msra.mxu0 0.0
  %1722 = vmatprep.subr.mxu0 0.0
  %1723 = vmatpush2.msra.mxu0 0.0
  %1724 = vmatprep.subr.mxu0 0.0
  %1725 = vmatpush2.msra.mxu0 0.0
  %1726 = vmatprep.mubr.f32.mxu0 0.0
  %1727 = vmatmul.mubr.f32.gmra.mxu0 %v43
  %v1728 = vpop.f32.mrf.mxu0
  %v1729 = vadd.f32 %v1644, %v1728
  %v1730 = vpop.f32.mrf.mxu0
  %1731 = vmatprep.mubr.f32.mxu0 0.0
  %1732 = vmatmul.mubr.f32.gmra.mxu0 %v70
  %v1733 = vpop.f32.mrf.mxu0
  %v1734 = vadd.f32 %v1649, %v1733
  %v1735 = vpop.f32.mrf.mxu0
  %1736 = vmatprep.mubr.f32.mxu0 0.0
  %1737 = vmatmul.mubr.f32.gmra.mxu0 %v97
  %v1738 = vpop.f32.mrf.mxu0
  %v1739 = vadd.f32 %v1654, %v1738
  %v1740 = vpop.f32.mrf.mxu0
  %1741 = vmatprep.mubr.f32.mxu0 0.0
  %1742 = vmatmul.mubr.f32.gmra.mxu0 %v124
  %v1743 = vpop.f32.mrf.mxu0
  %v1744 = vadd.f32 %v1659, %v1743
  %v1745 = vpop.f32.mrf.mxu0
  %1746 = vdwg.mxu0
  %v1747 = vld [vmem:[%s2] sm:$0x1]
  %v1749 = vlaneseq
  %v1750 = vshrl.u32 %v1749, 7
  %v1751 = vsub.s32 0, %v1750
  %v1752 = vrot.slane %v1747, %v1751
  %v1754 = vmul.f32 %v1729, %v1752
  %v1755 = vmul.f32 %v1734, %v1752
  %v1756 = vmul.f32 %v1739, %v1752
  %v1757 = vmul.f32 %v1744, %v1752
  %v1758 = vld [vmem:[%s3] sm:$0x1]
  %v1760 = vlaneseq
  %v1761 = vshrl.u32 %v1760, 7
  %v1762 = vsub.s32 0, %v1761
  %v1763 = vrot.slane %v1758, %v1762
  %v1765 = vadd.f32 %v1754, %v1763
  %v1766 = vadd.f32 %v1755, %v1763
  %v1767 = vadd.f32 %v1756, %v1763
  %v1768 = vadd.f32 %v1757, %v1763
  %v1769 = vmax.f32 %v1765, 0.0
  %v1770 = vmax.f32 %v1766, 0.0
  %v1771 = vmax.f32 %v1767, 0.0
  %v1772 = vmax.f32 %v1768, 0.0
  %1773 = vst [vmem:[%s4] sm:$0xff] %v1769
  %1774 = vst [vmem:[%s4 + $0x8] sm:$0xff] %v1770
  %1775 = vst [vmem:[%s4 + $0x10] sm:$0xff] %v1771
  %1776 = vst [vmem:[%s4 + $0x18] sm:$0xff] %v1772
  // Predicated region
  $region18: #{frbnet_forward.28} parent=0 // pred_check
    _
  $region19: #{frbnet_forward.28} parent=0 // pred_check_branch
    %1778 = sbr.rel (0) target = $region21
  $region20: #{frbnet_forward.28} parent=0 // pred_region
    _
  $region21: #{frbnet_forward.28} parent=0 // pred_fallthru
    _
  // Predicated region
  $region22: #{frbnet_forward.28} parent=0 // pred_check
    _
  $region23: #{frbnet_forward.28} parent=0 // pred_check_branch
    %1780 = sbr.rel (0) target = $region25
  $region24: #{frbnet_forward.28} parent=0 // pred_region
    _
  $region25: #{frbnet_forward.28} parent=0 // pred_fallthru
    _

// kernel: frbnet_forward.29
$region0: #{frbnet_forward.29}
  #allocation0 [shape = 'u32[]', space=smem, size = 0x4, offset = 0x4, fixed_abs, tag = 'smem constant byte address 0x4 - core index']
  #allocation1 [shape = 'u32[144,128]{1,0:T(1,128)}', space=vmem, size = 0x12000, scoped, tag = 'internal scratch']
  %s0 = inlined_call_operand.vmem [shape: f32[8,128], index: 0, kind: input, shape index: {}]
  %s1 = inlined_call_operand.vmem [shape: f32[128,256], index: 1, kind: input, shape index: {}]
  %s2 = inlined_call_operand.vmem [shape: f32[1,256], index: 2, kind: input, shape index: {}]
  %s3 = inlined_call_operand.vmem [shape: f32[1,256], index: 3, kind: input, shape index: {}]
  %s4 = inlined_call_operand.vmem [shape: f32[8,256], index: 4, kind: output, shape index: {}]
  %s5 = sld [smem:[#allocation0]]
  $region26: #{frbnet_forward.29} parent=0
    _
  %s7 = ssub.s32 1, %s5
  %s8 = scalar_select 0, %s7, %s5
  // Predicated region
  $region2: #{frbnet_forward.29} parent=0 // pred_check
    _
  $region3: #{frbnet_forward.29} parent=0 // pred_check_branch
    %10 = sbr.rel (0) target = $region5
  $region4: #{frbnet_forward.29} parent=0 // pred_region
    _
  $region5: #{frbnet_forward.29} parent=0 // pred_fallthru
    _
  // Predicated region
  $region6: #{frbnet_forward.29} parent=0 // pred_check
    _
  $region7: #{frbnet_forward.29} parent=0 // pred_check_branch
    %12 = sbr.rel (0) target = $region9
  $region8: #{frbnet_forward.29} parent=0 // pred_region
    _
  $region9: #{frbnet_forward.29} parent=0 // pred_fallthru
    _
  // Predicated region
  $region10: #{frbnet_forward.29} parent=0 // pred_check
    _
  $region11: #{frbnet_forward.29} parent=0 // pred_check_branch
    %14 = sbr.rel (0) target = $region13
  $region12: #{frbnet_forward.29} parent=0 // pred_region
    _
  $region13: #{frbnet_forward.29} parent=0 // pred_fallthru
    _
  // Predicated region
  $region14: #{frbnet_forward.29} parent=0 // pred_check
    _
  $region15: #{frbnet_forward.29} parent=0 // pred_check_branch
    %16 = sbr.rel (0) target = $region17
  $region16: #{frbnet_forward.29} parent=0 // pred_region
    _
  $region17: #{frbnet_forward.29} parent=0 // pred_fallthru
    _
  %v17 = vld [vmem:[%s0] sm:$0xff]
  %v18 = vld [vmem:[%s1] sm:$0xff]
  %v19 = vld [vmem:[%s1 + $0x8] sm:$0xff]
  %v20 = vld [vmem:[%s1 + $0x10] sm:$0xff]
  %v21 = vld [vmem:[%s1 + $0x18] sm:$0xff]
  %v22 = vld [vmem:[%s1 + $0x20] sm:$0xff]
  %v23 = vld [vmem:[%s1 + $0x28] sm:$0xff]
  %v24 = vld [vmem:[%s1 + $0x30] sm:$0xff]
  %v25 = vld [vmem:[%s1 + $0x38] sm:$0xff]
  %v26 = vld [vmem:[%s1 + $0x40] sm:$0xff]
  %v27 = vld [vmem:[%s1 + $0x48] sm:$0xff]
  %v28 = vld [vmem:[%s1 + $0x50] sm:$0xff]
  %v29 = vld [vmem:[%s1 + $0x58] sm:$0xff]
  %v30 = vld [vmem:[%s1 + $0x60] sm:$0xff]
  %v31 = vld [vmem:[%s1 + $0x68] sm:$0xff]
  %v32 = vld [vmem:[%s1 + $0x70] sm:$0xff]
  %v33 = vld [vmem:[%s1 + $0x78] sm:$0xff]
  %v34 = vld [vmem:[%s1 + $0x80] sm:$0xff]
  %v35 = vld [vmem:[%s1 + $0x88] sm:$0xff]
  %v36 = vld [vmem:[%s1 + $0x90] sm:$0xff]
  %v37 = vld [vmem:[%s1 + $0x98] sm:$0xff]
  %v38 = vld [vmem:[%s1 + $0xa0] sm:$0xff]
  %v39 = vld [vmem:[%s1 + $0xa8] sm:$0xff]
  %v40 = vld [vmem:[%s1 + $0xb0] sm:$0xff]
  %v41 = vld [vmem:[%s1 + $0xb8] sm:$0xff]
  %v42 = vld [vmem:[%s1 + $0xc0] sm:$0xff]
  %v43 = vld [vmem:[%s1 + $0xc8] sm:$0xff]
  %v44 = vld [vmem:[%s1 + $0xd0] sm:$0xff]
  %v45 = vld [vmem:[%s1 + $0xd8] sm:$0xff]
  %v46 = vld [vmem:[%s1 + $0xe0] sm:$0xff]
  %v47 = vld [vmem:[%s1 + $0xe8] sm:$0xff]
  %v48 = vld [vmem:[%s1 + $0xf0] sm:$0xff]
  %v49 = vld [vmem:[%s1 + $0xf8] sm:$0xff]
  %50 = vmatprep.subr.mxu0 %v49
  %51 = vmatpush1.msra.mxu0 %v48
  %52 = vmatprep.subr.mxu0 %v47
  %53 = vmatpush1.msra.mxu0 %v46
  %54 = vmatprep.subr.mxu0 %v45
  %55 = vmatpush1.msra.mxu0 %v44
  %56 = vmatprep.subr.mxu0 %v43
  %57 = vmatpush1.msra.mxu0 %v42
  %58 = vmatprep.subr.mxu0 %v41
  %59 = vmatpush1.msra.mxu0 %v40
  %60 = vmatprep.subr.mxu0 %v39
  %61 = vmatpush1.msra.mxu0 %v38
  %62 = vmatprep.subr.mxu0 %v37
  %63 = vmatpush1.msra.mxu0 %v36
  %64 = vmatprep.subr.mxu0 %v35
  %65 = vmatpush1.msra.mxu0 %v34
  %66 = vmatprep.subr.mxu0 %v33
  %67 = vmatpush1.msra.mxu0 %v32
  %68 = vmatprep.subr.mxu0 %v31
  %69 = vmatpush1.msra.mxu0 %v30
  %70 = vmatprep.subr.mxu0 %v29
  %71 = vmatpush1.msra.mxu0 %v28
  %72 = vmatprep.subr.mxu0 %v27
  %73 = vmatpush1.msra.mxu0 %v26
  %74 = vmatprep.subr.mxu0 %v25
  %75 = vmatpush1.msra.mxu0 %v24
  %76 = vmatprep.subr.mxu0 %v23
  %77 = vmatpush1.msra.mxu0 %v22
  %78 = vmatprep.subr.mxu0 %v21
  %79 = vmatpush1.msra.mxu0 %v20
  %80 = vmatprep.subr.mxu0 %v19
  %81 = vmatpush1.msra.mxu0 %v18
  %82 = vmatprep.subr.mxu0 0.0
  %83 = vmatpush2.msra.mxu0 0.0
  %84 = vmatprep.subr.mxu0 0.0
  %85 = vmatpush2.msra.mxu0 0.0
  %86 = vmatprep.subr.mxu0 0.0
  %87 = vmatpush2.msra.mxu0 0.0
  %88 = vmatprep.subr.mxu0 0.0
  %89 = vmatpush2.msra.mxu0 0.0
  %90 = vmatprep.subr.mxu0 0.0
  %91 = vmatpush2.msra.mxu0 0.0
  %92 = vmatprep.subr.mxu0 0.0
  %93 = vmatpush2.msra.mxu0 0.0
  %94 = vmatprep.subr.mxu0 0.0
  %95 = vmatpush2.msra.mxu0 0.0
  %96 = vmatprep.subr.mxu0 0.0
  %97 = vmatpush2.msra.mxu0 0.0
  %98 = vmatprep.subr.mxu0 0.0
  %99 = vmatpush2.msra.mxu0 0.0
  %100 = vmatprep.subr.mxu0 0.0
  %101 = vmatpush2.msra.mxu0 0.0
  %102 = vmatprep.subr.mxu0 0.0
  %103 = vmatpush2.msra.mxu0 0.0
  %104 = vmatprep.subr.mxu0 0.0
  %105 = vmatpush2.msra.mxu0 0.0
  %106 = vmatprep.subr.mxu0 0.0
  %107 = vmatpush2.msra.mxu0 0.0
  %108 = vmatprep.subr.mxu0 0.0
  %109 = vmatpush2.msra.mxu0 0.0
  %110 = vmatprep.subr.mxu0 0.0
  %111 = vmatpush2.msra.mxu0 0.0
  %112 = vmatprep.subr.mxu0 0.0
  %113 = vmatpush2.msra.mxu0 0.0
  %114 = vmatprep.mubr.f32.mxu0 0.0
  %115 = vmatmul.mubr.f32.gmra.mxu0 %v17
  %v116 = vpop.f32.mrf.mxu0
  %v117 = vadd.f32 0.0, %v116
  %v118 = vpop.f32.mrf.mxu0
  %v119 = vadd.f32 0.0, %v118
  %120 = vdwg.mxu0
  %v121 = vld [vmem:[%s2] sm:$0x3]
  %v123 = vlaneseq
  %v124 = vshrl.u32 %v123, 7
  %v125 = vsub.s32 0, %v124
  %v126 = vrot.slane %v121, %v125
  %v127 = vlaneseq
  %v128 = vshrl.u32 %v127, 7
  %v129 = vsub.s32 1, %v128
  %v130 = vrot.slane %v121, %v129
  %v133 = vmul.f32 %v117, %v126
  %v134 = vmul.f32 %v119, %v130
  %v135 = vld [vmem:[%s3] sm:$0x3]
  %v137 = vlaneseq
  %v138 = vshrl.u32 %v137, 7
  %v139 = vsub.s32 0, %v138
  %v140 = vrot.slane %v135, %v139
  %v141 = vlaneseq
  %v142 = vshrl.u32 %v141, 7
  %v143 = vsub.s32 1, %v142
  %v144 = vrot.slane %v135, %v143
  %v147 = vadd.f32 %v133, %v140
  %v148 = vadd.f32 %v134, %v144
  %149 = vst [vmem:[%s4] sm:$0xff] %v147
  %150 = vst [vmem:[%s4 + $0x8] sm:$0xff] %v148
  // Predicated region
  $region18: #{frbnet_forward.29} parent=0 // pred_check
    _
  $region19: #{frbnet_forward.29} parent=0 // pred_check_branch
    %152 = sbr.rel (0) target = $region21
  $region20: #{frbnet_forward.29} parent=0 // pred_region
    _
  $region21: #{frbnet_forward.29} parent=0 // pred_fallthru
    _
  // Predicated region
  $region22: #{frbnet_forward.29} parent=0 // pred_check
    _
  $region23: #{frbnet_forward.29} parent=0 // pred_check_branch
    %154 = sbr.rel (0) target = $region25
  $region24: #{frbnet_forward.29} parent=0 // pred_region
    _
  $region25: #{frbnet_forward.29} parent=0 // pred_fallthru
    _

// kernel: frbnet_forward.32
$region0: #{frbnet_forward.32}
  #allocation0 [shape = 'u32[]', space=smem, size = 0x4, offset = 0x4, fixed_abs, tag = 'smem constant byte address 0x4 - core index']
  #allocation1 [shape = 'u32[144,128]{1,0:T(1,128)}', space=vmem, size = 0x12000, scoped, tag = 'internal scratch']
  %s0 = inlined_call_operand.vmem [shape: f32[8,128], index: 0, kind: input, shape index: {}]
  %s1 = inlined_call_operand.vmem [shape: f32[128,256], index: 1, kind: input, shape index: {}]
  %s2 = inlined_call_operand.vmem [shape: f32[1,256], index: 2, kind: input, shape index: {}]
  %s3 = inlined_call_operand.vmem [shape: f32[1,256], index: 3, kind: input, shape index: {}]
  %s4 = inlined_call_operand.vmem [shape: f32[8,256], index: 4, kind: input, shape index: {}]
  %s5 = inlined_call_operand.vmem [shape: f32[8,256], index: 5, kind: output, shape index: {}]
  %s6 = sld [smem:[#allocation0]]
  $region30: #{frbnet_forward.32} parent=0
    _
  %s8 = ssub.s32 1, %s6
  %s9 = scalar_select 0, %s8, %s6
  // Predicated region
  $region2: #{frbnet_forward.32} parent=0 // pred_check
    _
  $region3: #{frbnet_forward.32} parent=0 // pred_check_branch
    %11 = sbr.rel (0) target = $region5
  $region4: #{frbnet_forward.32} parent=0 // pred_region
    _
  $region5: #{frbnet_forward.32} parent=0 // pred_fallthru
    _
  // Predicated region
  $region6: #{frbnet_forward.32} parent=0 // pred_check
    _
  $region7: #{frbnet_forward.32} parent=0 // pred_check_branch
    %13 = sbr.rel (0) target = $region9
  $region8: #{frbnet_forward.32} parent=0 // pred_region
    _
  $region9: #{frbnet_forward.32} parent=0 // pred_fallthru
    _
  // Predicated region
  $region10: #{frbnet_forward.32} parent=0 // pred_check
    _
  $region11: #{frbnet_forward.32} parent=0 // pred_check_branch
    %15 = sbr.rel (0) target = $region13
  $region12: #{frbnet_forward.32} parent=0 // pred_region
    _
  $region13: #{frbnet_forward.32} parent=0 // pred_fallthru
    _
  // Predicated region
  $region14: #{frbnet_forward.32} parent=0 // pred_check
    _
  $region15: #{frbnet_forward.32} parent=0 // pred_check_branch
    %17 = sbr.rel (0) target = $region17
  $region16: #{frbnet_forward.32} parent=0 // pred_region
    _
  $region17: #{frbnet_forward.32} parent=0 // pred_fallthru
    _
  // Predicated region
  $region18: #{frbnet_forward.32} parent=0 // pred_check
    _
  $region19: #{frbnet_forward.32} parent=0 // pred_check_branch
    %19 = sbr.rel (0) target = $region21
  $region20: #{frbnet_forward.32} parent=0 // pred_region
    _
  $region21: #{frbnet_forward.32} parent=0 // pred_fallthru
    _
  %v20 = vld [vmem:[%s0] sm:$0xff]
  %v21 = vld [vmem:[%s1] sm:$0xff]
  %v22 = vld [vmem:[%s1 + $0x8] sm:$0xff]
  %v23 = vld [vmem:[%s1 + $0x10] sm:$0xff]
  %v24 = vld [vmem:[%s1 + $0x18] sm:$0xff]
  %v25 = vld [vmem:[%s1 + $0x20] sm:$0xff]
  %v26 = vld [vmem:[%s1 + $0x28] sm:$0xff]
  %v27 = vld [vmem:[%s1 + $0x30] sm:$0xff]
  %v28 = vld [vmem:[%s1 + $0x38] sm:$0xff]
  %v29 = vld [vmem:[%s1 + $0x40] sm:$0xff]
  %v30 = vld [vmem:[%s1 + $0x48] sm:$0xff]
  %v31 = vld [vmem:[%s1 + $0x50] sm:$0xff]
  %v32 = vld [vmem:[%s1 + $0x58] sm:$0xff]
  %v33 = vld [vmem:[%s1 + $0x60] sm:$0xff]
  %v34 = vld [vmem:[%s1 + $0x68] sm:$0xff]
  %v35 = vld [vmem:[%s1 + $0x70] sm:$0xff]
  %v36 = vld [vmem:[%s1 + $0x78] sm:$0xff]
  %v37 = vld [vmem:[%s1 + $0x80] sm:$0xff]
  %v38 = vld [vmem:[%s1 + $0x88] sm:$0xff]
  %v39 = vld [vmem:[%s1 + $0x90] sm:$0xff]
  %v40 = vld [vmem:[%s1 + $0x98] sm:$0xff]
  %v41 = vld [vmem:[%s1 + $0xa0] sm:$0xff]
  %v42 = vld [vmem:[%s1 + $0xa8] sm:$0xff]
  %v43 = vld [vmem:[%s1 + $0xb0] sm:$0xff]
  %v44 = vld [vmem:[%s1 + $0xb8] sm:$0xff]
  %v45 = vld [vmem:[%s1 + $0xc0] sm:$0xff]
  %v46 = vld [vmem:[%s1 + $0xc8] sm:$0xff]
  %v47 = vld [vmem:[%s1 + $0xd0] sm:$0xff]
  %v48 = vld [vmem:[%s1 + $0xd8] sm:$0xff]
  %v49 = vld [vmem:[%s1 + $0xe0] sm:$0xff]
  %v50 = vld [vmem:[%s1 + $0xe8] sm:$0xff]
  %v51 = vld [vmem:[%s1 + $0xf0] sm:$0xff]
  %v52 = vld [vmem:[%s1 + $0xf8] sm:$0xff]
  %53 = vmatprep.subr.mxu0 %v52
  %54 = vmatpush1.msra.mxu0 %v51
  %55 = vmatprep.subr.mxu0 %v50
  %56 = vmatpush1.msra.mxu0 %v49
  %57 = vmatprep.subr.mxu0 %v48
  %58 = vmatpush1.msra.mxu0 %v47
  %59 = vmatprep.subr.mxu0 %v46
  %60 = vmatpush1.msra.mxu0 %v45
  %61 = vmatprep.subr.mxu0 %v44
  %62 = vmatpush1.msra.mxu0 %v43
  %63 = vmatprep.subr.mxu0 %v42
  %64 = vmatpush1.msra.mxu0 %v41
  %65 = vmatprep.subr.mxu0 %v40
  %66 = vmatpush1.msra.mxu0 %v39
  %67 = vmatprep.subr.mxu0 %v38
  %68 = vmatpush1.msra.mxu0 %v37
  %69 = vmatprep.subr.mxu0 %v36
  %70 = vmatpush1.msra.mxu0 %v35
  %71 = vmatprep.subr.mxu0 %v34
  %72 = vmatpush1.msra.mxu0 %v33
  %73 = vmatprep.subr.mxu0 %v32
  %74 = vmatpush1.msra.mxu0 %v31
  %75 = vmatprep.subr.mxu0 %v30
  %76 = vmatpush1.msra.mxu0 %v29
  %77 = vmatprep.subr.mxu0 %v28
  %78 = vmatpush1.msra.mxu0 %v27
  %79 = vmatprep.subr.mxu0 %v26
  %80 = vmatpush1.msra.mxu0 %v25
  %81 = vmatprep.subr.mxu0 %v24
  %82 = vmatpush1.msra.mxu0 %v23
  %83 = vmatprep.subr.mxu0 %v22
  %84 = vmatpush1.msra.mxu0 %v21
  %85 = vmatprep.subr.mxu0 0.0
  %86 = vmatpush2.msra.mxu0 0.0
  %87 = vmatprep.subr.mxu0 0.0
  %88 = vmatpush2.msra.mxu0 0.0
  %89 = vmatprep.subr.mxu0 0.0
  %90 = vmatpush2.msra.mxu0 0.0
  %91 = vmatprep.subr.mxu0 0.0
  %92 = vmatpush2.msra.mxu0 0.0
  %93 = vmatprep.subr.mxu0 0.0
  %94 = vmatpush2.msra.mxu0 0.0
  %95 = vmatprep.subr.mxu0 0.0
  %96 = vmatpush2.msra.mxu0 0.0
  %97 = vmatprep.subr.mxu0 0.0
  %98 = vmatpush2.msra.mxu0 0.0
  %99 = vmatprep.subr.mxu0 0.0
  %100 = vmatpush2.msra.mxu0 0.0
  %101 = vmatprep.subr.mxu0 0.0
  %102 = vmatpush2.msra.mxu0 0.0
  %103 = vmatprep.subr.mxu0 0.0
  %104 = vmatpush2.msra.mxu0 0.0
  %105 = vmatprep.subr.mxu0 0.0
  %106 = vmatpush2.msra.mxu0 0.0
  %107 = vmatprep.subr.mxu0 0.0
  %108 = vmatpush2.msra.mxu0 0.0
  %109 = vmatprep.subr.mxu0 0.0
  %110 = vmatpush2.msra.mxu0 0.0
  %111 = vmatprep.subr.mxu0 0.0
  %112 = vmatpush2.msra.mxu0 0.0
  %113 = vmatprep.subr.mxu0 0.0
  %114 = vmatpush2.msra.mxu0 0.0
  %115 = vmatprep.subr.mxu0 0.0
  %116 = vmatpush2.msra.mxu0 0.0
  %117 = vmatprep.mubr.f32.mxu0 0.0
  %118 = vmatmul.mubr.f32.gmra.mxu0 %v20
  %v119 = vpop.f32.mrf.mxu0
  %v120 = vadd.f32 0.0, %v119
  %v121 = vpop.f32.mrf.mxu0
  %v122 = vadd.f32 0.0, %v121
  %123 = vdwg.mxu0
  %v124 = vld [vmem:[%s2] sm:$0x3]
  %v126 = vlaneseq
  %v127 = vshrl.u32 %v126, 7
  %v128 = vsub.s32 0, %v127
  %v129 = vrot.slane %v124, %v128
  %v130 = vlaneseq
  %v131 = vshrl.u32 %v130, 7
  %v132 = vsub.s32 1, %v131
  %v133 = vrot.slane %v124, %v132
  %v136 = vmul.f32 %v120, %v129
  %v137 = vmul.f32 %v122, %v133
  %v138 = vld [vmem:[%s3] sm:$0x3]
  %v140 = vlaneseq
  %v141 = vshrl.u32 %v140, 7
  %v142 = vsub.s32 0, %v141
  %v143 = vrot.slane %v138, %v142
  %v144 = vlaneseq
  %v145 = vshrl.u32 %v144, 7
  %v146 = vsub.s32 1, %v145
  %v147 = vrot.slane %v138, %v146
  %v150 = vadd.f32 %v136, %v143
  %v151 = vadd.f32 %v137, %v147
  %v152 = vld [vmem:[%s4] sm:$0xff]
  %v153 = vld [vmem:[%s4 + $0x8] sm:$0xff]
  %v154 = vadd.f32 %v150, %v152
  %v155 = vadd.f32 %v151, %v153
  %v156 = vmax.f32 %v154, 0.0
  %v157 = vmax.f32 %v155, 0.0
  %158 = vst [vmem:[%s5] sm:$0xff] %v156
  %159 = vst [vmem:[%s5 + $0x8] sm:$0xff] %v157
  // Predicated region
  $region22: #{frbnet_forward.32} parent=0 // pred_check
    _
  $region23: #{frbnet_forward.32} parent=0 // pred_check_branch
    %161 = sbr.rel (0) target = $region25
  $region24: #{frbnet_forward.32} parent=0 // pred_region
    _
  $region25: #{frbnet_forward.32} parent=0 // pred_fallthru
    _
  // Predicated region
  $region26: #{frbnet_forward.32} parent=0 // pred_check
    _
  $region27: #{frbnet_forward.32} parent=0 // pred_check_branch
    %163 = sbr.rel (0) target = $region29
  $region28: #{frbnet_forward.32} parent=0 // pred_region
    _
  $region29: #{frbnet_forward.32} parent=0 // pred_fallthru
    _

// kernel: frbnet_forward.33
$region0: #{frbnet_forward.33}
  #allocation0 [shape = 'u32[]', space=smem, size = 0x4, offset = 0x4, fixed_abs, tag = 'smem constant byte address 0x4 - core index']
  #allocation1 [shape = 'u32[144,128]{1,0:T(1,128)}', space=vmem, size = 0x12000, scoped, tag = 'internal scratch']
  %s0 = inlined_call_operand.vmem [shape: f32[8,256], index: 0, kind: input, shape index: {}]
  %s1 = inlined_call_operand.vmem [shape: f32[256,4], index: 1, kind: input, shape index: {}]
  %s2 = inlined_call_operand.vmem [shape: f32[1,4], index: 2, kind: input, shape index: {}]
  %s3 = inlined_call_operand.vmem [shape: f32[1,4], index: 3, kind: input, shape index: {}]
  %s4 = inlined_call_operand.vmem [shape: f32[2,8], index: 4, kind: input, shape index: {}]
  %s5 = inlined_call_operand.hbm [shape: f32[2,4], index: 5, kind: output, shape index: {}]
  %s6 = sld [smem:[#allocation0]]
  $region30: #{frbnet_forward.33} parent=0
    _
  %s8 = ssub.s32 1, %s6
  %s9 = scalar_select 0, %s8, %s6
  $region1: #{frbnet_forward.33} parent=0
    #allocation2 [shape = 'u8[1024]{0}', space=vmem, size = 0x400, scoped, tag = 'output window, operand 0, single buffered']
    #allocation3 [shape = 's32[1]{0}', space=sflag, size = 0x4, scoped, tag = 'scoped memory for frbnet_forward.33']
    %10 = vsyncpa [#allocation3], 0
    // Predicated region
    $region2: #{frbnet_forward.33} parent=1 // pred_check
      _
    $region3: #{frbnet_forward.33} parent=1 // pred_check_branch
      %12 = sbr.rel (0) target = $region5
    $region4: #{frbnet_forward.33} parent=1 // pred_region
      _
    $region5: #{frbnet_forward.33} parent=1 // pred_fallthru
      _
    // Predicated region
    $region6: #{frbnet_forward.33} parent=1 // pred_check
      _
    $region7: #{frbnet_forward.33} parent=1 // pred_check_branch
      %14 = sbr.rel (0) target = $region9
    $region8: #{frbnet_forward.33} parent=1 // pred_region
      _
    $region9: #{frbnet_forward.33} parent=1 // pred_fallthru
      _
    // Predicated region
    $region10: #{frbnet_forward.33} parent=1 // pred_check
      _
    $region11: #{frbnet_forward.33} parent=1 // pred_check_branch
      %16 = sbr.rel (0) target = $region13
    $region12: #{frbnet_forward.33} parent=1 // pred_region
      _
    $region13: #{frbnet_forward.33} parent=1 // pred_fallthru
      _
    // Predicated region
    $region14: #{frbnet_forward.33} parent=1 // pred_check
      _
    $region15: #{frbnet_forward.33} parent=1 // pred_check_branch
      %18 = sbr.rel (0) target = $region17
    $region16: #{frbnet_forward.33} parent=1 // pred_region
      _
    $region17: #{frbnet_forward.33} parent=1 // pred_fallthru
      _
    // Predicated region
    $region18: #{frbnet_forward.33} parent=1 // pred_check
      _
    $region19: #{frbnet_forward.33} parent=1 // pred_check_branch
      %20 = sbr.rel (0) target = $region21
    $region20: #{frbnet_forward.33} parent=1 // pred_region
      _
    $region21: #{frbnet_forward.33} parent=1 // pred_fallthru
      _
    %v21 = vld [vmem:[%s0] sm:$0xff]
    %v22 = vld [vmem:[%s0 + $0x8] sm:$0xff]
    %v23 = vld [vmem:[%s1] sm:$0xff]
    %v24 = vld [vmem:[%s1 + $0x8] sm:$0xff]
    %v25 = vld [vmem:[%s1 + $0x10] sm:$0xff]
    %v26 = vld [vmem:[%s1 + $0x18] sm:$0xff]
    %v27 = vld [vmem:[%s1 + $0x20] sm:$0xff]
    %v28 = vld [vmem:[%s1 + $0x28] sm:$0xff]
    %v29 = vld [vmem:[%s1 + $0x30] sm:$0xff]
    %v30 = vld [vmem:[%s1 + $0x38] sm:$0xff]
    %v31 = vld [vmem:[%s1 + $0x40] sm:$0xff]
    %v32 = vld [vmem:[%s1 + $0x48] sm:$0xff]
    %v33 = vld [vmem:[%s1 + $0x50] sm:$0xff]
    %v34 = vld [vmem:[%s1 + $0x58] sm:$0xff]
    %v35 = vld [vmem:[%s1 + $0x60] sm:$0xff]
    %v36 = vld [vmem:[%s1 + $0x68] sm:$0xff]
    %v37 = vld [vmem:[%s1 + $0x70] sm:$0xff]
    %v38 = vld [vmem:[%s1 + $0x78] sm:$0xff]
    %v39 = vld [vmem:[%s1 + $0x80] sm:$0xff]
    %v40 = vld [vmem:[%s1 + $0x88] sm:$0xff]
    %v41 = vld [vmem:[%s1 + $0x90] sm:$0xff]
    %v42 = vld [vmem:[%s1 + $0x98] sm:$0xff]
    %v43 = vld [vmem:[%s1 + $0xa0] sm:$0xff]
    %v44 = vld [vmem:[%s1 + $0xa8] sm:$0xff]
    %v45 = vld [vmem:[%s1 + $0xb0] sm:$0xff]
    %v46 = vld [vmem:[%s1 + $0xb8] sm:$0xff]
    %v47 = vld [vmem:[%s1 + $0xc0] sm:$0xff]
    %v48 = vld [vmem:[%s1 + $0xc8] sm:$0xff]
    %v49 = vld [vmem:[%s1 + $0xd0] sm:$0xff]
    %v50 = vld [vmem:[%s1 + $0xd8] sm:$0xff]
    %v51 = vld [vmem:[%s1 + $0xe0] sm:$0xff]
    %v52 = vld [vmem:[%s1 + $0xe8] sm:$0xff]
    %v53 = vld [vmem:[%s1 + $0xf0] sm:$0xff]
    %v54 = vld [vmem:[%s1 + $0xf8] sm:$0xff]
    %55 = vmatprep.subr.mxu0 0.0
    %56 = vmatpush1.msra.mxu0 %v38
    %57 = vmatprep.subr.mxu0 0.0
    %58 = vmatpush1.msra.mxu0 %v37
    %59 = vmatprep.subr.mxu0 0.0
    %60 = vmatpush1.msra.mxu0 %v36
    %61 = vmatprep.subr.mxu0 0.0
    %62 = vmatpush1.msra.mxu0 %v35
    %63 = vmatprep.subr.mxu0 0.0
    %64 = vmatpush1.msra.mxu0 %v34
    %65 = vmatprep.subr.mxu0 0.0
    %66 = vmatpush1.msra.mxu0 %v33
    %67 = vmatprep.subr.mxu0 0.0
    %68 = vmatpush1.msra.mxu0 %v32
    %69 = vmatprep.subr.mxu0 0.0
    %70 = vmatpush1.msra.mxu0 %v31
    %71 = vmatprep.subr.mxu0 0.0
    %72 = vmatpush1.msra.mxu0 %v30
    %73 = vmatprep.subr.mxu0 0.0
    %74 = vmatpush1.msra.mxu0 %v29
    %75 = vmatprep.subr.mxu0 0.0
    %76 = vmatpush1.msra.mxu0 %v28
    %77 = vmatprep.subr.mxu0 0.0
    %78 = vmatpush1.msra.mxu0 %v27
    %79 = vmatprep.subr.mxu0 0.0
    %80 = vmatpush1.msra.mxu0 %v26
    %81 = vmatprep.subr.mxu0 0.0
    %82 = vmatpush1.msra.mxu0 %v25
    %83 = vmatprep.subr.mxu0 0.0
    %84 = vmatpush1.msra.mxu0 %v24
    %85 = vmatprep.subr.mxu0 0.0
    %86 = vmatpush1.msra.mxu0 %v23
    %87 = vmatprep.subr.mxu0 0.0
    %88 = vmatpush2.msra.mxu0 %v54
    %89 = vmatprep.subr.mxu0 0.0
    %90 = vmatpush2.msra.mxu0 %v53
    %91 = vmatprep.subr.mxu0 0.0
    %92 = vmatpush2.msra.mxu0 %v52
    %93 = vmatprep.subr.mxu0 0.0
    %94 = vmatpush2.msra.mxu0 %v51
    %95 = vmatprep.subr.mxu0 0.0
    %96 = vmatpush2.msra.mxu0 %v50
    %97 = vmatprep.subr.mxu0 0.0
    %98 = vmatpush2.msra.mxu0 %v49
    %99 = vmatprep.subr.mxu0 0.0
    %100 = vmatpush2.msra.mxu0 %v48
    %101 = vmatprep.subr.mxu0 0.0
    %102 = vmatpush2.msra.mxu0 %v47
    %103 = vmatprep.subr.mxu0 0.0
    %104 = vmatpush2.msra.mxu0 %v46
    %105 = vmatprep.subr.mxu0 0.0
    %106 = vmatpush2.msra.mxu0 %v45
    %107 = vmatprep.subr.mxu0 0.0
    %108 = vmatpush2.msra.mxu0 %v44
    %109 = vmatprep.subr.mxu0 0.0
    %110 = vmatpush2.msra.mxu0 %v43
    %111 = vmatprep.subr.mxu0 0.0
    %112 = vmatpush2.msra.mxu0 %v42
    %113 = vmatprep.subr.mxu0 0.0
    %114 = vmatpush2.msra.mxu0 %v41
    %115 = vmatprep.subr.mxu0 0.0
    %116 = vmatpush2.msra.mxu0 %v40
    %117 = vmatprep.subr.mxu0 0.0
    %118 = vmatpush2.msra.mxu0 %v39
    %119 = vmatprep.mubr.f32.mxu0 %v22
    %120 = vmatmul.mubr.f32.gmra.mxu0 %v21
    %v121 = vpop.f32.mrf.mxu0
    %v122 = vadd.f32 0.0, %v121
    %v123 = vpop.f32.mrf.mxu0
    %124 = vdwg.mxu0
    %v125 = vld [vmem:[%s2] sm:$0x1]
    %v127 = vlaneseq
    %v128 = vshrl.u32 %v127, 7
    %v129 = vsub.s32 0, %v128
    %v130 = vrot.slane %v125, %v129
    %v132 = vmul.f32 %v122, %v130
    %v133 = vld [vmem:[%s3] sm:$0x1]
    %v135 = vlaneseq
    %v136 = vshrl.u32 %v135, 7
    %v137 = vsub.s32 0, %v136
    %v138 = vrot.slane %v133, %v137
    %v140 = vadd.f32 %v132, %v138
    %v141 = vmax.f32 %v140, 0.0
    %v142 = vld [vmem:[%s4] sm:$0x3]
    %vm143 = vcmask 64512
    %v145 = vsel %vm143, %v142, 0
    %147 = vmatprep.subr.mxu0 0.0
    %148 = vmatpush1.msra.mxu0 0.0
    %149 = vmatprep.subr.mxu0 0.0
    %150 = vmatpush1.msra.mxu0 0.0
    %151 = vmatprep.subr.mxu0 0.0
    %152 = vmatpush1.msra.mxu0 0.0
    %153 = vmatprep.subr.mxu0 0.0
    %154 = vmatpush1.msra.mxu0 0.0
    %155 = vmatprep.subr.mxu0 0.0
    %156 = vmatpush1.msra.mxu0 0.0
    %157 = vmatprep.subr.mxu0 0.0
    %158 = vmatpush1.msra.mxu0 0.0
    %159 = vmatprep.subr.mxu0 0.0
    %160 = vmatpush1.msra.mxu0 0.0
    %161 = vmatprep.subr.mxu0 0.0
    %162 = vmatpush1.msra.mxu0 0.0
    %163 = vmatprep.subr.mxu0 0.0
    %164 = vmatpush1.msra.mxu0 0.0
    %165 = vmatprep.subr.mxu0 0.0
    %166 = vmatpush1.msra.mxu0 0.0
    %167 = vmatprep.subr.mxu0 0.0
    %168 = vmatpush1.msra.mxu0 0.0
    %169 = vmatprep.subr.mxu0 0.0
    %170 = vmatpush1.msra.mxu0 0.0
    %171 = vmatprep.subr.mxu0 0.0
    %172 = vmatpush1.msra.mxu0 0.0
    %173 = vmatprep.subr.mxu0 0.0
    %174 = vmatpush1.msra.mxu0 0.0
    %175 = vmatprep.subr.mxu0 0.0
    %176 = vmatpush1.msra.mxu0 0.0
    %177 = vmatprep.subr.mxu0 0.0
    %178 = vmatpush1.msra.mxu0 %v141
    %179 = vmatprep.subr.mxu0 0.0
    %180 = vmatpush2.msra.mxu0 0.0
    %181 = vmatprep.subr.mxu0 0.0
    %182 = vmatpush2.msra.mxu0 0.0
    %183 = vmatprep.subr.mxu0 0.0
    %184 = vmatpush2.msra.mxu0 0.0
    %185 = vmatprep.subr.mxu0 0.0
    %186 = vmatpush2.msra.mxu0 0.0
    %187 = vmatprep.subr.mxu0 0.0
    %188 = vmatpush2.msra.mxu0 0.0
    %189 = vmatprep.subr.mxu0 0.0
    %190 = vmatpush2.msra.mxu0 0.0
    %191 = vmatprep.subr.mxu0 0.0
    %192 = vmatpush2.msra.mxu0 0.0
    %193 = vmatprep.subr.mxu0 0.0
    %194 = vmatpush2.msra.mxu0 0.0
    %195 = vmatprep.subr.mxu0 0.0
    %196 = vmatpush2.msra.mxu0 0.0
    %197 = vmatprep.subr.mxu0 0.0
    %198 = vmatpush2.msra.mxu0 0.0
    %199 = vmatprep.subr.mxu0 0.0
    %200 = vmatpush2.msra.mxu0 0.0
    %201 = vmatprep.subr.mxu0 0.0
    %202 = vmatpush2.msra.mxu0 0.0
    %203 = vmatprep.subr.mxu0 0.0
    %204 = vmatpush2.msra.mxu0 0.0
    %205 = vmatprep.subr.mxu0 0.0
    %206 = vmatpush2.msra.mxu0 0.0
    %207 = vmatprep.subr.mxu0 0.0
    %208 = vmatpush2.msra.mxu0 0.0
    %209 = vmatprep.subr.mxu0 0.0
    %210 = vmatpush2.msra.mxu0 0.0
    %211 = vmatprep.mubr.f32.mxu0 0.0
    %212 = vmatmul.mubr.f32.gmra.mxu0 %v145
    %v213 = vpop.f32.mrf.mxu0
    %v214 = vadd.f32 0.0, %v213
    %v215 = vpop.f32.mrf.mxu0
    %216 = vdwg.mxu0
    %v217 = vmax.f32 %v214, 0.0
    %vm218 = vcmask 25600
    %219 = vst.msk [vmem:[#allocation2] sm:$0x3] %vm218, %v217
    // Predicated region
    $region22: #{frbnet_forward.33} parent=1 // pred_check
      _
    $region23: #{frbnet_forward.33} parent=1 // pred_check_branch
      %221 = sbr.rel (0) target = $region25
    $region24: #{frbnet_forward.33} parent=1 // pred_region
      %s223 = ssub.s32 32, 32
      %224 = vsyncadd [#allocation3], %s223
      %s226 = sshll.u32 [#allocation2], 4
      %s227 = int_to_ptr.vmem [resolvable:$true] %s226
      %229 = dma.vmem_to_hbm [thread:$0]  %s227, 32, %s5, [#allocation3]
    $region25: #{frbnet_forward.33} parent=1 // pred_fallthru
      _
    // Predicated region
    $region26: #{frbnet_forward.33} parent=1 // pred_check
      _
    $region27: #{frbnet_forward.33} parent=1 // pred_check_branch
      %231 = sbr.rel (0) target = $region29
    $region28: #{frbnet_forward.33} parent=1 // pred_region
      %232 = dma.done [#allocation3], 32
    $region29: #{frbnet_forward.33} parent=1 // pred_fallthru
      _
    %233 = vsyncpa [#allocation3], 1

</llo_original>
